<compile_context>
chip_gen: v7x
topology: tpu7x:2x2x1
jax: 0.10.0
libtpu: 0.0.40
codegen_flags: <defaults>
</compile_context>

<pallas_src>
import jax
import jax.numpy as jnp
import numpy as np
from jax import lax
from jax.experimental import pallas as pl
from jax.experimental.pallas import tpu as pltpu

LEAKY_SLOPE = 0.1

# ---- model config (small stand-ins for 1024 channels / 4096 hidden) ----
N_BATCH = 2
IN_CH = 8          # synthetic backbone input channels
FEAT_CH = 32       # stand-in for darknet's 1024 channels
IMG = 28           # input spatial (features stride-2 -> 14, head stride-2 -> 7)
S_GRID = 7
N_BBOX = 2
N_CLS = 20
OUT_CELL = N_CLS + 5 * N_BBOX            # 30
OUT_DIM = S_GRID * S_GRID * OUT_CELL     # 1470
OUT_PAD = 1536                           # 1470 padded up to a multiple of 128
HID = 128          # stand-in for 4096

# derived spatial sizes / flat lane widths
H0, H1, H2 = IMG, IMG // 2, IMG // 4     # 28, 14, 7
L0 = H0 * IN_CH                          # 224 (unpadded input plane row)
P0 = (H0 + 2) * IN_CH                    # 240 (padded input plane row)
L1 = H1 * FEAT_CH                        # 448
P1 = (H1 + 2) * FEAT_CH                  # 512
L2 = H2 * FEAT_CH                        # 224
P2 = (H2 + 2) * FEAT_CH                  # 288
FC_IN = S_GRID * S_GRID * FEAT_CH        # 1568


# ---------------------------------------------------------------------------
# Fused Pallas kernel (whole network, one batch element per grid step)
# ---------------------------------------------------------------------------
def _conv_plane(src_ref, wb_ref, sb_ref, h_out, sel_ref=None):
    """One 3x3 conv + folded-BN affine + LeakyReLU as 3 plane-level matmuls.

    src_ref: (Hin+2, (Win+2)*Cin)  zero-padded input plane (flat W*C lanes)
    wb_ref : (3, (Win+2)*Cin, Wout*Cout)  banded weight matrix per kernel row dy
    sb_ref : (2, Wout*Cout)  row 0 = scale tiled over W, row 1 = bias tiled over W
    sel_ref: (3, Hout, Hin+2) 0/1 row-selection matrices (stride-2 layers) or None
    returns: (Hout, Wout*Cout) post-activation plane (value, kept in registers/VMEM)
    """
    n_out = wb_ref.shape[2]
    acc = jnp.zeros((h_out, n_out), jnp.float32)
    if sel_ref is not None:
        src = src_ref[...]                       # whole padded plane, loaded once
    for dy in range(3):
        if sel_ref is None:                      # stride 1: contiguous row window
            lhs = src_ref[dy:dy + h_out, :]
        else:                                    # stride 2: pick rows dy + 2*ho
            lhs = jnp.dot(sel_ref[dy], src, preferred_element_type=jnp.float32)
        acc = acc + jnp.dot(lhs, wb_ref[dy], preferred_element_type=jnp.float32)
    y = acc * sb_ref[0:1, :] + sb_ref[1:2, :]    # single hoisted broadcast
    return jnp.where(y > 0, y, LEAKY_SLOPE * y)  # LeakyReLU(0.1)


def _yolo_fused_kernel(x_ref,
                       wb0_ref, wb1_ref, wb2_ref, wb3_ref, wb4_ref,
                       sb0_ref, sb1_ref, sb2_ref, sb3_ref, sb4_ref,
                       sel0_ref, sel2_ref,
                       w1_ref, b1_ref, w2_ref, b2_ref,
                       out_ref,
                       p0, p1, p2, p3, p4):
    """Whole YOLOv1 forward for one image; all activations stay in VMEM."""
    # Zero the padded activation planes: their borders are the conv zero padding.
    p0[...] = jnp.zeros_like(p0)
    p1[...] = jnp.zeros_like(p1)
    p2[...] = jnp.zeros_like(p2)
    p3[...] = jnp.zeros_like(p3)
    p4[...] = jnp.zeros_like(p4)

    # Stage the input image into the interior of the first padded plane.
    p0[1:1 + H0, 0:L0] = x_ref[0]

    # features: Conv3x3 stride 2 (IN_CH -> FEAT_CH) + LeakyReLU
    y = _conv_plane(p0, wb0_ref, sb0_ref, H1, sel_ref=sel0_ref)   # (14, 448)
    p1[1:1 + H1, 0:L1] = y
    # conv_layers: 4 x [Conv3x3 + BN(eval, folded) + LeakyReLU], 2nd conv stride 2
    y = _conv_plane(p1, wb1_ref, sb1_ref, H1)                     # (14, 448)
    p2[1:1 + H1, 0:L1] = y
    y = _conv_plane(p2, wb2_ref, sb2_ref, H2, sel_ref=sel2_ref)   # (7, 224)
    p3[1:1 + H2, 0:L2] = y
    y = _conv_plane(p3, wb3_ref, sb3_ref, H2)                     # (7, 224)
    p4[1:1 + H2, 0:L2] = y
    y = _conv_plane(p4, wb4_ref, sb4_ref, H2)                     # (7, 224) = NHWC flatten rows

    # fc1: Linear(1568 -> HID) as 7 row-chunks of the NHWC flatten, + LeakyReLU
    h = jnp.zeros((1, HID), jnp.float32)
    for ho in range(S_GRID):
        h = h + jnp.dot(y[ho:ho + 1, :], w1_ref[ho],
                        preferred_element_type=jnp.float32)
    h = h + b1_ref[...]
    h = jnp.where(h > 0, h, LEAKY_SLOPE * h)

    # fc2: Linear(HID -> OUT_PAD) + Sigmoid, lane-dense padded output store
    o = jnp.dot(h, w2_ref[...], preferred_element_type=jnp.float32) + b2_ref[...]
    o = 1.0 / (1.0 + jnp.exp(-o))
    out_ref[0] = o.astype(out_ref.dtype)


# ---------------------------------------------------------------------------
# Host-side parameter preparation (banded conv weights, tiled affines, pads)
# ---------------------------------------------------------------------------
def prepare_kernel_params(p):
    """Expand raw conv/fc params into the banded, lane-flat form the kernel uses."""

    def band(w_hwio, win, stride):
        # Banded matrix per dy: rows index the flat padded input row (w, cin),
        # cols index the flat output row (wo, cout); column layout of the padded
        # plane is [interior widths 1..win, then left pad, then right pad].
        w = np.asarray(w_hwio)
        _, _, cin, cout = w.shape
        wp = win + 2
        wout = (win - 1) // stride + 1

        def col(wpos):                      # padded width position -> column block
            if 1 <= wpos <= win:
                return wpos - 1
            return win if wpos == 0 else win + 1

        m = np.zeros((3, wp * cin, wout * cout), np.float32)
        for dy in range(3):
            for wo in range(wout):
                for dx in range(3):
                    r0 = col(wo * stride + dx) * cin
                    c0 = wo * cout
                    m[dy, r0:r0 + cin, c0:c0 + cout] = w[dy, dx]
        return jnp.asarray(m)

    def affine(scale, bias, wout):
        sb = np.stack([np.tile(np.asarray(scale), wout),
                       np.tile(np.asarray(bias), wout)]).astype(np.float32)
        return jnp.asarray(sb)

    def sel_matrices(h_out, h_pad, stride):
        s = np.zeros((3, h_out, h_pad), np.float32)
        for dy in range(3):
            for ho in range(h_out):
                s[dy, ho, stride * ho + dy] = 1.0
        return jnp.asarray(s)

    kp = {}
    kp["wb0"] = band(p["feat_w"], H0, 2)
    kp["sb0"] = affine(p["feat_scale"], p["feat_bias"], H1)
    kp["wb1"] = band(p["c1_w"], H1, 1)
    kp["sb1"] = affine(p["c1_scale"], p["c1_bias"], H1)
    kp["wb2"] = band(p["c2_w"], H1, 2)
    kp["sb2"] = affine(p["c2_scale"], p["c2_bias"], H2)
    kp["wb3"] = band(p["c3_w"], H2, 1)
    kp["sb3"] = affine(p["c3_scale"], p["c3_bias"], H2)
    kp["wb4"] = band(p["c4_w"], H2, 1)
    kp["sb4"] = affine(p["c4_scale"], p["c4_bias"], H2)
    kp["sel0"] = sel_matrices(H1, H0 + 2, 2)     # (3, 14, 30)
    kp["sel2"] = sel_matrices(H2, H1 + 2, 2)     # (3, 7, 16)

    kp["w1"] = jnp.asarray(p["fc1_w"]).reshape(S_GRID, S_GRID * FEAT_CH, HID)
    kp["b1"] = jnp.asarray(p["fc1_b"]).reshape(1, HID)
    w2 = np.zeros((HID, OUT_PAD), np.float32)
    w2[:, :OUT_DIM] = np.asarray(p["fc2_w"])
    b2 = np.zeros((1, OUT_PAD), np.float32)
    b2[0, :OUT_DIM] = np.asarray(p["fc2_b"])
    kp["w2"] = jnp.asarray(w2)
    kp["b2"] = jnp.asarray(b2)
    return kp


# ---------------------------------------------------------------------------
# pallas_call wrapper
# ---------------------------------------------------------------------------
def _const_spec(shape):
    nd = len(shape)
    return pl.BlockSpec(shape, lambda i: (0,) * nd)


def yolov1_forward(x, kp):
    """x: (N, IMG, IMG, IN_CH) NHWC -> (N, S, S, C + 5B)."""
    n = x.shape[0]
    x_flat = x.reshape(n, H0, L0)          # flat (H, W*C) layout for the kernel
    weights = (kp["wb0"], kp["wb1"], kp["wb2"], kp["wb3"], kp["wb4"],
               kp["sb0"], kp["sb1"], kp["sb2"], kp["sb3"], kp["sb4"],
               kp["sel0"], kp["sel2"],
               kp["w1"], kp["b1"], kp["w2"], kp["b2"])

    out_pad = pl.pallas_call(
        _yolo_fused_kernel,
        out_shape=jax.ShapeDtypeStruct((n, 1, OUT_PAD), jnp.float32),
        grid_spec=pltpu.PrefetchScalarGridSpec(
            num_scalar_prefetch=0,
            grid=(n,),
            in_specs=[pl.BlockSpec((1, H0, L0), lambda i: (i, 0, 0))]
                     + [_const_spec(w.shape) for w in weights],
            out_specs=pl.BlockSpec((1, 1, OUT_PAD), lambda i: (i, 0, 0)),
            scratch_shapes=[
                pltpu.VMEM((H0 + 2, P0), jnp.float32),   # padded input plane
                pltpu.VMEM((H1 + 2, P1), jnp.float32),   # padded features out
                pltpu.VMEM((H1 + 2, P1), jnp.float32),   # padded conv1 out
                pltpu.VMEM((H2 + 2, P2), jnp.float32),   # padded conv2 out
                pltpu.VMEM((H2 + 2, P2), jnp.float32),   # padded conv3 out
            ],
        ),
        compiler_params=pltpu.CompilerParams(
            dimension_semantics=("parallel",),
            vmem_limit_bytes=40 * 1024 * 1024,
        ),
    )(x_flat, *weights)

    out = out_pad.reshape(n, OUT_PAD)[:, :OUT_DIM]
    return out.reshape(n, S_GRID, S_GRID, OUT_CELL)     # == .view(-1, S, S, C+5B)


# ---------------------------------------------------------------------------
# Deterministic synthetic parameters
# ---------------------------------------------------------------------------
def init_params(key):
    keys = iter(jax.random.split(key, 32))
    eps = 1e-5

    def conv_block(cin, cout, with_bn):
        w = jax.random.normal(next(keys), (3, 3, cin, cout), jnp.float32) / np.sqrt(9.0 * cin)
        conv_b = 0.01 * jax.random.normal(next(keys), (cout,), jnp.float32)
        if with_bn:
            gamma = 1.0 + 0.1 * jax.random.normal(next(keys), (cout,), jnp.float32)
            beta = 0.1 * jax.random.normal(next(keys), (cout,), jnp.float32)
            running_mean = jnp.zeros((cout,), jnp.float32)
            running_var = jnp.ones((cout,), jnp.float32)
            scale = gamma / jnp.sqrt(running_var + eps)
            bias = scale * (conv_b - running_mean) + beta
        else:
            scale = jnp.ones((cout,), jnp.float32)
            bias = conv_b
        return w, scale, bias

    p = {}
    p["feat_w"], p["feat_scale"], p["feat_bias"] = conv_block(IN_CH, FEAT_CH, with_bn=False)
    p["c1_w"], p["c1_scale"], p["c1_bias"] = conv_block(FEAT_CH, FEAT_CH, with_bn=True)
    p["c2_w"], p["c2_scale"], p["c2_bias"] = conv_block(FEAT_CH, FEAT_CH, with_bn=True)
    p["c3_w"], p["c3_scale"], p["c3_bias"] = conv_block(FEAT_CH, FEAT_CH, with_bn=True)
    p["c4_w"], p["c4_scale"], p["c4_bias"] = conv_block(FEAT_CH, FEAT_CH, with_bn=True)

    p["fc1_w"] = jax.random.normal(next(keys), (FC_IN, HID), jnp.float32) / np.sqrt(float(FC_IN))
    p["fc1_b"] = 0.01 * jax.random.normal(next(keys), (HID,), jnp.float32)
    p["fc2_w"] = jax.random.normal(next(keys), (HID, OUT_DIM), jnp.float32) / np.sqrt(float(HID))
    p["fc2_b"] = 0.01 * jax.random.normal(next(keys), (OUT_DIM,), jnp.float32)
    return p


# ---------------------------------------------------------------------------
# Pure-JAX reference (for validation only)
# ---------------------------------------------------------------------------
def yolov1_reference(x, p):
    def conv(z, w, scale, bias, stride):
        y = lax.conv_general_dilated(z, w, (stride, stride), ((1, 1), (1, 1)),
                                     dimension_numbers=("NHWC", "HWIO", "NHWC"))
        y = y * scale[None, None, None, :] + bias[None, None, None, :]
        return jnp.where(y > 0, y, LEAKY_SLOPE * y)

    y = conv(x, p["feat_w"], p["feat_scale"], p["feat_bias"], 2)
    y = conv(y, p["c1_w"], p["c1_scale"], p["c1_bias"], 1)
    y = conv(y, p["c2_w"], p["c2_scale"], p["c2_bias"], 2)
    y = conv(y, p["c3_w"], p["c3_scale"], p["c3_bias"], 1)
    y = conv(y, p["c4_w"], p["c4_scale"], p["c4_bias"], 1)
    n = y.shape[0]
    flat = y.reshape(n, -1)
    h = flat @ p["fc1_w"] + p["fc1_b"]
    h = jnp.where(h > 0, h, LEAKY_SLOPE * h)
    o = jax.nn.sigmoid(h @ p["fc2_w"] + p["fc2_b"])
    return o.reshape(n, S_GRID, S_GRID, OUT_CELL)


if __name__ == "__main__":
    key = jax.random.PRNGKey(0)
    pkey, xkey = jax.random.split(key)
    params = init_params(pkey)
    kparams = prepare_kernel_params(params)
    x = jax.random.normal(xkey, (N_BATCH, IMG, IMG, IN_CH), jnp.float32)  # NHWC input

    out = jax.block_until_ready(yolov1_forward(x, kparams))
    assert out.shape == (N_BATCH, S_GRID, S_GRID, OUT_CELL), out.shape

    ref = jax.block_until_ready(yolov1_reference(x, params))
    np.testing.assert_allclose(np.asarray(out), np.asarray(ref), atol=2e-4, rtol=1e-3)
    print("KERNEL_OK")
</pallas_src>

<mosaic_0001>
module attributes {stable_mosaic.version = 11 : i64} {
  func.func @_yolo_fused_kernel(%arg0: i32, %arg1: memref<1x28x224xf32, #tpu.memory_space<vmem>>, %arg2: memref<3x240x448xf32, #tpu.memory_space<vmem>>, %arg3: memref<3x512x448xf32, #tpu.memory_space<vmem>>, %arg4: memref<3x512x224xf32, #tpu.memory_space<vmem>>, %arg5: memref<3x288x224xf32, #tpu.memory_space<vmem>>, %arg6: memref<3x288x224xf32, #tpu.memory_space<vmem>>, %arg7: memref<2x448xf32, #tpu.memory_space<vmem>>, %arg8: memref<2x448xf32, #tpu.memory_space<vmem>>, %arg9: memref<2x224xf32, #tpu.memory_space<vmem>>, %arg10: memref<2x224xf32, #tpu.memory_space<vmem>>, %arg11: memref<2x224xf32, #tpu.memory_space<vmem>>, %arg12: memref<3x14x30xf32, #tpu.memory_space<vmem>>, %arg13: memref<3x7x16xf32, #tpu.memory_space<vmem>>, %arg14: memref<7x224x128xf32, #tpu.memory_space<vmem>>, %arg15: memref<1x128xf32, #tpu.memory_space<vmem>>, %arg16: memref<128x1536xf32, #tpu.memory_space<vmem>>, %arg17: memref<1x1536xf32, #tpu.memory_space<vmem>>, %arg18: memref<1x1x1536xf32, #tpu.memory_space<vmem>>, %arg19: memref<30x240xf32, #tpu.memory_space<vmem>>, %arg20: memref<16x512xf32, #tpu.memory_space<vmem>>, %arg21: memref<16x512xf32, #tpu.memory_space<vmem>>, %arg22: memref<9x288xf32, #tpu.memory_space<vmem>>, %arg23: memref<9x288xf32, #tpu.memory_space<vmem>>) attributes {dimension_semantics = [#tpu.dimension_semantics<parallel>], iteration_bounds = array<i64: 2>, scalar_prefetch = 0 : i64, scratch_operands = 5 : i64, tpu.core_type = #tpu.core_type<tc>, window_params = [{transform_indices = @transform_0, window_bounds = array<i64: 1, 28, 224>}, {pipeline_mode = #tpu.pipeline_mode<synchronous>, transform_indices = @transform_1, window_bounds = array<i64: 3, 240, 448>}, {pipeline_mode = #tpu.pipeline_mode<synchronous>, transform_indices = @transform_2, window_bounds = array<i64: 3, 512, 448>}, {pipeline_mode = #tpu.pipeline_mode<synchronous>, transform_indices = @transform_3, window_bounds = array<i64: 3, 512, 224>}, {pipeline_mode = #tpu.pipeline_mode<synchronous>, transform_indices = @transform_4, window_bounds = array<i64: 3, 288, 224>}, {pipeline_mode = #tpu.pipeline_mode<synchronous>, transform_indices = @transform_5, window_bounds = array<i64: 3, 288, 224>}, {pipeline_mode = #tpu.pipeline_mode<synchronous>, transform_indices = @transform_6, window_bounds = array<i64: 2, 448>}, {pipeline_mode = #tpu.pipeline_mode<synchronous>, transform_indices = @transform_7, window_bounds = array<i64: 2, 448>}, {pipeline_mode = #tpu.pipeline_mode<synchronous>, transform_indices = @transform_8, window_bounds = array<i64: 2, 224>}, {pipeline_mode = #tpu.pipeline_mode<synchronous>, transform_indices = @transform_9, window_bounds = array<i64: 2, 224>}, {pipeline_mode = #tpu.pipeline_mode<synchronous>, transform_indices = @transform_10, window_bounds = array<i64: 2, 224>}, {pipeline_mode = #tpu.pipeline_mode<synchronous>, transform_indices = @transform_11, window_bounds = array<i64: 3, 14, 30>}, {pipeline_mode = #tpu.pipeline_mode<synchronous>, transform_indices = @transform_12, window_bounds = array<i64: 3, 7, 16>}, {pipeline_mode = #tpu.pipeline_mode<synchronous>, transform_indices = @transform_13, window_bounds = array<i64: 7, 224, 128>}, {pipeline_mode = #tpu.pipeline_mode<synchronous>, transform_indices = @transform_14, window_bounds = array<i64: 1, 128>}, {pipeline_mode = #tpu.pipeline_mode<synchronous>, transform_indices = @transform_15, window_bounds = array<i64: 128, 1536>}, {pipeline_mode = #tpu.pipeline_mode<synchronous>, transform_indices = @transform_16, window_bounds = array<i64: 1, 1536>}, {transform_indices = @transform_17, window_bounds = array<i64: 1, 1, 1536>}]} {
    %cst = arith.constant 0.000000e+00 : f32
    %0 = vector.broadcast %cst : f32 to vector<30x240xf32>
    %c0 = arith.constant 0 : index
    %c0_0 = arith.constant 0 : index
    %1 = vector.load %arg19[%c0, %c0_0] : memref<30x240xf32, #tpu.memory_space<vmem>>, vector<30x240xf32>
    tpu.vector_store %arg19[%c0, %c0_0], %0 {strides = array<i32>} : memref<30x240xf32, #tpu.memory_space<vmem>>, vector<30x240xf32>,
    %cst_1 = arith.constant 0.000000e+00 : f32
    %2 = vector.broadcast %cst_1 : f32 to vector<16x512xf32>
    %c0_2 = arith.constant 0 : index
    %c0_3 = arith.constant 0 : index
    %3 = vector.load %arg20[%c0_2, %c0_3] : memref<16x512xf32, #tpu.memory_space<vmem>>, vector<16x512xf32>
    tpu.vector_store %arg20[%c0_2, %c0_3], %2 {strides = array<i32>} : memref<16x512xf32, #tpu.memory_space<vmem>>, vector<16x512xf32>,
    %cst_4 = arith.constant 0.000000e+00 : f32
    %4 = vector.broadcast %cst_4 : f32 to vector<16x512xf32>
    %c0_5 = arith.constant 0 : index
    %c0_6 = arith.constant 0 : index
    %5 = vector.load %arg21[%c0_5, %c0_6] : memref<16x512xf32, #tpu.memory_space<vmem>>, vector<16x512xf32>
    tpu.vector_store %arg21[%c0_5, %c0_6], %4 {strides = array<i32>} : memref<16x512xf32, #tpu.memory_space<vmem>>, vector<16x512xf32>,
    %cst_7 = arith.constant 0.000000e+00 : f32
    %6 = vector.broadcast %cst_7 : f32 to vector<9x288xf32>
    %c0_8 = arith.constant 0 : index
    %c0_9 = arith.constant 0 : index
    %7 = vector.load %arg22[%c0_8, %c0_9] : memref<9x288xf32, #tpu.memory_space<vmem>>, vector<9x288xf32>
    tpu.vector_store %arg22[%c0_8, %c0_9], %6 {strides = array<i32>} : memref<9x288xf32, #tpu.memory_space<vmem>>, vector<9x288xf32>,
    %cst_10 = arith.constant 0.000000e+00 : f32
    %8 = vector.broadcast %cst_10 : f32 to vector<9x288xf32>
    %c0_11 = arith.constant 0 : index
    %c0_12 = arith.constant 0 : index
    %9 = vector.load %arg23[%c0_11, %c0_12] : memref<9x288xf32, #tpu.memory_space<vmem>>, vector<9x288xf32>
    tpu.vector_store %arg23[%c0_11, %c0_12], %8 {strides = array<i32>} : memref<9x288xf32, #tpu.memory_space<vmem>>, vector<9x288xf32>,
    %c0_13 = arith.constant 0 : index
    %c0_14 = arith.constant 0 : index
    %c0_15 = arith.constant 0 : index
    %10 = vector.load %arg1[%c0_13, %c0_14, %c0_15] : memref<1x28x224xf32, #tpu.memory_space<vmem>>, vector<1x28x224xf32>
    %11 = vector.shape_cast %10 : vector<1x28x224xf32> to vector<28x224xf32>
    %c1 = arith.constant 1 : index
    %c0_16 = arith.constant 0 : index
    %12 = vector.load %arg19[%c1, %c0_16] : memref<30x240xf32, #tpu.memory_space<vmem>>, vector<28x224xf32>
    tpu.vector_store %arg19[%c1, %c0_16], %11 {strides = array<i32>} : memref<30x240xf32, #tpu.memory_space<vmem>>, vector<28x224xf32>,
    %cst_17 = arith.constant 0.000000e+00 : f32
    %13 = vector.broadcast %cst_17 : f32 to vector<14x448xf32>
    %c0_18 = arith.constant 0 : index
    %c0_19 = arith.constant 0 : index
    %14 = vector.load %arg19[%c0_18, %c0_19] : memref<30x240xf32, #tpu.memory_space<vmem>>, vector<30x240xf32>
    %c0_20 = arith.constant 0 : index
    %c0_21 = arith.constant 0 : index
    %c0_22 = arith.constant 0 : index
    %15 = vector.load %arg12[%c0_20, %c0_21, %c0_22] : memref<3x14x30xf32, #tpu.memory_space<vmem>>, vector<1x14x30xf32>
    %16 = vector.shape_cast %15 : vector<1x14x30xf32> to vector<14x30xf32>
    %cst_23 = arith.constant dense<0.000000e+00> : vector<14x240xf32>
    %17 = tpu.matmul %16, %14, %cst_23 {dimension_numbers = #tpu.dot_dimension_numbers<[1], [0], [0], [1], [0, 0, 1, 1], [], []>} : vector<14x30xf32>, vector<30x240xf32>, vector<14x240xf32> -> vector<14x240xf32>
    %c0_24 = arith.constant 0 : index
    %c0_25 = arith.constant 0 : index
    %c0_26 = arith.constant 0 : index
    %18 = vector.load %arg2[%c0_24, %c0_25, %c0_26] : memref<3x240x448xf32, #tpu.memory_space<vmem>>, vector<1x240x448xf32>
    %19 = vector.shape_cast %18 : vector<1x240x448xf32> to vector<240x448xf32>
    %cst_27 = arith.constant dense<0.000000e+00> : vector<14x448xf32>
    %20 = tpu.matmul %17, %19, %cst_27 {dimension_numbers = #tpu.dot_dimension_numbers<[1], [0], [0], [1], [0, 0, 1, 1], [], []>} : vector<14x240xf32>, vector<240x448xf32>, vector<14x448xf32> -> vector<14x448xf32>
    %21 = arith.addf %13, %20 : vector<14x448xf32>
    %c1_28 = arith.constant 1 : index
    %c0_29 = arith.constant 0 : index
    %c0_30 = arith.constant 0 : index
    %22 = vector.load %arg12[%c1_28, %c0_29, %c0_30] : memref<3x14x30xf32, #tpu.memory_space<vmem>>, vector<1x14x30xf32>
    %23 = vector.shape_cast %22 : vector<1x14x30xf32> to vector<14x30xf32>
    %cst_31 = arith.constant dense<0.000000e+00> : vector<14x240xf32>
    %24 = tpu.matmul %23, %14, %cst_31 {dimension_numbers = #tpu.dot_dimension_numbers<[1], [0], [0], [1], [0, 0, 1, 1], [], []>} : vector<14x30xf32>, vector<30x240xf32>, vector<14x240xf32> -> vector<14x240xf32>
    %c1_32 = arith.constant 1 : index
    %c0_33 = arith.constant 0 : index
    %c0_34 = arith.constant 0 : index
    %25 = vector.load %arg2[%c1_32, %c0_33, %c0_34] : memref<3x240x448xf32, #tpu.memory_space<vmem>>, vector<1x240x448xf32>
    %26 = vector.shape_cast %25 : vector<1x240x448xf32> to vector<240x448xf32>
    %cst_35 = arith.constant dense<0.000000e+00> : vector<14x448xf32>
    %27 = tpu.matmul %24, %26, %cst_35 {dimension_numbers = #tpu.dot_dimension_numbers<[1], [0], [0], [1], [0, 0, 1, 1], [], []>} : vector<14x240xf32>, vector<240x448xf32>, vector<14x448xf32> -> vector<14x448xf32>
    %28 = arith.addf %21, %27 : vector<14x448xf32>
    %c2 = arith.constant 2 : index
    %c0_36 = arith.constant 0 : index
    %c0_37 = arith.constant 0 : index
    %29 = vector.load %arg12[%c2, %c0_36, %c0_37] : memref<3x14x30xf32, #tpu.memory_space<vmem>>, vector<1x14x30xf32>
    %30 = vector.shape_cast %29 : vector<1x14x30xf32> to vector<14x30xf32>
    %cst_38 = arith.constant dense<0.000000e+00> : vector<14x240xf32>
    %31 = tpu.matmul %30, %14, %cst_38 {dimension_numbers = #tpu.dot_dimension_numbers<[1], [0], [0], [1], [0, 0, 1, 1], [], []>} : vector<14x30xf32>, vector<30x240xf32>, vector<14x240xf32> -> vector<14x240xf32>
    %c2_39 = arith.constant 2 : index
    %c0_40 = arith.constant 0 : index
    %c0_41 = arith.constant 0 : index
    %32 = vector.load %arg2[%c2_39, %c0_40, %c0_41] : memref<3x240x448xf32, #tpu.memory_space<vmem>>, vector<1x240x448xf32>
    %33 = vector.shape_cast %32 : vector<1x240x448xf32> to vector<240x448xf32>
    %cst_42 = arith.constant dense<0.000000e+00> : vector<14x448xf32>
    %34 = tpu.matmul %31, %33, %cst_42 {dimension_numbers = #tpu.dot_dimension_numbers<[1], [0], [0], [1], [0, 0, 1, 1], [], []>} : vector<14x240xf32>, vector<240x448xf32>, vector<14x448xf32> -> vector<14x448xf32>
    %35 = arith.addf %28, %34 : vector<14x448xf32>
    %c0_43 = arith.constant 0 : index
    %c0_44 = arith.constant 0 : index
    %36 = vector.load %arg7[%c0_43, %c0_44] : memref<2x448xf32, #tpu.memory_space<vmem>>, vector<1x448xf32>
    %37 = vector.broadcast %36 : vector<1x448xf32> to vector<14x448xf32>
    %38 = arith.mulf %35, %37 : vector<14x448xf32>
    %c1_45 = arith.constant 1 : index
    %c0_46 = arith.constant 0 : index
    %39 = vector.load %arg7[%c1_45, %c0_46] : memref<2x448xf32, #tpu.memory_space<vmem>>, vector<1x448xf32>
    %40 = vector.broadcast %39 : vector<1x448xf32> to vector<14x448xf32>
    %41 = arith.addf %38, %40 : vector<14x448xf32>
    %cst_47 = arith.constant 0.000000e+00 : f32
    %42 = vector.broadcast %cst_47 : f32 to vector<14x448xf32>
    %43 = arith.cmpf ogt, %41, %42 : vector<14x448xf32>
    %cst_48 = arith.constant 1.000000e-01 : f32
    %44 = vector.broadcast %cst_48 : f32 to vector<14x448xf32>
    %45 = arith.mulf %44, %41 : vector<14x448xf32>
    %46 = arith.select %43, %41, %45 : vector<14x448xi1>, vector<14x448xf32>
    %c1_49 = arith.constant 1 : index
    %c0_50 = arith.constant 0 : index
    %47 = vector.load %arg20[%c1_49, %c0_50] : memref<16x512xf32, #tpu.memory_space<vmem>>, vector<14x448xf32>
    tpu.vector_store %arg20[%c1_49, %c0_50], %46 {strides = array<i32>} : memref<16x512xf32, #tpu.memory_space<vmem>>, vector<14x448xf32>,
    %cst_51 = arith.constant 0.000000e+00 : f32
    %48 = vector.broadcast %cst_51 : f32 to vector<14x448xf32>
    %c0_52 = arith.constant 0 : index
    %c0_53 = arith.constant 0 : index
    %49 = vector.load %arg20[%c0_52, %c0_53] : memref<16x512xf32, #tpu.memory_space<vmem>>, vector<14x512xf32>
    %c0_54 = arith.constant 0 : index
    %c0_55 = arith.constant 0 : index
    %c0_56 = arith.constant 0 : index
    %50 = vector.load %arg3[%c0_54, %c0_55, %c0_56] : memref<3x512x448xf32, #tpu.memory_space<vmem>>, vector<1x512x448xf32>
    %51 = vector.shape_cast %50 : vector<1x512x448xf32> to vector<512x448xf32>
    %cst_57 = arith.constant dense<0.000000e+00> : vector<14x448xf32>
    %52 = tpu.matmul %49, %51, %cst_57 {dimension_numbers = #tpu.dot_dimension_numbers<[1], [0], [0], [1], [0, 0, 1, 1], [], []>} : vector<14x512xf32>, vector<512x448xf32>, vector<14x448xf32> -> vector<14x448xf32>
    %53 = arith.addf %48, %52 : vector<14x448xf32>
    %c1_58 = arith.constant 1 : index
    %c0_59 = arith.constant 0 : index
    %54 = vector.load %arg20[%c1_58, %c0_59] : memref<16x512xf32, #tpu.memory_space<vmem>>, vector<14x512xf32>
    %c1_60 = arith.constant 1 : index
    %c0_61 = arith.constant 0 : index
    %c0_62 = arith.constant 0 : index
    %55 = vector.load %arg3[%c1_60, %c0_61, %c0_62] : memref<3x512x448xf32, #tpu.memory_space<vmem>>, vector<1x512x448xf32>
    %56 = vector.shape_cast %55 : vector<1x512x448xf32> to vector<512x448xf32>
    %cst_63 = arith.constant dense<0.000000e+00> : vector<14x448xf32>
    %57 = tpu.matmul %54, %56, %cst_63 {dimension_numbers = #tpu.dot_dimension_numbers<[1], [0], [0], [1], [0, 0, 1, 1], [], []>} : vector<14x512xf32>, vector<512x448xf32>, vector<14x448xf32> -> vector<14x448xf32>
    %58 = arith.addf %53, %57 : vector<14x448xf32>
    %c2_64 = arith.constant 2 : index
    %c0_65 = arith.constant 0 : index
    %59 = vector.load %arg20[%c2_64, %c0_65] : memref<16x512xf32, #tpu.memory_space<vmem>>, vector<14x512xf32>
    %c2_66 = arith.constant 2 : index
    %c0_67 = arith.constant 0 : index
    %c0_68 = arith.constant 0 : index
    %60 = vector.load %arg3[%c2_66, %c0_67, %c0_68] : memref<3x512x448xf32, #tpu.memory_space<vmem>>, vector<1x512x448xf32>
    %61 = vector.shape_cast %60 : vector<1x512x448xf32> to vector<512x448xf32>
    %cst_69 = arith.constant dense<0.000000e+00> : vector<14x448xf32>
    %62 = tpu.matmul %59, %61, %cst_69 {dimension_numbers = #tpu.dot_dimension_numbers<[1], [0], [0], [1], [0, 0, 1, 1], [], []>} : vector<14x512xf32>, vector<512x448xf32>, vector<14x448xf32> -> vector<14x448xf32>
    %63 = arith.addf %58, %62 : vector<14x448xf32>
    %c0_70 = arith.constant 0 : index
    %c0_71 = arith.constant 0 : index
    %64 = vector.load %arg8[%c0_70, %c0_71] : memref<2x448xf32, #tpu.memory_space<vmem>>, vector<1x448xf32>
    %65 = vector.broadcast %64 : vector<1x448xf32> to vector<14x448xf32>
    %66 = arith.mulf %63, %65 : vector<14x448xf32>
    %c1_72 = arith.constant 1 : index
    %c0_73 = arith.constant 0 : index
    %67 = vector.load %arg8[%c1_72, %c0_73] : memref<2x448xf32, #tpu.memory_space<vmem>>, vector<1x448xf32>
    %68 = vector.broadcast %67 : vector<1x448xf32> to vector<14x448xf32>
    %69 = arith.addf %66, %68 : vector<14x448xf32>
    %cst_74 = arith.constant 0.000000e+00 : f32
    %70 = vector.broadcast %cst_74 : f32 to vector<14x448xf32>
    %71 = arith.cmpf ogt, %69, %70 : vector<14x448xf32>
    %cst_75 = arith.constant 1.000000e-01 : f32
    %72 = vector.broadcast %cst_75 : f32 to vector<14x448xf32>
    %73 = arith.mulf %72, %69 : vector<14x448xf32>
    %74 = arith.select %71, %69, %73 : vector<14x448xi1>, vector<14x448xf32>
    %c1_76 = arith.constant 1 : index
    %c0_77 = arith.constant 0 : index
    %75 = vector.load %arg21[%c1_76, %c0_77] : memref<16x512xf32, #tpu.memory_space<vmem>>, vector<14x448xf32>
    tpu.vector_store %arg21[%c1_76, %c0_77], %74 {strides = array<i32>} : memref<16x512xf32, #tpu.memory_space<vmem>>, vector<14x448xf32>,
    %cst_78 = arith.constant 0.000000e+00 : f32
    %76 = vector.broadcast %cst_78 : f32 to vector<7x224xf32>
    %c0_79 = arith.constant 0 : index
    %c0_80 = arith.constant 0 : index
    %77 = vector.load %arg21[%c0_79, %c0_80] : memref<16x512xf32, #tpu.memory_space<vmem>>, vector<16x512xf32>
    %c0_81 = arith.constant 0 : index
    %c0_82 = arith.constant 0 : index
    %c0_83 = arith.constant 0 : index
    %78 = vector.load %arg13[%c0_81, %c0_82, %c0_83] : memref<3x7x16xf32, #tpu.memory_space<vmem>>, vector<1x7x16xf32>
    %79 = vector.shape_cast %78 : vector<1x7x16xf32> to vector<7x16xf32>
    %cst_84 = arith.constant dense<0.000000e+00> : vector<7x512xf32>
    %80 = tpu.matmul %79, %77, %cst_84 {dimension_numbers = #tpu.dot_dimension_numbers<[1], [0], [0], [1], [0, 0, 1, 1], [], []>} : vector<7x16xf32>, vector<16x512xf32>, vector<7x512xf32> -> vector<7x512xf32>
    %c0_85 = arith.constant 0 : index
    %c0_86 = arith.constant 0 : index
    %c0_87 = arith.constant 0 : index
    %81 = vector.load %arg4[%c0_85, %c0_86, %c0_87] : memref<3x512x224xf32, #tpu.memory_space<vmem>>, vector<1x512x224xf32>
    %82 = vector.shape_cast %81 : vector<1x512x224xf32> to vector<512x224xf32>
    %cst_88 = arith.constant dense<0.000000e+00> : vector<7x224xf32>
    %83 = tpu.matmul %80, %82, %cst_88 {dimension_numbers = #tpu.dot_dimension_numbers<[1], [0], [0], [1], [0, 0, 1, 1], [], []>} : vector<7x512xf32>, vector<512x224xf32>, vector<7x224xf32> -> vector<7x224xf32>
    %84 = arith.addf %76, %83 : vector<7x224xf32>
    %c1_89 = arith.constant 1 : index
    %c0_90 = arith.constant 0 : index
    %c0_91 = arith.constant 0 : index
    %85 = vector.load %arg13[%c1_89, %c0_90, %c0_91] : memref<3x7x16xf32, #tpu.memory_space<vmem>>, vector<1x7x16xf32>
    %86 = vector.shape_cast %85 : vector<1x7x16xf32> to vector<7x16xf32>
    %cst_92 = arith.constant dense<0.000000e+00> : vector<7x512xf32>
    %87 = tpu.matmul %86, %77, %cst_92 {dimension_numbers = #tpu.dot_dimension_numbers<[1], [0], [0], [1], [0, 0, 1, 1], [], []>} : vector<7x16xf32>, vector<16x512xf32>, vector<7x512xf32> -> vector<7x512xf32>
    %c1_93 = arith.constant 1 : index
    %c0_94 = arith.constant 0 : index
    %c0_95 = arith.constant 0 : index
    %88 = vector.load %arg4[%c1_93, %c0_94, %c0_95] : memref<3x512x224xf32, #tpu.memory_space<vmem>>, vector<1x512x224xf32>
    %89 = vector.shape_cast %88 : vector<1x512x224xf32> to vector<512x224xf32>
    %cst_96 = arith.constant dense<0.000000e+00> : vector<7x224xf32>
    %90 = tpu.matmul %87, %89, %cst_96 {dimension_numbers = #tpu.dot_dimension_numbers<[1], [0], [0], [1], [0, 0, 1, 1], [], []>} : vector<7x512xf32>, vector<512x224xf32>, vector<7x224xf32> -> vector<7x224xf32>
    %91 = arith.addf %84, %90 : vector<7x224xf32>
    %c2_97 = arith.constant 2 : index
    %c0_98 = arith.constant 0 : index
    %c0_99 = arith.constant 0 : index
    %92 = vector.load %arg13[%c2_97, %c0_98, %c0_99] : memref<3x7x16xf32, #tpu.memory_space<vmem>>, vector<1x7x16xf32>
    %93 = vector.shape_cast %92 : vector<1x7x16xf32> to vector<7x16xf32>
    %cst_100 = arith.constant dense<0.000000e+00> : vector<7x512xf32>
    %94 = tpu.matmul %93, %77, %cst_100 {dimension_numbers = #tpu.dot_dimension_numbers<[1], [0], [0], [1], [0, 0, 1, 1], [], []>} : vector<7x16xf32>, vector<16x512xf32>, vector<7x512xf32> -> vector<7x512xf32>
    %c2_101 = arith.constant 2 : index
    %c0_102 = arith.constant 0 : index
    %c0_103 = arith.constant 0 : index
    %95 = vector.load %arg4[%c2_101, %c0_102, %c0_103] : memref<3x512x224xf32, #tpu.memory_space<vmem>>, vector<1x512x224xf32>
    %96 = vector.shape_cast %95 : vector<1x512x224xf32> to vector<512x224xf32>
    %cst_104 = arith.constant dense<0.000000e+00> : vector<7x224xf32>
    %97 = tpu.matmul %94, %96, %cst_104 {dimension_numbers = #tpu.dot_dimension_numbers<[1], [0], [0], [1], [0, 0, 1, 1], [], []>} : vector<7x512xf32>, vector<512x224xf32>, vector<7x224xf32> -> vector<7x224xf32>
    %98 = arith.addf %91, %97 : vector<7x224xf32>
    %c0_105 = arith.constant 0 : index
    %c0_106 = arith.constant 0 : index
    %99 = vector.load %arg9[%c0_105, %c0_106] : memref<2x224xf32, #tpu.memory_space<vmem>>, vector<1x224xf32>
    %100 = vector.broadcast %99 : vector<1x224xf32> to vector<7x224xf32>
    %101 = arith.mulf %98, %100 : vector<7x224xf32>
    %c1_107 = arith.constant 1 : index
    %c0_108 = arith.constant 0 : index
    %102 = vector.load %arg9[%c1_107, %c0_108] : memref<2x224xf32, #tpu.memory_space<vmem>>, vector<1x224xf32>
    %103 = vector.broadcast %102 : vector<1x224xf32> to vector<7x224xf32>
    %104 = arith.addf %101, %103 : vector<7x224xf32>
    %cst_109 = arith.constant 0.000000e+00 : f32
    %105 = vector.broadcast %cst_109 : f32 to vector<7x224xf32>
    %106 = arith.cmpf ogt, %104, %105 : vector<7x224xf32>
    %cst_110 = arith.constant 1.000000e-01 : f32
    %107 = vector.broadcast %cst_110 : f32 to vector<7x224xf32>
    %108 = arith.mulf %107, %104 : vector<7x224xf32>
    %109 = arith.select %106, %104, %108 : vector<7x224xi1>, vector<7x224xf32>
    %c1_111 = arith.constant 1 : index
    %c0_112 = arith.constant 0 : index
    %110 = vector.load %arg22[%c1_111, %c0_112] : memref<9x288xf32, #tpu.memory_space<vmem>>, vector<7x224xf32>
    tpu.vector_store %arg22[%c1_111, %c0_112], %109 {strides = array<i32>} : memref<9x288xf32, #tpu.memory_space<vmem>>, vector<7x224xf32>,
    %cst_113 = arith.constant 0.000000e+00 : f32
    %111 = vector.broadcast %cst_113 : f32 to vector<7x224xf32>
    %c0_114 = arith.constant 0 : index
    %c0_115 = arith.constant 0 : index
    %112 = vector.load %arg22[%c0_114, %c0_115] : memref<9x288xf32, #tpu.memory_space<vmem>>, vector<7x288xf32>
    %c0_116 = arith.constant 0 : index
    %c0_117 = arith.constant 0 : index
    %c0_118 = arith.constant 0 : index
    %113 = vector.load %arg5[%c0_116, %c0_117, %c0_118] : memref<3x288x224xf32, #tpu.memory_space<vmem>>, vector<1x288x224xf32>
    %114 = vector.shape_cast %113 : vector<1x288x224xf32> to vector<288x224xf32>
    %cst_119 = arith.constant dense<0.000000e+00> : vector<7x224xf32>
    %115 = tpu.matmul %112, %114, %cst_119 {dimension_numbers = #tpu.dot_dimension_numbers<[1], [0], [0], [1], [0, 0, 1, 1], [], []>} : vector<7x288xf32>, vector<288x224xf32>, vector<7x224xf32> -> vector<7x224xf32>
    %116 = arith.addf %111, %115 : vector<7x224xf32>
    %c1_120 = arith.constant 1 : index
    %c0_121 = arith.constant 0 : index
    %117 = vector.load %arg22[%c1_120, %c0_121] : memref<9x288xf32, #tpu.memory_space<vmem>>, vector<7x288xf32>
    %c1_122 = arith.constant 1 : index
    %c0_123 = arith.constant 0 : index
    %c0_124 = arith.constant 0 : index
    %118 = vector.load %arg5[%c1_122, %c0_123, %c0_124] : memref<3x288x224xf32, #tpu.memory_space<vmem>>, vector<1x288x224xf32>
    %119 = vector.shape_cast %118 : vector<1x288x224xf32> to vector<288x224xf32>
    %cst_125 = arith.constant dense<0.000000e+00> : vector<7x224xf32>
    %120 = tpu.matmul %117, %119, %cst_125 {dimension_numbers = #tpu.dot_dimension_numbers<[1], [0], [0], [1], [0, 0, 1, 1], [], []>} : vector<7x288xf32>, vector<288x224xf32>, vector<7x224xf32> -> vector<7x224xf32>
    %121 = arith.addf %116, %120 : vector<7x224xf32>
    %c2_126 = arith.constant 2 : index
    %c0_127 = arith.constant 0 : index
    %122 = vector.load %arg22[%c2_126, %c0_127] : memref<9x288xf32, #tpu.memory_space<vmem>>, vector<7x288xf32>
    %c2_128 = arith.constant 2 : index
    %c0_129 = arith.constant 0 : index
    %c0_130 = arith.constant 0 : index
    %123 = vector.load %arg5[%c2_128, %c0_129, %c0_130] : memref<3x288x224xf32, #tpu.memory_space<vmem>>, vector<1x288x224xf32>
    %124 = vector.shape_cast %123 : vector<1x288x224xf32> to vector<288x224xf32>
    %cst_131 = arith.constant dense<0.000000e+00> : vector<7x224xf32>
    %125 = tpu.matmul %122, %124, %cst_131 {dimension_numbers = #tpu.dot_dimension_numbers<[1], [0], [0], [1], [0, 0, 1, 1], [], []>} : vector<7x288xf32>, vector<288x224xf32>, vector<7x224xf32> -> vector<7x224xf32>
    %126 = arith.addf %121, %125 : vector<7x224xf32>
    %c0_132 = arith.constant 0 : index
    %c0_133 = arith.constant 0 : index
    %127 = vector.load %arg10[%c0_132, %c0_133] : memref<2x224xf32, #tpu.memory_space<vmem>>, vector<1x224xf32>
    %128 = vector.broadcast %127 : vector<1x224xf32> to vector<7x224xf32>
    %129 = arith.mulf %126, %128 : vector<7x224xf32>
    %c1_134 = arith.constant 1 : index
    %c0_135 = arith.constant 0 : index
    %130 = vector.load %arg10[%c1_134, %c0_135] : memref<2x224xf32, #tpu.memory_space<vmem>>, vector<1x224xf32>
    %131 = vector.broadcast %130 : vector<1x224xf32> to vector<7x224xf32>
    %132 = arith.addf %129, %131 : vector<7x224xf32>
    %cst_136 = arith.constant 0.000000e+00 : f32
    %133 = vector.broadcast %cst_136 : f32 to vector<7x224xf32>
    %134 = arith.cmpf ogt, %132, %133 : vector<7x224xf32>
    %cst_137 = arith.constant 1.000000e-01 : f32
    %135 = vector.broadcast %cst_137 : f32 to vector<7x224xf32>
    %136 = arith.mulf %135, %132 : vector<7x224xf32>
    %137 = arith.select %134, %132, %136 : vector<7x224xi1>, vector<7x224xf32>
    %c1_138 = arith.constant 1 : index
    %c0_139 = arith.constant 0 : index
    %138 = vector.load %arg23[%c1_138, %c0_139] : memref<9x288xf32, #tpu.memory_space<vmem>>, vector<7x224xf32>
    tpu.vector_store %arg23[%c1_138, %c0_139], %137 {strides = array<i32>} : memref<9x288xf32, #tpu.memory_space<vmem>>, vector<7x224xf32>,
    %cst_140 = arith.constant 0.000000e+00 : f32
    %139 = vector.broadcast %cst_140 : f32 to vector<7x224xf32>
    %c0_141 = arith.constant 0 : index
    %c0_142 = arith.constant 0 : index
    %140 = vector.load %arg23[%c0_141, %c0_142] : memref<9x288xf32, #tpu.memory_space<vmem>>, vector<7x288xf32>
    %c0_143 = arith.constant 0 : index
    %c0_144 = arith.constant 0 : index
    %c0_145 = arith.constant 0 : index
    %141 = vector.load %arg6[%c0_143, %c0_144, %c0_145] : memref<3x288x224xf32, #tpu.memory_space<vmem>>, vector<1x288x224xf32>
    %142 = vector.shape_cast %141 : vector<1x288x224xf32> to vector<288x224xf32>
    %cst_146 = arith.constant dense<0.000000e+00> : vector<7x224xf32>
    %143 = tpu.matmul %140, %142, %cst_146 {dimension_numbers = #tpu.dot_dimension_numbers<[1], [0], [0], [1], [0, 0, 1, 1], [], []>} : vector<7x288xf32>, vector<288x224xf32>, vector<7x224xf32> -> vector<7x224xf32>
    %144 = arith.addf %139, %143 : vector<7x224xf32>
    %c1_147 = arith.constant 1 : index
    %c0_148 = arith.constant 0 : index
    %145 = vector.load %arg23[%c1_147, %c0_148] : memref<9x288xf32, #tpu.memory_space<vmem>>, vector<7x288xf32>
    %c1_149 = arith.constant 1 : index
    %c0_150 = arith.constant 0 : index
    %c0_151 = arith.constant 0 : index
    %146 = vector.load %arg6[%c1_149, %c0_150, %c0_151] : memref<3x288x224xf32, #tpu.memory_space<vmem>>, vector<1x288x224xf32>
    %147 = vector.shape_cast %146 : vector<1x288x224xf32> to vector<288x224xf32>
    %cst_152 = arith.constant dense<0.000000e+00> : vector<7x224xf32>
    %148 = tpu.matmul %145, %147, %cst_152 {dimension_numbers = #tpu.dot_dimension_numbers<[1], [0], [0], [1], [0, 0, 1, 1], [], []>} : vector<7x288xf32>, vector<288x224xf32>, vector<7x224xf32> -> vector<7x224xf32>
    %149 = arith.addf %144, %148 : vector<7x224xf32>
    %c2_153 = arith.constant 2 : index
    %c0_154 = arith.constant 0 : index
    %150 = vector.load %arg23[%c2_153, %c0_154] : memref<9x288xf32, #tpu.memory_space<vmem>>, vector<7x288xf32>
    %c2_155 = arith.constant 2 : index
    %c0_156 = arith.constant 0 : index
    %c0_157 = arith.constant 0 : index
    %151 = vector.load %arg6[%c2_155, %c0_156, %c0_157] : memref<3x288x224xf32, #tpu.memory_space<vmem>>, vector<1x288x224xf32>
    %152 = vector.shape_cast %151 : vector<1x288x224xf32> to vector<288x224xf32>
    %cst_158 = arith.constant dense<0.000000e+00> : vector<7x224xf32>
    %153 = tpu.matmul %150, %152, %cst_158 {dimension_numbers = #tpu.dot_dimension_numbers<[1], [0], [0], [1], [0, 0, 1, 1], [], []>} : vector<7x288xf32>, vector<288x224xf32>, vector<7x224xf32> -> vector<7x224xf32>
    %154 = arith.addf %149, %153 : vector<7x224xf32>
    %c0_159 = arith.constant 0 : index
    %c0_160 = arith.constant 0 : index
    %155 = vector.load %arg11[%c0_159, %c0_160] : memref<2x224xf32, #tpu.memory_space<vmem>>, vector<1x224xf32>
    %156 = vector.broadcast %155 : vector<1x224xf32> to vector<7x224xf32>
    %157 = arith.mulf %154, %156 : vector<7x224xf32>
    %c1_161 = arith.constant 1 : index
    %c0_162 = arith.constant 0 : index
    %158 = vector.load %arg11[%c1_161, %c0_162] : memref<2x224xf32, #tpu.memory_space<vmem>>, vector<1x224xf32>
    %159 = vector.broadcast %158 : vector<1x224xf32> to vector<7x224xf32>
    %160 = arith.addf %157, %159 : vector<7x224xf32>
    %cst_163 = arith.constant 0.000000e+00 : f32
    %161 = vector.broadcast %cst_163 : f32 to vector<7x224xf32>
    %162 = arith.cmpf ogt, %160, %161 : vector<7x224xf32>
    %cst_164 = arith.constant 1.000000e-01 : f32
    %163 = vector.broadcast %cst_164 : f32 to vector<7x224xf32>
    %164 = arith.mulf %163, %160 : vector<7x224xf32>
    %165 = arith.select %162, %160, %164 : vector<7x224xi1>, vector<7x224xf32>
    %cst_165 = arith.constant 0.000000e+00 : f32
    %166 = vector.broadcast %cst_165 : f32 to vector<1x128xf32>
    %167 = vector.extract_strided_slice %165 {offsets = [0, 0], sizes = [1, 224], strides = [1, 1]} : vector<7x224xf32> to vector<1x224xf32>
    %c0_166 = arith.constant 0 : index
    %c0_167 = arith.constant 0 : index
    %c0_168 = arith.constant 0 : index
    %168 = vector.load %arg14[%c0_166, %c0_167, %c0_168] : memref<7x224x128xf32, #tpu.memory_space<vmem>>, vector<1x224x128xf32>
    %169 = vector.shape_cast %168 : vector<1x224x128xf32> to vector<224x128xf32>
    %cst_169 = arith.constant dense<0.000000e+00> : vector<1x128xf32>
    %170 = tpu.matmul %167, %169, %cst_169 {dimension_numbers = #tpu.dot_dimension_numbers<[1], [0], [0], [1], [0, 0, 1, 1], [], []>} : vector<1x224xf32>, vector<224x128xf32>, vector<1x128xf32> -> vector<1x128xf32>
    %171 = arith.addf %166, %170 : vector<1x128xf32>
    %172 = vector.extract_strided_slice %165 {offsets = [1, 0], sizes = [1, 224], strides = [1, 1]} : vector<7x224xf32> to vector<1x224xf32>
    %c1_170 = arith.constant 1 : index
    %c0_171 = arith.constant 0 : index
    %c0_172 = arith.constant 0 : index
    %173 = vector.load %arg14[%c1_170, %c0_171, %c0_172] : memref<7x224x128xf32, #tpu.memory_space<vmem>>, vector<1x224x128xf32>
    %174 = vector.shape_cast %173 : vector<1x224x128xf32> to vector<224x128xf32>
    %cst_173 = arith.constant dense<0.000000e+00> : vector<1x128xf32>
    %175 = tpu.matmul %172, %174, %cst_173 {dimension_numbers = #tpu.dot_dimension_numbers<[1], [0], [0], [1], [0, 0, 1, 1], [], []>} : vector<1x224xf32>, vector<224x128xf32>, vector<1x128xf32> -> vector<1x128xf32>
    %176 = arith.addf %171, %175 : vector<1x128xf32>
    %177 = vector.extract_strided_slice %165 {offsets = [2, 0], sizes = [1, 224], strides = [1, 1]} : vector<7x224xf32> to vector<1x224xf32>
    %c2_174 = arith.constant 2 : index
    %c0_175 = arith.constant 0 : index
    %c0_176 = arith.constant 0 : index
    %178 = vector.load %arg14[%c2_174, %c0_175, %c0_176] : memref<7x224x128xf32, #tpu.memory_space<vmem>>, vector<1x224x128xf32>
    %179 = vector.shape_cast %178 : vector<1x224x128xf32> to vector<224x128xf32>
    %cst_177 = arith.constant dense<0.000000e+00> : vector<1x128xf32>
    %180 = tpu.matmul %177, %179, %cst_177 {dimension_numbers = #tpu.dot_dimension_numbers<[1], [0], [0], [1], [0, 0, 1, 1], [], []>} : vector<1x224xf32>, vector<224x128xf32>, vector<1x128xf32> -> vector<1x128xf32>
    %181 = arith.addf %176, %180 : vector<1x128xf32>
    %182 = vector.extract_strided_slice %165 {offsets = [3, 0], sizes = [1, 224], strides = [1, 1]} : vector<7x224xf32> to vector<1x224xf32>
    %c3 = arith.constant 3 : index
    %c0_178 = arith.constant 0 : index
    %c0_179 = arith.constant 0 : index
    %183 = vector.load %arg14[%c3, %c0_178, %c0_179] : memref<7x224x128xf32, #tpu.memory_space<vmem>>, vector<1x224x128xf32>
    %184 = vector.shape_cast %183 : vector<1x224x128xf32> to vector<224x128xf32>
    %cst_180 = arith.constant dense<0.000000e+00> : vector<1x128xf32>
    %185 = tpu.matmul %182, %184, %cst_180 {dimension_numbers = #tpu.dot_dimension_numbers<[1], [0], [0], [1], [0, 0, 1, 1], [], []>} : vector<1x224xf32>, vector<224x128xf32>, vector<1x128xf32> -> vector<1x128xf32>
    %186 = arith.addf %181, %185 : vector<1x128xf32>
    %187 = vector.extract_strided_slice %165 {offsets = [4, 0], sizes = [1, 224], strides = [1, 1]} : vector<7x224xf32> to vector<1x224xf32>
    %c4 = arith.constant 4 : index
    %c0_181 = arith.constant 0 : index
    %c0_182 = arith.constant 0 : index
    %188 = vector.load %arg14[%c4, %c0_181, %c0_182] : memref<7x224x128xf32, #tpu.memory_space<vmem>>, vector<1x224x128xf32>
    %189 = vector.shape_cast %188 : vector<1x224x128xf32> to vector<224x128xf32>
    %cst_183 = arith.constant dense<0.000000e+00> : vector<1x128xf32>
    %190 = tpu.matmul %187, %189, %cst_183 {dimension_numbers = #tpu.dot_dimension_numbers<[1], [0], [0], [1], [0, 0, 1, 1], [], []>} : vector<1x224xf32>, vector<224x128xf32>, vector<1x128xf32> -> vector<1x128xf32>
    %191 = arith.addf %186, %190 : vector<1x128xf32>
    %192 = vector.extract_strided_slice %165 {offsets = [5, 0], sizes = [1, 224], strides = [1, 1]} : vector<7x224xf32> to vector<1x224xf32>
    %c5 = arith.constant 5 : index
    %c0_184 = arith.constant 0 : index
    %c0_185 = arith.constant 0 : index
    %193 = vector.load %arg14[%c5, %c0_184, %c0_185] : memref<7x224x128xf32, #tpu.memory_space<vmem>>, vector<1x224x128xf32>
    %194 = vector.shape_cast %193 : vector<1x224x128xf32> to vector<224x128xf32>
    %cst_186 = arith.constant dense<0.000000e+00> : vector<1x128xf32>
    %195 = tpu.matmul %192, %194, %cst_186 {dimension_numbers = #tpu.dot_dimension_numbers<[1], [0], [0], [1], [0, 0, 1, 1], [], []>} : vector<1x224xf32>, vector<224x128xf32>, vector<1x128xf32> -> vector<1x128xf32>
    %196 = arith.addf %191, %195 : vector<1x128xf32>
    %197 = vector.extract_strided_slice %165 {offsets = [6, 0], sizes = [1, 224], strides = [1, 1]} : vector<7x224xf32> to vector<1x224xf32>
    %c6 = arith.constant 6 : index
    %c0_187 = arith.constant 0 : index
    %c0_188 = arith.constant 0 : index
    %198 = vector.load %arg14[%c6, %c0_187, %c0_188] : memref<7x224x128xf32, #tpu.memory_space<vmem>>, vector<1x224x128xf32>
    %199 = vector.shape_cast %198 : vector<1x224x128xf32> to vector<224x128xf32>
    %cst_189 = arith.constant dense<0.000000e+00> : vector<1x128xf32>
    %200 = tpu.matmul %197, %199, %cst_189 {dimension_numbers = #tpu.dot_dimension_numbers<[1], [0], [0], [1], [0, 0, 1, 1], [], []>} : vector<1x224xf32>, vector<224x128xf32>, vector<1x128xf32> -> vector<1x128xf32>
    %201 = arith.addf %196, %200 : vector<1x128xf32>
    %c0_190 = arith.constant 0 : index
    %c0_191 = arith.constant 0 : index
    %202 = vector.load %arg15[%c0_190, %c0_191] : memref<1x128xf32, #tpu.memory_space<vmem>>, vector<1x128xf32>
    %203 = arith.addf %201, %202 : vector<1x128xf32>
    %cst_192 = arith.constant 0.000000e+00 : f32
    %204 = vector.broadcast %cst_192 : f32 to vector<1x128xf32>
    %205 = arith.cmpf ogt, %203, %204 : vector<1x128xf32>
    %cst_193 = arith.constant 1.000000e-01 : f32
    %206 = vector.broadcast %cst_193 : f32 to vector<1x128xf32>
    %207 = arith.mulf %206, %203 : vector<1x128xf32>
    %208 = arith.select %205, %203, %207 : vector<1x128xi1>, vector<1x128xf32>
    %c0_194 = arith.constant 0 : index
    %c0_195 = arith.constant 0 : index
    %209 = vector.load %arg16[%c0_194, %c0_195] : memref<128x1536xf32, #tpu.memory_space<vmem>>, vector<128x1536xf32>
    %cst_196 = arith.constant dense<0.000000e+00> : vector<1x1536xf32>
    %210 = tpu.matmul %208, %209, %cst_196 {dimension_numbers = #tpu.dot_dimension_numbers<[1], [0], [0], [1], [0, 0, 1, 1], [], []>} : vector<1x128xf32>, vector<128x1536xf32>, vector<1x1536xf32> -> vector<1x1536xf32>
    %c0_197 = arith.constant 0 : index
    %c0_198 = arith.constant 0 : index
    %211 = vector.load %arg17[%c0_197, %c0_198] : memref<1x1536xf32, #tpu.memory_space<vmem>>, vector<1x1536xf32>
    %212 = arith.addf %210, %211 : vector<1x1536xf32>
    %cst_199 = arith.constant 0.000000e+00 : f32
    %213 = vector.broadcast %cst_199 : f32 to vector<1x1536xf32>
    %214 = arith.subf %213, %212 : vector<1x1536xf32>
    %215 = math.exp %214 : vector<1x1536xf32>
    %cst_200 = arith.constant 1.000000e+00 : f32
    %216 = vector.broadcast %cst_200 : f32 to vector<1x1536xf32>
    %217 = arith.addf %216, %215 : vector<1x1536xf32>
    %cst_201 = arith.constant 1.000000e+00 : f32
    %218 = vector.broadcast %cst_201 : f32 to vector<1x1536xf32>
    %219 = arith.divf %218, %217 : vector<1x1536xf32>
    %c0_202 = arith.constant 0 : index
    %c0_203 = arith.constant 0 : index
    %c0_204 = arith.constant 0 : index
    %220 = vector.load %arg18[%c0_202, %c0_203, %c0_204] : memref<1x1x1536xf32, #tpu.memory_space<vmem>>, vector<1x1x1536xf32>
    %221 = vector.shape_cast %220 : vector<1x1x1536xf32> to vector<1x1536xf32>
    %222 = vector.shape_cast %219 : vector<1x1536xf32> to vector<1x1x1536xf32>
    tpu.vector_store %arg18[%c0_202, %c0_203, %c0_204], %222 {strides = array<i32>} : memref<1x1x1536xf32, #tpu.memory_space<vmem>>, vector<1x1x1536xf32>,
    return
  }
  func.func @transform_0(%arg0: i32) -> (i32, i32, i32) {
    %c0_i32 = arith.constant 0 : i32
    %c0_i32_0 = arith.constant 0 : i32
    %c0_i32_1 = arith.constant 0 : i32
    return %arg0, %c0_i32, %c0_i32_0 : i32, i32, i32
  }
  func.func @transform_1(%arg0: i32) -> (i32, i32, i32) {
    %c0_i32 = arith.constant 0 : i32
    %c0_i32_0 = arith.constant 0 : i32
    %c0_i32_1 = arith.constant 0 : i32
    %c0_i32_2 = arith.constant 0 : i32
    return %c0_i32, %c0_i32_0, %c0_i32_1 : i32, i32, i32
  }
  func.func @transform_2(%arg0: i32) -> (i32, i32, i32) {
    %c0_i32 = arith.constant 0 : i32
    %c0_i32_0 = arith.constant 0 : i32
    %c0_i32_1 = arith.constant 0 : i32
    %c0_i32_2 = arith.constant 0 : i32
    return %c0_i32, %c0_i32_0, %c0_i32_1 : i32, i32, i32
  }
  func.func @transform_3(%arg0: i32) -> (i32, i32, i32) {
    %c0_i32 = arith.constant 0 : i32
    %c0_i32_0 = arith.constant 0 : i32
    %c0_i32_1 = arith.constant 0 : i32
    %c0_i32_2 = arith.constant 0 : i32
    return %c0_i32, %c0_i32_0, %c0_i32_1 : i32, i32, i32
  }
  func.func @transform_4(%arg0: i32) -> (i32, i32, i32) {
    %c0_i32 = arith.constant 0 : i32
    %c0_i32_0 = arith.constant 0 : i32
    %c0_i32_1 = arith.constant 0 : i32
    %c0_i32_2 = arith.constant 0 : i32
    return %c0_i32, %c0_i32_0, %c0_i32_1 : i32, i32, i32
  }
  func.func @transform_5(%arg0: i32) -> (i32, i32, i32) {
    %c0_i32 = arith.constant 0 : i32
    %c0_i32_0 = arith.constant 0 : i32
    %c0_i32_1 = arith.constant 0 : i32
    %c0_i32_2 = arith.constant 0 : i32
    return %c0_i32, %c0_i32_0, %c0_i32_1 : i32, i32, i32
  }
  func.func @transform_6(%arg0: i32) -> (i32, i32) {
    %c0_i32 = arith.constant 0 : i32
    %c0_i32_0 = arith.constant 0 : i32
    %c0_i32_1 = arith.constant 0 : i32
    return %c0_i32, %c0_i32_0 : i32, i32
  }
  func.func @transform_7(%arg0: i32) -> (i32, i32) {
    %c0_i32 = arith.constant 0 : i32
    %c0_i32_0 = arith.constant 0 : i32
    %c0_i32_1 = arith.constant 0 : i32
    return %c0_i32, %c0_i32_0 : i32, i32
  }
  func.func @transform_8(%arg0: i32) -> (i32, i32) {
    %c0_i32 = arith.constant 0 : i32
    %c0_i32_0 = arith.constant 0 : i32
    %c0_i32_1 = arith.constant 0 : i32
    return %c0_i32, %c0_i32_0 : i32, i32
  }
  func.func @transform_9(%arg0: i32) -> (i32, i32) {
    %c0_i32 = arith.constant 0 : i32
    %c0_i32_0 = arith.constant 0 : i32
    %c0_i32_1 = arith.constant 0 : i32
    return %c0_i32, %c0_i32_0 : i32, i32
  }
  func.func @transform_10(%arg0: i32) -> (i32, i32) {
    %c0_i32 = arith.constant 0 : i32
    %c0_i32_0 = arith.constant 0 : i32
    %c0_i32_1 = arith.constant 0 : i32
    return %c0_i32, %c0_i32_0 : i32, i32
  }
  func.func @transform_11(%arg0: i32) -> (i32, i32, i32) {
    %c0_i32 = arith.constant 0 : i32
    %c0_i32_0 = arith.constant 0 : i32
    %c0_i32_1 = arith.constant 0 : i32
    %c0_i32_2 = arith.constant 0 : i32
    return %c0_i32, %c0_i32_0, %c0_i32_1 : i32, i32, i32
  }
  func.func @transform_12(%arg0: i32) -> (i32, i32, i32) {
    %c0_i32 = arith.constant 0 : i32
    %c0_i32_0 = arith.constant 0 : i32
    %c0_i32_1 = arith.constant 0 : i32
    %c0_i32_2 = arith.constant 0 : i32
    return %c0_i32, %c0_i32_0, %c0_i32_1 : i32, i32, i32
  }
  func.func @transform_13(%arg0: i32) -> (i32, i32, i32) {
    %c0_i32 = arith.constant 0 : i32
    %c0_i32_0 = arith.constant 0 : i32
    %c0_i32_1 = arith.constant 0 : i32
    %c0_i32_2 = arith.constant 0 : i32
    return %c0_i32, %c0_i32_0, %c0_i32_1 : i32, i32, i32
  }
  func.func @transform_14(%arg0: i32) -> (i32, i32) {
    %c0_i32 = arith.constant 0 : i32
    %c0_i32_0 = arith.constant 0 : i32
    %c0_i32_1 = arith.constant 0 : i32
    return %c0_i32, %c0_i32_0 : i32, i32
  }
  func.func @transform_15(%arg0: i32) -> (i32, i32) {
    %c0_i32 = arith.constant 0 : i32
    %c0_i32_0 = arith.constant 0 : i32
    %c0_i32_1 = arith.constant 0 : i32
    return %c0_i32, %c0_i32_0 : i32, i32
  }
  func.func @transform_16(%arg0: i32) -> (i32, i32) {
    %c0_i32 = arith.constant 0 : i32
    %c0_i32_0 = arith.constant 0 : i32
    %c0_i32_1 = arith.constant 0 : i32
    return %c0_i32, %c0_i32_0 : i32, i32
  }
  func.func @transform_17(%arg0: i32) -> (i32, i32, i32) {
    %c0_i32 = arith.constant 0 : i32
    %c0_i32_0 = arith.constant 0 : i32
    %c0_i32_1 = arith.constant 0 : i32
    return %arg0, %c0_i32, %c0_i32_0 : i32, i32, i32
  }
}

</mosaic_0001>

<llo_original>
// kernel: tpu_custom_call.1
$region0: #{tpu_custom_call.1}
  #allocation0 [shape = 'u32[]', space=smem, size = 0x4, offset = 0x4, fixed_abs, tag = 'smem constant byte address 0x4 - core index']
  #allocation1 [shape = 'u32[144,128]{1,0:T(1,128)}', space=vmem, size = 0x12000, scoped, tag = 'internal scratch']
  #allocation2 [shape = 'f32[30,240]{1,0:T(8,128)}', space=vmem, size = 0x8000, scoped, tag = 'scratch operand']
  #allocation3 [shape = 'f32[16,512]{1,0:T(8,128)}', space=vmem, size = 0x8000, scoped, tag = 'scratch operand']
  #allocation4 [shape = 'f32[16,512]{1,0:T(8,128)}', space=vmem, size = 0x8000, scoped, tag = 'scratch operand']
  #allocation5 [shape = 'f32[9,288]{1,0:T(8,128)}', space=vmem, size = 0x6000, scoped, tag = 'scratch operand']
  #allocation6 [shape = 'f32[9,288]{1,0:T(8,128)}', space=vmem, size = 0x6000, scoped, tag = 'scratch operand']
  %s0 = inlined_call_operand.vmem [shape: f32[2,28,224], index: 0, kind: input, shape index: {}]
  %s1 = inlined_call_operand.vmem [shape: f32[3,240,448], index: 1, kind: input, shape index: {}]
  %s2 = inlined_call_operand.vmem [shape: f32[3,512,448], index: 2, kind: input, shape index: {}]
  %s3 = inlined_call_operand.vmem [shape: f32[3,512,224], index: 3, kind: input, shape index: {}]
  %s4 = inlined_call_operand.vmem [shape: f32[3,288,224], index: 4, kind: input, shape index: {}]
  %s5 = inlined_call_operand.vmem [shape: f32[3,288,224], index: 5, kind: input, shape index: {}]
  %s6 = inlined_call_operand.vmem [shape: f32[2,448], index: 6, kind: input, shape index: {}]
  %s7 = inlined_call_operand.vmem [shape: f32[2,448], index: 7, kind: input, shape index: {}]
  %s8 = inlined_call_operand.vmem [shape: f32[2,224], index: 8, kind: input, shape index: {}]
  %s9 = inlined_call_operand.vmem [shape: f32[2,224], index: 9, kind: input, shape index: {}]
  %s10 = inlined_call_operand.vmem [shape: f32[2,224], index: 10, kind: input, shape index: {}]
  %s11 = inlined_call_operand.vmem [shape: f32[3,14,30], index: 11, kind: input, shape index: {}]
  %s12 = inlined_call_operand.vmem [shape: f32[3,7,16], index: 12, kind: input, shape index: {}]
  %s13 = inlined_call_operand.vmem [shape: f32[7,224,128], index: 13, kind: input, shape index: {}]
  %s14 = inlined_call_operand.vmem [shape: f32[1,128], index: 14, kind: input, shape index: {}]
  %s15 = inlined_call_operand.vmem [shape: f32[128,1536], index: 15, kind: input, shape index: {}]
  %s16 = inlined_call_operand.vmem [shape: f32[1,1536], index: 16, kind: input, shape index: {}]
  %s17 = inlined_call_operand.hbm [shape: f32[2,1,1536], index: 17, kind: output, shape index: {}]
  %s18 = sld [smem:[#allocation0]]
  $region101: #{tpu_custom_call.1} parent=0
    _
  %s20 = ssub.s32 1, %s18
  %s21 = scalar_select 0, %s20, %s18
  $region1: #{tpu_custom_call.1} parent=0
    #allocation7 [shape = 'u8[12288]{0}', space=vmem, size = 0x3000, scoped, tag = 'output window, operand 0']
    #allocation8 [shape = 's32[2]{0}', space=sflag, size = 0x8, scoped, tag = 'scoped memory for tpu_custom_call.1']
    %22 = vsyncpa [#allocation8], 0
    %s23 = scalar_lea.sflag [#allocation8], 1
    %24 = vsyncpa %s23, 0
    loop: start=0, step=1, limit=4
    $region2: #{tpu_custom_call.1} parent=1 // loop_pre_header
      _
    $region3: #{tpu_custom_call.1} parent=1 // loop_header
      %s26 = sphi 0, %s30
      %p27 = scmp.ge.s32.totalorder %s26, 4
      %s36 = sphi 0, %s38
      %s39 = sphi 0, %s36
      %s40 = sphi 0, %s39
      %s56 = sphi 0, %s40
      %s60 = sphi 0, %s60
      %s62 = sphi 0, %s60
      %s63 = sphi 0, %s62
      %s77 = sphi 0, %s63
      %s81 = sphi 0, %s81
      %s83 = sphi 0, %s81
      %s84 = sphi 0, %s83
      %s98 = sphi 0, %s84
      %s102 = sphi 0, %s102
      %s104 = sphi 0, %s102
      %s105 = sphi 0, %s104
      %s119 = sphi 0, %s105
      %s123 = sphi 0, %s123
      %s125 = sphi 0, %s123
      %s126 = sphi 0, %s125
      %s140 = sphi 0, %s126
      %s144 = sphi 0, %s144
      %s146 = sphi 0, %s144
      %s147 = sphi 0, %s146
      %s161 = sphi 0, %s147
      %s165 = sphi 0, %s165
      %s167 = sphi 0, %s165
      %s168 = sphi 0, %s167
      %s182 = sphi 0, %s168
      %s186 = sphi 0, %s186
      %s188 = sphi 0, %s186
      %s189 = sphi 0, %s188
      %s203 = sphi 0, %s189
      %s207 = sphi 0, %s207
      %s209 = sphi 0, %s207
      %s210 = sphi 0, %s209
      %s224 = sphi 0, %s210
      %s228 = sphi 0, %s228
      %s230 = sphi 0, %s228
      %s231 = sphi 0, %s230
      %s245 = sphi 0, %s231
      %s249 = sphi 0, %s249
      %s251 = sphi 0, %s249
      %s252 = sphi 0, %s251
      %s266 = sphi 0, %s252
      %s270 = sphi 0, %s270
      %s272 = sphi 0, %s270
      %s273 = sphi 0, %s272
      %s287 = sphi 0, %s273
      %s291 = sphi 0, %s291
      %s293 = sphi 0, %s291
      %s294 = sphi 0, %s293
      %s308 = sphi 0, %s294
      %s312 = sphi 0, %s312
      %s314 = sphi 0, %s312
      %s315 = sphi 0, %s314
      %s329 = sphi 0, %s315
      %s333 = sphi 0, %s333
      %s335 = sphi 0, %s333
      %s336 = sphi 0, %s335
      %s350 = sphi 0, %s336
      %s354 = sphi 0, %s354
      %s356 = sphi 0, %s354
      %s357 = sphi 0, %s356
      %s371 = sphi 0, %s357
      %s375 = sphi 0, %s375
      %s377 = sphi 0, %s375
      %s378 = sphi 0, %s377
      %s392 = sphi 0, %s378
      %s398 = sphi 0, %s400
      %s401 = sphi 0, %s398
      %s402 = sphi 0, %s401
      %s418 = sphi 0, %s402
    $region4: #{tpu_custom_call.1} parent=1 // loop_header_branch
      %29 = sbr.rel (%p27) target = $region8
    $region5: #{tpu_custom_call.1} parent=1 // loop_body
      %s31 = ssub.s32 %s26, 1
      %s32 = ssub.s32 %s26, 2
      %s33 = sadd.s32 %s26, 1
      %s34 = ssub.s32 %s26, %s33
      %p35 = scmp.eq.s32.totalorder %s34, 0
      %s37 = sadd.s32 %s36, 1
      %s38 = scalar_select %p35, %s36, %s37
      %p41 = pneg %p35
      %p42 = scmp.eq.s32.totalorder %s26, 1
      %p43 = por %p41, %p42
      %p44 = scmp.ne.s32.totalorder %s36, %s39
      %p45 = scmp.eq.s32.totalorder %s26, 0
      %p46 = por %p44, %p45
      %p47 = scmp.ne.s32.totalorder %s36, %s39
      %p48 = scmp.eq.s32.totalorder %s31, 1
      %p49 = por %p47, %p48
      %p50 = scmp.ne.s32.totalorder %s39, %s40
      %p51 = scmp.eq.s32.totalorder %s31, 0
      %p52 = por %p50, %p51
      %p53 = scmp.ne.s32.totalorder %s39, %s40
      %p54 = scmp.eq.s32.totalorder %s32, 1
      %p55 = por %p53, %p54
      %p57 = scmp.ne.s32.totalorder %s40, %s56
      %p58 = scmp.eq.s32.totalorder %s32, 0
      %p59 = por %p57, %p58
      %s61 = sadd.s32 %s60, 1
      %p64 = scmp.eq.s32.totalorder %s26, 1
      %p65 = scmp.ne.s32.totalorder %s60, %s62
      %p66 = scmp.eq.s32.totalorder %s26, 0
      %p67 = por %p65, %p66
      %p68 = scmp.ne.s32.totalorder %s60, %s62
      %p69 = scmp.eq.s32.totalorder %s31, 1
      %p70 = por %p68, %p69
      %p71 = scmp.ne.s32.totalorder %s62, %s63
      %p72 = scmp.eq.s32.totalorder %s31, 0
      %p73 = por %p71, %p72
      %p74 = scmp.ne.s32.totalorder %s62, %s63
      %p75 = scmp.eq.s32.totalorder %s32, 1
      %p76 = por %p74, %p75
      %p78 = scmp.ne.s32.totalorder %s63, %s77
      %p79 = scmp.eq.s32.totalorder %s32, 0
      %p80 = por %p78, %p79
      %s82 = sadd.s32 %s81, 1
      %p85 = scmp.eq.s32.totalorder %s26, 1
      %p86 = scmp.ne.s32.totalorder %s81, %s83
      %p87 = scmp.eq.s32.totalorder %s26, 0
      %p88 = por %p86, %p87
      %p89 = scmp.ne.s32.totalorder %s81, %s83
      %p90 = scmp.eq.s32.totalorder %s31, 1
      %p91 = por %p89, %p90
      %p92 = scmp.ne.s32.totalorder %s83, %s84
      %p93 = scmp.eq.s32.totalorder %s31, 0
      %p94 = por %p92, %p93
      %p95 = scmp.ne.s32.totalorder %s83, %s84
      %p96 = scmp.eq.s32.totalorder %s32, 1
      %p97 = por %p95, %p96
      %p99 = scmp.ne.s32.totalorder %s84, %s98
      %p100 = scmp.eq.s32.totalorder %s32, 0
      %p101 = por %p99, %p100
      %s103 = sadd.s32 %s102, 1
      %p106 = scmp.eq.s32.totalorder %s26, 1
      %p107 = scmp.ne.s32.totalorder %s102, %s104
      %p108 = scmp.eq.s32.totalorder %s26, 0
      %p109 = por %p107, %p108
      %p110 = scmp.ne.s32.totalorder %s102, %s104
      %p111 = scmp.eq.s32.totalorder %s31, 1
      %p112 = por %p110, %p111
      %p113 = scmp.ne.s32.totalorder %s104, %s105
      %p114 = scmp.eq.s32.totalorder %s31, 0
      %p115 = por %p113, %p114
      %p116 = scmp.ne.s32.totalorder %s104, %s105
      %p117 = scmp.eq.s32.totalorder %s32, 1
      %p118 = por %p116, %p117
      %p120 = scmp.ne.s32.totalorder %s105, %s119
      %p121 = scmp.eq.s32.totalorder %s32, 0
      %p122 = por %p120, %p121
      %s124 = sadd.s32 %s123, 1
      %p127 = scmp.eq.s32.totalorder %s26, 1
      %p128 = scmp.ne.s32.totalorder %s123, %s125
      %p129 = scmp.eq.s32.totalorder %s26, 0
      %p130 = por %p128, %p129
      %p131 = scmp.ne.s32.totalorder %s123, %s125
      %p132 = scmp.eq.s32.totalorder %s31, 1
      %p133 = por %p131, %p132
      %p134 = scmp.ne.s32.totalorder %s125, %s126
      %p135 = scmp.eq.s32.totalorder %s31, 0
      %p136 = por %p134, %p135
      %p137 = scmp.ne.s32.totalorder %s125, %s126
      %p138 = scmp.eq.s32.totalorder %s32, 1
      %p139 = por %p137, %p138
      %p141 = scmp.ne.s32.totalorder %s126, %s140
      %p142 = scmp.eq.s32.totalorder %s32, 0
      %p143 = por %p141, %p142
      %s145 = sadd.s32 %s144, 1
      %p148 = scmp.eq.s32.totalorder %s26, 1
      %p149 = scmp.ne.s32.totalorder %s144, %s146
      %p150 = scmp.eq.s32.totalorder %s26, 0
      %p151 = por %p149, %p150
      %p152 = scmp.ne.s32.totalorder %s144, %s146
      %p153 = scmp.eq.s32.totalorder %s31, 1
      %p154 = por %p152, %p153
      %p155 = scmp.ne.s32.totalorder %s146, %s147
      %p156 = scmp.eq.s32.totalorder %s31, 0
      %p157 = por %p155, %p156
      %p158 = scmp.ne.s32.totalorder %s146, %s147
      %p159 = scmp.eq.s32.totalorder %s32, 1
      %p160 = por %p158, %p159
      %p162 = scmp.ne.s32.totalorder %s147, %s161
      %p163 = scmp.eq.s32.totalorder %s32, 0
      %p164 = por %p162, %p163
      %s166 = sadd.s32 %s165, 1
      %p169 = scmp.eq.s32.totalorder %s26, 1
      %p170 = scmp.ne.s32.totalorder %s165, %s167
      %p171 = scmp.eq.s32.totalorder %s26, 0
      %p172 = por %p170, %p171
      %p173 = scmp.ne.s32.totalorder %s165, %s167
      %p174 = scmp.eq.s32.totalorder %s31, 1
      %p175 = por %p173, %p174
      %p176 = scmp.ne.s32.totalorder %s167, %s168
      %p177 = scmp.eq.s32.totalorder %s31, 0
      %p178 = por %p176, %p177
      %p179 = scmp.ne.s32.totalorder %s167, %s168
      %p180 = scmp.eq.s32.totalorder %s32, 1
      %p181 = por %p179, %p180
      %p183 = scmp.ne.s32.totalorder %s168, %s182
      %p184 = scmp.eq.s32.totalorder %s32, 0
      %p185 = por %p183, %p184
      %s187 = sadd.s32 %s186, 1
      %p190 = scmp.eq.s32.totalorder %s26, 1
      %p191 = scmp.ne.s32.totalorder %s186, %s188
      %p192 = scmp.eq.s32.totalorder %s26, 0
      %p193 = por %p191, %p192
      %p194 = scmp.ne.s32.totalorder %s186, %s188
      %p195 = scmp.eq.s32.totalorder %s31, 1
      %p196 = por %p194, %p195
      %p197 = scmp.ne.s32.totalorder %s188, %s189
      %p198 = scmp.eq.s32.totalorder %s31, 0
      %p199 = por %p197, %p198
      %p200 = scmp.ne.s32.totalorder %s188, %s189
      %p201 = scmp.eq.s32.totalorder %s32, 1
      %p202 = por %p200, %p201
      %p204 = scmp.ne.s32.totalorder %s189, %s203
      %p205 = scmp.eq.s32.totalorder %s32, 0
      %p206 = por %p204, %p205
      %s208 = sadd.s32 %s207, 1
      %p211 = scmp.eq.s32.totalorder %s26, 1
      %p212 = scmp.ne.s32.totalorder %s207, %s209
      %p213 = scmp.eq.s32.totalorder %s26, 0
      %p214 = por %p212, %p213
      %p215 = scmp.ne.s32.totalorder %s207, %s209
      %p216 = scmp.eq.s32.totalorder %s31, 1
      %p217 = por %p215, %p216
      %p218 = scmp.ne.s32.totalorder %s209, %s210
      %p219 = scmp.eq.s32.totalorder %s31, 0
      %p220 = por %p218, %p219
      %p221 = scmp.ne.s32.totalorder %s209, %s210
      %p222 = scmp.eq.s32.totalorder %s32, 1
      %p223 = por %p221, %p222
      %p225 = scmp.ne.s32.totalorder %s210, %s224
      %p226 = scmp.eq.s32.totalorder %s32, 0
      %p227 = por %p225, %p226
      %s229 = sadd.s32 %s228, 1
      %p232 = scmp.eq.s32.totalorder %s26, 1
      %p233 = scmp.ne.s32.totalorder %s228, %s230
      %p234 = scmp.eq.s32.totalorder %s26, 0
      %p235 = por %p233, %p234
      %p236 = scmp.ne.s32.totalorder %s228, %s230
      %p237 = scmp.eq.s32.totalorder %s31, 1
      %p238 = por %p236, %p237
      %p239 = scmp.ne.s32.totalorder %s230, %s231
      %p240 = scmp.eq.s32.totalorder %s31, 0
      %p241 = por %p239, %p240
      %p242 = scmp.ne.s32.totalorder %s230, %s231
      %p243 = scmp.eq.s32.totalorder %s32, 1
      %p244 = por %p242, %p243
      %p246 = scmp.ne.s32.totalorder %s231, %s245
      %p247 = scmp.eq.s32.totalorder %s32, 0
      %p248 = por %p246, %p247
      %s250 = sadd.s32 %s249, 1
      %p253 = scmp.eq.s32.totalorder %s26, 1
      %p254 = scmp.ne.s32.totalorder %s249, %s251
      %p255 = scmp.eq.s32.totalorder %s26, 0
      %p256 = por %p254, %p255
      %p257 = scmp.ne.s32.totalorder %s249, %s251
      %p258 = scmp.eq.s32.totalorder %s31, 1
      %p259 = por %p257, %p258
      %p260 = scmp.ne.s32.totalorder %s251, %s252
      %p261 = scmp.eq.s32.totalorder %s31, 0
      %p262 = por %p260, %p261
      %p263 = scmp.ne.s32.totalorder %s251, %s252
      %p264 = scmp.eq.s32.totalorder %s32, 1
      %p265 = por %p263, %p264
      %p267 = scmp.ne.s32.totalorder %s252, %s266
      %p268 = scmp.eq.s32.totalorder %s32, 0
      %p269 = por %p267, %p268
      %s271 = sadd.s32 %s270, 1
      %p274 = scmp.eq.s32.totalorder %s26, 1
      %p275 = scmp.ne.s32.totalorder %s270, %s272
      %p276 = scmp.eq.s32.totalorder %s26, 0
      %p277 = por %p275, %p276
      %p278 = scmp.ne.s32.totalorder %s270, %s272
      %p279 = scmp.eq.s32.totalorder %s31, 1
      %p280 = por %p278, %p279
      %p281 = scmp.ne.s32.totalorder %s272, %s273
      %p282 = scmp.eq.s32.totalorder %s31, 0
      %p283 = por %p281, %p282
      %p284 = scmp.ne.s32.totalorder %s272, %s273
      %p285 = scmp.eq.s32.totalorder %s32, 1
      %p286 = por %p284, %p285
      %p288 = scmp.ne.s32.totalorder %s273, %s287
      %p289 = scmp.eq.s32.totalorder %s32, 0
      %p290 = por %p288, %p289
      %s292 = sadd.s32 %s291, 1
      %p295 = scmp.eq.s32.totalorder %s26, 1
      %p296 = scmp.ne.s32.totalorder %s291, %s293
      %p297 = scmp.eq.s32.totalorder %s26, 0
      %p298 = por %p296, %p297
      %p299 = scmp.ne.s32.totalorder %s291, %s293
      %p300 = scmp.eq.s32.totalorder %s31, 1
      %p301 = por %p299, %p300
      %p302 = scmp.ne.s32.totalorder %s293, %s294
      %p303 = scmp.eq.s32.totalorder %s31, 0
      %p304 = por %p302, %p303
      %p305 = scmp.ne.s32.totalorder %s293, %s294
      %p306 = scmp.eq.s32.totalorder %s32, 1
      %p307 = por %p305, %p306
      %p309 = scmp.ne.s32.totalorder %s294, %s308
      %p310 = scmp.eq.s32.totalorder %s32, 0
      %p311 = por %p309, %p310
      %s313 = sadd.s32 %s312, 1
      %p316 = scmp.eq.s32.totalorder %s26, 1
      %p317 = scmp.ne.s32.totalorder %s312, %s314
      %p318 = scmp.eq.s32.totalorder %s26, 0
      %p319 = por %p317, %p318
      %p320 = scmp.ne.s32.totalorder %s312, %s314
      %p321 = scmp.eq.s32.totalorder %s31, 1
      %p322 = por %p320, %p321
      %p323 = scmp.ne.s32.totalorder %s314, %s315
      %p324 = scmp.eq.s32.totalorder %s31, 0
      %p325 = por %p323, %p324
      %p326 = scmp.ne.s32.totalorder %s314, %s315
      %p327 = scmp.eq.s32.totalorder %s32, 1
      %p328 = por %p326, %p327
      %p330 = scmp.ne.s32.totalorder %s315, %s329
      %p331 = scmp.eq.s32.totalorder %s32, 0
      %p332 = por %p330, %p331
      %s334 = sadd.s32 %s333, 1
      %p337 = scmp.eq.s32.totalorder %s26, 1
      %p338 = scmp.ne.s32.totalorder %s333, %s335
      %p339 = scmp.eq.s32.totalorder %s26, 0
      %p340 = por %p338, %p339
      %p341 = scmp.ne.s32.totalorder %s333, %s335
      %p342 = scmp.eq.s32.totalorder %s31, 1
      %p343 = por %p341, %p342
      %p344 = scmp.ne.s32.totalorder %s335, %s336
      %p345 = scmp.eq.s32.totalorder %s31, 0
      %p346 = por %p344, %p345
      %p347 = scmp.ne.s32.totalorder %s335, %s336
      %p348 = scmp.eq.s32.totalorder %s32, 1
      %p349 = por %p347, %p348
      %p351 = scmp.ne.s32.totalorder %s336, %s350
      %p352 = scmp.eq.s32.totalorder %s32, 0
      %p353 = por %p351, %p352
      %s355 = sadd.s32 %s354, 1
      %p358 = scmp.eq.s32.totalorder %s26, 1
      %p359 = scmp.ne.s32.totalorder %s354, %s356
      %p360 = scmp.eq.s32.totalorder %s26, 0
      %p361 = por %p359, %p360
      %p362 = scmp.ne.s32.totalorder %s354, %s356
      %p363 = scmp.eq.s32.totalorder %s31, 1
      %p364 = por %p362, %p363
      %p365 = scmp.ne.s32.totalorder %s356, %s357
      %p366 = scmp.eq.s32.totalorder %s31, 0
      %p367 = por %p365, %p366
      %p368 = scmp.ne.s32.totalorder %s356, %s357
      %p369 = scmp.eq.s32.totalorder %s32, 1
      %p370 = por %p368, %p369
      %p372 = scmp.ne.s32.totalorder %s357, %s371
      %p373 = scmp.eq.s32.totalorder %s32, 0
      %p374 = por %p372, %p373
      %s376 = sadd.s32 %s375, 1
      %p379 = scmp.eq.s32.totalorder %s26, 1
      %p380 = scmp.ne.s32.totalorder %s375, %s377
      %p381 = scmp.eq.s32.totalorder %s26, 0
      %p382 = por %p380, %p381
      %p383 = scmp.ne.s32.totalorder %s375, %s377
      %p384 = scmp.eq.s32.totalorder %s31, 1
      %p385 = por %p383, %p384
      %p386 = scmp.ne.s32.totalorder %s377, %s378
      %p387 = scmp.eq.s32.totalorder %s31, 0
      %p388 = por %p386, %p387
      %p389 = scmp.ne.s32.totalorder %s377, %s378
      %p390 = scmp.eq.s32.totalorder %s32, 1
      %p391 = por %p389, %p390
      %p393 = scmp.ne.s32.totalorder %s378, %s392
      %p394 = scmp.eq.s32.totalorder %s32, 0
      %p395 = por %p393, %p394
      %s396 = ssub.s32 %s26, %s33
      %p397 = scmp.eq.s32.totalorder %s396, 0
      %s399 = sadd.s32 %s398, 1
      %s400 = scalar_select %p397, %s398, %s399
      %p403 = pneg %p397
      %p404 = scmp.eq.s32.totalorder %s26, 1
      %p405 = por %p403, %p404
      %p406 = scmp.ne.s32.totalorder %s398, %s401
      %p407 = scmp.eq.s32.totalorder %s26, 0
      %p408 = por %p406, %p407
      %p409 = scmp.ne.s32.totalorder %s398, %s401
      %p410 = scmp.eq.s32.totalorder %s31, 1
      %p411 = por %p409, %p410
      %p412 = scmp.ne.s32.totalorder %s401, %s402
      %p413 = scmp.eq.s32.totalorder %s31, 0
      %p414 = por %p412, %p413
      %p415 = scmp.ne.s32.totalorder %s401, %s402
      %p416 = scmp.eq.s32.totalorder %s32, 1
      %p417 = por %p415, %p416
      %p419 = scmp.ne.s32.totalorder %s402, %s418
      %p420 = scmp.eq.s32.totalorder %s32, 0
      %p421 = por %p419, %p420
      %p422 = scmp.le.s32.totalorder 1, %s26
      %p423 = scmp.lt.s32.totalorder %s26, 3
      %p424 = pnand %p422, %p423
      %p425 = pneg %p424
      // Predicated region
      $region9: #{tpu_custom_call.1} parent=5 // pred_check
        _
      $region10: #{tpu_custom_call.1} parent=5 // pred_check_branch
        %427 = sbr.rel (%p424) target = $region12
      $region11: #{tpu_custom_call.1} parent=5 // pred_region
        %s428 = ssub.s32 %s26, 1
        // Predicated region
        $region13: #{tpu_custom_call.1} parent=11 // pred_check
          %p429 = pneg %p73
        $region14: #{tpu_custom_call.1} parent=11 // pred_check_branch
          %431 = sbr.rel (%p429) target = $region16
        $region15: #{tpu_custom_call.1} parent=11 // pred_region
          _
        $region16: #{tpu_custom_call.1} parent=11 // pred_fallthru
          _
        // Predicated region
        $region17: #{tpu_custom_call.1} parent=11 // pred_check
          %p432 = pneg %p94
        $region18: #{tpu_custom_call.1} parent=11 // pred_check_branch
          %434 = sbr.rel (%p432) target = $region20
        $region19: #{tpu_custom_call.1} parent=11 // pred_region
          _
        $region20: #{tpu_custom_call.1} parent=11 // pred_fallthru
          _
        // Predicated region
        $region21: #{tpu_custom_call.1} parent=11 // pred_check
          %p435 = pneg %p115
        $region22: #{tpu_custom_call.1} parent=11 // pred_check_branch
          %437 = sbr.rel (%p435) target = $region24
        $region23: #{tpu_custom_call.1} parent=11 // pred_region
          _
        $region24: #{tpu_custom_call.1} parent=11 // pred_fallthru
          _
        // Predicated region
        $region25: #{tpu_custom_call.1} parent=11 // pred_check
          %p438 = pneg %p136
        $region26: #{tpu_custom_call.1} parent=11 // pred_check_branch
          %440 = sbr.rel (%p438) target = $region28
        $region27: #{tpu_custom_call.1} parent=11 // pred_region
          _
        $region28: #{tpu_custom_call.1} parent=11 // pred_fallthru
          _
        // Predicated region
        $region29: #{tpu_custom_call.1} parent=11 // pred_check
          %p441 = pneg %p157
        $region30: #{tpu_custom_call.1} parent=11 // pred_check_branch
          %443 = sbr.rel (%p441) target = $region32
        $region31: #{tpu_custom_call.1} parent=11 // pred_region
          _
        $region32: #{tpu_custom_call.1} parent=11 // pred_fallthru
          _
        // Predicated region
        $region33: #{tpu_custom_call.1} parent=11 // pred_check
          %p444 = pneg %p178
        $region34: #{tpu_custom_call.1} parent=11 // pred_check_branch
          %446 = sbr.rel (%p444) target = $region36
        $region35: #{tpu_custom_call.1} parent=11 // pred_region
          _
        $region36: #{tpu_custom_call.1} parent=11 // pred_fallthru
          _
        // Predicated region
        $region37: #{tpu_custom_call.1} parent=11 // pred_check
          %p447 = pneg %p199
        $region38: #{tpu_custom_call.1} parent=11 // pred_check_branch
          %449 = sbr.rel (%p447) target = $region40
        $region39: #{tpu_custom_call.1} parent=11 // pred_region
          _
        $region40: #{tpu_custom_call.1} parent=11 // pred_fallthru
          _
        // Predicated region
        $region41: #{tpu_custom_call.1} parent=11 // pred_check
          %p450 = pneg %p220
        $region42: #{tpu_custom_call.1} parent=11 // pred_check_branch
          %452 = sbr.rel (%p450) target = $region44
        $region43: #{tpu_custom_call.1} parent=11 // pred_region
          _
        $region44: #{tpu_custom_call.1} parent=11 // pred_fallthru
          _
        // Predicated region
        $region45: #{tpu_custom_call.1} parent=11 // pred_check
          %p453 = pneg %p241
        $region46: #{tpu_custom_call.1} parent=11 // pred_check_branch
          %455 = sbr.rel (%p453) target = $region48
        $region47: #{tpu_custom_call.1} parent=11 // pred_region
          _
        $region48: #{tpu_custom_call.1} parent=11 // pred_fallthru
          _
        // Predicated region
        $region49: #{tpu_custom_call.1} parent=11 // pred_check
          %p456 = pneg %p262
        $region50: #{tpu_custom_call.1} parent=11 // pred_check_branch
          %458 = sbr.rel (%p456) target = $region52
        $region51: #{tpu_custom_call.1} parent=11 // pred_region
          _
        $region52: #{tpu_custom_call.1} parent=11 // pred_fallthru
          _
        // Predicated region
        $region53: #{tpu_custom_call.1} parent=11 // pred_check
          %p459 = pneg %p283
        $region54: #{tpu_custom_call.1} parent=11 // pred_check_branch
          %461 = sbr.rel (%p459) target = $region56
        $region55: #{tpu_custom_call.1} parent=11 // pred_region
          _
        $region56: #{tpu_custom_call.1} parent=11 // pred_fallthru
          _
        // Predicated region
        $region57: #{tpu_custom_call.1} parent=11 // pred_check
          %p462 = pneg %p304
        $region58: #{tpu_custom_call.1} parent=11 // pred_check_branch
          %464 = sbr.rel (%p462) target = $region60
        $region59: #{tpu_custom_call.1} parent=11 // pred_region
          _
        $region60: #{tpu_custom_call.1} parent=11 // pred_fallthru
          _
        // Predicated region
        $region61: #{tpu_custom_call.1} parent=11 // pred_check
          %p465 = pneg %p325
        $region62: #{tpu_custom_call.1} parent=11 // pred_check_branch
          %467 = sbr.rel (%p465) target = $region64
        $region63: #{tpu_custom_call.1} parent=11 // pred_region
          _
        $region64: #{tpu_custom_call.1} parent=11 // pred_fallthru
          _
        // Predicated region
        $region65: #{tpu_custom_call.1} parent=11 // pred_check
          %p468 = pneg %p346
        $region66: #{tpu_custom_call.1} parent=11 // pred_check_branch
          %470 = sbr.rel (%p468) target = $region68
        $region67: #{tpu_custom_call.1} parent=11 // pred_region
          _
        $region68: #{tpu_custom_call.1} parent=11 // pred_fallthru
          _
        // Predicated region
        $region69: #{tpu_custom_call.1} parent=11 // pred_check
          %p471 = pneg %p367
        $region70: #{tpu_custom_call.1} parent=11 // pred_check_branch
          %473 = sbr.rel (%p471) target = $region72
        $region71: #{tpu_custom_call.1} parent=11 // pred_region
          _
        $region72: #{tpu_custom_call.1} parent=11 // pred_fallthru
          _
        // Predicated region
        $region73: #{tpu_custom_call.1} parent=11 // pred_check
          %p474 = pneg %p388
        $region74: #{tpu_custom_call.1} parent=11 // pred_check_branch
          %476 = sbr.rel (%p474) target = $region76
        $region75: #{tpu_custom_call.1} parent=11 // pred_region
          _
        $region76: #{tpu_custom_call.1} parent=11 // pred_fallthru
          _
      $region12: #{tpu_custom_call.1} parent=5 // pred_fallthru
        _
      %p477 = scmp.lt.s32.totalorder %s26, 2
      // Predicated region
      $region77: #{tpu_custom_call.1} parent=5 // pred_check
        %p478 = pneg %p477
      $region78: #{tpu_custom_call.1} parent=5 // pred_check_branch
        %480 = sbr.rel (%p478) target = $region80
      $region79: #{tpu_custom_call.1} parent=5 // pred_region
        // Predicated region
        $region81: #{tpu_custom_call.1} parent=79 // pred_check
          %p481 = pneg %p46
        $region82: #{tpu_custom_call.1} parent=79 // pred_check_branch
          %483 = sbr.rel (%p481) target = $region84
        $region83: #{tpu_custom_call.1} parent=79 // pred_region
          %p484 = scmp.lt.s32.totalorder %s26, 1
          %s485 = scalar_select %p484, %s26, 1
          %s486 = smul.addr %s485, 8
          %s487 = smul.addr %s486, 8
          %s488 = scalar_lea.vmem %s0, %s487
        $region84: #{tpu_custom_call.1} parent=79 // pred_fallthru
          _
      $region80: #{tpu_custom_call.1} parent=5 // pred_fallthru
        _
      %p489 = scmp.le.s32.totalorder 1, %s26
      %p490 = scmp.lt.s32.totalorder %s26, 3
      %p491 = pnand %p489, %p490
      %p492 = pneg %p491
      // Predicated region
      $region85: #{tpu_custom_call.1} parent=5 // pred_check
        _
      $region86: #{tpu_custom_call.1} parent=5 // pred_check_branch
        %494 = sbr.rel (%p491) target = $region88
      $region87: #{tpu_custom_call.1} parent=5 // pred_region
        %s495 = ssub.s32 %s26, 1
        %p496 = scmp.lt.s32.totalorder %s31, 1
        %s497 = scalar_select %p496, %s31, 1
        %s498 = smul.addr %s497, 8
        %s499 = smul.addr %s498, 8
        %s500 = scalar_lea.vmem %s0, %s499
        %p501 = pneg %p52
        %p502 = pneg %p49
        %p503 = pneg %p73
        %p504 = pneg %p70
        %p505 = pneg %p94
        %p506 = pneg %p91
        %p507 = pneg %p115
        %p508 = pneg %p112
        %p509 = pneg %p136
        %p510 = pneg %p133
        %p511 = pneg %p157
        %p512 = pneg %p154
        %p513 = pneg %p178
        %p514 = pneg %p175
        %p515 = pneg %p199
        %p516 = pneg %p196
        %p517 = pneg %p220
        %p518 = pneg %p217
        %p519 = pneg %p241
        %p520 = pneg %p238
        %p521 = pneg %p262
        %p522 = pneg %p259
        %p523 = pneg %p283
        %p524 = pneg %p280
        %p525 = pneg %p304
        %p526 = pneg %p301
        %p527 = pneg %p325
        %p528 = pneg %p322
        %p529 = pneg %p346
        %p530 = pneg %p343
        %p531 = pneg %p367
        %p532 = pneg %p364
        %p533 = pneg %p388
        %p534 = pneg %p385
        %p535 = pneg %p414
        %p536 = pneg %p411
        %s537 = sand.u32 %s401, 1
        %s538 = scalar_lea.sflag [#allocation8], %s537
        %s539 = sand.u32 %s401, 1
        %s540 = smul.addr %s539, 12
        %s541 = scalar_lea.vmem [#allocation7], %s540
        %p542 = scmp.lt.s32.totalorder %s31, 1
        %s543 = scalar_select %p542, %s31, 1
        %s544 = smul.addr %s543, 8
        %s545 = smul.addr %s544, 8
        %s546 = scalar_lea.vmem %s0, %s545
        %547 = vst [vmem:[#allocation2] sm:$0xff] 0.0
        %vm548 = vcmask 916480
        %549 = vst.msk [vmem:[#allocation2 + $0x8] sm:$0xff] %vm548, 0.0
        %550 = vst [vmem:[#allocation2 + $0x10] sm:$0xff] 0.0
        %551 = vst.msk [vmem:[#allocation2 + $0x18] sm:$0xff] %vm548, 0.0
        %552 = vst [vmem:[#allocation2 + $0x20] sm:$0xff] 0.0
        %553 = vst.msk [vmem:[#allocation2 + $0x28] sm:$0xff] %vm548, 0.0
        %554 = vst [vmem:[#allocation2 + $0x30] sm:$0x3f] 0.0
        %vm555 = vcmask 914432
        %556 = vst.msk [vmem:[#allocation2 + $0x38] sm:$0x3f] %vm555, 0.0
        %557 = vst [vmem:[#allocation3] sm:$0xff] 0.0
        %558 = vst [vmem:[#allocation3 + $0x8] sm:$0xff] 0.0
        %559 = vst [vmem:[#allocation3 + $0x10] sm:$0xff] 0.0
        %560 = vst [vmem:[#allocation3 + $0x18] sm:$0xff] 0.0
        %561 = vst [vmem:[#allocation3 + $0x20] sm:$0xff] 0.0
        %562 = vst [vmem:[#allocation3 + $0x28] sm:$0xff] 0.0
        %563 = vst [vmem:[#allocation3 + $0x30] sm:$0xff] 0.0
        %564 = vst [vmem:[#allocation3 + $0x38] sm:$0xff] 0.0
        %565 = vst [vmem:[#allocation4] sm:$0xff] 0.0
        %566 = vst [vmem:[#allocation4 + $0x8] sm:$0xff] 0.0
        %567 = vst [vmem:[#allocation4 + $0x10] sm:$0xff] 0.0
        %568 = vst [vmem:[#allocation4 + $0x18] sm:$0xff] 0.0
        %569 = vst [vmem:[#allocation4 + $0x20] sm:$0xff] 0.0
        %570 = vst [vmem:[#allocation4 + $0x28] sm:$0xff] 0.0
        %571 = vst [vmem:[#allocation4 + $0x30] sm:$0xff] 0.0
        %572 = vst [vmem:[#allocation4 + $0x38] sm:$0xff] 0.0
        %573 = vst [vmem:[#allocation5] sm:$0xff] 0.0
        %574 = vst [vmem:[#allocation5 + $0x8] sm:$0xff] 0.0
        %vm575 = vcmask 261120
        %576 = vst.msk [vmem:[#allocation5 + $0x10] sm:$0xff] %vm575, 0.0
        %577 = vst [vmem:[#allocation5 + $0x18] sm:$0x1] 0.0
        %578 = vst [vmem:[#allocation5 + $0x20] sm:$0x1] 0.0
        %vm579 = vcmask 253952
        %580 = vst.msk [vmem:[#allocation5 + $0x28] sm:$0x1] %vm579, 0.0
        %581 = vst [vmem:[#allocation6] sm:$0xff] 0.0
        %582 = vst [vmem:[#allocation6 + $0x8] sm:$0xff] 0.0
        %583 = vst.msk [vmem:[#allocation6 + $0x10] sm:$0xff] %vm575, 0.0
        %584 = vst [vmem:[#allocation6 + $0x18] sm:$0x1] 0.0
        %585 = vst [vmem:[#allocation6 + $0x20] sm:$0x1] 0.0
        %586 = vst.msk [vmem:[#allocation6 + $0x28] sm:$0x1] %vm579, 0.0
        %v587 = vld [vmem:[%s546] sm:$0xff]
        %v588 = vld [vmem:[%s546 + $0x8] sm:$0xff]
        %v589 = vld [vmem:[%s546 + $0x10] sm:$0xff]
        %v590 = vld [vmem:[%s546 + $0x18] sm:$0xff]
        %v591 = vld [vmem:[%s546 + $0x20] sm:$0xff]
        %v592 = vld [vmem:[%s546 + $0x28] sm:$0xff]
        %v593 = vld [vmem:[%s546 + $0x30] sm:$0xf]
        %v594 = vld [vmem:[%s546 + $0x38] sm:$0xf]
        %vm603 = vcmask 1040384
        %v604 = vrot.slane %v587, 7
        %v605 = vrot.slane %v588, 7
        %v606 = vrot.slane %v589, 7
        %v607 = vsel %vm603, %v604, %v606
        %v608 = vrot.slane %v590, 7
        %v609 = vsel %vm603, %v605, %v608
        %v610 = vrot.slane %v591, 7
        %v611 = vsel %vm603, %v606, %v610
        %v612 = vrot.slane %v592, 7
        %v613 = vsel %vm603, %v608, %v612
        %v614 = vrot.slane %v593, 7
        %v615 = vsel %vm603, %v610, %v614
        %v616 = vrot.slane %v594, 7
        %v617 = vsel %vm603, %v612, %v616
        %626 = vst [vmem:[#allocation2] sm:$0xfe] %v604
        %vm627 = vcmask 785409
        %628 = vst.msk [vmem:[#allocation2 + $0x8] sm:$0xfe] %vm627, %v605
        %629 = vst [vmem:[#allocation2 + $0x10] sm:$0xff] %v607
        %vm630 = vcmask 785408
        %631 = vst.msk [vmem:[#allocation2 + $0x18] sm:$0xff] %vm630, %v609
        %632 = vst [vmem:[#allocation2 + $0x20] sm:$0xff] %v611
        %633 = vst.msk [vmem:[#allocation2 + $0x28] sm:$0xff] %vm630, %v613
        %634 = vst [vmem:[#allocation2 + $0x30] sm:$0x1f] %v615
        %vm635 = vcmask 782336
        %636 = vst.msk [vmem:[#allocation2 + $0x38] sm:$0x1f] %vm635, %v617
        %v637 = vld [vmem:[#allocation2] sm:$0xff]
        %v638 = vld [vmem:[#allocation2 + $0x8] sm:$0xff]
        %v639 = vld [vmem:[#allocation2 + $0x10] sm:$0xff]
        %v640 = vld [vmem:[#allocation2 + $0x18] sm:$0xff]
        %v641 = vld [vmem:[#allocation2 + $0x20] sm:$0xff]
        %v642 = vld [vmem:[#allocation2 + $0x28] sm:$0xff]
        %v643 = vld [vmem:[#allocation2 + $0x30] sm:$0x3f]
        %v644 = vld [vmem:[#allocation2 + $0x38] sm:$0x3f]
        %v645 = vld [vmem:[%s11] sm:$0xff]
        %v646 = vld [vmem:[%s11 + $0x8] sm:$0x3f]
        %vm647 = vcmask 244736
        %v649 = vsel %vm647, %v645, 0
        %v652 = vsel %vm647, %v646, 0
        %vm654 = vcmask 1045504
        %v656 = vsel %vm654, %v643, 0
        %v659 = vsel %vm654, %v644, 0
        %661 = vmatprep.subr.mxu0 %v638
        %662 = vmatpush1.msra.mxu0 %v637
        %663 = vmatprep.subr.mxu0 %v640
        %664 = vmatpush1.msra.mxu0 %v639
        %665 = vmatprep.subr.mxu0 %v642
        %666 = vmatpush1.msra.mxu0 %v641
        %667 = vmatprep.subr.mxu0 %v659
        %668 = vmatpush1.msra.mxu0 %v656
        %669 = vmatprep.subr.mxu0 0.0
        %670 = vmatpush1.msra.mxu0 0.0
        %671 = vmatprep.subr.mxu0 0.0
        %672 = vmatpush1.msra.mxu0 0.0
        %673 = vmatprep.subr.mxu0 0.0
        %674 = vmatpush1.msra.mxu0 0.0
        %675 = vmatprep.subr.mxu0 0.0
        %676 = vmatpush1.msra.mxu0 0.0
        %677 = vmatprep.subr.mxu0 0.0
        %678 = vmatpush1.msra.mxu0 0.0
        %679 = vmatprep.subr.mxu0 0.0
        %680 = vmatpush1.msra.mxu0 0.0
        %681 = vmatprep.subr.mxu0 0.0
        %682 = vmatpush1.msra.mxu0 0.0
        %683 = vmatprep.subr.mxu0 0.0
        %684 = vmatpush1.msra.mxu0 0.0
        %685 = vmatprep.subr.mxu0 0.0
        %686 = vmatpush1.msra.mxu0 0.0
        %687 = vmatprep.subr.mxu0 0.0
        %688 = vmatpush1.msra.mxu0 0.0
        %689 = vmatprep.subr.mxu0 0.0
        %690 = vmatpush1.msra.mxu0 0.0
        %691 = vmatprep.subr.mxu0 0.0
        %692 = vmatpush1.msra.mxu0 0.0
        %693 = vmatprep.subr.mxu0 0.0
        %694 = vmatpush1.msra.mxu0 0.0
        %695 = vmatprep.subr.mxu0 0.0
        %696 = vmatpush1.msra.mxu0 0.0
        %697 = vmatprep.subr.mxu0 0.0
        %698 = vmatpush1.msra.mxu0 0.0
        %699 = vmatprep.subr.mxu0 0.0
        %700 = vmatpush1.msra.mxu0 0.0
        %701 = vmatprep.subr.mxu0 0.0
        %702 = vmatpush1.msra.mxu0 0.0
        %703 = vmatprep.subr.mxu0 0.0
        %704 = vmatpush1.msra.mxu0 0.0
        %705 = vmatprep.subr.mxu0 0.0
        %706 = vmatpush1.msra.mxu0 0.0
        %707 = vmatprep.subr.mxu0 0.0
        %708 = vmatpush1.msra.mxu0 0.0
        %709 = vmatprep.subr.mxu0 0.0
        %710 = vmatpush1.msra.mxu0 0.0
        %711 = vmatprep.subr.mxu0 0.0
        %712 = vmatpush1.msra.mxu0 0.0
        %713 = vmatprep.subr.mxu0 0.0
        %714 = vmatpush1.msra.mxu0 0.0
        %715 = vmatprep.subr.mxu0 0.0
        %716 = vmatpush1.msra.mxu0 0.0
        %717 = vmatprep.subr.mxu0 0.0
        %718 = vmatpush1.msra.mxu0 0.0
        %719 = vmatprep.subr.mxu0 0.0
        %720 = vmatpush1.msra.mxu0 0.0
        %721 = vmatprep.subr.mxu0 0.0
        %722 = vmatpush1.msra.mxu0 0.0
        %723 = vmatprep.subr.mxu0 0.0
        %724 = vmatpush1.msra.mxu0 0.0
        %725 = vmatprep.mubr.f32.mxu0 0.0
        %726 = vmatmul.mubr.f32.gmra.mrb[0].mxu0 %v649
        %v727 = vpop.f32.mrb[0].mxu0
        %v728 = vadd.f32 0.0, %v727
        %v729 = vpop.f32.mrb[0].mxu0
        %v730 = vadd.f32 0.0, %v729
        %731 = vmatprep.mubr.f32.mxu0 0.0
        %732 = vmatmul.mubr.f32.gmra.mrb[0].mxu0 %v652
        %v733 = vpop.f32.mrb[0].mxu0
        %v734 = vadd.f32 0.0, %v733
        %v735 = vpop.f32.mrb[0].mxu0
        %v736 = vadd.f32 0.0, %v735
        %737 = vdwg.mxu0
        %v738 = vld [vmem:[%s1] sm:$0xff]
        %v739 = vld [vmem:[%s1 + $0x8] sm:$0xff]
        %v740 = vld [vmem:[%s1 + $0x10] sm:$0xff]
        %v741 = vld [vmem:[%s1 + $0x18] sm:$0xff]
        %v742 = vld [vmem:[%s1 + $0x20] sm:$0xff]
        %v743 = vld [vmem:[%s1 + $0x28] sm:$0xff]
        %v744 = vld [vmem:[%s1 + $0x30] sm:$0xff]
        %v745 = vld [vmem:[%s1 + $0x38] sm:$0xff]
        %v746 = vld [vmem:[%s1 + $0x40] sm:$0xff]
        %v747 = vld [vmem:[%s1 + $0x48] sm:$0xff]
        %v748 = vld [vmem:[%s1 + $0x50] sm:$0xff]
        %v749 = vld [vmem:[%s1 + $0x58] sm:$0xff]
        %v750 = vld [vmem:[%s1 + $0x60] sm:$0xff]
        %v751 = vld [vmem:[%s1 + $0x68] sm:$0xff]
        %v752 = vld [vmem:[%s1 + $0x70] sm:$0xff]
        %v753 = vld [vmem:[%s1 + $0x78] sm:$0xff]
        %v754 = vld [vmem:[%s1 + $0x80] sm:$0xff]
        %v755 = vld [vmem:[%s1 + $0x88] sm:$0xff]
        %v756 = vld [vmem:[%s1 + $0x90] sm:$0xff]
        %v757 = vld [vmem:[%s1 + $0x98] sm:$0xff]
        %v758 = vld [vmem:[%s1 + $0xa0] sm:$0xff]
        %v759 = vld [vmem:[%s1 + $0xa8] sm:$0xff]
        %v760 = vld [vmem:[%s1 + $0xb0] sm:$0xff]
        %v761 = vld [vmem:[%s1 + $0xb8] sm:$0xff]
        %v762 = vld [vmem:[%s1 + $0xc0] sm:$0xff]
        %v763 = vld [vmem:[%s1 + $0xc8] sm:$0xff]
        %v764 = vld [vmem:[%s1 + $0xd0] sm:$0xff]
        %v765 = vld [vmem:[%s1 + $0xd8] sm:$0xff]
        %v766 = vld [vmem:[%s1 + $0xe0] sm:$0xff]
        %v767 = vld [vmem:[%s1 + $0xe8] sm:$0xff]
        %v768 = vld [vmem:[%s1 + $0xf0] sm:$0xff]
        %v769 = vld [vmem:[%s1 + $0xf8] sm:$0xff]
        %v770 = vld [vmem:[%s1 + $0x100] sm:$0xff]
        %v771 = vld [vmem:[%s1 + $0x108] sm:$0xff]
        %v772 = vld [vmem:[%s1 + $0x110] sm:$0xff]
        %v773 = vld [vmem:[%s1 + $0x118] sm:$0xff]
        %v774 = vld [vmem:[%s1 + $0x120] sm:$0xff]
        %v775 = vld [vmem:[%s1 + $0x128] sm:$0xff]
        %v776 = vld [vmem:[%s1 + $0x130] sm:$0xff]
        %v777 = vld [vmem:[%s1 + $0x138] sm:$0xff]
        %v778 = vld [vmem:[%s1 + $0x140] sm:$0xff]
        %v779 = vld [vmem:[%s1 + $0x148] sm:$0xff]
        %v780 = vld [vmem:[%s1 + $0x150] sm:$0xff]
        %v781 = vld [vmem:[%s1 + $0x158] sm:$0xff]
        %v782 = vld [vmem:[%s1 + $0x160] sm:$0xff]
        %v783 = vld [vmem:[%s1 + $0x168] sm:$0xff]
        %v784 = vld [vmem:[%s1 + $0x170] sm:$0xff]
        %v785 = vld [vmem:[%s1 + $0x178] sm:$0xff]
        %v786 = vld [vmem:[%s1 + $0x180] sm:$0xff]
        %v787 = vld [vmem:[%s1 + $0x188] sm:$0xff]
        %v788 = vld [vmem:[%s1 + $0x190] sm:$0xff]
        %v789 = vld [vmem:[%s1 + $0x198] sm:$0xff]
        %v790 = vld [vmem:[%s1 + $0x1a0] sm:$0xff]
        %v791 = vld [vmem:[%s1 + $0x1a8] sm:$0xff]
        %v792 = vld [vmem:[%s1 + $0x1b0] sm:$0xff]
        %v793 = vld [vmem:[%s1 + $0x1b8] sm:$0xff]
        %v794 = vld [vmem:[%s1 + $0x1c0] sm:$0xff]
        %v795 = vld [vmem:[%s1 + $0x1c8] sm:$0xff]
        %v796 = vld [vmem:[%s1 + $0x1d0] sm:$0xff]
        %v797 = vld [vmem:[%s1 + $0x1d8] sm:$0xff]
        %v798 = vld [vmem:[%s1 + $0x1e0] sm:$0xff]
        %v799 = vld [vmem:[%s1 + $0x1e8] sm:$0xff]
        %v800 = vld [vmem:[%s1 + $0x1f0] sm:$0xff]
        %v801 = vld [vmem:[%s1 + $0x1f8] sm:$0xff]
        %v802 = vld [vmem:[%s1 + $0x200] sm:$0xff]
        %v803 = vld [vmem:[%s1 + $0x208] sm:$0xff]
        %v804 = vld [vmem:[%s1 + $0x210] sm:$0xff]
        %v805 = vld [vmem:[%s1 + $0x218] sm:$0xff]
        %v806 = vld [vmem:[%s1 + $0x220] sm:$0xff]
        %v807 = vld [vmem:[%s1 + $0x228] sm:$0xff]
        %v808 = vld [vmem:[%s1 + $0x230] sm:$0xff]
        %v809 = vld [vmem:[%s1 + $0x238] sm:$0xff]
        %v810 = vld [vmem:[%s1 + $0x240] sm:$0xff]
        %v811 = vld [vmem:[%s1 + $0x248] sm:$0xff]
        %v812 = vld [vmem:[%s1 + $0x250] sm:$0xff]
        %v813 = vld [vmem:[%s1 + $0x258] sm:$0xff]
        %v814 = vld [vmem:[%s1 + $0x260] sm:$0xff]
        %v815 = vld [vmem:[%s1 + $0x268] sm:$0xff]
        %v816 = vld [vmem:[%s1 + $0x270] sm:$0xff]
        %v817 = vld [vmem:[%s1 + $0x278] sm:$0xff]
        %v818 = vld [vmem:[%s1 + $0x280] sm:$0xff]
        %v819 = vld [vmem:[%s1 + $0x288] sm:$0xff]
        %v820 = vld [vmem:[%s1 + $0x290] sm:$0xff]
        %v821 = vld [vmem:[%s1 + $0x298] sm:$0xff]
        %v822 = vld [vmem:[%s1 + $0x2a0] sm:$0xff]
        %v823 = vld [vmem:[%s1 + $0x2a8] sm:$0xff]
        %v824 = vld [vmem:[%s1 + $0x2b0] sm:$0xff]
        %v825 = vld [vmem:[%s1 + $0x2b8] sm:$0xff]
        %v826 = vld [vmem:[%s1 + $0x2c0] sm:$0xff]
        %v827 = vld [vmem:[%s1 + $0x2c8] sm:$0xff]
        %v828 = vld [vmem:[%s1 + $0x2d0] sm:$0xff]
        %v829 = vld [vmem:[%s1 + $0x2d8] sm:$0xff]
        %v830 = vld [vmem:[%s1 + $0x2e0] sm:$0xff]
        %v831 = vld [vmem:[%s1 + $0x2e8] sm:$0xff]
        %v832 = vld [vmem:[%s1 + $0x2f0] sm:$0xff]
        %v833 = vld [vmem:[%s1 + $0x2f8] sm:$0xff]
        %v834 = vld [vmem:[%s1 + $0x300] sm:$0xff]
        %v835 = vld [vmem:[%s1 + $0x308] sm:$0xff]
        %v836 = vld [vmem:[%s1 + $0x310] sm:$0xff]
        %v837 = vld [vmem:[%s1 + $0x318] sm:$0xff]
        %v838 = vld [vmem:[%s1 + $0x320] sm:$0xff]
        %v839 = vld [vmem:[%s1 + $0x328] sm:$0xff]
        %v840 = vld [vmem:[%s1 + $0x330] sm:$0xff]
        %v841 = vld [vmem:[%s1 + $0x338] sm:$0xff]
        %v842 = vld [vmem:[%s1 + $0x340] sm:$0xff]
        %v843 = vld [vmem:[%s1 + $0x348] sm:$0xff]
        %v844 = vld [vmem:[%s1 + $0x350] sm:$0xff]
        %v845 = vld [vmem:[%s1 + $0x358] sm:$0xff]
        %v846 = vld [vmem:[%s1 + $0x360] sm:$0xff]
        %v847 = vld [vmem:[%s1 + $0x368] sm:$0xff]
        %v848 = vld [vmem:[%s1 + $0x370] sm:$0xff]
        %v849 = vld [vmem:[%s1 + $0x378] sm:$0xff]
        %v850 = vld [vmem:[%s1 + $0x380] sm:$0xff]
        %v851 = vld [vmem:[%s1 + $0x388] sm:$0xff]
        %v852 = vld [vmem:[%s1 + $0x390] sm:$0xff]
        %v853 = vld [vmem:[%s1 + $0x398] sm:$0xff]
        %v854 = vld [vmem:[%s1 + $0x3a0] sm:$0xff]
        %v855 = vld [vmem:[%s1 + $0x3a8] sm:$0xff]
        %v856 = vld [vmem:[%s1 + $0x3b0] sm:$0xff]
        %v857 = vld [vmem:[%s1 + $0x3b8] sm:$0xff]
        %s858 = scalar_lea.vmem %s11, 16
        %v859 = vld [vmem:[%s858] sm:$0xff]
        %v860 = vld [vmem:[%s858 + $0x8] sm:$0x3f]
        %v862 = vsel %vm647, %v859, 0
        %v865 = vsel %vm647, %v860, 0
        %867 = vmatprep.subr.mxu0 %v638
        %868 = vmatpush1.msra.mxu0 %v637
        %869 = vmatprep.subr.mxu0 %v640
        %870 = vmatpush1.msra.mxu0 %v639
        %871 = vmatprep.subr.mxu0 %v642
        %872 = vmatpush1.msra.mxu0 %v641
        %873 = vmatprep.subr.mxu0 %v659
        %874 = vmatpush1.msra.mxu0 %v656
        %875 = vmatprep.subr.mxu0 0.0
        %876 = vmatpush1.msra.mxu0 0.0
        %877 = vmatprep.subr.mxu0 0.0
        %878 = vmatpush1.msra.mxu0 0.0
        %879 = vmatprep.subr.mxu0 0.0
        %880 = vmatpush1.msra.mxu0 0.0
        %881 = vmatprep.subr.mxu0 0.0
        %882 = vmatpush1.msra.mxu0 0.0
        %883 = vmatprep.subr.mxu0 0.0
        %884 = vmatpush1.msra.mxu0 0.0
        %885 = vmatprep.subr.mxu0 0.0
        %886 = vmatpush1.msra.mxu0 0.0
        %887 = vmatprep.subr.mxu0 0.0
        %888 = vmatpush1.msra.mxu0 0.0
        %889 = vmatprep.subr.mxu0 0.0
        %890 = vmatpush1.msra.mxu0 0.0
        %891 = vmatprep.subr.mxu0 0.0
        %892 = vmatpush1.msra.mxu0 0.0
        %893 = vmatprep.subr.mxu0 0.0
        %894 = vmatpush1.msra.mxu0 0.0
        %895 = vmatprep.subr.mxu0 0.0
        %896 = vmatpush1.msra.mxu0 0.0
        %897 = vmatprep.subr.mxu0 0.0
        %898 = vmatpush1.msra.mxu0 0.0
        %899 = vmatprep.subr.mxu0 0.0
        %900 = vmatpush1.msra.mxu0 0.0
        %901 = vmatprep.subr.mxu0 0.0
        %902 = vmatpush1.msra.mxu0 0.0
        %903 = vmatprep.subr.mxu0 0.0
        %904 = vmatpush1.msra.mxu0 0.0
        %905 = vmatprep.subr.mxu0 0.0
        %906 = vmatpush1.msra.mxu0 0.0
        %907 = vmatprep.subr.mxu0 0.0
        %908 = vmatpush1.msra.mxu0 0.0
        %909 = vmatprep.subr.mxu0 0.0
        %910 = vmatpush1.msra.mxu0 0.0
        %911 = vmatprep.subr.mxu0 0.0
        %912 = vmatpush1.msra.mxu0 0.0
        %913 = vmatprep.subr.mxu0 0.0
        %914 = vmatpush1.msra.mxu0 0.0
        %915 = vmatprep.subr.mxu0 0.0
        %916 = vmatpush1.msra.mxu0 0.0
        %917 = vmatprep.subr.mxu0 0.0
        %918 = vmatpush1.msra.mxu0 0.0
        %919 = vmatprep.subr.mxu0 0.0
        %920 = vmatpush1.msra.mxu0 0.0
        %921 = vmatprep.subr.mxu0 0.0
        %922 = vmatpush1.msra.mxu0 0.0
        %923 = vmatprep.subr.mxu0 0.0
        %924 = vmatpush1.msra.mxu0 0.0
        %925 = vmatprep.subr.mxu0 0.0
        %926 = vmatpush1.msra.mxu0 0.0
        %927 = vmatprep.subr.mxu0 0.0
        %928 = vmatpush1.msra.mxu0 0.0
        %929 = vmatprep.subr.mxu0 0.0
        %930 = vmatpush1.msra.mxu0 0.0
        %931 = vmatprep.mubr.f32.mxu0 0.0
        %932 = vmatmul.mubr.f32.gmra.mrb[0].mxu0 %v862
        %v933 = vpop.f32.mrb[0].mxu0
        %v934 = vadd.f32 0.0, %v933
        %v935 = vpop.f32.mrb[0].mxu0
        %v936 = vadd.f32 0.0, %v935
        %937 = vmatprep.mubr.f32.mxu0 0.0
        %938 = vmatmul.mubr.f32.gmra.mrb[0].mxu0 %v865
        %v939 = vpop.f32.mrb[0].mxu0
        %v940 = vadd.f32 0.0, %v939
        %v941 = vpop.f32.mrb[0].mxu0
        %v942 = vadd.f32 0.0, %v941
        %943 = vdwg.mxu0
        %s944 = scalar_lea.vmem %s1, 960
        %v945 = vld [vmem:[%s944] sm:$0xff]
        %v946 = vld [vmem:[%s944 + $0x8] sm:$0xff]
        %v947 = vld [vmem:[%s944 + $0x10] sm:$0xff]
        %v948 = vld [vmem:[%s944 + $0x18] sm:$0xff]
        %v949 = vld [vmem:[%s944 + $0x20] sm:$0xff]
        %v950 = vld [vmem:[%s944 + $0x28] sm:$0xff]
        %v951 = vld [vmem:[%s944 + $0x30] sm:$0xff]
        %v952 = vld [vmem:[%s944 + $0x38] sm:$0xff]
        %v953 = vld [vmem:[%s944 + $0x40] sm:$0xff]
        %v954 = vld [vmem:[%s944 + $0x48] sm:$0xff]
        %v955 = vld [vmem:[%s944 + $0x50] sm:$0xff]
        %v956 = vld [vmem:[%s944 + $0x58] sm:$0xff]
        %v957 = vld [vmem:[%s944 + $0x60] sm:$0xff]
        %v958 = vld [vmem:[%s944 + $0x68] sm:$0xff]
        %v959 = vld [vmem:[%s944 + $0x70] sm:$0xff]
        %v960 = vld [vmem:[%s944 + $0x78] sm:$0xff]
        %v961 = vld [vmem:[%s944 + $0x80] sm:$0xff]
        %v962 = vld [vmem:[%s944 + $0x88] sm:$0xff]
        %v963 = vld [vmem:[%s944 + $0x90] sm:$0xff]
        %v964 = vld [vmem:[%s944 + $0x98] sm:$0xff]
        %v965 = vld [vmem:[%s944 + $0xa0] sm:$0xff]
        %v966 = vld [vmem:[%s944 + $0xa8] sm:$0xff]
        %v967 = vld [vmem:[%s944 + $0xb0] sm:$0xff]
        %v968 = vld [vmem:[%s944 + $0xb8] sm:$0xff]
        %v969 = vld [vmem:[%s944 + $0xc0] sm:$0xff]
        %v970 = vld [vmem:[%s944 + $0xc8] sm:$0xff]
        %v971 = vld [vmem:[%s944 + $0xd0] sm:$0xff]
        %v972 = vld [vmem:[%s944 + $0xd8] sm:$0xff]
        %v973 = vld [vmem:[%s944 + $0xe0] sm:$0xff]
        %v974 = vld [vmem:[%s944 + $0xe8] sm:$0xff]
        %v975 = vld [vmem:[%s944 + $0xf0] sm:$0xff]
        %v976 = vld [vmem:[%s944 + $0xf8] sm:$0xff]
        %v977 = vld [vmem:[%s944 + $0x100] sm:$0xff]
        %v978 = vld [vmem:[%s944 + $0x108] sm:$0xff]
        %v979 = vld [vmem:[%s944 + $0x110] sm:$0xff]
        %v980 = vld [vmem:[%s944 + $0x118] sm:$0xff]
        %v981 = vld [vmem:[%s944 + $0x120] sm:$0xff]
        %v982 = vld [vmem:[%s944 + $0x128] sm:$0xff]
        %v983 = vld [vmem:[%s944 + $0x130] sm:$0xff]
        %v984 = vld [vmem:[%s944 + $0x138] sm:$0xff]
        %v985 = vld [vmem:[%s944 + $0x140] sm:$0xff]
        %v986 = vld [vmem:[%s944 + $0x148] sm:$0xff]
        %v987 = vld [vmem:[%s944 + $0x150] sm:$0xff]
        %v988 = vld [vmem:[%s944 + $0x158] sm:$0xff]
        %v989 = vld [vmem:[%s944 + $0x160] sm:$0xff]
        %v990 = vld [vmem:[%s944 + $0x168] sm:$0xff]
        %v991 = vld [vmem:[%s944 + $0x170] sm:$0xff]
        %v992 = vld [vmem:[%s944 + $0x178] sm:$0xff]
        %v993 = vld [vmem:[%s944 + $0x180] sm:$0xff]
        %v994 = vld [vmem:[%s944 + $0x188] sm:$0xff]
        %v995 = vld [vmem:[%s944 + $0x190] sm:$0xff]
        %v996 = vld [vmem:[%s944 + $0x198] sm:$0xff]
        %v997 = vld [vmem:[%s944 + $0x1a0] sm:$0xff]
        %v998 = vld [vmem:[%s944 + $0x1a8] sm:$0xff]
        %v999 = vld [vmem:[%s944 + $0x1b0] sm:$0xff]
        %v1000 = vld [vmem:[%s944 + $0x1b8] sm:$0xff]
        %v1001 = vld [vmem:[%s944 + $0x1c0] sm:$0xff]
        %v1002 = vld [vmem:[%s944 + $0x1c8] sm:$0xff]
        %v1003 = vld [vmem:[%s944 + $0x1d0] sm:$0xff]
        %v1004 = vld [vmem:[%s944 + $0x1d8] sm:$0xff]
        %v1005 = vld [vmem:[%s944 + $0x1e0] sm:$0xff]
        %v1006 = vld [vmem:[%s944 + $0x1e8] sm:$0xff]
        %v1007 = vld [vmem:[%s944 + $0x1f0] sm:$0xff]
        %v1008 = vld [vmem:[%s944 + $0x1f8] sm:$0xff]
        %v1009 = vld [vmem:[%s944 + $0x200] sm:$0xff]
        %v1010 = vld [vmem:[%s944 + $0x208] sm:$0xff]
        %v1011 = vld [vmem:[%s944 + $0x210] sm:$0xff]
        %v1012 = vld [vmem:[%s944 + $0x218] sm:$0xff]
        %v1013 = vld [vmem:[%s944 + $0x220] sm:$0xff]
        %v1014 = vld [vmem:[%s944 + $0x228] sm:$0xff]
        %v1015 = vld [vmem:[%s944 + $0x230] sm:$0xff]
        %v1016 = vld [vmem:[%s944 + $0x238] sm:$0xff]
        %v1017 = vld [vmem:[%s944 + $0x240] sm:$0xff]
        %v1018 = vld [vmem:[%s944 + $0x248] sm:$0xff]
        %v1019 = vld [vmem:[%s944 + $0x250] sm:$0xff]
        %v1020 = vld [vmem:[%s944 + $0x258] sm:$0xff]
        %v1021 = vld [vmem:[%s944 + $0x260] sm:$0xff]
        %v1022 = vld [vmem:[%s944 + $0x268] sm:$0xff]
        %v1023 = vld [vmem:[%s944 + $0x270] sm:$0xff]
        %v1024 = vld [vmem:[%s944 + $0x278] sm:$0xff]
        %v1025 = vld [vmem:[%s944 + $0x280] sm:$0xff]
        %v1026 = vld [vmem:[%s944 + $0x288] sm:$0xff]
        %v1027 = vld [vmem:[%s944 + $0x290] sm:$0xff]
        %v1028 = vld [vmem:[%s944 + $0x298] sm:$0xff]
        %v1029 = vld [vmem:[%s944 + $0x2a0] sm:$0xff]
        %v1030 = vld [vmem:[%s944 + $0x2a8] sm:$0xff]
        %v1031 = vld [vmem:[%s944 + $0x2b0] sm:$0xff]
        %v1032 = vld [vmem:[%s944 + $0x2b8] sm:$0xff]
        %v1033 = vld [vmem:[%s944 + $0x2c0] sm:$0xff]
        %v1034 = vld [vmem:[%s944 + $0x2c8] sm:$0xff]
        %v1035 = vld [vmem:[%s944 + $0x2d0] sm:$0xff]
        %v1036 = vld [vmem:[%s944 + $0x2d8] sm:$0xff]
        %v1037 = vld [vmem:[%s944 + $0x2e0] sm:$0xff]
        %v1038 = vld [vmem:[%s944 + $0x2e8] sm:$0xff]
        %v1039 = vld [vmem:[%s944 + $0x2f0] sm:$0xff]
        %v1040 = vld [vmem:[%s944 + $0x2f8] sm:$0xff]
        %v1041 = vld [vmem:[%s944 + $0x300] sm:$0xff]
        %v1042 = vld [vmem:[%s944 + $0x308] sm:$0xff]
        %v1043 = vld [vmem:[%s944 + $0x310] sm:$0xff]
        %v1044 = vld [vmem:[%s944 + $0x318] sm:$0xff]
        %v1045 = vld [vmem:[%s944 + $0x320] sm:$0xff]
        %v1046 = vld [vmem:[%s944 + $0x328] sm:$0xff]
        %v1047 = vld [vmem:[%s944 + $0x330] sm:$0xff]
        %v1048 = vld [vmem:[%s944 + $0x338] sm:$0xff]
        %v1049 = vld [vmem:[%s944 + $0x340] sm:$0xff]
        %v1050 = vld [vmem:[%s944 + $0x348] sm:$0xff]
        %v1051 = vld [vmem:[%s944 + $0x350] sm:$0xff]
        %v1052 = vld [vmem:[%s944 + $0x358] sm:$0xff]
        %v1053 = vld [vmem:[%s944 + $0x360] sm:$0xff]
        %v1054 = vld [vmem:[%s944 + $0x368] sm:$0xff]
        %v1055 = vld [vmem:[%s944 + $0x370] sm:$0xff]
        %v1056 = vld [vmem:[%s944 + $0x378] sm:$0xff]
        %v1057 = vld [vmem:[%s944 + $0x380] sm:$0xff]
        %v1058 = vld [vmem:[%s944 + $0x388] sm:$0xff]
        %v1059 = vld [vmem:[%s944 + $0x390] sm:$0xff]
        %v1060 = vld [vmem:[%s944 + $0x398] sm:$0xff]
        %v1061 = vld [vmem:[%s944 + $0x3a0] sm:$0xff]
        %v1062 = vld [vmem:[%s944 + $0x3a8] sm:$0xff]
        %v1063 = vld [vmem:[%s944 + $0x3b0] sm:$0xff]
        %v1064 = vld [vmem:[%s944 + $0x3b8] sm:$0xff]
        %v1066 = vsel %vm548, %v936, 0
        %v1069 = vsel %vm548, %v942, 0
        %1071 = vmatprep.subr.mxu0 %v946
        %1072 = vmatpush1.msra.mxu0 %v945
        %1073 = vmatprep.subr.mxu0 %v950
        %1074 = vmatpush1.msra.mxu0 %v949
        %1075 = vmatprep.subr.mxu0 %v954
        %1076 = vmatpush1.msra.mxu0 %v953
        %1077 = vmatprep.subr.mxu0 %v958
        %1078 = vmatpush1.msra.mxu0 %v957
        %1079 = vmatprep.subr.mxu0 %v962
        %1080 = vmatpush1.msra.mxu0 %v961
        %1081 = vmatprep.subr.mxu0 %v966
        %1082 = vmatpush1.msra.mxu0 %v965
        %1083 = vmatprep.subr.mxu0 %v970
        %1084 = vmatpush1.msra.mxu0 %v969
        %1085 = vmatprep.subr.mxu0 %v974
        %1086 = vmatpush1.msra.mxu0 %v973
        %1087 = vmatprep.subr.mxu0 %v978
        %1088 = vmatpush1.msra.mxu0 %v977
        %1089 = vmatprep.subr.mxu0 %v982
        %1090 = vmatpush1.msra.mxu0 %v981
        %1091 = vmatprep.subr.mxu0 %v986
        %1092 = vmatpush1.msra.mxu0 %v985
        %1093 = vmatprep.subr.mxu0 %v990
        %1094 = vmatpush1.msra.mxu0 %v989
        %1095 = vmatprep.subr.mxu0 %v994
        %1096 = vmatpush1.msra.mxu0 %v993
        %1097 = vmatprep.subr.mxu0 %v998
        %1098 = vmatpush1.msra.mxu0 %v997
        %1099 = vmatprep.subr.mxu0 %v1002
        %1100 = vmatpush1.msra.mxu0 %v1001
        %1101 = vmatprep.subr.mxu0 %v1006
        %1102 = vmatpush1.msra.mxu0 %v1005
        %1103 = vmatprep.subr.mxu0 %v1010
        %1104 = vmatpush1.msra.mxu0 %v1009
        %1105 = vmatprep.subr.mxu0 %v1014
        %1106 = vmatpush1.msra.mxu0 %v1013
        %1107 = vmatprep.subr.mxu0 %v1018
        %1108 = vmatpush1.msra.mxu0 %v1017
        %1109 = vmatprep.subr.mxu0 %v1022
        %1110 = vmatpush1.msra.mxu0 %v1021
        %1111 = vmatprep.subr.mxu0 %v1026
        %1112 = vmatpush1.msra.mxu0 %v1025
        %1113 = vmatprep.subr.mxu0 %v1030
        %1114 = vmatpush1.msra.mxu0 %v1029
        %1115 = vmatprep.subr.mxu0 %v1034
        %1116 = vmatpush1.msra.mxu0 %v1033
        %1117 = vmatprep.subr.mxu0 %v1038
        %1118 = vmatpush1.msra.mxu0 %v1037
        %1119 = vmatprep.subr.mxu0 %v1042
        %1120 = vmatpush1.msra.mxu0 %v1041
        %1121 = vmatprep.subr.mxu0 %v1046
        %1122 = vmatpush1.msra.mxu0 %v1045
        %1123 = vmatprep.subr.mxu0 %v1050
        %1124 = vmatpush1.msra.mxu0 %v1049
        %1125 = vmatprep.subr.mxu0 %v1054
        %1126 = vmatpush1.msra.mxu0 %v1053
        %1127 = vmatprep.subr.mxu0 %v1058
        %1128 = vmatpush1.msra.mxu0 %v1057
        %1129 = vmatprep.subr.mxu0 %v1062
        %1130 = vmatpush1.msra.mxu0 %v1061
        %1131 = vmatprep.subr.mxu0 0.0
        %1132 = vmatpush1.msra.mxu0 0.0
        %1133 = vmatprep.subr.mxu0 0.0
        %1134 = vmatpush1.msra.mxu0 0.0
        %1135 = vmatprep.mubr.f32.mxu0 %v1066
        %1136 = vmatmul.mubr.f32.gmra.mrb[0].mxu0 %v934
        %v1137 = vpop.f32.mrb[0].mxu0
        %v1138 = vadd.f32 0.0, %v1137
        %v1139 = vpop.f32.mrb[0].mxu0
        %v1140 = vadd.f32 0.0, %v1139
        %1141 = vmatprep.mubr.f32.mxu0 %v1069
        %1142 = vmatmul.mubr.f32.gmra.mrb[0].mxu0 %v940
        %v1143 = vpop.f32.mrb[0].mxu0
        %v1144 = vadd.f32 0.0, %v1143
        %v1145 = vpop.f32.mrb[0].mxu0
        %v1146 = vadd.f32 0.0, %v1145
        %1147 = vdwg.mxu0
        %1148 = vmatprep.subr.mxu0 %v948
        %1149 = vmatpush1.msra.mxu0 %v947
        %1150 = vmatprep.subr.mxu0 %v952
        %1151 = vmatpush1.msra.mxu0 %v951
        %1152 = vmatprep.subr.mxu0 %v956
        %1153 = vmatpush1.msra.mxu0 %v955
        %1154 = vmatprep.subr.mxu0 %v960
        %1155 = vmatpush1.msra.mxu0 %v959
        %1156 = vmatprep.subr.mxu0 %v964
        %1157 = vmatpush1.msra.mxu0 %v963
        %1158 = vmatprep.subr.mxu0 %v968
        %1159 = vmatpush1.msra.mxu0 %v967
        %1160 = vmatprep.subr.mxu0 %v972
        %1161 = vmatpush1.msra.mxu0 %v971
        %1162 = vmatprep.subr.mxu0 %v976
        %1163 = vmatpush1.msra.mxu0 %v975
        %1164 = vmatprep.subr.mxu0 %v980
        %1165 = vmatpush1.msra.mxu0 %v979
        %1166 = vmatprep.subr.mxu0 %v984
        %1167 = vmatpush1.msra.mxu0 %v983
        %1168 = vmatprep.subr.mxu0 %v988
        %1169 = vmatpush1.msra.mxu0 %v987
        %1170 = vmatprep.subr.mxu0 %v992
        %1171 = vmatpush1.msra.mxu0 %v991
        %1172 = vmatprep.subr.mxu0 %v996
        %1173 = vmatpush1.msra.mxu0 %v995
        %1174 = vmatprep.subr.mxu0 %v1000
        %1175 = vmatpush1.msra.mxu0 %v999
        %1176 = vmatprep.subr.mxu0 %v1004
        %1177 = vmatpush1.msra.mxu0 %v1003
        %1178 = vmatprep.subr.mxu0 %v1008
        %1179 = vmatpush1.msra.mxu0 %v1007
        %1180 = vmatprep.subr.mxu0 %v1012
        %1181 = vmatpush1.msra.mxu0 %v1011
        %1182 = vmatprep.subr.mxu0 %v1016
        %1183 = vmatpush1.msra.mxu0 %v1015
        %1184 = vmatprep.subr.mxu0 %v1020
        %1185 = vmatpush1.msra.mxu0 %v1019
        %1186 = vmatprep.subr.mxu0 %v1024
        %1187 = vmatpush1.msra.mxu0 %v1023
        %1188 = vmatprep.subr.mxu0 %v1028
        %1189 = vmatpush1.msra.mxu0 %v1027
        %1190 = vmatprep.subr.mxu0 %v1032
        %1191 = vmatpush1.msra.mxu0 %v1031
        %1192 = vmatprep.subr.mxu0 %v1036
        %1193 = vmatpush1.msra.mxu0 %v1035
        %1194 = vmatprep.subr.mxu0 %v1040
        %1195 = vmatpush1.msra.mxu0 %v1039
        %1196 = vmatprep.subr.mxu0 %v1044
        %1197 = vmatpush1.msra.mxu0 %v1043
        %1198 = vmatprep.subr.mxu0 %v1048
        %1199 = vmatpush1.msra.mxu0 %v1047
        %1200 = vmatprep.subr.mxu0 %v1052
        %1201 = vmatpush1.msra.mxu0 %v1051
        %1202 = vmatprep.subr.mxu0 %v1056
        %1203 = vmatpush1.msra.mxu0 %v1055
        %1204 = vmatprep.subr.mxu0 %v1060
        %1205 = vmatpush1.msra.mxu0 %v1059
        %1206 = vmatprep.subr.mxu0 %v1064
        %1207 = vmatpush1.msra.mxu0 %v1063
        %1208 = vmatprep.subr.mxu0 0.0
        %1209 = vmatpush1.msra.mxu0 0.0
        %1210 = vmatprep.subr.mxu0 0.0
        %1211 = vmatpush1.msra.mxu0 0.0
        %1212 = vmatprep.mubr.f32.mxu0 %v1066
        %1213 = vmatmul.mubr.f32.gmra.mrb[0].mxu0 %v934
        %v1214 = vpop.f32.mrb[0].mxu0
        %v1215 = vadd.f32 0.0, %v1214
        %v1216 = vpop.f32.mrb[0].mxu0
        %v1217 = vadd.f32 0.0, %v1216
        %1218 = vmatprep.mubr.f32.mxu0 %v1069
        %1219 = vmatmul.mubr.f32.gmra.mrb[0].mxu0 %v940
        %v1220 = vpop.f32.mrb[0].mxu0
        %v1221 = vadd.f32 0.0, %v1220
        %v1222 = vpop.f32.mrb[0].mxu0
        %v1223 = vadd.f32 0.0, %v1222
        %1224 = vdwg.mxu0
        %v1226 = vsel %vm548, %v730, 0
        %v1229 = vsel %vm548, %v736, 0
        %1231 = vmatprep.subr.mxu0 %v739
        %1232 = vmatpush1.msra.mxu0 %v738
        %1233 = vmatprep.subr.mxu0 %v743
        %1234 = vmatpush1.msra.mxu0 %v742
        %1235 = vmatprep.subr.mxu0 %v747
        %1236 = vmatpush1.msra.mxu0 %v746
        %1237 = vmatprep.subr.mxu0 %v751
        %1238 = vmatpush1.msra.mxu0 %v750
        %1239 = vmatprep.subr.mxu0 %v755
        %1240 = vmatpush1.msra.mxu0 %v754
        %1241 = vmatprep.subr.mxu0 %v759
        %1242 = vmatpush1.msra.mxu0 %v758
        %1243 = vmatprep.subr.mxu0 %v763
        %1244 = vmatpush1.msra.mxu0 %v762
        %1245 = vmatprep.subr.mxu0 %v767
        %1246 = vmatpush1.msra.mxu0 %v766
        %1247 = vmatprep.subr.mxu0 %v771
        %1248 = vmatpush1.msra.mxu0 %v770
        %1249 = vmatprep.subr.mxu0 %v775
        %1250 = vmatpush1.msra.mxu0 %v774
        %1251 = vmatprep.subr.mxu0 %v779
        %1252 = vmatpush1.msra.mxu0 %v778
        %1253 = vmatprep.subr.mxu0 %v783
        %1254 = vmatpush1.msra.mxu0 %v782
        %1255 = vmatprep.subr.mxu0 %v787
        %1256 = vmatpush1.msra.mxu0 %v786
        %1257 = vmatprep.subr.mxu0 %v791
        %1258 = vmatpush1.msra.mxu0 %v790
        %1259 = vmatprep.subr.mxu0 %v795
        %1260 = vmatpush1.msra.mxu0 %v794
        %1261 = vmatprep.subr.mxu0 %v799
        %1262 = vmatpush1.msra.mxu0 %v798
        %1263 = vmatprep.subr.mxu0 %v803
        %1264 = vmatpush1.msra.mxu0 %v802
        %1265 = vmatprep.subr.mxu0 %v807
        %1266 = vmatpush1.msra.mxu0 %v806
        %1267 = vmatprep.subr.mxu0 %v811
        %1268 = vmatpush1.msra.mxu0 %v810
        %1269 = vmatprep.subr.mxu0 %v815
        %1270 = vmatpush1.msra.mxu0 %v814
        %1271 = vmatprep.subr.mxu0 %v819
        %1272 = vmatpush1.msra.mxu0 %v818
        %1273 = vmatprep.subr.mxu0 %v823
        %1274 = vmatpush1.msra.mxu0 %v822
        %1275 = vmatprep.subr.mxu0 %v827
        %1276 = vmatpush1.msra.mxu0 %v826
        %1277 = vmatprep.subr.mxu0 %v831
        %1278 = vmatpush1.msra.mxu0 %v830
        %1279 = vmatprep.subr.mxu0 %v835
        %1280 = vmatpush1.msra.mxu0 %v834
        %1281 = vmatprep.subr.mxu0 %v839
        %1282 = vmatpush1.msra.mxu0 %v838
        %1283 = vmatprep.subr.mxu0 %v843
        %1284 = vmatpush1.msra.mxu0 %v842
        %1285 = vmatprep.subr.mxu0 %v847
        %1286 = vmatpush1.msra.mxu0 %v846
        %1287 = vmatprep.subr.mxu0 %v851
        %1288 = vmatpush1.msra.mxu0 %v850
        %1289 = vmatprep.subr.mxu0 %v855
        %1290 = vmatpush1.msra.mxu0 %v854
        %1291 = vmatprep.subr.mxu0 0.0
        %1292 = vmatpush1.msra.mxu0 0.0
        %1293 = vmatprep.subr.mxu0 0.0
        %1294 = vmatpush1.msra.mxu0 0.0
        %1295 = vmatprep.mubr.f32.mxu0 %v1226
        %1296 = vmatmul.mubr.f32.gmra.mrb[0].mxu0 %v728
        %v1297 = vpop.f32.mrb[0].mxu0
        %v1298 = vadd.f32 %v1138, %v1297
        %v1299 = vpop.f32.mrb[0].mxu0
        %v1300 = vadd.f32 %v1140, %v1299
        %1301 = vmatprep.mubr.f32.mxu0 %v1229
        %1302 = vmatmul.mubr.f32.gmra.mrb[0].mxu0 %v734
        %v1303 = vpop.f32.mrb[0].mxu0
        %v1304 = vadd.f32 %v1144, %v1303
        %v1305 = vpop.f32.mrb[0].mxu0
        %v1306 = vadd.f32 %v1146, %v1305
        %1307 = vdwg.mxu0
        %1308 = vmatprep.subr.mxu0 %v741
        %1309 = vmatpush1.msra.mxu0 %v740
        %1310 = vmatprep.subr.mxu0 %v745
        %1311 = vmatpush1.msra.mxu0 %v744
        %1312 = vmatprep.subr.mxu0 %v749
        %1313 = vmatpush1.msra.mxu0 %v748
        %1314 = vmatprep.subr.mxu0 %v753
        %1315 = vmatpush1.msra.mxu0 %v752
        %1316 = vmatprep.subr.mxu0 %v757
        %1317 = vmatpush1.msra.mxu0 %v756
        %1318 = vmatprep.subr.mxu0 %v761
        %1319 = vmatpush1.msra.mxu0 %v760
        %1320 = vmatprep.subr.mxu0 %v765
        %1321 = vmatpush1.msra.mxu0 %v764
        %1322 = vmatprep.subr.mxu0 %v769
        %1323 = vmatpush1.msra.mxu0 %v768
        %1324 = vmatprep.subr.mxu0 %v773
        %1325 = vmatpush1.msra.mxu0 %v772
        %1326 = vmatprep.subr.mxu0 %v777
        %1327 = vmatpush1.msra.mxu0 %v776
        %1328 = vmatprep.subr.mxu0 %v781
        %1329 = vmatpush1.msra.mxu0 %v780
        %1330 = vmatprep.subr.mxu0 %v785
        %1331 = vmatpush1.msra.mxu0 %v784
        %1332 = vmatprep.subr.mxu0 %v789
        %1333 = vmatpush1.msra.mxu0 %v788
        %1334 = vmatprep.subr.mxu0 %v793
        %1335 = vmatpush1.msra.mxu0 %v792
        %1336 = vmatprep.subr.mxu0 %v797
        %1337 = vmatpush1.msra.mxu0 %v796
        %1338 = vmatprep.subr.mxu0 %v801
        %1339 = vmatpush1.msra.mxu0 %v800
        %1340 = vmatprep.subr.mxu0 %v805
        %1341 = vmatpush1.msra.mxu0 %v804
        %1342 = vmatprep.subr.mxu0 %v809
        %1343 = vmatpush1.msra.mxu0 %v808
        %1344 = vmatprep.subr.mxu0 %v813
        %1345 = vmatpush1.msra.mxu0 %v812
        %1346 = vmatprep.subr.mxu0 %v817
        %1347 = vmatpush1.msra.mxu0 %v816
        %1348 = vmatprep.subr.mxu0 %v821
        %1349 = vmatpush1.msra.mxu0 %v820
        %1350 = vmatprep.subr.mxu0 %v825
        %1351 = vmatpush1.msra.mxu0 %v824
        %1352 = vmatprep.subr.mxu0 %v829
        %1353 = vmatpush1.msra.mxu0 %v828
        %1354 = vmatprep.subr.mxu0 %v833
        %1355 = vmatpush1.msra.mxu0 %v832
        %1356 = vmatprep.subr.mxu0 %v837
        %1357 = vmatpush1.msra.mxu0 %v836
        %1358 = vmatprep.subr.mxu0 %v841
        %1359 = vmatpush1.msra.mxu0 %v840
        %1360 = vmatprep.subr.mxu0 %v845
        %1361 = vmatpush1.msra.mxu0 %v844
        %1362 = vmatprep.subr.mxu0 %v849
        %1363 = vmatpush1.msra.mxu0 %v848
        %1364 = vmatprep.subr.mxu0 %v853
        %1365 = vmatpush1.msra.mxu0 %v852
        %1366 = vmatprep.subr.mxu0 %v857
        %1367 = vmatpush1.msra.mxu0 %v856
        %1368 = vmatprep.subr.mxu0 0.0
        %1369 = vmatpush1.msra.mxu0 0.0
        %1370 = vmatprep.subr.mxu0 0.0
        %1371 = vmatpush1.msra.mxu0 0.0
        %1372 = vmatprep.mubr.f32.mxu0 %v1226
        %1373 = vmatmul.mubr.f32.gmra.mrb[0].mxu0 %v728
        %v1374 = vpop.f32.mrb[0].mxu0
        %v1375 = vadd.f32 %v1215, %v1374
        %v1376 = vpop.f32.mrb[0].mxu0
        %v1377 = vadd.f32 %v1217, %v1376
        %1378 = vmatprep.mubr.f32.mxu0 %v1229
        %1379 = vmatmul.mubr.f32.gmra.mrb[0].mxu0 %v734
        %v1380 = vpop.f32.mrb[0].mxu0
        %v1381 = vadd.f32 %v1221, %v1380
        %v1382 = vpop.f32.mrb[0].mxu0
        %v1383 = vadd.f32 %v1223, %v1382
        %1384 = vdwg.mxu0
        %s1385 = scalar_lea.vmem %s11, 32
        %v1386 = vld [vmem:[%s1385] sm:$0xff]
        %v1387 = vld [vmem:[%s1385 + $0x8] sm:$0x3f]
        %v1389 = vsel %vm647, %v1386, 0
        %v1392 = vsel %vm647, %v1387, 0
        %1394 = vmatprep.subr.mxu0 %v638
        %1395 = vmatpush1.msra.mxu0 %v637
        %1396 = vmatprep.subr.mxu0 %v640
        %1397 = vmatpush1.msra.mxu0 %v639
        %1398 = vmatprep.subr.mxu0 %v642
        %1399 = vmatpush1.msra.mxu0 %v641
        %1400 = vmatprep.subr.mxu0 %v659
        %1401 = vmatpush1.msra.mxu0 %v656
        %1402 = vmatprep.subr.mxu0 0.0
        %1403 = vmatpush1.msra.mxu0 0.0
        %1404 = vmatprep.subr.mxu0 0.0
        %1405 = vmatpush1.msra.mxu0 0.0
        %1406 = vmatprep.subr.mxu0 0.0
        %1407 = vmatpush1.msra.mxu0 0.0
        %1408 = vmatprep.subr.mxu0 0.0
        %1409 = vmatpush1.msra.mxu0 0.0
        %1410 = vmatprep.subr.mxu0 0.0
        %1411 = vmatpush1.msra.mxu0 0.0
        %1412 = vmatprep.subr.mxu0 0.0
        %1413 = vmatpush1.msra.mxu0 0.0
        %1414 = vmatprep.subr.mxu0 0.0
        %1415 = vmatpush1.msra.mxu0 0.0
        %1416 = vmatprep.subr.mxu0 0.0
        %1417 = vmatpush1.msra.mxu0 0.0
        %1418 = vmatprep.subr.mxu0 0.0
        %1419 = vmatpush1.msra.mxu0 0.0
        %1420 = vmatprep.subr.mxu0 0.0
        %1421 = vmatpush1.msra.mxu0 0.0
        %1422 = vmatprep.subr.mxu0 0.0
        %1423 = vmatpush1.msra.mxu0 0.0
        %1424 = vmatprep.subr.mxu0 0.0
        %1425 = vmatpush1.msra.mxu0 0.0
        %1426 = vmatprep.subr.mxu0 0.0
        %1427 = vmatpush1.msra.mxu0 0.0
        %1428 = vmatprep.subr.mxu0 0.0
        %1429 = vmatpush1.msra.mxu0 0.0
        %1430 = vmatprep.subr.mxu0 0.0
        %1431 = vmatpush1.msra.mxu0 0.0
        %1432 = vmatprep.subr.mxu0 0.0
        %1433 = vmatpush1.msra.mxu0 0.0
        %1434 = vmatprep.subr.mxu0 0.0
        %1435 = vmatpush1.msra.mxu0 0.0
        %1436 = vmatprep.subr.mxu0 0.0
        %1437 = vmatpush1.msra.mxu0 0.0
        %1438 = vmatprep.subr.mxu0 0.0
        %1439 = vmatpush1.msra.mxu0 0.0
        %1440 = vmatprep.subr.mxu0 0.0
        %1441 = vmatpush1.msra.mxu0 0.0
        %1442 = vmatprep.subr.mxu0 0.0
        %1443 = vmatpush1.msra.mxu0 0.0
        %1444 = vmatprep.subr.mxu0 0.0
        %1445 = vmatpush1.msra.mxu0 0.0
        %1446 = vmatprep.subr.mxu0 0.0
        %1447 = vmatpush1.msra.mxu0 0.0
        %1448 = vmatprep.subr.mxu0 0.0
        %1449 = vmatpush1.msra.mxu0 0.0
        %1450 = vmatprep.subr.mxu0 0.0
        %1451 = vmatpush1.msra.mxu0 0.0
        %1452 = vmatprep.subr.mxu0 0.0
        %1453 = vmatpush1.msra.mxu0 0.0
        %1454 = vmatprep.subr.mxu0 0.0
        %1455 = vmatpush1.msra.mxu0 0.0
        %1456 = vmatprep.subr.mxu0 0.0
        %1457 = vmatpush1.msra.mxu0 0.0
        %1458 = vmatprep.mubr.f32.mxu0 0.0
        %1459 = vmatmul.mubr.f32.gmra.mrb[0].mxu0 %v1389
        %v1460 = vpop.f32.mrb[0].mxu0
        %v1461 = vadd.f32 0.0, %v1460
        %v1462 = vpop.f32.mrb[0].mxu0
        %v1463 = vadd.f32 0.0, %v1462
        %1464 = vmatprep.mubr.f32.mxu0 0.0
        %1465 = vmatmul.mubr.f32.gmra.mrb[0].mxu0 %v1392
        %v1466 = vpop.f32.mrb[0].mxu0
        %v1467 = vadd.f32 0.0, %v1466
        %v1468 = vpop.f32.mrb[0].mxu0
        %v1469 = vadd.f32 0.0, %v1468
        %1470 = vdwg.mxu0
        %s1471 = scalar_lea.vmem %s1, 1920
        %v1472 = vld [vmem:[%s1471] sm:$0xff]
        %v1473 = vld [vmem:[%s1471 + $0x8] sm:$0xff]
        %v1474 = vld [vmem:[%s1471 + $0x10] sm:$0xff]
        %v1475 = vld [vmem:[%s1471 + $0x18] sm:$0xff]
        %v1476 = vld [vmem:[%s1471 + $0x20] sm:$0xff]
        %v1477 = vld [vmem:[%s1471 + $0x28] sm:$0xff]
        %v1478 = vld [vmem:[%s1471 + $0x30] sm:$0xff]
        %v1479 = vld [vmem:[%s1471 + $0x38] sm:$0xff]
        %v1480 = vld [vmem:[%s1471 + $0x40] sm:$0xff]
        %v1481 = vld [vmem:[%s1471 + $0x48] sm:$0xff]
        %v1482 = vld [vmem:[%s1471 + $0x50] sm:$0xff]
        %v1483 = vld [vmem:[%s1471 + $0x58] sm:$0xff]
        %v1484 = vld [vmem:[%s1471 + $0x60] sm:$0xff]
        %v1485 = vld [vmem:[%s1471 + $0x68] sm:$0xff]
        %v1486 = vld [vmem:[%s1471 + $0x70] sm:$0xff]
        %v1487 = vld [vmem:[%s1471 + $0x78] sm:$0xff]
        %v1488 = vld [vmem:[%s1471 + $0x80] sm:$0xff]
        %v1489 = vld [vmem:[%s1471 + $0x88] sm:$0xff]
        %v1490 = vld [vmem:[%s1471 + $0x90] sm:$0xff]
        %v1491 = vld [vmem:[%s1471 + $0x98] sm:$0xff]
        %v1492 = vld [vmem:[%s1471 + $0xa0] sm:$0xff]
        %v1493 = vld [vmem:[%s1471 + $0xa8] sm:$0xff]
        %v1494 = vld [vmem:[%s1471 + $0xb0] sm:$0xff]
        %v1495 = vld [vmem:[%s1471 + $0xb8] sm:$0xff]
        %v1496 = vld [vmem:[%s1471 + $0xc0] sm:$0xff]
        %v1497 = vld [vmem:[%s1471 + $0xc8] sm:$0xff]
        %v1498 = vld [vmem:[%s1471 + $0xd0] sm:$0xff]
        %v1499 = vld [vmem:[%s1471 + $0xd8] sm:$0xff]
        %v1500 = vld [vmem:[%s1471 + $0xe0] sm:$0xff]
        %v1501 = vld [vmem:[%s1471 + $0xe8] sm:$0xff]
        %v1502 = vld [vmem:[%s1471 + $0xf0] sm:$0xff]
        %v1503 = vld [vmem:[%s1471 + $0xf8] sm:$0xff]
        %v1504 = vld [vmem:[%s1471 + $0x100] sm:$0xff]
        %v1505 = vld [vmem:[%s1471 + $0x108] sm:$0xff]
        %v1506 = vld [vmem:[%s1471 + $0x110] sm:$0xff]
        %v1507 = vld [vmem:[%s1471 + $0x118] sm:$0xff]
        %v1508 = vld [vmem:[%s1471 + $0x120] sm:$0xff]
        %v1509 = vld [vmem:[%s1471 + $0x128] sm:$0xff]
        %v1510 = vld [vmem:[%s1471 + $0x130] sm:$0xff]
        %v1511 = vld [vmem:[%s1471 + $0x138] sm:$0xff]
        %v1512 = vld [vmem:[%s1471 + $0x140] sm:$0xff]
        %v1513 = vld [vmem:[%s1471 + $0x148] sm:$0xff]
        %v1514 = vld [vmem:[%s1471 + $0x150] sm:$0xff]
        %v1515 = vld [vmem:[%s1471 + $0x158] sm:$0xff]
        %v1516 = vld [vmem:[%s1471 + $0x160] sm:$0xff]
        %v1517 = vld [vmem:[%s1471 + $0x168] sm:$0xff]
        %v1518 = vld [vmem:[%s1471 + $0x170] sm:$0xff]
        %v1519 = vld [vmem:[%s1471 + $0x178] sm:$0xff]
        %v1520 = vld [vmem:[%s1471 + $0x180] sm:$0xff]
        %v1521 = vld [vmem:[%s1471 + $0x188] sm:$0xff]
        %v1522 = vld [vmem:[%s1471 + $0x190] sm:$0xff]
        %v1523 = vld [vmem:[%s1471 + $0x198] sm:$0xff]
        %v1524 = vld [vmem:[%s1471 + $0x1a0] sm:$0xff]
        %v1525 = vld [vmem:[%s1471 + $0x1a8] sm:$0xff]
        %v1526 = vld [vmem:[%s1471 + $0x1b0] sm:$0xff]
        %v1527 = vld [vmem:[%s1471 + $0x1b8] sm:$0xff]
        %v1528 = vld [vmem:[%s1471 + $0x1c0] sm:$0xff]
        %v1529 = vld [vmem:[%s1471 + $0x1c8] sm:$0xff]
        %v1530 = vld [vmem:[%s1471 + $0x1d0] sm:$0xff]
        %v1531 = vld [vmem:[%s1471 + $0x1d8] sm:$0xff]
        %v1532 = vld [vmem:[%s1471 + $0x1e0] sm:$0xff]
        %v1533 = vld [vmem:[%s1471 + $0x1e8] sm:$0xff]
        %v1534 = vld [vmem:[%s1471 + $0x1f0] sm:$0xff]
        %v1535 = vld [vmem:[%s1471 + $0x1f8] sm:$0xff]
        %v1536 = vld [vmem:[%s1471 + $0x200] sm:$0xff]
        %v1537 = vld [vmem:[%s1471 + $0x208] sm:$0xff]
        %v1538 = vld [vmem:[%s1471 + $0x210] sm:$0xff]
        %v1539 = vld [vmem:[%s1471 + $0x218] sm:$0xff]
        %v1540 = vld [vmem:[%s1471 + $0x220] sm:$0xff]
        %v1541 = vld [vmem:[%s1471 + $0x228] sm:$0xff]
        %v1542 = vld [vmem:[%s1471 + $0x230] sm:$0xff]
        %v1543 = vld [vmem:[%s1471 + $0x238] sm:$0xff]
        %v1544 = vld [vmem:[%s1471 + $0x240] sm:$0xff]
        %v1545 = vld [vmem:[%s1471 + $0x248] sm:$0xff]
        %v1546 = vld [vmem:[%s1471 + $0x250] sm:$0xff]
        %v1547 = vld [vmem:[%s1471 + $0x258] sm:$0xff]
        %v1548 = vld [vmem:[%s1471 + $0x260] sm:$0xff]
        %v1549 = vld [vmem:[%s1471 + $0x268] sm:$0xff]
        %v1550 = vld [vmem:[%s1471 + $0x270] sm:$0xff]
        %v1551 = vld [vmem:[%s1471 + $0x278] sm:$0xff]
        %v1552 = vld [vmem:[%s1471 + $0x280] sm:$0xff]
        %v1553 = vld [vmem:[%s1471 + $0x288] sm:$0xff]
        %v1554 = vld [vmem:[%s1471 + $0x290] sm:$0xff]
        %v1555 = vld [vmem:[%s1471 + $0x298] sm:$0xff]
        %v1556 = vld [vmem:[%s1471 + $0x2a0] sm:$0xff]
        %v1557 = vld [vmem:[%s1471 + $0x2a8] sm:$0xff]
        %v1558 = vld [vmem:[%s1471 + $0x2b0] sm:$0xff]
        %v1559 = vld [vmem:[%s1471 + $0x2b8] sm:$0xff]
        %v1560 = vld [vmem:[%s1471 + $0x2c0] sm:$0xff]
        %v1561 = vld [vmem:[%s1471 + $0x2c8] sm:$0xff]
        %v1562 = vld [vmem:[%s1471 + $0x2d0] sm:$0xff]
        %v1563 = vld [vmem:[%s1471 + $0x2d8] sm:$0xff]
        %v1564 = vld [vmem:[%s1471 + $0x2e0] sm:$0xff]
        %v1565 = vld [vmem:[%s1471 + $0x2e8] sm:$0xff]
        %v1566 = vld [vmem:[%s1471 + $0x2f0] sm:$0xff]
        %v1567 = vld [vmem:[%s1471 + $0x2f8] sm:$0xff]
        %v1568 = vld [vmem:[%s1471 + $0x300] sm:$0xff]
        %v1569 = vld [vmem:[%s1471 + $0x308] sm:$0xff]
        %v1570 = vld [vmem:[%s1471 + $0x310] sm:$0xff]
        %v1571 = vld [vmem:[%s1471 + $0x318] sm:$0xff]
        %v1572 = vld [vmem:[%s1471 + $0x320] sm:$0xff]
        %v1573 = vld [vmem:[%s1471 + $0x328] sm:$0xff]
        %v1574 = vld [vmem:[%s1471 + $0x330] sm:$0xff]
        %v1575 = vld [vmem:[%s1471 + $0x338] sm:$0xff]
        %v1576 = vld [vmem:[%s1471 + $0x340] sm:$0xff]
        %v1577 = vld [vmem:[%s1471 + $0x348] sm:$0xff]
        %v1578 = vld [vmem:[%s1471 + $0x350] sm:$0xff]
        %v1579 = vld [vmem:[%s1471 + $0x358] sm:$0xff]
        %v1580 = vld [vmem:[%s1471 + $0x360] sm:$0xff]
        %v1581 = vld [vmem:[%s1471 + $0x368] sm:$0xff]
        %v1582 = vld [vmem:[%s1471 + $0x370] sm:$0xff]
        %v1583 = vld [vmem:[%s1471 + $0x378] sm:$0xff]
        %v1584 = vld [vmem:[%s1471 + $0x380] sm:$0xff]
        %v1585 = vld [vmem:[%s1471 + $0x388] sm:$0xff]
        %v1586 = vld [vmem:[%s1471 + $0x390] sm:$0xff]
        %v1587 = vld [vmem:[%s1471 + $0x398] sm:$0xff]
        %v1588 = vld [vmem:[%s1471 + $0x3a0] sm:$0xff]
        %v1589 = vld [vmem:[%s1471 + $0x3a8] sm:$0xff]
        %v1590 = vld [vmem:[%s1471 + $0x3b0] sm:$0xff]
        %v1591 = vld [vmem:[%s1471 + $0x3b8] sm:$0xff]
        %v1593 = vsel %vm548, %v1463, 0
        %v1596 = vsel %vm548, %v1469, 0
        %1598 = vmatprep.subr.mxu0 %v1473
        %1599 = vmatpush1.msra.mxu0 %v1472
        %1600 = vmatprep.subr.mxu0 %v1477
        %1601 = vmatpush1.msra.mxu0 %v1476
        %1602 = vmatprep.subr.mxu0 %v1481
        %1603 = vmatpush1.msra.mxu0 %v1480
        %1604 = vmatprep.subr.mxu0 %v1485
        %1605 = vmatpush1.msra.mxu0 %v1484
        %1606 = vmatprep.subr.mxu0 %v1489
        %1607 = vmatpush1.msra.mxu0 %v1488
        %1608 = vmatprep.subr.mxu0 %v1493
        %1609 = vmatpush1.msra.mxu0 %v1492
        %1610 = vmatprep.subr.mxu0 %v1497
        %1611 = vmatpush1.msra.mxu0 %v1496
        %1612 = vmatprep.subr.mxu0 %v1501
        %1613 = vmatpush1.msra.mxu0 %v1500
        %1614 = vmatprep.subr.mxu0 %v1505
        %1615 = vmatpush1.msra.mxu0 %v1504
        %1616 = vmatprep.subr.mxu0 %v1509
        %1617 = vmatpush1.msra.mxu0 %v1508
        %1618 = vmatprep.subr.mxu0 %v1513
        %1619 = vmatpush1.msra.mxu0 %v1512
        %1620 = vmatprep.subr.mxu0 %v1517
        %1621 = vmatpush1.msra.mxu0 %v1516
        %1622 = vmatprep.subr.mxu0 %v1521
        %1623 = vmatpush1.msra.mxu0 %v1520
        %1624 = vmatprep.subr.mxu0 %v1525
        %1625 = vmatpush1.msra.mxu0 %v1524
        %1626 = vmatprep.subr.mxu0 %v1529
        %1627 = vmatpush1.msra.mxu0 %v1528
        %1628 = vmatprep.subr.mxu0 %v1533
        %1629 = vmatpush1.msra.mxu0 %v1532
        %1630 = vmatprep.subr.mxu0 %v1537
        %1631 = vmatpush1.msra.mxu0 %v1536
        %1632 = vmatprep.subr.mxu0 %v1541
        %1633 = vmatpush1.msra.mxu0 %v1540
        %1634 = vmatprep.subr.mxu0 %v1545
        %1635 = vmatpush1.msra.mxu0 %v1544
        %1636 = vmatprep.subr.mxu0 %v1549
        %1637 = vmatpush1.msra.mxu0 %v1548
        %1638 = vmatprep.subr.mxu0 %v1553
        %1639 = vmatpush1.msra.mxu0 %v1552
        %1640 = vmatprep.subr.mxu0 %v1557
        %1641 = vmatpush1.msra.mxu0 %v1556
        %1642 = vmatprep.subr.mxu0 %v1561
        %1643 = vmatpush1.msra.mxu0 %v1560
        %1644 = vmatprep.subr.mxu0 %v1565
        %1645 = vmatpush1.msra.mxu0 %v1564
        %1646 = vmatprep.subr.mxu0 %v1569
        %1647 = vmatpush1.msra.mxu0 %v1568
        %1648 = vmatprep.subr.mxu0 %v1573
        %1649 = vmatpush1.msra.mxu0 %v1572
        %1650 = vmatprep.subr.mxu0 %v1577
        %1651 = vmatpush1.msra.mxu0 %v1576
        %1652 = vmatprep.subr.mxu0 %v1581
        %1653 = vmatpush1.msra.mxu0 %v1580
        %1654 = vmatprep.subr.mxu0 %v1585
        %1655 = vmatpush1.msra.mxu0 %v1584
        %1656 = vmatprep.subr.mxu0 %v1589
        %1657 = vmatpush1.msra.mxu0 %v1588
        %1658 = vmatprep.subr.mxu0 0.0
        %1659 = vmatpush1.msra.mxu0 0.0
        %1660 = vmatprep.subr.mxu0 0.0
        %1661 = vmatpush1.msra.mxu0 0.0
        %1662 = vmatprep.mubr.f32.mxu0 %v1593
        %1663 = vmatmul.mubr.f32.gmra.mrb[0].mxu0 %v1461
        %v1664 = vpop.f32.mrb[0].mxu0
        %v1665 = vadd.f32 0.0, %v1664
        %v1666 = vpop.f32.mrb[0].mxu0
        %v1667 = vadd.f32 0.0, %v1666
        %1668 = vmatprep.mubr.f32.mxu0 %v1596
        %1669 = vmatmul.mubr.f32.gmra.mrb[0].mxu0 %v1467
        %v1670 = vpop.f32.mrb[0].mxu0
        %v1671 = vadd.f32 0.0, %v1670
        %v1672 = vpop.f32.mrb[0].mxu0
        %v1673 = vadd.f32 0.0, %v1672
        %1674 = vdwg.mxu0
        %1675 = vmatprep.subr.mxu0 %v1475
        %1676 = vmatpush1.msra.mxu0 %v1474
        %1677 = vmatprep.subr.mxu0 %v1479
        %1678 = vmatpush1.msra.mxu0 %v1478
        %1679 = vmatprep.subr.mxu0 %v1483
        %1680 = vmatpush1.msra.mxu0 %v1482
        %1681 = vmatprep.subr.mxu0 %v1487
        %1682 = vmatpush1.msra.mxu0 %v1486
        %1683 = vmatprep.subr.mxu0 %v1491
        %1684 = vmatpush1.msra.mxu0 %v1490
        %1685 = vmatprep.subr.mxu0 %v1495
        %1686 = vmatpush1.msra.mxu0 %v1494
        %1687 = vmatprep.subr.mxu0 %v1499
        %1688 = vmatpush1.msra.mxu0 %v1498
        %1689 = vmatprep.subr.mxu0 %v1503
        %1690 = vmatpush1.msra.mxu0 %v1502
        %1691 = vmatprep.subr.mxu0 %v1507
        %1692 = vmatpush1.msra.mxu0 %v1506
        %1693 = vmatprep.subr.mxu0 %v1511
        %1694 = vmatpush1.msra.mxu0 %v1510
        %1695 = vmatprep.subr.mxu0 %v1515
        %1696 = vmatpush1.msra.mxu0 %v1514
        %1697 = vmatprep.subr.mxu0 %v1519
        %1698 = vmatpush1.msra.mxu0 %v1518
        %1699 = vmatprep.subr.mxu0 %v1523
        %1700 = vmatpush1.msra.mxu0 %v1522
        %1701 = vmatprep.subr.mxu0 %v1527
        %1702 = vmatpush1.msra.mxu0 %v1526
        %1703 = vmatprep.subr.mxu0 %v1531
        %1704 = vmatpush1.msra.mxu0 %v1530
        %1705 = vmatprep.subr.mxu0 %v1535
        %1706 = vmatpush1.msra.mxu0 %v1534
        %1707 = vmatprep.subr.mxu0 %v1539
        %1708 = vmatpush1.msra.mxu0 %v1538
        %1709 = vmatprep.subr.mxu0 %v1543
        %1710 = vmatpush1.msra.mxu0 %v1542
        %1711 = vmatprep.subr.mxu0 %v1547
        %1712 = vmatpush1.msra.mxu0 %v1546
        %1713 = vmatprep.subr.mxu0 %v1551
        %1714 = vmatpush1.msra.mxu0 %v1550
        %1715 = vmatprep.subr.mxu0 %v1555
        %1716 = vmatpush1.msra.mxu0 %v1554
        %1717 = vmatprep.subr.mxu0 %v1559
        %1718 = vmatpush1.msra.mxu0 %v1558
        %1719 = vmatprep.subr.mxu0 %v1563
        %1720 = vmatpush1.msra.mxu0 %v1562
        %1721 = vmatprep.subr.mxu0 %v1567
        %1722 = vmatpush1.msra.mxu0 %v1566
        %1723 = vmatprep.subr.mxu0 %v1571
        %1724 = vmatpush1.msra.mxu0 %v1570
        %1725 = vmatprep.subr.mxu0 %v1575
        %1726 = vmatpush1.msra.mxu0 %v1574
        %1727 = vmatprep.subr.mxu0 %v1579
        %1728 = vmatpush1.msra.mxu0 %v1578
        %1729 = vmatprep.subr.mxu0 %v1583
        %1730 = vmatpush1.msra.mxu0 %v1582
        %1731 = vmatprep.subr.mxu0 %v1587
        %1732 = vmatpush1.msra.mxu0 %v1586
        %1733 = vmatprep.subr.mxu0 %v1591
        %1734 = vmatpush1.msra.mxu0 %v1590
        %1735 = vmatprep.subr.mxu0 0.0
        %1736 = vmatpush1.msra.mxu0 0.0
        %1737 = vmatprep.subr.mxu0 0.0
        %1738 = vmatpush1.msra.mxu0 0.0
        %1739 = vmatprep.mubr.f32.mxu0 %v1593
        %1740 = vmatmul.mubr.f32.gmra.mrb[0].mxu0 %v1461
        %v1741 = vpop.f32.mrb[0].mxu0
        %v1742 = vadd.f32 0.0, %v1741
        %v1743 = vpop.f32.mrb[0].mxu0
        %v1744 = vadd.f32 0.0, %v1743
        %1745 = vmatprep.mubr.f32.mxu0 %v1596
        %1746 = vmatmul.mubr.f32.gmra.mrb[0].mxu0 %v1467
        %v1747 = vpop.f32.mrb[0].mxu0
        %v1748 = vadd.f32 0.0, %v1747
        %v1749 = vpop.f32.mrb[0].mxu0
        %v1750 = vadd.f32 0.0, %v1749
        %1751 = vdwg.mxu0
        %v1752 = vadd.f32 %v1298, %v1665
        %v1753 = vadd.f32 %v1300, %v1667
        %v1754 = vadd.f32 %v1375, %v1742
        %v1755 = vadd.f32 %v1377, %v1744
        %v1756 = vadd.f32 %v1304, %v1671
        %v1757 = vadd.f32 %v1306, %v1673
        %v1758 = vadd.f32 %v1381, %v1748
        %v1759 = vadd.f32 %v1383, %v1750
        %v1760 = vld [vmem:[%s6] ss:$2 sm:$0xf]
        %v1762 = vlaneseq
        %v1763 = vshrl.u32 %v1762, 7
        %v1764 = vsub.s32 0, %v1763
        %v1765 = vrot.slane %v1760, %v1764
        %v1766 = vlaneseq
        %v1767 = vshrl.u32 %v1766, 7
        %v1768 = vsub.s32 1, %v1767
        %v1769 = vrot.slane %v1760, %v1768
        %v1770 = vlaneseq
        %v1771 = vshrl.u32 %v1770, 7
        %v1772 = vsub.s32 2, %v1771
        %v1773 = vrot.slane %v1760, %v1772
        %v1774 = vlaneseq
        %v1775 = vshrl.u32 %v1774, 7
        %v1776 = vsub.s32 3, %v1775
        %v1777 = vrot.slane %v1760, %v1776
        %v1782 = vmul.f32 %v1752, %v1765
        %v1783 = vmul.f32 %v1753, %v1769
        %v1784 = vmul.f32 %v1754, %v1773
        %v1785 = vmul.f32 %v1755, %v1777
        %v1786 = vmul.f32 %v1756, %v1765
        %v1787 = vmul.f32 %v1757, %v1769
        %v1788 = vmul.f32 %v1758, %v1773
        %v1789 = vmul.f32 %v1759, %v1777
        %s1790 = scalar_lea.vmem %s6, 1
        %v1791 = vld [vmem:[%s1790] ss:$2 sm:$0xf]
        %v1793 = vlaneseq
        %v1794 = vshrl.u32 %v1793, 7
        %v1795 = vsub.s32 0, %v1794
        %v1796 = vrot.slane %v1791, %v1795
        %v1797 = vlaneseq
        %v1798 = vshrl.u32 %v1797, 7
        %v1799 = vsub.s32 1, %v1798
        %v1800 = vrot.slane %v1791, %v1799
        %v1801 = vlaneseq
        %v1802 = vshrl.u32 %v1801, 7
        %v1803 = vsub.s32 2, %v1802
        %v1804 = vrot.slane %v1791, %v1803
        %v1805 = vlaneseq
        %v1806 = vshrl.u32 %v1805, 7
        %v1807 = vsub.s32 3, %v1806
        %v1808 = vrot.slane %v1791, %v1807
        %v1813 = vadd.f32 %v1782, %v1796
        %v1814 = vadd.f32 %v1783, %v1800
        %v1815 = vadd.f32 %v1784, %v1804
        %v1816 = vadd.f32 %v1785, %v1808
        %v1817 = vadd.f32 %v1786, %v1796
        %v1818 = vadd.f32 %v1787, %v1800
        %v1819 = vadd.f32 %v1788, %v1804
        %v1820 = vadd.f32 %v1789, %v1808
        %vm1821 = vcmp.gt.f32.partialorder %v1813, 0.0
        %vm1822 = vcmp.gt.f32.partialorder %v1814, 0.0
        %vm1823 = vcmp.gt.f32.partialorder %v1815, 0.0
        %vm1824 = vcmp.gt.f32.partialorder %v1816, 0.0
        %vm1825 = vcmp.gt.f32.partialorder %v1817, 0.0
        %vm1826 = vcmp.gt.f32.partialorder %v1818, 0.0
        %vm1827 = vcmp.gt.f32.partialorder %v1819, 0.0
        %vm1828 = vcmp.gt.f32.partialorder %v1820, 0.0
        %v1829 = vmul.f32 %v1813, 0.1
        %v1830 = vmul.f32 %v1814, 0.1
        %v1831 = vmul.f32 %v1815, 0.1
        %v1832 = vmul.f32 %v1816, 0.1
        %v1833 = vmul.f32 %v1817, 0.1
        %v1834 = vmul.f32 %v1818, 0.1
        %v1835 = vmul.f32 %v1819, 0.1
        %v1836 = vmul.f32 %v1820, 0.1
        %v1837 = vsel %vm1821, %v1813, %v1829
        %v1838 = vsel %vm1822, %v1814, %v1830
        %v1839 = vsel %vm1823, %v1815, %v1831
        %v1840 = vsel %vm1824, %v1816, %v1832
        %v1841 = vsel %vm1825, %v1817, %v1833
        %v1842 = vsel %vm1826, %v1818, %v1834
        %v1843 = vsel %vm1827, %v1819, %v1835
        %v1844 = vsel %vm1828, %v1820, %v1836
        %v1853 = vrot.slane %v1837, 7
        %v1854 = vrot.slane %v1838, 7
        %v1855 = vrot.slane %v1839, 7
        %v1856 = vrot.slane %v1840, 7
        %v1857 = vrot.slane %v1841, 7
        %v1858 = vsel %vm603, %v1853, %v1857
        %v1859 = vrot.slane %v1842, 7
        %v1860 = vsel %vm603, %v1854, %v1859
        %v1861 = vrot.slane %v1843, 7
        %v1862 = vsel %vm603, %v1855, %v1861
        %v1863 = vrot.slane %v1844, 7
        %v1864 = vsel %vm603, %v1856, %v1863
        %1873 = vst [vmem:[#allocation3] sm:$0xfe] %v1853
        %1874 = vst [vmem:[#allocation3 + $0x8] sm:$0xfe] %v1854
        %1875 = vst [vmem:[#allocation3 + $0x10] sm:$0xfe] %v1855
        %vm1876 = vcmask 523265
        %1877 = vst.msk [vmem:[#allocation3 + $0x18] sm:$0xfe] %vm1876, %v1856
        %1878 = vst [vmem:[#allocation3 + $0x20] sm:$0x7f] %v1858
        %1879 = vst [vmem:[#allocation3 + $0x28] sm:$0x7f] %v1860
        %1880 = vst [vmem:[#allocation3 + $0x30] sm:$0x7f] %v1862
        %vm1881 = vcmask 522240
        %1882 = vst.msk [vmem:[#allocation3 + $0x38] sm:$0x7f] %vm1881, %v1864
        %v1883 = vld [vmem:[#allocation3] sm:$0xff]
        %v1884 = vld [vmem:[#allocation3 + $0x8] sm:$0xff]
        %v1885 = vld [vmem:[#allocation3 + $0x10] sm:$0xff]
        %v1886 = vld [vmem:[#allocation3 + $0x18] sm:$0xff]
        %v1887 = vld [vmem:[#allocation3 + $0x20] sm:$0x3f]
        %v1888 = vld [vmem:[#allocation3 + $0x28] sm:$0x3f]
        %v1889 = vld [vmem:[#allocation3 + $0x30] sm:$0x3f]
        %v1890 = vld [vmem:[#allocation3 + $0x38] sm:$0x3f]
        %v1891 = vld [vmem:[%s2] sm:$0xff]
        %v1892 = vld [vmem:[%s2 + $0x8] sm:$0xff]
        %v1893 = vld [vmem:[%s2 + $0x10] sm:$0xff]
        %v1894 = vld [vmem:[%s2 + $0x18] sm:$0xff]
        %v1895 = vld [vmem:[%s2 + $0x20] sm:$0xff]
        %v1896 = vld [vmem:[%s2 + $0x28] sm:$0xff]
        %v1897 = vld [vmem:[%s2 + $0x30] sm:$0xff]
        %v1898 = vld [vmem:[%s2 + $0x38] sm:$0xff]
        %v1899 = vld [vmem:[%s2 + $0x40] sm:$0xff]
        %v1900 = vld [vmem:[%s2 + $0x48] sm:$0xff]
        %v1901 = vld [vmem:[%s2 + $0x50] sm:$0xff]
        %v1902 = vld [vmem:[%s2 + $0x58] sm:$0xff]
        %v1903 = vld [vmem:[%s2 + $0x60] sm:$0xff]
        %v1904 = vld [vmem:[%s2 + $0x68] sm:$0xff]
        %v1905 = vld [vmem:[%s2 + $0x70] sm:$0xff]
        %v1906 = vld [vmem:[%s2 + $0x78] sm:$0xff]
        %v1907 = vld [vmem:[%s2 + $0x80] sm:$0xff]
        %v1908 = vld [vmem:[%s2 + $0x88] sm:$0xff]
        %v1909 = vld [vmem:[%s2 + $0x90] sm:$0xff]
        %v1910 = vld [vmem:[%s2 + $0x98] sm:$0xff]
        %v1911 = vld [vmem:[%s2 + $0xa0] sm:$0xff]
        %v1912 = vld [vmem:[%s2 + $0xa8] sm:$0xff]
        %v1913 = vld [vmem:[%s2 + $0xb0] sm:$0xff]
        %v1914 = vld [vmem:[%s2 + $0xb8] sm:$0xff]
        %v1915 = vld [vmem:[%s2 + $0xc0] sm:$0xff]
        %v1916 = vld [vmem:[%s2 + $0xc8] sm:$0xff]
        %v1917 = vld [vmem:[%s2 + $0xd0] sm:$0xff]
        %v1918 = vld [vmem:[%s2 + $0xd8] sm:$0xff]
        %v1919 = vld [vmem:[%s2 + $0xe0] sm:$0xff]
        %v1920 = vld [vmem:[%s2 + $0xe8] sm:$0xff]
        %v1921 = vld [vmem:[%s2 + $0xf0] sm:$0xff]
        %v1922 = vld [vmem:[%s2 + $0xf8] sm:$0xff]
        %v1923 = vld [vmem:[%s2 + $0x100] sm:$0xff]
        %v1924 = vld [vmem:[%s2 + $0x108] sm:$0xff]
        %v1925 = vld [vmem:[%s2 + $0x110] sm:$0xff]
        %v1926 = vld [vmem:[%s2 + $0x118] sm:$0xff]
        %v1927 = vld [vmem:[%s2 + $0x120] sm:$0xff]
        %v1928 = vld [vmem:[%s2 + $0x128] sm:$0xff]
        %v1929 = vld [vmem:[%s2 + $0x130] sm:$0xff]
        %v1930 = vld [vmem:[%s2 + $0x138] sm:$0xff]
        %v1931 = vld [vmem:[%s2 + $0x140] sm:$0xff]
        %v1932 = vld [vmem:[%s2 + $0x148] sm:$0xff]
        %v1933 = vld [vmem:[%s2 + $0x150] sm:$0xff]
        %v1934 = vld [vmem:[%s2 + $0x158] sm:$0xff]
        %v1935 = vld [vmem:[%s2 + $0x160] sm:$0xff]
        %v1936 = vld [vmem:[%s2 + $0x168] sm:$0xff]
        %v1937 = vld [vmem:[%s2 + $0x170] sm:$0xff]
        %v1938 = vld [vmem:[%s2 + $0x178] sm:$0xff]
        %v1939 = vld [vmem:[%s2 + $0x180] sm:$0xff]
        %v1940 = vld [vmem:[%s2 + $0x188] sm:$0xff]
        %v1941 = vld [vmem:[%s2 + $0x190] sm:$0xff]
        %v1942 = vld [vmem:[%s2 + $0x198] sm:$0xff]
        %v1943 = vld [vmem:[%s2 + $0x1a0] sm:$0xff]
        %v1944 = vld [vmem:[%s2 + $0x1a8] sm:$0xff]
        %v1945 = vld [vmem:[%s2 + $0x1b0] sm:$0xff]
        %v1946 = vld [vmem:[%s2 + $0x1b8] sm:$0xff]
        %v1947 = vld [vmem:[%s2 + $0x1c0] sm:$0xff]
        %v1948 = vld [vmem:[%s2 + $0x1c8] sm:$0xff]
        %v1949 = vld [vmem:[%s2 + $0x1d0] sm:$0xff]
        %v1950 = vld [vmem:[%s2 + $0x1d8] sm:$0xff]
        %v1951 = vld [vmem:[%s2 + $0x1e0] sm:$0xff]
        %v1952 = vld [vmem:[%s2 + $0x1e8] sm:$0xff]
        %v1953 = vld [vmem:[%s2 + $0x1f0] sm:$0xff]
        %v1954 = vld [vmem:[%s2 + $0x1f8] sm:$0xff]
        %v1955 = vld [vmem:[%s2 + $0x200] sm:$0xff]
        %v1956 = vld [vmem:[%s2 + $0x208] sm:$0xff]
        %v1957 = vld [vmem:[%s2 + $0x210] sm:$0xff]
        %v1958 = vld [vmem:[%s2 + $0x218] sm:$0xff]
        %v1959 = vld [vmem:[%s2 + $0x220] sm:$0xff]
        %v1960 = vld [vmem:[%s2 + $0x228] sm:$0xff]
        %v1961 = vld [vmem:[%s2 + $0x230] sm:$0xff]
        %v1962 = vld [vmem:[%s2 + $0x238] sm:$0xff]
        %v1963 = vld [vmem:[%s2 + $0x240] sm:$0xff]
        %v1964 = vld [vmem:[%s2 + $0x248] sm:$0xff]
        %v1965 = vld [vmem:[%s2 + $0x250] sm:$0xff]
        %v1966 = vld [vmem:[%s2 + $0x258] sm:$0xff]
        %v1967 = vld [vmem:[%s2 + $0x260] sm:$0xff]
        %v1968 = vld [vmem:[%s2 + $0x268] sm:$0xff]
        %v1969 = vld [vmem:[%s2 + $0x270] sm:$0xff]
        %v1970 = vld [vmem:[%s2 + $0x278] sm:$0xff]
        %v1971 = vld [vmem:[%s2 + $0x280] sm:$0xff]
        %v1972 = vld [vmem:[%s2 + $0x288] sm:$0xff]
        %v1973 = vld [vmem:[%s2 + $0x290] sm:$0xff]
        %v1974 = vld [vmem:[%s2 + $0x298] sm:$0xff]
        %v1975 = vld [vmem:[%s2 + $0x2a0] sm:$0xff]
        %v1976 = vld [vmem:[%s2 + $0x2a8] sm:$0xff]
        %v1977 = vld [vmem:[%s2 + $0x2b0] sm:$0xff]
        %v1978 = vld [vmem:[%s2 + $0x2b8] sm:$0xff]
        %v1979 = vld [vmem:[%s2 + $0x2c0] sm:$0xff]
        %v1980 = vld [vmem:[%s2 + $0x2c8] sm:$0xff]
        %v1981 = vld [vmem:[%s2 + $0x2d0] sm:$0xff]
        %v1982 = vld [vmem:[%s2 + $0x2d8] sm:$0xff]
        %v1983 = vld [vmem:[%s2 + $0x2e0] sm:$0xff]
        %v1984 = vld [vmem:[%s2 + $0x2e8] sm:$0xff]
        %v1985 = vld [vmem:[%s2 + $0x2f0] sm:$0xff]
        %v1986 = vld [vmem:[%s2 + $0x2f8] sm:$0xff]
        %v1987 = vld [vmem:[%s2 + $0x300] sm:$0xff]
        %v1988 = vld [vmem:[%s2 + $0x308] sm:$0xff]
        %v1989 = vld [vmem:[%s2 + $0x310] sm:$0xff]
        %v1990 = vld [vmem:[%s2 + $0x318] sm:$0xff]
        %v1991 = vld [vmem:[%s2 + $0x320] sm:$0xff]
        %v1992 = vld [vmem:[%s2 + $0x328] sm:$0xff]
        %v1993 = vld [vmem:[%s2 + $0x330] sm:$0xff]
        %v1994 = vld [vmem:[%s2 + $0x338] sm:$0xff]
        %v1995 = vld [vmem:[%s2 + $0x340] sm:$0xff]
        %v1996 = vld [vmem:[%s2 + $0x348] sm:$0xff]
        %v1997 = vld [vmem:[%s2 + $0x350] sm:$0xff]
        %v1998 = vld [vmem:[%s2 + $0x358] sm:$0xff]
        %v1999 = vld [vmem:[%s2 + $0x360] sm:$0xff]
        %v2000 = vld [vmem:[%s2 + $0x368] sm:$0xff]
        %v2001 = vld [vmem:[%s2 + $0x370] sm:$0xff]
        %v2002 = vld [vmem:[%s2 + $0x378] sm:$0xff]
        %v2003 = vld [vmem:[%s2 + $0x380] sm:$0xff]
        %v2004 = vld [vmem:[%s2 + $0x388] sm:$0xff]
        %v2005 = vld [vmem:[%s2 + $0x390] sm:$0xff]
        %v2006 = vld [vmem:[%s2 + $0x398] sm:$0xff]
        %v2007 = vld [vmem:[%s2 + $0x3a0] sm:$0xff]
        %v2008 = vld [vmem:[%s2 + $0x3a8] sm:$0xff]
        %v2009 = vld [vmem:[%s2 + $0x3b0] sm:$0xff]
        %v2010 = vld [vmem:[%s2 + $0x3b8] sm:$0xff]
        %v2011 = vld [vmem:[%s2 + $0x3c0] sm:$0xff]
        %v2012 = vld [vmem:[%s2 + $0x3c8] sm:$0xff]
        %v2013 = vld [vmem:[%s2 + $0x3d0] sm:$0xff]
        %v2014 = vld [vmem:[%s2 + $0x3d8] sm:$0xff]
        %v2015 = vld [vmem:[%s2 + $0x3e0] sm:$0xff]
        %v2016 = vld [vmem:[%s2 + $0x3e8] sm:$0xff]
        %v2017 = vld [vmem:[%s2 + $0x3f0] sm:$0xff]
        %v2018 = vld [vmem:[%s2 + $0x3f8] sm:$0xff]
        %v2019 = vld [vmem:[%s2 + $0x400] sm:$0xff]
        %v2020 = vld [vmem:[%s2 + $0x408] sm:$0xff]
        %v2021 = vld [vmem:[%s2 + $0x410] sm:$0xff]
        %v2022 = vld [vmem:[%s2 + $0x418] sm:$0xff]
        %v2023 = vld [vmem:[%s2 + $0x420] sm:$0xff]
        %v2024 = vld [vmem:[%s2 + $0x428] sm:$0xff]
        %v2025 = vld [vmem:[%s2 + $0x430] sm:$0xff]
        %v2026 = vld [vmem:[%s2 + $0x438] sm:$0xff]
        %v2027 = vld [vmem:[%s2 + $0x440] sm:$0xff]
        %v2028 = vld [vmem:[%s2 + $0x448] sm:$0xff]
        %v2029 = vld [vmem:[%s2 + $0x450] sm:$0xff]
        %v2030 = vld [vmem:[%s2 + $0x458] sm:$0xff]
        %v2031 = vld [vmem:[%s2 + $0x460] sm:$0xff]
        %v2032 = vld [vmem:[%s2 + $0x468] sm:$0xff]
        %v2033 = vld [vmem:[%s2 + $0x470] sm:$0xff]
        %v2034 = vld [vmem:[%s2 + $0x478] sm:$0xff]
        %v2035 = vld [vmem:[%s2 + $0x480] sm:$0xff]
        %v2036 = vld [vmem:[%s2 + $0x488] sm:$0xff]
        %v2037 = vld [vmem:[%s2 + $0x490] sm:$0xff]
        %v2038 = vld [vmem:[%s2 + $0x498] sm:$0xff]
        %v2039 = vld [vmem:[%s2 + $0x4a0] sm:$0xff]
        %v2040 = vld [vmem:[%s2 + $0x4a8] sm:$0xff]
        %v2041 = vld [vmem:[%s2 + $0x4b0] sm:$0xff]
        %v2042 = vld [vmem:[%s2 + $0x4b8] sm:$0xff]
        %v2043 = vld [vmem:[%s2 + $0x4c0] sm:$0xff]
        %v2044 = vld [vmem:[%s2 + $0x4c8] sm:$0xff]
        %v2045 = vld [vmem:[%s2 + $0x4d0] sm:$0xff]
        %v2046 = vld [vmem:[%s2 + $0x4d8] sm:$0xff]
        %v2047 = vld [vmem:[%s2 + $0x4e0] sm:$0xff]
        %v2048 = vld [vmem:[%s2 + $0x4e8] sm:$0xff]
        %v2049 = vld [vmem:[%s2 + $0x4f0] sm:$0xff]
        %v2050 = vld [vmem:[%s2 + $0x4f8] sm:$0xff]
        %v2051 = vld [vmem:[%s2 + $0x500] sm:$0xff]
        %v2052 = vld [vmem:[%s2 + $0x508] sm:$0xff]
        %v2053 = vld [vmem:[%s2 + $0x510] sm:$0xff]
        %v2054 = vld [vmem:[%s2 + $0x518] sm:$0xff]
        %v2055 = vld [vmem:[%s2 + $0x520] sm:$0xff]
        %v2056 = vld [vmem:[%s2 + $0x528] sm:$0xff]
        %v2057 = vld [vmem:[%s2 + $0x530] sm:$0xff]
        %v2058 = vld [vmem:[%s2 + $0x538] sm:$0xff]
        %v2059 = vld [vmem:[%s2 + $0x540] sm:$0xff]
        %v2060 = vld [vmem:[%s2 + $0x548] sm:$0xff]
        %v2061 = vld [vmem:[%s2 + $0x550] sm:$0xff]
        %v2062 = vld [vmem:[%s2 + $0x558] sm:$0xff]
        %v2063 = vld [vmem:[%s2 + $0x560] sm:$0xff]
        %v2064 = vld [vmem:[%s2 + $0x568] sm:$0xff]
        %v2065 = vld [vmem:[%s2 + $0x570] sm:$0xff]
        %v2066 = vld [vmem:[%s2 + $0x578] sm:$0xff]
        %v2067 = vld [vmem:[%s2 + $0x580] sm:$0xff]
        %v2068 = vld [vmem:[%s2 + $0x588] sm:$0xff]
        %v2069 = vld [vmem:[%s2 + $0x590] sm:$0xff]
        %v2070 = vld [vmem:[%s2 + $0x598] sm:$0xff]
        %v2071 = vld [vmem:[%s2 + $0x5a0] sm:$0xff]
        %v2072 = vld [vmem:[%s2 + $0x5a8] sm:$0xff]
        %v2073 = vld [vmem:[%s2 + $0x5b0] sm:$0xff]
        %v2074 = vld [vmem:[%s2 + $0x5b8] sm:$0xff]
        %v2075 = vld [vmem:[%s2 + $0x5c0] sm:$0xff]
        %v2076 = vld [vmem:[%s2 + $0x5c8] sm:$0xff]
        %v2077 = vld [vmem:[%s2 + $0x5d0] sm:$0xff]
        %v2078 = vld [vmem:[%s2 + $0x5d8] sm:$0xff]
        %v2079 = vld [vmem:[%s2 + $0x5e0] sm:$0xff]
        %v2080 = vld [vmem:[%s2 + $0x5e8] sm:$0xff]
        %v2081 = vld [vmem:[%s2 + $0x5f0] sm:$0xff]
        %v2082 = vld [vmem:[%s2 + $0x5f8] sm:$0xff]
        %v2083 = vld [vmem:[%s2 + $0x600] sm:$0xff]
        %v2084 = vld [vmem:[%s2 + $0x608] sm:$0xff]
        %v2085 = vld [vmem:[%s2 + $0x610] sm:$0xff]
        %v2086 = vld [vmem:[%s2 + $0x618] sm:$0xff]
        %v2087 = vld [vmem:[%s2 + $0x620] sm:$0xff]
        %v2088 = vld [vmem:[%s2 + $0x628] sm:$0xff]
        %v2089 = vld [vmem:[%s2 + $0x630] sm:$0xff]
        %v2090 = vld [vmem:[%s2 + $0x638] sm:$0xff]
        %v2091 = vld [vmem:[%s2 + $0x640] sm:$0xff]
        %v2092 = vld [vmem:[%s2 + $0x648] sm:$0xff]
        %v2093 = vld [vmem:[%s2 + $0x650] sm:$0xff]
        %v2094 = vld [vmem:[%s2 + $0x658] sm:$0xff]
        %v2095 = vld [vmem:[%s2 + $0x660] sm:$0xff]
        %v2096 = vld [vmem:[%s2 + $0x668] sm:$0xff]
        %v2097 = vld [vmem:[%s2 + $0x670] sm:$0xff]
        %v2098 = vld [vmem:[%s2 + $0x678] sm:$0xff]
        %v2099 = vld [vmem:[%s2 + $0x680] sm:$0xff]
        %v2100 = vld [vmem:[%s2 + $0x688] sm:$0xff]
        %v2101 = vld [vmem:[%s2 + $0x690] sm:$0xff]
        %v2102 = vld [vmem:[%s2 + $0x698] sm:$0xff]
        %v2103 = vld [vmem:[%s2 + $0x6a0] sm:$0xff]
        %v2104 = vld [vmem:[%s2 + $0x6a8] sm:$0xff]
        %v2105 = vld [vmem:[%s2 + $0x6b0] sm:$0xff]
        %v2106 = vld [vmem:[%s2 + $0x6b8] sm:$0xff]
        %v2107 = vld [vmem:[%s2 + $0x6c0] sm:$0xff]
        %v2108 = vld [vmem:[%s2 + $0x6c8] sm:$0xff]
        %v2109 = vld [vmem:[%s2 + $0x6d0] sm:$0xff]
        %v2110 = vld [vmem:[%s2 + $0x6d8] sm:$0xff]
        %v2111 = vld [vmem:[%s2 + $0x6e0] sm:$0xff]
        %v2112 = vld [vmem:[%s2 + $0x6e8] sm:$0xff]
        %v2113 = vld [vmem:[%s2 + $0x6f0] sm:$0xff]
        %v2114 = vld [vmem:[%s2 + $0x6f8] sm:$0xff]
        %v2115 = vld [vmem:[%s2 + $0x700] sm:$0xff]
        %v2116 = vld [vmem:[%s2 + $0x708] sm:$0xff]
        %v2117 = vld [vmem:[%s2 + $0x710] sm:$0xff]
        %v2118 = vld [vmem:[%s2 + $0x718] sm:$0xff]
        %v2119 = vld [vmem:[%s2 + $0x720] sm:$0xff]
        %v2120 = vld [vmem:[%s2 + $0x728] sm:$0xff]
        %v2121 = vld [vmem:[%s2 + $0x730] sm:$0xff]
        %v2122 = vld [vmem:[%s2 + $0x738] sm:$0xff]
        %v2123 = vld [vmem:[%s2 + $0x740] sm:$0xff]
        %v2124 = vld [vmem:[%s2 + $0x748] sm:$0xff]
        %v2125 = vld [vmem:[%s2 + $0x750] sm:$0xff]
        %v2126 = vld [vmem:[%s2 + $0x758] sm:$0xff]
        %v2127 = vld [vmem:[%s2 + $0x760] sm:$0xff]
        %v2128 = vld [vmem:[%s2 + $0x768] sm:$0xff]
        %v2129 = vld [vmem:[%s2 + $0x770] sm:$0xff]
        %v2130 = vld [vmem:[%s2 + $0x778] sm:$0xff]
        %v2131 = vld [vmem:[%s2 + $0x780] sm:$0xff]
        %v2132 = vld [vmem:[%s2 + $0x788] sm:$0xff]
        %v2133 = vld [vmem:[%s2 + $0x790] sm:$0xff]
        %v2134 = vld [vmem:[%s2 + $0x798] sm:$0xff]
        %v2135 = vld [vmem:[%s2 + $0x7a0] sm:$0xff]
        %v2136 = vld [vmem:[%s2 + $0x7a8] sm:$0xff]
        %v2137 = vld [vmem:[%s2 + $0x7b0] sm:$0xff]
        %v2138 = vld [vmem:[%s2 + $0x7b8] sm:$0xff]
        %v2139 = vld [vmem:[%s2 + $0x7c0] sm:$0xff]
        %v2140 = vld [vmem:[%s2 + $0x7c8] sm:$0xff]
        %v2141 = vld [vmem:[%s2 + $0x7d0] sm:$0xff]
        %v2142 = vld [vmem:[%s2 + $0x7d8] sm:$0xff]
        %v2143 = vld [vmem:[%s2 + $0x7e0] sm:$0xff]
        %v2144 = vld [vmem:[%s2 + $0x7e8] sm:$0xff]
        %v2145 = vld [vmem:[%s2 + $0x7f0] sm:$0xff]
        %v2146 = vld [vmem:[%s2 + $0x7f8] sm:$0xff]
        %v2147 = vld [vmem:[#allocation3] sm:$0xfe]
        %v2148 = vld [vmem:[#allocation3 + $0x8] sm:$0xfe]
        %v2149 = vld [vmem:[#allocation3 + $0x10] sm:$0xfe]
        %v2150 = vld [vmem:[#allocation3 + $0x18] sm:$0xfe]
        %v2151 = vld [vmem:[#allocation3 + $0x20] sm:$0x7f]
        %v2152 = vld [vmem:[#allocation3 + $0x28] sm:$0x7f]
        %v2153 = vld [vmem:[#allocation3 + $0x30] sm:$0x7f]
        %v2154 = vld [vmem:[#allocation3 + $0x38] sm:$0x7f]
        %s2155 = scalar_lea.vmem %s2, 2048
        %v2156 = vld [vmem:[%s2155] sm:$0xff]
        %v2157 = vld [vmem:[%s2155 + $0x8] sm:$0xff]
        %v2158 = vld [vmem:[%s2155 + $0x10] sm:$0xff]
        %v2159 = vld [vmem:[%s2155 + $0x18] sm:$0xff]
        %v2160 = vld [vmem:[%s2155 + $0x20] sm:$0xff]
        %v2161 = vld [vmem:[%s2155 + $0x28] sm:$0xff]
        %v2162 = vld [vmem:[%s2155 + $0x30] sm:$0xff]
        %v2163 = vld [vmem:[%s2155 + $0x38] sm:$0xff]
        %v2164 = vld [vmem:[%s2155 + $0x40] sm:$0xff]
        %v2165 = vld [vmem:[%s2155 + $0x48] sm:$0xff]
        %v2166 = vld [vmem:[%s2155 + $0x50] sm:$0xff]
        %v2167 = vld [vmem:[%s2155 + $0x58] sm:$0xff]
        %v2168 = vld [vmem:[%s2155 + $0x60] sm:$0xff]
        %v2169 = vld [vmem:[%s2155 + $0x68] sm:$0xff]
        %v2170 = vld [vmem:[%s2155 + $0x70] sm:$0xff]
        %v2171 = vld [vmem:[%s2155 + $0x78] sm:$0xff]
        %v2172 = vld [vmem:[%s2155 + $0x80] sm:$0xff]
        %v2173 = vld [vmem:[%s2155 + $0x88] sm:$0xff]
        %v2174 = vld [vmem:[%s2155 + $0x90] sm:$0xff]
        %v2175 = vld [vmem:[%s2155 + $0x98] sm:$0xff]
        %v2176 = vld [vmem:[%s2155 + $0xa0] sm:$0xff]
        %v2177 = vld [vmem:[%s2155 + $0xa8] sm:$0xff]
        %v2178 = vld [vmem:[%s2155 + $0xb0] sm:$0xff]
        %v2179 = vld [vmem:[%s2155 + $0xb8] sm:$0xff]
        %v2180 = vld [vmem:[%s2155 + $0xc0] sm:$0xff]
        %v2181 = vld [vmem:[%s2155 + $0xc8] sm:$0xff]
        %v2182 = vld [vmem:[%s2155 + $0xd0] sm:$0xff]
        %v2183 = vld [vmem:[%s2155 + $0xd8] sm:$0xff]
        %v2184 = vld [vmem:[%s2155 + $0xe0] sm:$0xff]
        %v2185 = vld [vmem:[%s2155 + $0xe8] sm:$0xff]
        %v2186 = vld [vmem:[%s2155 + $0xf0] sm:$0xff]
        %v2187 = vld [vmem:[%s2155 + $0xf8] sm:$0xff]
        %v2188 = vld [vmem:[%s2155 + $0x100] sm:$0xff]
        %v2189 = vld [vmem:[%s2155 + $0x108] sm:$0xff]
        %v2190 = vld [vmem:[%s2155 + $0x110] sm:$0xff]
        %v2191 = vld [vmem:[%s2155 + $0x118] sm:$0xff]
        %v2192 = vld [vmem:[%s2155 + $0x120] sm:$0xff]
        %v2193 = vld [vmem:[%s2155 + $0x128] sm:$0xff]
        %v2194 = vld [vmem:[%s2155 + $0x130] sm:$0xff]
        %v2195 = vld [vmem:[%s2155 + $0x138] sm:$0xff]
        %v2196 = vld [vmem:[%s2155 + $0x140] sm:$0xff]
        %v2197 = vld [vmem:[%s2155 + $0x148] sm:$0xff]
        %v2198 = vld [vmem:[%s2155 + $0x150] sm:$0xff]
        %v2199 = vld [vmem:[%s2155 + $0x158] sm:$0xff]
        %v2200 = vld [vmem:[%s2155 + $0x160] sm:$0xff]
        %v2201 = vld [vmem:[%s2155 + $0x168] sm:$0xff]
        %v2202 = vld [vmem:[%s2155 + $0x170] sm:$0xff]
        %v2203 = vld [vmem:[%s2155 + $0x178] sm:$0xff]
        %v2204 = vld [vmem:[%s2155 + $0x180] sm:$0xff]
        %v2205 = vld [vmem:[%s2155 + $0x188] sm:$0xff]
        %v2206 = vld [vmem:[%s2155 + $0x190] sm:$0xff]
        %v2207 = vld [vmem:[%s2155 + $0x198] sm:$0xff]
        %v2208 = vld [vmem:[%s2155 + $0x1a0] sm:$0xff]
        %v2209 = vld [vmem:[%s2155 + $0x1a8] sm:$0xff]
        %v2210 = vld [vmem:[%s2155 + $0x1b0] sm:$0xff]
        %v2211 = vld [vmem:[%s2155 + $0x1b8] sm:$0xff]
        %v2212 = vld [vmem:[%s2155 + $0x1c0] sm:$0xff]
        %v2213 = vld [vmem:[%s2155 + $0x1c8] sm:$0xff]
        %v2214 = vld [vmem:[%s2155 + $0x1d0] sm:$0xff]
        %v2215 = vld [vmem:[%s2155 + $0x1d8] sm:$0xff]
        %v2216 = vld [vmem:[%s2155 + $0x1e0] sm:$0xff]
        %v2217 = vld [vmem:[%s2155 + $0x1e8] sm:$0xff]
        %v2218 = vld [vmem:[%s2155 + $0x1f0] sm:$0xff]
        %v2219 = vld [vmem:[%s2155 + $0x1f8] sm:$0xff]
        %v2220 = vld [vmem:[%s2155 + $0x200] sm:$0xff]
        %v2221 = vld [vmem:[%s2155 + $0x208] sm:$0xff]
        %v2222 = vld [vmem:[%s2155 + $0x210] sm:$0xff]
        %v2223 = vld [vmem:[%s2155 + $0x218] sm:$0xff]
        %v2224 = vld [vmem:[%s2155 + $0x220] sm:$0xff]
        %v2225 = vld [vmem:[%s2155 + $0x228] sm:$0xff]
        %v2226 = vld [vmem:[%s2155 + $0x230] sm:$0xff]
        %v2227 = vld [vmem:[%s2155 + $0x238] sm:$0xff]
        %v2228 = vld [vmem:[%s2155 + $0x240] sm:$0xff]
        %v2229 = vld [vmem:[%s2155 + $0x248] sm:$0xff]
        %v2230 = vld [vmem:[%s2155 + $0x250] sm:$0xff]
        %v2231 = vld [vmem:[%s2155 + $0x258] sm:$0xff]
        %v2232 = vld [vmem:[%s2155 + $0x260] sm:$0xff]
        %v2233 = vld [vmem:[%s2155 + $0x268] sm:$0xff]
        %v2234 = vld [vmem:[%s2155 + $0x270] sm:$0xff]
        %v2235 = vld [vmem:[%s2155 + $0x278] sm:$0xff]
        %v2236 = vld [vmem:[%s2155 + $0x280] sm:$0xff]
        %v2237 = vld [vmem:[%s2155 + $0x288] sm:$0xff]
        %v2238 = vld [vmem:[%s2155 + $0x290] sm:$0xff]
        %v2239 = vld [vmem:[%s2155 + $0x298] sm:$0xff]
        %v2240 = vld [vmem:[%s2155 + $0x2a0] sm:$0xff]
        %v2241 = vld [vmem:[%s2155 + $0x2a8] sm:$0xff]
        %v2242 = vld [vmem:[%s2155 + $0x2b0] sm:$0xff]
        %v2243 = vld [vmem:[%s2155 + $0x2b8] sm:$0xff]
        %v2244 = vld [vmem:[%s2155 + $0x2c0] sm:$0xff]
        %v2245 = vld [vmem:[%s2155 + $0x2c8] sm:$0xff]
        %v2246 = vld [vmem:[%s2155 + $0x2d0] sm:$0xff]
        %v2247 = vld [vmem:[%s2155 + $0x2d8] sm:$0xff]
        %v2248 = vld [vmem:[%s2155 + $0x2e0] sm:$0xff]
        %v2249 = vld [vmem:[%s2155 + $0x2e8] sm:$0xff]
        %v2250 = vld [vmem:[%s2155 + $0x2f0] sm:$0xff]
        %v2251 = vld [vmem:[%s2155 + $0x2f8] sm:$0xff]
        %v2252 = vld [vmem:[%s2155 + $0x300] sm:$0xff]
        %v2253 = vld [vmem:[%s2155 + $0x308] sm:$0xff]
        %v2254 = vld [vmem:[%s2155 + $0x310] sm:$0xff]
        %v2255 = vld [vmem:[%s2155 + $0x318] sm:$0xff]
        %v2256 = vld [vmem:[%s2155 + $0x320] sm:$0xff]
        %v2257 = vld [vmem:[%s2155 + $0x328] sm:$0xff]
        %v2258 = vld [vmem:[%s2155 + $0x330] sm:$0xff]
        %v2259 = vld [vmem:[%s2155 + $0x338] sm:$0xff]
        %v2260 = vld [vmem:[%s2155 + $0x340] sm:$0xff]
        %v2261 = vld [vmem:[%s2155 + $0x348] sm:$0xff]
        %v2262 = vld [vmem:[%s2155 + $0x350] sm:$0xff]
        %v2263 = vld [vmem:[%s2155 + $0x358] sm:$0xff]
        %v2264 = vld [vmem:[%s2155 + $0x360] sm:$0xff]
        %v2265 = vld [vmem:[%s2155 + $0x368] sm:$0xff]
        %v2266 = vld [vmem:[%s2155 + $0x370] sm:$0xff]
        %v2267 = vld [vmem:[%s2155 + $0x378] sm:$0xff]
        %v2268 = vld [vmem:[%s2155 + $0x380] sm:$0xff]
        %v2269 = vld [vmem:[%s2155 + $0x388] sm:$0xff]
        %v2270 = vld [vmem:[%s2155 + $0x390] sm:$0xff]
        %v2271 = vld [vmem:[%s2155 + $0x398] sm:$0xff]
        %v2272 = vld [vmem:[%s2155 + $0x3a0] sm:$0xff]
        %v2273 = vld [vmem:[%s2155 + $0x3a8] sm:$0xff]
        %v2274 = vld [vmem:[%s2155 + $0x3b0] sm:$0xff]
        %v2275 = vld [vmem:[%s2155 + $0x3b8] sm:$0xff]
        %v2276 = vld [vmem:[%s2155 + $0x3c0] sm:$0xff]
        %v2277 = vld [vmem:[%s2155 + $0x3c8] sm:$0xff]
        %v2278 = vld [vmem:[%s2155 + $0x3d0] sm:$0xff]
        %v2279 = vld [vmem:[%s2155 + $0x3d8] sm:$0xff]
        %v2280 = vld [vmem:[%s2155 + $0x3e0] sm:$0xff]
        %v2281 = vld [vmem:[%s2155 + $0x3e8] sm:$0xff]
        %v2282 = vld [vmem:[%s2155 + $0x3f0] sm:$0xff]
        %v2283 = vld [vmem:[%s2155 + $0x3f8] sm:$0xff]
        %v2284 = vld [vmem:[%s2155 + $0x400] sm:$0xff]
        %v2285 = vld [vmem:[%s2155 + $0x408] sm:$0xff]
        %v2286 = vld [vmem:[%s2155 + $0x410] sm:$0xff]
        %v2287 = vld [vmem:[%s2155 + $0x418] sm:$0xff]
        %v2288 = vld [vmem:[%s2155 + $0x420] sm:$0xff]
        %v2289 = vld [vmem:[%s2155 + $0x428] sm:$0xff]
        %v2290 = vld [vmem:[%s2155 + $0x430] sm:$0xff]
        %v2291 = vld [vmem:[%s2155 + $0x438] sm:$0xff]
        %v2292 = vld [vmem:[%s2155 + $0x440] sm:$0xff]
        %v2293 = vld [vmem:[%s2155 + $0x448] sm:$0xff]
        %v2294 = vld [vmem:[%s2155 + $0x450] sm:$0xff]
        %v2295 = vld [vmem:[%s2155 + $0x458] sm:$0xff]
        %v2296 = vld [vmem:[%s2155 + $0x460] sm:$0xff]
        %v2297 = vld [vmem:[%s2155 + $0x468] sm:$0xff]
        %v2298 = vld [vmem:[%s2155 + $0x470] sm:$0xff]
        %v2299 = vld [vmem:[%s2155 + $0x478] sm:$0xff]
        %v2300 = vld [vmem:[%s2155 + $0x480] sm:$0xff]
        %v2301 = vld [vmem:[%s2155 + $0x488] sm:$0xff]
        %v2302 = vld [vmem:[%s2155 + $0x490] sm:$0xff]
        %v2303 = vld [vmem:[%s2155 + $0x498] sm:$0xff]
        %v2304 = vld [vmem:[%s2155 + $0x4a0] sm:$0xff]
        %v2305 = vld [vmem:[%s2155 + $0x4a8] sm:$0xff]
        %v2306 = vld [vmem:[%s2155 + $0x4b0] sm:$0xff]
        %v2307 = vld [vmem:[%s2155 + $0x4b8] sm:$0xff]
        %v2308 = vld [vmem:[%s2155 + $0x4c0] sm:$0xff]
        %v2309 = vld [vmem:[%s2155 + $0x4c8] sm:$0xff]
        %v2310 = vld [vmem:[%s2155 + $0x4d0] sm:$0xff]
        %v2311 = vld [vmem:[%s2155 + $0x4d8] sm:$0xff]
        %v2312 = vld [vmem:[%s2155 + $0x4e0] sm:$0xff]
        %v2313 = vld [vmem:[%s2155 + $0x4e8] sm:$0xff]
        %v2314 = vld [vmem:[%s2155 + $0x4f0] sm:$0xff]
        %v2315 = vld [vmem:[%s2155 + $0x4f8] sm:$0xff]
        %v2316 = vld [vmem:[%s2155 + $0x500] sm:$0xff]
        %v2317 = vld [vmem:[%s2155 + $0x508] sm:$0xff]
        %v2318 = vld [vmem:[%s2155 + $0x510] sm:$0xff]
        %v2319 = vld [vmem:[%s2155 + $0x518] sm:$0xff]
        %v2320 = vld [vmem:[%s2155 + $0x520] sm:$0xff]
        %v2321 = vld [vmem:[%s2155 + $0x528] sm:$0xff]
        %v2322 = vld [vmem:[%s2155 + $0x530] sm:$0xff]
        %v2323 = vld [vmem:[%s2155 + $0x538] sm:$0xff]
        %v2324 = vld [vmem:[%s2155 + $0x540] sm:$0xff]
        %v2325 = vld [vmem:[%s2155 + $0x548] sm:$0xff]
        %v2326 = vld [vmem:[%s2155 + $0x550] sm:$0xff]
        %v2327 = vld [vmem:[%s2155 + $0x558] sm:$0xff]
        %v2328 = vld [vmem:[%s2155 + $0x560] sm:$0xff]
        %v2329 = vld [vmem:[%s2155 + $0x568] sm:$0xff]
        %v2330 = vld [vmem:[%s2155 + $0x570] sm:$0xff]
        %v2331 = vld [vmem:[%s2155 + $0x578] sm:$0xff]
        %v2332 = vld [vmem:[%s2155 + $0x580] sm:$0xff]
        %v2333 = vld [vmem:[%s2155 + $0x588] sm:$0xff]
        %v2334 = vld [vmem:[%s2155 + $0x590] sm:$0xff]
        %v2335 = vld [vmem:[%s2155 + $0x598] sm:$0xff]
        %v2336 = vld [vmem:[%s2155 + $0x5a0] sm:$0xff]
        %v2337 = vld [vmem:[%s2155 + $0x5a8] sm:$0xff]
        %v2338 = vld [vmem:[%s2155 + $0x5b0] sm:$0xff]
        %v2339 = vld [vmem:[%s2155 + $0x5b8] sm:$0xff]
        %v2340 = vld [vmem:[%s2155 + $0x5c0] sm:$0xff]
        %v2341 = vld [vmem:[%s2155 + $0x5c8] sm:$0xff]
        %v2342 = vld [vmem:[%s2155 + $0x5d0] sm:$0xff]
        %v2343 = vld [vmem:[%s2155 + $0x5d8] sm:$0xff]
        %v2344 = vld [vmem:[%s2155 + $0x5e0] sm:$0xff]
        %v2345 = vld [vmem:[%s2155 + $0x5e8] sm:$0xff]
        %v2346 = vld [vmem:[%s2155 + $0x5f0] sm:$0xff]
        %v2347 = vld [vmem:[%s2155 + $0x5f8] sm:$0xff]
        %v2348 = vld [vmem:[%s2155 + $0x600] sm:$0xff]
        %v2349 = vld [vmem:[%s2155 + $0x608] sm:$0xff]
        %v2350 = vld [vmem:[%s2155 + $0x610] sm:$0xff]
        %v2351 = vld [vmem:[%s2155 + $0x618] sm:$0xff]
        %v2352 = vld [vmem:[%s2155 + $0x620] sm:$0xff]
        %v2353 = vld [vmem:[%s2155 + $0x628] sm:$0xff]
        %v2354 = vld [vmem:[%s2155 + $0x630] sm:$0xff]
        %v2355 = vld [vmem:[%s2155 + $0x638] sm:$0xff]
        %v2356 = vld [vmem:[%s2155 + $0x640] sm:$0xff]
        %v2357 = vld [vmem:[%s2155 + $0x648] sm:$0xff]
        %v2358 = vld [vmem:[%s2155 + $0x650] sm:$0xff]
        %v2359 = vld [vmem:[%s2155 + $0x658] sm:$0xff]
        %v2360 = vld [vmem:[%s2155 + $0x660] sm:$0xff]
        %v2361 = vld [vmem:[%s2155 + $0x668] sm:$0xff]
        %v2362 = vld [vmem:[%s2155 + $0x670] sm:$0xff]
        %v2363 = vld [vmem:[%s2155 + $0x678] sm:$0xff]
        %v2364 = vld [vmem:[%s2155 + $0x680] sm:$0xff]
        %v2365 = vld [vmem:[%s2155 + $0x688] sm:$0xff]
        %v2366 = vld [vmem:[%s2155 + $0x690] sm:$0xff]
        %v2367 = vld [vmem:[%s2155 + $0x698] sm:$0xff]
        %v2368 = vld [vmem:[%s2155 + $0x6a0] sm:$0xff]
        %v2369 = vld [vmem:[%s2155 + $0x6a8] sm:$0xff]
        %v2370 = vld [vmem:[%s2155 + $0x6b0] sm:$0xff]
        %v2371 = vld [vmem:[%s2155 + $0x6b8] sm:$0xff]
        %v2372 = vld [vmem:[%s2155 + $0x6c0] sm:$0xff]
        %v2373 = vld [vmem:[%s2155 + $0x6c8] sm:$0xff]
        %v2374 = vld [vmem:[%s2155 + $0x6d0] sm:$0xff]
        %v2375 = vld [vmem:[%s2155 + $0x6d8] sm:$0xff]
        %v2376 = vld [vmem:[%s2155 + $0x6e0] sm:$0xff]
        %v2377 = vld [vmem:[%s2155 + $0x6e8] sm:$0xff]
        %v2378 = vld [vmem:[%s2155 + $0x6f0] sm:$0xff]
        %v2379 = vld [vmem:[%s2155 + $0x6f8] sm:$0xff]
        %v2380 = vld [vmem:[%s2155 + $0x700] sm:$0xff]
        %v2381 = vld [vmem:[%s2155 + $0x708] sm:$0xff]
        %v2382 = vld [vmem:[%s2155 + $0x710] sm:$0xff]
        %v2383 = vld [vmem:[%s2155 + $0x718] sm:$0xff]
        %v2384 = vld [vmem:[%s2155 + $0x720] sm:$0xff]
        %v2385 = vld [vmem:[%s2155 + $0x728] sm:$0xff]
        %v2386 = vld [vmem:[%s2155 + $0x730] sm:$0xff]
        %v2387 = vld [vmem:[%s2155 + $0x738] sm:$0xff]
        %v2388 = vld [vmem:[%s2155 + $0x740] sm:$0xff]
        %v2389 = vld [vmem:[%s2155 + $0x748] sm:$0xff]
        %v2390 = vld [vmem:[%s2155 + $0x750] sm:$0xff]
        %v2391 = vld [vmem:[%s2155 + $0x758] sm:$0xff]
        %v2392 = vld [vmem:[%s2155 + $0x760] sm:$0xff]
        %v2393 = vld [vmem:[%s2155 + $0x768] sm:$0xff]
        %v2394 = vld [vmem:[%s2155 + $0x770] sm:$0xff]
        %v2395 = vld [vmem:[%s2155 + $0x778] sm:$0xff]
        %v2396 = vld [vmem:[%s2155 + $0x780] sm:$0xff]
        %v2397 = vld [vmem:[%s2155 + $0x788] sm:$0xff]
        %v2398 = vld [vmem:[%s2155 + $0x790] sm:$0xff]
        %v2399 = vld [vmem:[%s2155 + $0x798] sm:$0xff]
        %v2400 = vld [vmem:[%s2155 + $0x7a0] sm:$0xff]
        %v2401 = vld [vmem:[%s2155 + $0x7a8] sm:$0xff]
        %v2402 = vld [vmem:[%s2155 + $0x7b0] sm:$0xff]
        %v2403 = vld [vmem:[%s2155 + $0x7b8] sm:$0xff]
        %v2404 = vld [vmem:[%s2155 + $0x7c0] sm:$0xff]
        %v2405 = vld [vmem:[%s2155 + $0x7c8] sm:$0xff]
        %v2406 = vld [vmem:[%s2155 + $0x7d0] sm:$0xff]
        %v2407 = vld [vmem:[%s2155 + $0x7d8] sm:$0xff]
        %v2408 = vld [vmem:[%s2155 + $0x7e0] sm:$0xff]
        %v2409 = vld [vmem:[%s2155 + $0x7e8] sm:$0xff]
        %v2410 = vld [vmem:[%s2155 + $0x7f0] sm:$0xff]
        %v2411 = vld [vmem:[%s2155 + $0x7f8] sm:$0xff]
        %vm2420 = vcmask 1046528
        %v2421 = vrot.slane %v2147, 1
        %v2422 = vrot.slane %v2151, 1
        %v2423 = vsel %vm2420, %v2421, %v2422
        %v2424 = vrot.slane %v2148, 1
        %v2425 = vrot.slane %v2152, 1
        %v2426 = vsel %vm2420, %v2424, %v2425
        %v2427 = vrot.slane %v2149, 1
        %v2428 = vrot.slane %v2153, 1
        %v2429 = vsel %vm2420, %v2427, %v2428
        %v2430 = vrot.slane %v2150, 1
        %v2431 = vrot.slane %v2154, 1
        %v2432 = vsel %vm2420, %v2430, %v2431
        %2441 = vmatprep.subr.mxu0 %v2157
        %2442 = vmatpush1.msra.mxu0 %v2156
        %2443 = vmatprep.subr.mxu0 %v2161
        %2444 = vmatpush1.msra.mxu0 %v2160
        %2445 = vmatprep.subr.mxu0 %v2165
        %2446 = vmatpush1.msra.mxu0 %v2164
        %2447 = vmatprep.subr.mxu0 %v2169
        %2448 = vmatpush1.msra.mxu0 %v2168
        %2449 = vmatprep.subr.mxu0 %v2173
        %2450 = vmatpush1.msra.mxu0 %v2172
        %2451 = vmatprep.subr.mxu0 %v2177
        %2452 = vmatpush1.msra.mxu0 %v2176
        %2453 = vmatprep.subr.mxu0 %v2181
        %2454 = vmatpush1.msra.mxu0 %v2180
        %2455 = vmatprep.subr.mxu0 %v2185
        %2456 = vmatpush1.msra.mxu0 %v2184
        %2457 = vmatprep.subr.mxu0 %v2189
        %2458 = vmatpush1.msra.mxu0 %v2188
        %2459 = vmatprep.subr.mxu0 %v2193
        %2460 = vmatpush1.msra.mxu0 %v2192
        %2461 = vmatprep.subr.mxu0 %v2197
        %2462 = vmatpush1.msra.mxu0 %v2196
        %2463 = vmatprep.subr.mxu0 %v2201
        %2464 = vmatpush1.msra.mxu0 %v2200
        %2465 = vmatprep.subr.mxu0 %v2205
        %2466 = vmatpush1.msra.mxu0 %v2204
        %2467 = vmatprep.subr.mxu0 %v2209
        %2468 = vmatpush1.msra.mxu0 %v2208
        %2469 = vmatprep.subr.mxu0 %v2213
        %2470 = vmatpush1.msra.mxu0 %v2212
        %2471 = vmatprep.subr.mxu0 %v2217
        %2472 = vmatpush1.msra.mxu0 %v2216
        %2473 = vmatprep.subr.mxu0 %v2221
        %2474 = vmatpush1.msra.mxu0 %v2220
        %2475 = vmatprep.subr.mxu0 %v2225
        %2476 = vmatpush1.msra.mxu0 %v2224
        %2477 = vmatprep.subr.mxu0 %v2229
        %2478 = vmatpush1.msra.mxu0 %v2228
        %2479 = vmatprep.subr.mxu0 %v2233
        %2480 = vmatpush1.msra.mxu0 %v2232
        %2481 = vmatprep.subr.mxu0 %v2237
        %2482 = vmatpush1.msra.mxu0 %v2236
        %2483 = vmatprep.subr.mxu0 %v2241
        %2484 = vmatpush1.msra.mxu0 %v2240
        %2485 = vmatprep.subr.mxu0 %v2245
        %2486 = vmatpush1.msra.mxu0 %v2244
        %2487 = vmatprep.subr.mxu0 %v2249
        %2488 = vmatpush1.msra.mxu0 %v2248
        %2489 = vmatprep.subr.mxu0 %v2253
        %2490 = vmatpush1.msra.mxu0 %v2252
        %2491 = vmatprep.subr.mxu0 %v2257
        %2492 = vmatpush1.msra.mxu0 %v2256
        %2493 = vmatprep.subr.mxu0 %v2261
        %2494 = vmatpush1.msra.mxu0 %v2260
        %2495 = vmatprep.subr.mxu0 %v2265
        %2496 = vmatpush1.msra.mxu0 %v2264
        %2497 = vmatprep.subr.mxu0 %v2269
        %2498 = vmatpush1.msra.mxu0 %v2268
        %2499 = vmatprep.subr.mxu0 %v2273
        %2500 = vmatpush1.msra.mxu0 %v2272
        %2501 = vmatprep.subr.mxu0 %v2277
        %2502 = vmatpush1.msra.mxu0 %v2276
        %2503 = vmatprep.subr.mxu0 %v2281
        %2504 = vmatpush1.msra.mxu0 %v2280
        %2505 = vmatprep.mubr.f32.mxu0 %v2426
        %2506 = vmatmul.mubr.f32.gmra.mrb[0].mxu0 %v2423
        %v2507 = vpop.f32.mrb[0].mxu0
        %v2508 = vadd.f32 0.0, %v2507
        %v2509 = vpop.f32.mrb[0].mxu0
        %v2510 = vadd.f32 0.0, %v2509
        %2511 = vmatprep.mubr.f32.mxu0 %v2425
        %2512 = vmatmul.mubr.f32.gmra.mrb[0].mxu0 %v2422
        %v2513 = vpop.f32.mrb[0].mxu0
        %v2514 = vadd.f32 0.0, %v2513
        %v2515 = vpop.f32.mrb[0].mxu0
        %v2516 = vadd.f32 0.0, %v2515
        %2517 = vdwg.mxu0
        %2518 = vmatprep.subr.mxu0 %v2285
        %2519 = vmatpush1.msra.mxu0 %v2284
        %2520 = vmatprep.subr.mxu0 %v2289
        %2521 = vmatpush1.msra.mxu0 %v2288
        %2522 = vmatprep.subr.mxu0 %v2293
        %2523 = vmatpush1.msra.mxu0 %v2292
        %2524 = vmatprep.subr.mxu0 %v2297
        %2525 = vmatpush1.msra.mxu0 %v2296
        %2526 = vmatprep.subr.mxu0 %v2301
        %2527 = vmatpush1.msra.mxu0 %v2300
        %2528 = vmatprep.subr.mxu0 %v2305
        %2529 = vmatpush1.msra.mxu0 %v2304
        %2530 = vmatprep.subr.mxu0 %v2309
        %2531 = vmatpush1.msra.mxu0 %v2308
        %2532 = vmatprep.subr.mxu0 %v2313
        %2533 = vmatpush1.msra.mxu0 %v2312
        %2534 = vmatprep.subr.mxu0 %v2317
        %2535 = vmatpush1.msra.mxu0 %v2316
        %2536 = vmatprep.subr.mxu0 %v2321
        %2537 = vmatpush1.msra.mxu0 %v2320
        %2538 = vmatprep.subr.mxu0 %v2325
        %2539 = vmatpush1.msra.mxu0 %v2324
        %2540 = vmatprep.subr.mxu0 %v2329
        %2541 = vmatpush1.msra.mxu0 %v2328
        %2542 = vmatprep.subr.mxu0 %v2333
        %2543 = vmatpush1.msra.mxu0 %v2332
        %2544 = vmatprep.subr.mxu0 %v2337
        %2545 = vmatpush1.msra.mxu0 %v2336
        %2546 = vmatprep.subr.mxu0 %v2341
        %2547 = vmatpush1.msra.mxu0 %v2340
        %2548 = vmatprep.subr.mxu0 %v2345
        %2549 = vmatpush1.msra.mxu0 %v2344
        %2550 = vmatprep.subr.mxu0 %v2349
        %2551 = vmatpush1.msra.mxu0 %v2348
        %2552 = vmatprep.subr.mxu0 %v2353
        %2553 = vmatpush1.msra.mxu0 %v2352
        %2554 = vmatprep.subr.mxu0 %v2357
        %2555 = vmatpush1.msra.mxu0 %v2356
        %2556 = vmatprep.subr.mxu0 %v2361
        %2557 = vmatpush1.msra.mxu0 %v2360
        %2558 = vmatprep.subr.mxu0 %v2365
        %2559 = vmatpush1.msra.mxu0 %v2364
        %2560 = vmatprep.subr.mxu0 %v2369
        %2561 = vmatpush1.msra.mxu0 %v2368
        %2562 = vmatprep.subr.mxu0 %v2373
        %2563 = vmatpush1.msra.mxu0 %v2372
        %2564 = vmatprep.subr.mxu0 %v2377
        %2565 = vmatpush1.msra.mxu0 %v2376
        %2566 = vmatprep.subr.mxu0 %v2381
        %2567 = vmatpush1.msra.mxu0 %v2380
        %2568 = vmatprep.subr.mxu0 %v2385
        %2569 = vmatpush1.msra.mxu0 %v2384
        %2570 = vmatprep.subr.mxu0 %v2389
        %2571 = vmatpush1.msra.mxu0 %v2388
        %2572 = vmatprep.subr.mxu0 %v2393
        %2573 = vmatpush1.msra.mxu0 %v2392
        %2574 = vmatprep.subr.mxu0 %v2397
        %2575 = vmatpush1.msra.mxu0 %v2396
        %2576 = vmatprep.subr.mxu0 %v2401
        %2577 = vmatpush1.msra.mxu0 %v2400
        %2578 = vmatprep.subr.mxu0 %v2405
        %2579 = vmatpush1.msra.mxu0 %v2404
        %2580 = vmatprep.subr.mxu0 %v2409
        %2581 = vmatpush1.msra.mxu0 %v2408
        %2582 = vmatprep.mubr.f32.mxu0 %v2432
        %2583 = vmatmul.mubr.f32.gmra.mrb[0].mxu0 %v2429
        %v2584 = vpop.f32.mrb[0].mxu0
        %v2585 = vadd.f32 %v2508, %v2584
        %v2586 = vpop.f32.mrb[0].mxu0
        %v2587 = vadd.f32 %v2510, %v2586
        %2588 = vmatprep.mubr.f32.mxu0 %v2431
        %2589 = vmatmul.mubr.f32.gmra.mrb[0].mxu0 %v2428
        %v2590 = vpop.f32.mrb[0].mxu0
        %v2591 = vadd.f32 %v2514, %v2590
        %v2592 = vpop.f32.mrb[0].mxu0
        %v2593 = vadd.f32 %v2516, %v2592
        %2594 = vdwg.mxu0
        %2595 = vmatprep.subr.mxu0 %v2159
        %2596 = vmatpush1.msra.mxu0 %v2158
        %2597 = vmatprep.subr.mxu0 %v2163
        %2598 = vmatpush1.msra.mxu0 %v2162
        %2599 = vmatprep.subr.mxu0 %v2167
        %2600 = vmatpush1.msra.mxu0 %v2166
        %2601 = vmatprep.subr.mxu0 %v2171
        %2602 = vmatpush1.msra.mxu0 %v2170
        %2603 = vmatprep.subr.mxu0 %v2175
        %2604 = vmatpush1.msra.mxu0 %v2174
        %2605 = vmatprep.subr.mxu0 %v2179
        %2606 = vmatpush1.msra.mxu0 %v2178
        %2607 = vmatprep.subr.mxu0 %v2183
        %2608 = vmatpush1.msra.mxu0 %v2182
        %2609 = vmatprep.subr.mxu0 %v2187
        %2610 = vmatpush1.msra.mxu0 %v2186
        %2611 = vmatprep.subr.mxu0 %v2191
        %2612 = vmatpush1.msra.mxu0 %v2190
        %2613 = vmatprep.subr.mxu0 %v2195
        %2614 = vmatpush1.msra.mxu0 %v2194
        %2615 = vmatprep.subr.mxu0 %v2199
        %2616 = vmatpush1.msra.mxu0 %v2198
        %2617 = vmatprep.subr.mxu0 %v2203
        %2618 = vmatpush1.msra.mxu0 %v2202
        %2619 = vmatprep.subr.mxu0 %v2207
        %2620 = vmatpush1.msra.mxu0 %v2206
        %2621 = vmatprep.subr.mxu0 %v2211
        %2622 = vmatpush1.msra.mxu0 %v2210
        %2623 = vmatprep.subr.mxu0 %v2215
        %2624 = vmatpush1.msra.mxu0 %v2214
        %2625 = vmatprep.subr.mxu0 %v2219
        %2626 = vmatpush1.msra.mxu0 %v2218
        %2627 = vmatprep.subr.mxu0 %v2223
        %2628 = vmatpush1.msra.mxu0 %v2222
        %2629 = vmatprep.subr.mxu0 %v2227
        %2630 = vmatpush1.msra.mxu0 %v2226
        %2631 = vmatprep.subr.mxu0 %v2231
        %2632 = vmatpush1.msra.mxu0 %v2230
        %2633 = vmatprep.subr.mxu0 %v2235
        %2634 = vmatpush1.msra.mxu0 %v2234
        %2635 = vmatprep.subr.mxu0 %v2239
        %2636 = vmatpush1.msra.mxu0 %v2238
        %2637 = vmatprep.subr.mxu0 %v2243
        %2638 = vmatpush1.msra.mxu0 %v2242
        %2639 = vmatprep.subr.mxu0 %v2247
        %2640 = vmatpush1.msra.mxu0 %v2246
        %2641 = vmatprep.subr.mxu0 %v2251
        %2642 = vmatpush1.msra.mxu0 %v2250
        %2643 = vmatprep.subr.mxu0 %v2255
        %2644 = vmatpush1.msra.mxu0 %v2254
        %2645 = vmatprep.subr.mxu0 %v2259
        %2646 = vmatpush1.msra.mxu0 %v2258
        %2647 = vmatprep.subr.mxu0 %v2263
        %2648 = vmatpush1.msra.mxu0 %v2262
        %2649 = vmatprep.subr.mxu0 %v2267
        %2650 = vmatpush1.msra.mxu0 %v2266
        %2651 = vmatprep.subr.mxu0 %v2271
        %2652 = vmatpush1.msra.mxu0 %v2270
        %2653 = vmatprep.subr.mxu0 %v2275
        %2654 = vmatpush1.msra.mxu0 %v2274
        %2655 = vmatprep.subr.mxu0 %v2279
        %2656 = vmatpush1.msra.mxu0 %v2278
        %2657 = vmatprep.subr.mxu0 %v2283
        %2658 = vmatpush1.msra.mxu0 %v2282
        %2659 = vmatprep.mubr.f32.mxu0 %v2426
        %2660 = vmatmul.mubr.f32.gmra.mrb[0].mxu0 %v2423
        %v2661 = vpop.f32.mrb[0].mxu0
        %v2662 = vadd.f32 0.0, %v2661
        %v2663 = vpop.f32.mrb[0].mxu0
        %v2664 = vadd.f32 0.0, %v2663
        %2665 = vmatprep.mubr.f32.mxu0 %v2425
        %2666 = vmatmul.mubr.f32.gmra.mrb[0].mxu0 %v2422
        %v2667 = vpop.f32.mrb[0].mxu0
        %v2668 = vadd.f32 0.0, %v2667
        %v2669 = vpop.f32.mrb[0].mxu0
        %v2670 = vadd.f32 0.0, %v2669
        %2671 = vdwg.mxu0
        %2672 = vmatprep.subr.mxu0 %v2287
        %2673 = vmatpush1.msra.mxu0 %v2286
        %2674 = vmatprep.subr.mxu0 %v2291
        %2675 = vmatpush1.msra.mxu0 %v2290
        %2676 = vmatprep.subr.mxu0 %v2295
        %2677 = vmatpush1.msra.mxu0 %v2294
        %2678 = vmatprep.subr.mxu0 %v2299
        %2679 = vmatpush1.msra.mxu0 %v2298
        %2680 = vmatprep.subr.mxu0 %v2303
        %2681 = vmatpush1.msra.mxu0 %v2302
        %2682 = vmatprep.subr.mxu0 %v2307
        %2683 = vmatpush1.msra.mxu0 %v2306
        %2684 = vmatprep.subr.mxu0 %v2311
        %2685 = vmatpush1.msra.mxu0 %v2310
        %2686 = vmatprep.subr.mxu0 %v2315
        %2687 = vmatpush1.msra.mxu0 %v2314
        %2688 = vmatprep.subr.mxu0 %v2319
        %2689 = vmatpush1.msra.mxu0 %v2318
        %2690 = vmatprep.subr.mxu0 %v2323
        %2691 = vmatpush1.msra.mxu0 %v2322
        %2692 = vmatprep.subr.mxu0 %v2327
        %2693 = vmatpush1.msra.mxu0 %v2326
        %2694 = vmatprep.subr.mxu0 %v2331
        %2695 = vmatpush1.msra.mxu0 %v2330
        %2696 = vmatprep.subr.mxu0 %v2335
        %2697 = vmatpush1.msra.mxu0 %v2334
        %2698 = vmatprep.subr.mxu0 %v2339
        %2699 = vmatpush1.msra.mxu0 %v2338
        %2700 = vmatprep.subr.mxu0 %v2343
        %2701 = vmatpush1.msra.mxu0 %v2342
        %2702 = vmatprep.subr.mxu0 %v2347
        %2703 = vmatpush1.msra.mxu0 %v2346
        %2704 = vmatprep.subr.mxu0 %v2351
        %2705 = vmatpush1.msra.mxu0 %v2350
        %2706 = vmatprep.subr.mxu0 %v2355
        %2707 = vmatpush1.msra.mxu0 %v2354
        %2708 = vmatprep.subr.mxu0 %v2359
        %2709 = vmatpush1.msra.mxu0 %v2358
        %2710 = vmatprep.subr.mxu0 %v2363
        %2711 = vmatpush1.msra.mxu0 %v2362
        %2712 = vmatprep.subr.mxu0 %v2367
        %2713 = vmatpush1.msra.mxu0 %v2366
        %2714 = vmatprep.subr.mxu0 %v2371
        %2715 = vmatpush1.msra.mxu0 %v2370
        %2716 = vmatprep.subr.mxu0 %v2375
        %2717 = vmatpush1.msra.mxu0 %v2374
        %2718 = vmatprep.subr.mxu0 %v2379
        %2719 = vmatpush1.msra.mxu0 %v2378
        %2720 = vmatprep.subr.mxu0 %v2383
        %2721 = vmatpush1.msra.mxu0 %v2382
        %2722 = vmatprep.subr.mxu0 %v2387
        %2723 = vmatpush1.msra.mxu0 %v2386
        %2724 = vmatprep.subr.mxu0 %v2391
        %2725 = vmatpush1.msra.mxu0 %v2390
        %2726 = vmatprep.subr.mxu0 %v2395
        %2727 = vmatpush1.msra.mxu0 %v2394
        %2728 = vmatprep.subr.mxu0 %v2399
        %2729 = vmatpush1.msra.mxu0 %v2398
        %2730 = vmatprep.subr.mxu0 %v2403
        %2731 = vmatpush1.msra.mxu0 %v2402
        %2732 = vmatprep.subr.mxu0 %v2407
        %2733 = vmatpush1.msra.mxu0 %v2406
        %2734 = vmatprep.subr.mxu0 %v2411
        %2735 = vmatpush1.msra.mxu0 %v2410
        %2736 = vmatprep.mubr.f32.mxu0 %v2432
        %2737 = vmatmul.mubr.f32.gmra.mrb[0].mxu0 %v2429
        %v2738 = vpop.f32.mrb[0].mxu0
        %v2739 = vadd.f32 %v2662, %v2738
        %v2740 = vpop.f32.mrb[0].mxu0
        %v2741 = vadd.f32 %v2664, %v2740
        %2742 = vmatprep.mubr.f32.mxu0 %v2431
        %2743 = vmatmul.mubr.f32.gmra.mrb[0].mxu0 %v2428
        %v2744 = vpop.f32.mrb[0].mxu0
        %v2745 = vadd.f32 %v2668, %v2744
        %v2746 = vpop.f32.mrb[0].mxu0
        %v2747 = vadd.f32 %v2670, %v2746
        %2748 = vdwg.mxu0
        %2749 = vmatprep.subr.mxu0 %v1892
        %2750 = vmatpush1.msra.mxu0 %v1891
        %2751 = vmatprep.subr.mxu0 %v1896
        %2752 = vmatpush1.msra.mxu0 %v1895
        %2753 = vmatprep.subr.mxu0 %v1900
        %2754 = vmatpush1.msra.mxu0 %v1899
        %2755 = vmatprep.subr.mxu0 %v1904
        %2756 = vmatpush1.msra.mxu0 %v1903
        %2757 = vmatprep.subr.mxu0 %v1908
        %2758 = vmatpush1.msra.mxu0 %v1907
        %2759 = vmatprep.subr.mxu0 %v1912
        %2760 = vmatpush1.msra.mxu0 %v1911
        %2761 = vmatprep.subr.mxu0 %v1916
        %2762 = vmatpush1.msra.mxu0 %v1915
        %2763 = vmatprep.subr.mxu0 %v1920
        %2764 = vmatpush1.msra.mxu0 %v1919
        %2765 = vmatprep.subr.mxu0 %v1924
        %2766 = vmatpush1.msra.mxu0 %v1923
        %2767 = vmatprep.subr.mxu0 %v1928
        %2768 = vmatpush1.msra.mxu0 %v1927
        %2769 = vmatprep.subr.mxu0 %v1932
        %2770 = vmatpush1.msra.mxu0 %v1931
        %2771 = vmatprep.subr.mxu0 %v1936
        %2772 = vmatpush1.msra.mxu0 %v1935
        %2773 = vmatprep.subr.mxu0 %v1940
        %2774 = vmatpush1.msra.mxu0 %v1939
        %2775 = vmatprep.subr.mxu0 %v1944
        %2776 = vmatpush1.msra.mxu0 %v1943
        %2777 = vmatprep.subr.mxu0 %v1948
        %2778 = vmatpush1.msra.mxu0 %v1947
        %2779 = vmatprep.subr.mxu0 %v1952
        %2780 = vmatpush1.msra.mxu0 %v1951
        %2781 = vmatprep.subr.mxu0 %v1956
        %2782 = vmatpush1.msra.mxu0 %v1955
        %2783 = vmatprep.subr.mxu0 %v1960
        %2784 = vmatpush1.msra.mxu0 %v1959
        %2785 = vmatprep.subr.mxu0 %v1964
        %2786 = vmatpush1.msra.mxu0 %v1963
        %2787 = vmatprep.subr.mxu0 %v1968
        %2788 = vmatpush1.msra.mxu0 %v1967
        %2789 = vmatprep.subr.mxu0 %v1972
        %2790 = vmatpush1.msra.mxu0 %v1971
        %2791 = vmatprep.subr.mxu0 %v1976
        %2792 = vmatpush1.msra.mxu0 %v1975
        %2793 = vmatprep.subr.mxu0 %v1980
        %2794 = vmatpush1.msra.mxu0 %v1979
        %2795 = vmatprep.subr.mxu0 %v1984
        %2796 = vmatpush1.msra.mxu0 %v1983
        %2797 = vmatprep.subr.mxu0 %v1988
        %2798 = vmatpush1.msra.mxu0 %v1987
        %2799 = vmatprep.subr.mxu0 %v1992
        %2800 = vmatpush1.msra.mxu0 %v1991
        %2801 = vmatprep.subr.mxu0 %v1996
        %2802 = vmatpush1.msra.mxu0 %v1995
        %2803 = vmatprep.subr.mxu0 %v2000
        %2804 = vmatpush1.msra.mxu0 %v1999
        %2805 = vmatprep.subr.mxu0 %v2004
        %2806 = vmatpush1.msra.mxu0 %v2003
        %2807 = vmatprep.subr.mxu0 %v2008
        %2808 = vmatpush1.msra.mxu0 %v2007
        %2809 = vmatprep.subr.mxu0 %v2012
        %2810 = vmatpush1.msra.mxu0 %v2011
        %2811 = vmatprep.subr.mxu0 %v2016
        %2812 = vmatpush1.msra.mxu0 %v2015
        %2813 = vmatprep.mubr.f32.mxu0 %v1884
        %2814 = vmatmul.mubr.f32.gmra.mrb[0].mxu0 %v1883
        %v2815 = vpop.f32.mrb[0].mxu0
        %v2816 = vadd.f32 %v2585, %v2815
        %v2817 = vpop.f32.mrb[0].mxu0
        %v2818 = vadd.f32 %v2587, %v2817
        %2819 = vmatprep.mubr.f32.mxu0 %v1888
        %2820 = vmatmul.mubr.f32.gmra.mrb[0].mxu0 %v1887
        %v2821 = vpop.f32.mrb[0].mxu0
        %v2822 = vadd.f32 %v2591, %v2821
        %v2823 = vpop.f32.mrb[0].mxu0
        %v2824 = vadd.f32 %v2593, %v2823
        %2825 = vdwg.mxu0
        %2826 = vmatprep.subr.mxu0 %v2020
        %2827 = vmatpush1.msra.mxu0 %v2019
        %2828 = vmatprep.subr.mxu0 %v2024
        %2829 = vmatpush1.msra.mxu0 %v2023
        %2830 = vmatprep.subr.mxu0 %v2028
        %2831 = vmatpush1.msra.mxu0 %v2027
        %2832 = vmatprep.subr.mxu0 %v2032
        %2833 = vmatpush1.msra.mxu0 %v2031
        %2834 = vmatprep.subr.mxu0 %v2036
        %2835 = vmatpush1.msra.mxu0 %v2035
        %2836 = vmatprep.subr.mxu0 %v2040
        %2837 = vmatpush1.msra.mxu0 %v2039
        %2838 = vmatprep.subr.mxu0 %v2044
        %2839 = vmatpush1.msra.mxu0 %v2043
        %2840 = vmatprep.subr.mxu0 %v2048
        %2841 = vmatpush1.msra.mxu0 %v2047
        %2842 = vmatprep.subr.mxu0 %v2052
        %2843 = vmatpush1.msra.mxu0 %v2051
        %2844 = vmatprep.subr.mxu0 %v2056
        %2845 = vmatpush1.msra.mxu0 %v2055
        %2846 = vmatprep.subr.mxu0 %v2060
        %2847 = vmatpush1.msra.mxu0 %v2059
        %2848 = vmatprep.subr.mxu0 %v2064
        %2849 = vmatpush1.msra.mxu0 %v2063
        %2850 = vmatprep.subr.mxu0 %v2068
        %2851 = vmatpush1.msra.mxu0 %v2067
        %2852 = vmatprep.subr.mxu0 %v2072
        %2853 = vmatpush1.msra.mxu0 %v2071
        %2854 = vmatprep.subr.mxu0 %v2076
        %2855 = vmatpush1.msra.mxu0 %v2075
        %2856 = vmatprep.subr.mxu0 %v2080
        %2857 = vmatpush1.msra.mxu0 %v2079
        %2858 = vmatprep.subr.mxu0 %v2084
        %2859 = vmatpush1.msra.mxu0 %v2083
        %2860 = vmatprep.subr.mxu0 %v2088
        %2861 = vmatpush1.msra.mxu0 %v2087
        %2862 = vmatprep.subr.mxu0 %v2092
        %2863 = vmatpush1.msra.mxu0 %v2091
        %2864 = vmatprep.subr.mxu0 %v2096
        %2865 = vmatpush1.msra.mxu0 %v2095
        %2866 = vmatprep.subr.mxu0 %v2100
        %2867 = vmatpush1.msra.mxu0 %v2099
        %2868 = vmatprep.subr.mxu0 %v2104
        %2869 = vmatpush1.msra.mxu0 %v2103
        %2870 = vmatprep.subr.mxu0 %v2108
        %2871 = vmatpush1.msra.mxu0 %v2107
        %2872 = vmatprep.subr.mxu0 %v2112
        %2873 = vmatpush1.msra.mxu0 %v2111
        %2874 = vmatprep.subr.mxu0 %v2116
        %2875 = vmatpush1.msra.mxu0 %v2115
        %2876 = vmatprep.subr.mxu0 %v2120
        %2877 = vmatpush1.msra.mxu0 %v2119
        %2878 = vmatprep.subr.mxu0 %v2124
        %2879 = vmatpush1.msra.mxu0 %v2123
        %2880 = vmatprep.subr.mxu0 %v2128
        %2881 = vmatpush1.msra.mxu0 %v2127
        %2882 = vmatprep.subr.mxu0 %v2132
        %2883 = vmatpush1.msra.mxu0 %v2131
        %2884 = vmatprep.subr.mxu0 %v2136
        %2885 = vmatpush1.msra.mxu0 %v2135
        %2886 = vmatprep.subr.mxu0 %v2140
        %2887 = vmatpush1.msra.mxu0 %v2139
        %2888 = vmatprep.subr.mxu0 %v2144
        %2889 = vmatpush1.msra.mxu0 %v2143
        %2890 = vmatprep.mubr.f32.mxu0 %v1886
        %2891 = vmatmul.mubr.f32.gmra.mrb[0].mxu0 %v1885
        %v2892 = vpop.f32.mrb[0].mxu0
        %v2893 = vadd.f32 %v2816, %v2892
        %v2894 = vpop.f32.mrb[0].mxu0
        %v2895 = vadd.f32 %v2818, %v2894
        %2896 = vmatprep.mubr.f32.mxu0 %v1890
        %2897 = vmatmul.mubr.f32.gmra.mrb[0].mxu0 %v1889
        %v2898 = vpop.f32.mrb[0].mxu0
        %v2899 = vadd.f32 %v2822, %v2898
        %v2900 = vpop.f32.mrb[0].mxu0
        %v2901 = vadd.f32 %v2824, %v2900
        %2902 = vdwg.mxu0
        %2903 = vmatprep.subr.mxu0 %v1894
        %2904 = vmatpush1.msra.mxu0 %v1893
        %2905 = vmatprep.subr.mxu0 %v1898
        %2906 = vmatpush1.msra.mxu0 %v1897
        %2907 = vmatprep.subr.mxu0 %v1902
        %2908 = vmatpush1.msra.mxu0 %v1901
        %2909 = vmatprep.subr.mxu0 %v1906
        %2910 = vmatpush1.msra.mxu0 %v1905
        %2911 = vmatprep.subr.mxu0 %v1910
        %2912 = vmatpush1.msra.mxu0 %v1909
        %2913 = vmatprep.subr.mxu0 %v1914
        %2914 = vmatpush1.msra.mxu0 %v1913
        %2915 = vmatprep.subr.mxu0 %v1918
        %2916 = vmatpush1.msra.mxu0 %v1917
        %2917 = vmatprep.subr.mxu0 %v1922
        %2918 = vmatpush1.msra.mxu0 %v1921
        %2919 = vmatprep.subr.mxu0 %v1926
        %2920 = vmatpush1.msra.mxu0 %v1925
        %2921 = vmatprep.subr.mxu0 %v1930
        %2922 = vmatpush1.msra.mxu0 %v1929
        %2923 = vmatprep.subr.mxu0 %v1934
        %2924 = vmatpush1.msra.mxu0 %v1933
        %2925 = vmatprep.subr.mxu0 %v1938
        %2926 = vmatpush1.msra.mxu0 %v1937
        %2927 = vmatprep.subr.mxu0 %v1942
        %2928 = vmatpush1.msra.mxu0 %v1941
        %2929 = vmatprep.subr.mxu0 %v1946
        %2930 = vmatpush1.msra.mxu0 %v1945
        %2931 = vmatprep.subr.mxu0 %v1950
        %2932 = vmatpush1.msra.mxu0 %v1949
        %2933 = vmatprep.subr.mxu0 %v1954
        %2934 = vmatpush1.msra.mxu0 %v1953
        %2935 = vmatprep.subr.mxu0 %v1958
        %2936 = vmatpush1.msra.mxu0 %v1957
        %2937 = vmatprep.subr.mxu0 %v1962
        %2938 = vmatpush1.msra.mxu0 %v1961
        %2939 = vmatprep.subr.mxu0 %v1966
        %2940 = vmatpush1.msra.mxu0 %v1965
        %2941 = vmatprep.subr.mxu0 %v1970
        %2942 = vmatpush1.msra.mxu0 %v1969
        %2943 = vmatprep.subr.mxu0 %v1974
        %2944 = vmatpush1.msra.mxu0 %v1973
        %2945 = vmatprep.subr.mxu0 %v1978
        %2946 = vmatpush1.msra.mxu0 %v1977
        %2947 = vmatprep.subr.mxu0 %v1982
        %2948 = vmatpush1.msra.mxu0 %v1981
        %2949 = vmatprep.subr.mxu0 %v1986
        %2950 = vmatpush1.msra.mxu0 %v1985
        %2951 = vmatprep.subr.mxu0 %v1990
        %2952 = vmatpush1.msra.mxu0 %v1989
        %2953 = vmatprep.subr.mxu0 %v1994
        %2954 = vmatpush1.msra.mxu0 %v1993
        %2955 = vmatprep.subr.mxu0 %v1998
        %2956 = vmatpush1.msra.mxu0 %v1997
        %2957 = vmatprep.subr.mxu0 %v2002
        %2958 = vmatpush1.msra.mxu0 %v2001
        %2959 = vmatprep.subr.mxu0 %v2006
        %2960 = vmatpush1.msra.mxu0 %v2005
        %2961 = vmatprep.subr.mxu0 %v2010
        %2962 = vmatpush1.msra.mxu0 %v2009
        %2963 = vmatprep.subr.mxu0 %v2014
        %2964 = vmatpush1.msra.mxu0 %v2013
        %2965 = vmatprep.subr.mxu0 %v2018
        %2966 = vmatpush1.msra.mxu0 %v2017
        %2967 = vmatprep.mubr.f32.mxu0 %v1884
        %2968 = vmatmul.mubr.f32.gmra.mrb[0].mxu0 %v1883
        %v2969 = vpop.f32.mrb[0].mxu0
        %v2970 = vadd.f32 %v2739, %v2969
        %v2971 = vpop.f32.mrb[0].mxu0
        %v2972 = vadd.f32 %v2741, %v2971
        %2973 = vmatprep.mubr.f32.mxu0 %v1888
        %2974 = vmatmul.mubr.f32.gmra.mrb[0].mxu0 %v1887
        %v2975 = vpop.f32.mrb[0].mxu0
        %v2976 = vadd.f32 %v2745, %v2975
        %v2977 = vpop.f32.mrb[0].mxu0
        %v2978 = vadd.f32 %v2747, %v2977
        %2979 = vdwg.mxu0
        %2980 = vmatprep.subr.mxu0 %v2022
        %2981 = vmatpush1.msra.mxu0 %v2021
        %2982 = vmatprep.subr.mxu0 %v2026
        %2983 = vmatpush1.msra.mxu0 %v2025
        %2984 = vmatprep.subr.mxu0 %v2030
        %2985 = vmatpush1.msra.mxu0 %v2029
        %2986 = vmatprep.subr.mxu0 %v2034
        %2987 = vmatpush1.msra.mxu0 %v2033
        %2988 = vmatprep.subr.mxu0 %v2038
        %2989 = vmatpush1.msra.mxu0 %v2037
        %2990 = vmatprep.subr.mxu0 %v2042
        %2991 = vmatpush1.msra.mxu0 %v2041
        %2992 = vmatprep.subr.mxu0 %v2046
        %2993 = vmatpush1.msra.mxu0 %v2045
        %2994 = vmatprep.subr.mxu0 %v2050
        %2995 = vmatpush1.msra.mxu0 %v2049
        %2996 = vmatprep.subr.mxu0 %v2054
        %2997 = vmatpush1.msra.mxu0 %v2053
        %2998 = vmatprep.subr.mxu0 %v2058
        %2999 = vmatpush1.msra.mxu0 %v2057
        %3000 = vmatprep.subr.mxu0 %v2062
        %3001 = vmatpush1.msra.mxu0 %v2061
        %3002 = vmatprep.subr.mxu0 %v2066
        %3003 = vmatpush1.msra.mxu0 %v2065
        %3004 = vmatprep.subr.mxu0 %v2070
        %3005 = vmatpush1.msra.mxu0 %v2069
        %3006 = vmatprep.subr.mxu0 %v2074
        %3007 = vmatpush1.msra.mxu0 %v2073
        %3008 = vmatprep.subr.mxu0 %v2078
        %3009 = vmatpush1.msra.mxu0 %v2077
        %3010 = vmatprep.subr.mxu0 %v2082
        %3011 = vmatpush1.msra.mxu0 %v2081
        %3012 = vmatprep.subr.mxu0 %v2086
        %3013 = vmatpush1.msra.mxu0 %v2085
        %3014 = vmatprep.subr.mxu0 %v2090
        %3015 = vmatpush1.msra.mxu0 %v2089
        %3016 = vmatprep.subr.mxu0 %v2094
        %3017 = vmatpush1.msra.mxu0 %v2093
        %3018 = vmatprep.subr.mxu0 %v2098
        %3019 = vmatpush1.msra.mxu0 %v2097
        %3020 = vmatprep.subr.mxu0 %v2102
        %3021 = vmatpush1.msra.mxu0 %v2101
        %3022 = vmatprep.subr.mxu0 %v2106
        %3023 = vmatpush1.msra.mxu0 %v2105
        %3024 = vmatprep.subr.mxu0 %v2110
        %3025 = vmatpush1.msra.mxu0 %v2109
        %3026 = vmatprep.subr.mxu0 %v2114
        %3027 = vmatpush1.msra.mxu0 %v2113
        %3028 = vmatprep.subr.mxu0 %v2118
        %3029 = vmatpush1.msra.mxu0 %v2117
        %3030 = vmatprep.subr.mxu0 %v2122
        %3031 = vmatpush1.msra.mxu0 %v2121
        %3032 = vmatprep.subr.mxu0 %v2126
        %3033 = vmatpush1.msra.mxu0 %v2125
        %3034 = vmatprep.subr.mxu0 %v2130
        %3035 = vmatpush1.msra.mxu0 %v2129
        %3036 = vmatprep.subr.mxu0 %v2134
        %3037 = vmatpush1.msra.mxu0 %v2133
        %3038 = vmatprep.subr.mxu0 %v2138
        %3039 = vmatpush1.msra.mxu0 %v2137
        %3040 = vmatprep.subr.mxu0 %v2142
        %3041 = vmatpush1.msra.mxu0 %v2141
        %3042 = vmatprep.subr.mxu0 %v2146
        %3043 = vmatpush1.msra.mxu0 %v2145
        %3044 = vmatprep.mubr.f32.mxu0 %v1886
        %3045 = vmatmul.mubr.f32.gmra.mrb[0].mxu0 %v1885
        %v3046 = vpop.f32.mrb[0].mxu0
        %v3047 = vadd.f32 %v2970, %v3046
        %v3048 = vpop.f32.mrb[0].mxu0
        %v3049 = vadd.f32 %v2972, %v3048
        %3050 = vmatprep.mubr.f32.mxu0 %v1890
        %3051 = vmatmul.mubr.f32.gmra.mrb[0].mxu0 %v1889
        %v3052 = vpop.f32.mrb[0].mxu0
        %v3053 = vadd.f32 %v2976, %v3052
        %v3054 = vpop.f32.mrb[0].mxu0
        %v3055 = vadd.f32 %v2978, %v3054
        %3056 = vdwg.mxu0
        %v3057 = vld [vmem:[#allocation3] sm:$0xfc]
        %v3058 = vld [vmem:[#allocation3 + $0x8] sm:$0xfc]
        %v3059 = vld [vmem:[#allocation3 + $0x10] sm:$0xfc]
        %v3060 = vld [vmem:[#allocation3 + $0x18] sm:$0xfc]
        %v3061 = vld [vmem:[#allocation3 + $0x20] sm:$0xff]
        %v3062 = vld [vmem:[#allocation3 + $0x28] sm:$0xff]
        %v3063 = vld [vmem:[#allocation3 + $0x30] sm:$0xff]
        %v3064 = vld [vmem:[#allocation3 + $0x38] sm:$0xff]
        %s3065 = scalar_lea.vmem %s2, 4096
        %v3066 = vld [vmem:[%s3065] sm:$0xff]
        %v3067 = vld [vmem:[%s3065 + $0x8] sm:$0xff]
        %v3068 = vld [vmem:[%s3065 + $0x10] sm:$0xff]
        %v3069 = vld [vmem:[%s3065 + $0x18] sm:$0xff]
        %v3070 = vld [vmem:[%s3065 + $0x20] sm:$0xff]
        %v3071 = vld [vmem:[%s3065 + $0x28] sm:$0xff]
        %v3072 = vld [vmem:[%s3065 + $0x30] sm:$0xff]
        %v3073 = vld [vmem:[%s3065 + $0x38] sm:$0xff]
        %v3074 = vld [vmem:[%s3065 + $0x40] sm:$0xff]
        %v3075 = vld [vmem:[%s3065 + $0x48] sm:$0xff]
        %v3076 = vld [vmem:[%s3065 + $0x50] sm:$0xff]
        %v3077 = vld [vmem:[%s3065 + $0x58] sm:$0xff]
        %v3078 = vld [vmem:[%s3065 + $0x60] sm:$0xff]
        %v3079 = vld [vmem:[%s3065 + $0x68] sm:$0xff]
        %v3080 = vld [vmem:[%s3065 + $0x70] sm:$0xff]
        %v3081 = vld [vmem:[%s3065 + $0x78] sm:$0xff]
        %v3082 = vld [vmem:[%s3065 + $0x80] sm:$0xff]
        %v3083 = vld [vmem:[%s3065 + $0x88] sm:$0xff]
        %v3084 = vld [vmem:[%s3065 + $0x90] sm:$0xff]
        %v3085 = vld [vmem:[%s3065 + $0x98] sm:$0xff]
        %v3086 = vld [vmem:[%s3065 + $0xa0] sm:$0xff]
        %v3087 = vld [vmem:[%s3065 + $0xa8] sm:$0xff]
        %v3088 = vld [vmem:[%s3065 + $0xb0] sm:$0xff]
        %v3089 = vld [vmem:[%s3065 + $0xb8] sm:$0xff]
        %v3090 = vld [vmem:[%s3065 + $0xc0] sm:$0xff]
        %v3091 = vld [vmem:[%s3065 + $0xc8] sm:$0xff]
        %v3092 = vld [vmem:[%s3065 + $0xd0] sm:$0xff]
        %v3093 = vld [vmem:[%s3065 + $0xd8] sm:$0xff]
        %v3094 = vld [vmem:[%s3065 + $0xe0] sm:$0xff]
        %v3095 = vld [vmem:[%s3065 + $0xe8] sm:$0xff]
        %v3096 = vld [vmem:[%s3065 + $0xf0] sm:$0xff]
        %v3097 = vld [vmem:[%s3065 + $0xf8] sm:$0xff]
        %v3098 = vld [vmem:[%s3065 + $0x100] sm:$0xff]
        %v3099 = vld [vmem:[%s3065 + $0x108] sm:$0xff]
        %v3100 = vld [vmem:[%s3065 + $0x110] sm:$0xff]
        %v3101 = vld [vmem:[%s3065 + $0x118] sm:$0xff]
        %v3102 = vld [vmem:[%s3065 + $0x120] sm:$0xff]
        %v3103 = vld [vmem:[%s3065 + $0x128] sm:$0xff]
        %v3104 = vld [vmem:[%s3065 + $0x130] sm:$0xff]
        %v3105 = vld [vmem:[%s3065 + $0x138] sm:$0xff]
        %v3106 = vld [vmem:[%s3065 + $0x140] sm:$0xff]
        %v3107 = vld [vmem:[%s3065 + $0x148] sm:$0xff]
        %v3108 = vld [vmem:[%s3065 + $0x150] sm:$0xff]
        %v3109 = vld [vmem:[%s3065 + $0x158] sm:$0xff]
        %v3110 = vld [vmem:[%s3065 + $0x160] sm:$0xff]
        %v3111 = vld [vmem:[%s3065 + $0x168] sm:$0xff]
        %v3112 = vld [vmem:[%s3065 + $0x170] sm:$0xff]
        %v3113 = vld [vmem:[%s3065 + $0x178] sm:$0xff]
        %v3114 = vld [vmem:[%s3065 + $0x180] sm:$0xff]
        %v3115 = vld [vmem:[%s3065 + $0x188] sm:$0xff]
        %v3116 = vld [vmem:[%s3065 + $0x190] sm:$0xff]
        %v3117 = vld [vmem:[%s3065 + $0x198] sm:$0xff]
        %v3118 = vld [vmem:[%s3065 + $0x1a0] sm:$0xff]
        %v3119 = vld [vmem:[%s3065 + $0x1a8] sm:$0xff]
        %v3120 = vld [vmem:[%s3065 + $0x1b0] sm:$0xff]
        %v3121 = vld [vmem:[%s3065 + $0x1b8] sm:$0xff]
        %v3122 = vld [vmem:[%s3065 + $0x1c0] sm:$0xff]
        %v3123 = vld [vmem:[%s3065 + $0x1c8] sm:$0xff]
        %v3124 = vld [vmem:[%s3065 + $0x1d0] sm:$0xff]
        %v3125 = vld [vmem:[%s3065 + $0x1d8] sm:$0xff]
        %v3126 = vld [vmem:[%s3065 + $0x1e0] sm:$0xff]
        %v3127 = vld [vmem:[%s3065 + $0x1e8] sm:$0xff]
        %v3128 = vld [vmem:[%s3065 + $0x1f0] sm:$0xff]
        %v3129 = vld [vmem:[%s3065 + $0x1f8] sm:$0xff]
        %v3130 = vld [vmem:[%s3065 + $0x200] sm:$0xff]
        %v3131 = vld [vmem:[%s3065 + $0x208] sm:$0xff]
        %v3132 = vld [vmem:[%s3065 + $0x210] sm:$0xff]
        %v3133 = vld [vmem:[%s3065 + $0x218] sm:$0xff]
        %v3134 = vld [vmem:[%s3065 + $0x220] sm:$0xff]
        %v3135 = vld [vmem:[%s3065 + $0x228] sm:$0xff]
        %v3136 = vld [vmem:[%s3065 + $0x230] sm:$0xff]
        %v3137 = vld [vmem:[%s3065 + $0x238] sm:$0xff]
        %v3138 = vld [vmem:[%s3065 + $0x240] sm:$0xff]
        %v3139 = vld [vmem:[%s3065 + $0x248] sm:$0xff]
        %v3140 = vld [vmem:[%s3065 + $0x250] sm:$0xff]
        %v3141 = vld [vmem:[%s3065 + $0x258] sm:$0xff]
        %v3142 = vld [vmem:[%s3065 + $0x260] sm:$0xff]
        %v3143 = vld [vmem:[%s3065 + $0x268] sm:$0xff]
        %v3144 = vld [vmem:[%s3065 + $0x270] sm:$0xff]
        %v3145 = vld [vmem:[%s3065 + $0x278] sm:$0xff]
        %v3146 = vld [vmem:[%s3065 + $0x280] sm:$0xff]
        %v3147 = vld [vmem:[%s3065 + $0x288] sm:$0xff]
        %v3148 = vld [vmem:[%s3065 + $0x290] sm:$0xff]
        %v3149 = vld [vmem:[%s3065 + $0x298] sm:$0xff]
        %v3150 = vld [vmem:[%s3065 + $0x2a0] sm:$0xff]
        %v3151 = vld [vmem:[%s3065 + $0x2a8] sm:$0xff]
        %v3152 = vld [vmem:[%s3065 + $0x2b0] sm:$0xff]
        %v3153 = vld [vmem:[%s3065 + $0x2b8] sm:$0xff]
        %v3154 = vld [vmem:[%s3065 + $0x2c0] sm:$0xff]
        %v3155 = vld [vmem:[%s3065 + $0x2c8] sm:$0xff]
        %v3156 = vld [vmem:[%s3065 + $0x2d0] sm:$0xff]
        %v3157 = vld [vmem:[%s3065 + $0x2d8] sm:$0xff]
        %v3158 = vld [vmem:[%s3065 + $0x2e0] sm:$0xff]
        %v3159 = vld [vmem:[%s3065 + $0x2e8] sm:$0xff]
        %v3160 = vld [vmem:[%s3065 + $0x2f0] sm:$0xff]
        %v3161 = vld [vmem:[%s3065 + $0x2f8] sm:$0xff]
        %v3162 = vld [vmem:[%s3065 + $0x300] sm:$0xff]
        %v3163 = vld [vmem:[%s3065 + $0x308] sm:$0xff]
        %v3164 = vld [vmem:[%s3065 + $0x310] sm:$0xff]
        %v3165 = vld [vmem:[%s3065 + $0x318] sm:$0xff]
        %v3166 = vld [vmem:[%s3065 + $0x320] sm:$0xff]
        %v3167 = vld [vmem:[%s3065 + $0x328] sm:$0xff]
        %v3168 = vld [vmem:[%s3065 + $0x330] sm:$0xff]
        %v3169 = vld [vmem:[%s3065 + $0x338] sm:$0xff]
        %v3170 = vld [vmem:[%s3065 + $0x340] sm:$0xff]
        %v3171 = vld [vmem:[%s3065 + $0x348] sm:$0xff]
        %v3172 = vld [vmem:[%s3065 + $0x350] sm:$0xff]
        %v3173 = vld [vmem:[%s3065 + $0x358] sm:$0xff]
        %v3174 = vld [vmem:[%s3065 + $0x360] sm:$0xff]
        %v3175 = vld [vmem:[%s3065 + $0x368] sm:$0xff]
        %v3176 = vld [vmem:[%s3065 + $0x370] sm:$0xff]
        %v3177 = vld [vmem:[%s3065 + $0x378] sm:$0xff]
        %v3178 = vld [vmem:[%s3065 + $0x380] sm:$0xff]
        %v3179 = vld [vmem:[%s3065 + $0x388] sm:$0xff]
        %v3180 = vld [vmem:[%s3065 + $0x390] sm:$0xff]
        %v3181 = vld [vmem:[%s3065 + $0x398] sm:$0xff]
        %v3182 = vld [vmem:[%s3065 + $0x3a0] sm:$0xff]
        %v3183 = vld [vmem:[%s3065 + $0x3a8] sm:$0xff]
        %v3184 = vld [vmem:[%s3065 + $0x3b0] sm:$0xff]
        %v3185 = vld [vmem:[%s3065 + $0x3b8] sm:$0xff]
        %v3186 = vld [vmem:[%s3065 + $0x3c0] sm:$0xff]
        %v3187 = vld [vmem:[%s3065 + $0x3c8] sm:$0xff]
        %v3188 = vld [vmem:[%s3065 + $0x3d0] sm:$0xff]
        %v3189 = vld [vmem:[%s3065 + $0x3d8] sm:$0xff]
        %v3190 = vld [vmem:[%s3065 + $0x3e0] sm:$0xff]
        %v3191 = vld [vmem:[%s3065 + $0x3e8] sm:$0xff]
        %v3192 = vld [vmem:[%s3065 + $0x3f0] sm:$0xff]
        %v3193 = vld [vmem:[%s3065 + $0x3f8] sm:$0xff]
        %v3194 = vld [vmem:[%s3065 + $0x400] sm:$0xff]
        %v3195 = vld [vmem:[%s3065 + $0x408] sm:$0xff]
        %v3196 = vld [vmem:[%s3065 + $0x410] sm:$0xff]
        %v3197 = vld [vmem:[%s3065 + $0x418] sm:$0xff]
        %v3198 = vld [vmem:[%s3065 + $0x420] sm:$0xff]
        %v3199 = vld [vmem:[%s3065 + $0x428] sm:$0xff]
        %v3200 = vld [vmem:[%s3065 + $0x430] sm:$0xff]
        %v3201 = vld [vmem:[%s3065 + $0x438] sm:$0xff]
        %v3202 = vld [vmem:[%s3065 + $0x440] sm:$0xff]
        %v3203 = vld [vmem:[%s3065 + $0x448] sm:$0xff]
        %v3204 = vld [vmem:[%s3065 + $0x450] sm:$0xff]
        %v3205 = vld [vmem:[%s3065 + $0x458] sm:$0xff]
        %v3206 = vld [vmem:[%s3065 + $0x460] sm:$0xff]
        %v3207 = vld [vmem:[%s3065 + $0x468] sm:$0xff]
        %v3208 = vld [vmem:[%s3065 + $0x470] sm:$0xff]
        %v3209 = vld [vmem:[%s3065 + $0x478] sm:$0xff]
        %v3210 = vld [vmem:[%s3065 + $0x480] sm:$0xff]
        %v3211 = vld [vmem:[%s3065 + $0x488] sm:$0xff]
        %v3212 = vld [vmem:[%s3065 + $0x490] sm:$0xff]
        %v3213 = vld [vmem:[%s3065 + $0x498] sm:$0xff]
        %v3214 = vld [vmem:[%s3065 + $0x4a0] sm:$0xff]
        %v3215 = vld [vmem:[%s3065 + $0x4a8] sm:$0xff]
        %v3216 = vld [vmem:[%s3065 + $0x4b0] sm:$0xff]
        %v3217 = vld [vmem:[%s3065 + $0x4b8] sm:$0xff]
        %v3218 = vld [vmem:[%s3065 + $0x4c0] sm:$0xff]
        %v3219 = vld [vmem:[%s3065 + $0x4c8] sm:$0xff]
        %v3220 = vld [vmem:[%s3065 + $0x4d0] sm:$0xff]
        %v3221 = vld [vmem:[%s3065 + $0x4d8] sm:$0xff]
        %v3222 = vld [vmem:[%s3065 + $0x4e0] sm:$0xff]
        %v3223 = vld [vmem:[%s3065 + $0x4e8] sm:$0xff]
        %v3224 = vld [vmem:[%s3065 + $0x4f0] sm:$0xff]
        %v3225 = vld [vmem:[%s3065 + $0x4f8] sm:$0xff]
        %v3226 = vld [vmem:[%s3065 + $0x500] sm:$0xff]
        %v3227 = vld [vmem:[%s3065 + $0x508] sm:$0xff]
        %v3228 = vld [vmem:[%s3065 + $0x510] sm:$0xff]
        %v3229 = vld [vmem:[%s3065 + $0x518] sm:$0xff]
        %v3230 = vld [vmem:[%s3065 + $0x520] sm:$0xff]
        %v3231 = vld [vmem:[%s3065 + $0x528] sm:$0xff]
        %v3232 = vld [vmem:[%s3065 + $0x530] sm:$0xff]
        %v3233 = vld [vmem:[%s3065 + $0x538] sm:$0xff]
        %v3234 = vld [vmem:[%s3065 + $0x540] sm:$0xff]
        %v3235 = vld [vmem:[%s3065 + $0x548] sm:$0xff]
        %v3236 = vld [vmem:[%s3065 + $0x550] sm:$0xff]
        %v3237 = vld [vmem:[%s3065 + $0x558] sm:$0xff]
        %v3238 = vld [vmem:[%s3065 + $0x560] sm:$0xff]
        %v3239 = vld [vmem:[%s3065 + $0x568] sm:$0xff]
        %v3240 = vld [vmem:[%s3065 + $0x570] sm:$0xff]
        %v3241 = vld [vmem:[%s3065 + $0x578] sm:$0xff]
        %v3242 = vld [vmem:[%s3065 + $0x580] sm:$0xff]
        %v3243 = vld [vmem:[%s3065 + $0x588] sm:$0xff]
        %v3244 = vld [vmem:[%s3065 + $0x590] sm:$0xff]
        %v3245 = vld [vmem:[%s3065 + $0x598] sm:$0xff]
        %v3246 = vld [vmem:[%s3065 + $0x5a0] sm:$0xff]
        %v3247 = vld [vmem:[%s3065 + $0x5a8] sm:$0xff]
        %v3248 = vld [vmem:[%s3065 + $0x5b0] sm:$0xff]
        %v3249 = vld [vmem:[%s3065 + $0x5b8] sm:$0xff]
        %v3250 = vld [vmem:[%s3065 + $0x5c0] sm:$0xff]
        %v3251 = vld [vmem:[%s3065 + $0x5c8] sm:$0xff]
        %v3252 = vld [vmem:[%s3065 + $0x5d0] sm:$0xff]
        %v3253 = vld [vmem:[%s3065 + $0x5d8] sm:$0xff]
        %v3254 = vld [vmem:[%s3065 + $0x5e0] sm:$0xff]
        %v3255 = vld [vmem:[%s3065 + $0x5e8] sm:$0xff]
        %v3256 = vld [vmem:[%s3065 + $0x5f0] sm:$0xff]
        %v3257 = vld [vmem:[%s3065 + $0x5f8] sm:$0xff]
        %v3258 = vld [vmem:[%s3065 + $0x600] sm:$0xff]
        %v3259 = vld [vmem:[%s3065 + $0x608] sm:$0xff]
        %v3260 = vld [vmem:[%s3065 + $0x610] sm:$0xff]
        %v3261 = vld [vmem:[%s3065 + $0x618] sm:$0xff]
        %v3262 = vld [vmem:[%s3065 + $0x620] sm:$0xff]
        %v3263 = vld [vmem:[%s3065 + $0x628] sm:$0xff]
        %v3264 = vld [vmem:[%s3065 + $0x630] sm:$0xff]
        %v3265 = vld [vmem:[%s3065 + $0x638] sm:$0xff]
        %v3266 = vld [vmem:[%s3065 + $0x640] sm:$0xff]
        %v3267 = vld [vmem:[%s3065 + $0x648] sm:$0xff]
        %v3268 = vld [vmem:[%s3065 + $0x650] sm:$0xff]
        %v3269 = vld [vmem:[%s3065 + $0x658] sm:$0xff]
        %v3270 = vld [vmem:[%s3065 + $0x660] sm:$0xff]
        %v3271 = vld [vmem:[%s3065 + $0x668] sm:$0xff]
        %v3272 = vld [vmem:[%s3065 + $0x670] sm:$0xff]
        %v3273 = vld [vmem:[%s3065 + $0x678] sm:$0xff]
        %v3274 = vld [vmem:[%s3065 + $0x680] sm:$0xff]
        %v3275 = vld [vmem:[%s3065 + $0x688] sm:$0xff]
        %v3276 = vld [vmem:[%s3065 + $0x690] sm:$0xff]
        %v3277 = vld [vmem:[%s3065 + $0x698] sm:$0xff]
        %v3278 = vld [vmem:[%s3065 + $0x6a0] sm:$0xff]
        %v3279 = vld [vmem:[%s3065 + $0x6a8] sm:$0xff]
        %v3280 = vld [vmem:[%s3065 + $0x6b0] sm:$0xff]
        %v3281 = vld [vmem:[%s3065 + $0x6b8] sm:$0xff]
        %v3282 = vld [vmem:[%s3065 + $0x6c0] sm:$0xff]
        %v3283 = vld [vmem:[%s3065 + $0x6c8] sm:$0xff]
        %v3284 = vld [vmem:[%s3065 + $0x6d0] sm:$0xff]
        %v3285 = vld [vmem:[%s3065 + $0x6d8] sm:$0xff]
        %v3286 = vld [vmem:[%s3065 + $0x6e0] sm:$0xff]
        %v3287 = vld [vmem:[%s3065 + $0x6e8] sm:$0xff]
        %v3288 = vld [vmem:[%s3065 + $0x6f0] sm:$0xff]
        %v3289 = vld [vmem:[%s3065 + $0x6f8] sm:$0xff]
        %v3290 = vld [vmem:[%s3065 + $0x700] sm:$0xff]
        %v3291 = vld [vmem:[%s3065 + $0x708] sm:$0xff]
        %v3292 = vld [vmem:[%s3065 + $0x710] sm:$0xff]
        %v3293 = vld [vmem:[%s3065 + $0x718] sm:$0xff]
        %v3294 = vld [vmem:[%s3065 + $0x720] sm:$0xff]
        %v3295 = vld [vmem:[%s3065 + $0x728] sm:$0xff]
        %v3296 = vld [vmem:[%s3065 + $0x730] sm:$0xff]
        %v3297 = vld [vmem:[%s3065 + $0x738] sm:$0xff]
        %v3298 = vld [vmem:[%s3065 + $0x740] sm:$0xff]
        %v3299 = vld [vmem:[%s3065 + $0x748] sm:$0xff]
        %v3300 = vld [vmem:[%s3065 + $0x750] sm:$0xff]
        %v3301 = vld [vmem:[%s3065 + $0x758] sm:$0xff]
        %v3302 = vld [vmem:[%s3065 + $0x760] sm:$0xff]
        %v3303 = vld [vmem:[%s3065 + $0x768] sm:$0xff]
        %v3304 = vld [vmem:[%s3065 + $0x770] sm:$0xff]
        %v3305 = vld [vmem:[%s3065 + $0x778] sm:$0xff]
        %v3306 = vld [vmem:[%s3065 + $0x780] sm:$0xff]
        %v3307 = vld [vmem:[%s3065 + $0x788] sm:$0xff]
        %v3308 = vld [vmem:[%s3065 + $0x790] sm:$0xff]
        %v3309 = vld [vmem:[%s3065 + $0x798] sm:$0xff]
        %v3310 = vld [vmem:[%s3065 + $0x7a0] sm:$0xff]
        %v3311 = vld [vmem:[%s3065 + $0x7a8] sm:$0xff]
        %v3312 = vld [vmem:[%s3065 + $0x7b0] sm:$0xff]
        %v3313 = vld [vmem:[%s3065 + $0x7b8] sm:$0xff]
        %v3314 = vld [vmem:[%s3065 + $0x7c0] sm:$0xff]
        %v3315 = vld [vmem:[%s3065 + $0x7c8] sm:$0xff]
        %v3316 = vld [vmem:[%s3065 + $0x7d0] sm:$0xff]
        %v3317 = vld [vmem:[%s3065 + $0x7d8] sm:$0xff]
        %v3318 = vld [vmem:[%s3065 + $0x7e0] sm:$0xff]
        %v3319 = vld [vmem:[%s3065 + $0x7e8] sm:$0xff]
        %v3320 = vld [vmem:[%s3065 + $0x7f0] sm:$0xff]
        %v3321 = vld [vmem:[%s3065 + $0x7f8] sm:$0xff]
        %v3330 = vrot.slane %v3057, 2
        %v3331 = vrot.slane %v3061, 2
        %v3332 = vsel %vm654, %v3330, %v3331
        %v3333 = vrot.slane %v3058, 2
        %v3334 = vrot.slane %v3062, 2
        %v3335 = vsel %vm654, %v3333, %v3334
        %v3336 = vrot.slane %v3059, 2
        %v3337 = vrot.slane %v3063, 2
        %v3338 = vsel %vm654, %v3336, %v3337
        %v3339 = vrot.slane %v3060, 2
        %v3340 = vrot.slane %v3064, 2
        %v3341 = vsel %vm654, %v3339, %v3340
        %3350 = vmatprep.subr.mxu0 %v3067
        %3351 = vmatpush1.msra.mxu0 %v3066
        %3352 = vmatprep.subr.mxu0 %v3071
        %3353 = vmatpush1.msra.mxu0 %v3070
        %3354 = vmatprep.subr.mxu0 %v3075
        %3355 = vmatpush1.msra.mxu0 %v3074
        %3356 = vmatprep.subr.mxu0 %v3079
        %3357 = vmatpush1.msra.mxu0 %v3078
        %3358 = vmatprep.subr.mxu0 %v3083
        %3359 = vmatpush1.msra.mxu0 %v3082
        %3360 = vmatprep.subr.mxu0 %v3087
        %3361 = vmatpush1.msra.mxu0 %v3086
        %3362 = vmatprep.subr.mxu0 %v3091
        %3363 = vmatpush1.msra.mxu0 %v3090
        %3364 = vmatprep.subr.mxu0 %v3095
        %3365 = vmatpush1.msra.mxu0 %v3094
        %3366 = vmatprep.subr.mxu0 %v3099
        %3367 = vmatpush1.msra.mxu0 %v3098
        %3368 = vmatprep.subr.mxu0 %v3103
        %3369 = vmatpush1.msra.mxu0 %v3102
        %3370 = vmatprep.subr.mxu0 %v3107
        %3371 = vmatpush1.msra.mxu0 %v3106
        %3372 = vmatprep.subr.mxu0 %v3111
        %3373 = vmatpush1.msra.mxu0 %v3110
        %3374 = vmatprep.subr.mxu0 %v3115
        %3375 = vmatpush1.msra.mxu0 %v3114
        %3376 = vmatprep.subr.mxu0 %v3119
        %3377 = vmatpush1.msra.mxu0 %v3118
        %3378 = vmatprep.subr.mxu0 %v3123
        %3379 = vmatpush1.msra.mxu0 %v3122
        %3380 = vmatprep.subr.mxu0 %v3127
        %3381 = vmatpush1.msra.mxu0 %v3126
        %3382 = vmatprep.subr.mxu0 %v3131
        %3383 = vmatpush1.msra.mxu0 %v3130
        %3384 = vmatprep.subr.mxu0 %v3135
        %3385 = vmatpush1.msra.mxu0 %v3134
        %3386 = vmatprep.subr.mxu0 %v3139
        %3387 = vmatpush1.msra.mxu0 %v3138
        %3388 = vmatprep.subr.mxu0 %v3143
        %3389 = vmatpush1.msra.mxu0 %v3142
        %3390 = vmatprep.subr.mxu0 %v3147
        %3391 = vmatpush1.msra.mxu0 %v3146
        %3392 = vmatprep.subr.mxu0 %v3151
        %3393 = vmatpush1.msra.mxu0 %v3150
        %3394 = vmatprep.subr.mxu0 %v3155
        %3395 = vmatpush1.msra.mxu0 %v3154
        %3396 = vmatprep.subr.mxu0 %v3159
        %3397 = vmatpush1.msra.mxu0 %v3158
        %3398 = vmatprep.subr.mxu0 %v3163
        %3399 = vmatpush1.msra.mxu0 %v3162
        %3400 = vmatprep.subr.mxu0 %v3167
        %3401 = vmatpush1.msra.mxu0 %v3166
        %3402 = vmatprep.subr.mxu0 %v3171
        %3403 = vmatpush1.msra.mxu0 %v3170
        %3404 = vmatprep.subr.mxu0 %v3175
        %3405 = vmatpush1.msra.mxu0 %v3174
        %3406 = vmatprep.subr.mxu0 %v3179
        %3407 = vmatpush1.msra.mxu0 %v3178
        %3408 = vmatprep.subr.mxu0 %v3183
        %3409 = vmatpush1.msra.mxu0 %v3182
        %3410 = vmatprep.subr.mxu0 %v3187
        %3411 = vmatpush1.msra.mxu0 %v3186
        %3412 = vmatprep.subr.mxu0 %v3191
        %3413 = vmatpush1.msra.mxu0 %v3190
        %3414 = vmatprep.mubr.f32.mxu0 %v3335
        %3415 = vmatmul.mubr.f32.gmra.mrb[0].mxu0 %v3332
        %v3416 = vpop.f32.mrb[0].mxu0
        %v3417 = vadd.f32 0.0, %v3416
        %v3418 = vpop.f32.mrb[0].mxu0
        %v3419 = vadd.f32 0.0, %v3418
        %3420 = vmatprep.mubr.f32.mxu0 %v3334
        %3421 = vmatmul.mubr.f32.gmra.mrb[0].mxu0 %v3331
        %v3422 = vpop.f32.mrb[0].mxu0
        %v3423 = vadd.f32 0.0, %v3422
        %v3424 = vpop.f32.mrb[0].mxu0
        %v3425 = vadd.f32 0.0, %v3424
        %3426 = vdwg.mxu0
        %3427 = vmatprep.subr.mxu0 %v3195
        %3428 = vmatpush1.msra.mxu0 %v3194
        %3429 = vmatprep.subr.mxu0 %v3199
        %3430 = vmatpush1.msra.mxu0 %v3198
        %3431 = vmatprep.subr.mxu0 %v3203
        %3432 = vmatpush1.msra.mxu0 %v3202
        %3433 = vmatprep.subr.mxu0 %v3207
        %3434 = vmatpush1.msra.mxu0 %v3206
        %3435 = vmatprep.subr.mxu0 %v3211
        %3436 = vmatpush1.msra.mxu0 %v3210
        %3437 = vmatprep.subr.mxu0 %v3215
        %3438 = vmatpush1.msra.mxu0 %v3214
        %3439 = vmatprep.subr.mxu0 %v3219
        %3440 = vmatpush1.msra.mxu0 %v3218
        %3441 = vmatprep.subr.mxu0 %v3223
        %3442 = vmatpush1.msra.mxu0 %v3222
        %3443 = vmatprep.subr.mxu0 %v3227
        %3444 = vmatpush1.msra.mxu0 %v3226
        %3445 = vmatprep.subr.mxu0 %v3231
        %3446 = vmatpush1.msra.mxu0 %v3230
        %3447 = vmatprep.subr.mxu0 %v3235
        %3448 = vmatpush1.msra.mxu0 %v3234
        %3449 = vmatprep.subr.mxu0 %v3239
        %3450 = vmatpush1.msra.mxu0 %v3238
        %3451 = vmatprep.subr.mxu0 %v3243
        %3452 = vmatpush1.msra.mxu0 %v3242
        %3453 = vmatprep.subr.mxu0 %v3247
        %3454 = vmatpush1.msra.mxu0 %v3246
        %3455 = vmatprep.subr.mxu0 %v3251
        %3456 = vmatpush1.msra.mxu0 %v3250
        %3457 = vmatprep.subr.mxu0 %v3255
        %3458 = vmatpush1.msra.mxu0 %v3254
        %3459 = vmatprep.subr.mxu0 %v3259
        %3460 = vmatpush1.msra.mxu0 %v3258
        %3461 = vmatprep.subr.mxu0 %v3263
        %3462 = vmatpush1.msra.mxu0 %v3262
        %3463 = vmatprep.subr.mxu0 %v3267
        %3464 = vmatpush1.msra.mxu0 %v3266
        %3465 = vmatprep.subr.mxu0 %v3271
        %3466 = vmatpush1.msra.mxu0 %v3270
        %3467 = vmatprep.subr.mxu0 %v3275
        %3468 = vmatpush1.msra.mxu0 %v3274
        %3469 = vmatprep.subr.mxu0 %v3279
        %3470 = vmatpush1.msra.mxu0 %v3278
        %3471 = vmatprep.subr.mxu0 %v3283
        %3472 = vmatpush1.msra.mxu0 %v3282
        %3473 = vmatprep.subr.mxu0 %v3287
        %3474 = vmatpush1.msra.mxu0 %v3286
        %3475 = vmatprep.subr.mxu0 %v3291
        %3476 = vmatpush1.msra.mxu0 %v3290
        %3477 = vmatprep.subr.mxu0 %v3295
        %3478 = vmatpush1.msra.mxu0 %v3294
        %3479 = vmatprep.subr.mxu0 %v3299
        %3480 = vmatpush1.msra.mxu0 %v3298
        %3481 = vmatprep.subr.mxu0 %v3303
        %3482 = vmatpush1.msra.mxu0 %v3302
        %3483 = vmatprep.subr.mxu0 %v3307
        %3484 = vmatpush1.msra.mxu0 %v3306
        %3485 = vmatprep.subr.mxu0 %v3311
        %3486 = vmatpush1.msra.mxu0 %v3310
        %3487 = vmatprep.subr.mxu0 %v3315
        %3488 = vmatpush1.msra.mxu0 %v3314
        %3489 = vmatprep.subr.mxu0 %v3319
        %3490 = vmatpush1.msra.mxu0 %v3318
        %3491 = vmatprep.mubr.f32.mxu0 %v3341
        %3492 = vmatmul.mubr.f32.gmra.mrb[0].mxu0 %v3338
        %v3493 = vpop.f32.mrb[0].mxu0
        %v3494 = vadd.f32 %v3417, %v3493
        %v3495 = vpop.f32.mrb[0].mxu0
        %v3496 = vadd.f32 %v3419, %v3495
        %3497 = vmatprep.mubr.f32.mxu0 %v3340
        %3498 = vmatmul.mubr.f32.gmra.mrb[0].mxu0 %v3337
        %v3499 = vpop.f32.mrb[0].mxu0
        %v3500 = vadd.f32 %v3423, %v3499
        %v3501 = vpop.f32.mrb[0].mxu0
        %v3502 = vadd.f32 %v3425, %v3501
        %3503 = vdwg.mxu0
        %3504 = vmatprep.subr.mxu0 %v3069
        %3505 = vmatpush1.msra.mxu0 %v3068
        %3506 = vmatprep.subr.mxu0 %v3073
        %3507 = vmatpush1.msra.mxu0 %v3072
        %3508 = vmatprep.subr.mxu0 %v3077
        %3509 = vmatpush1.msra.mxu0 %v3076
        %3510 = vmatprep.subr.mxu0 %v3081
        %3511 = vmatpush1.msra.mxu0 %v3080
        %3512 = vmatprep.subr.mxu0 %v3085
        %3513 = vmatpush1.msra.mxu0 %v3084
        %3514 = vmatprep.subr.mxu0 %v3089
        %3515 = vmatpush1.msra.mxu0 %v3088
        %3516 = vmatprep.subr.mxu0 %v3093
        %3517 = vmatpush1.msra.mxu0 %v3092
        %3518 = vmatprep.subr.mxu0 %v3097
        %3519 = vmatpush1.msra.mxu0 %v3096
        %3520 = vmatprep.subr.mxu0 %v3101
        %3521 = vmatpush1.msra.mxu0 %v3100
        %3522 = vmatprep.subr.mxu0 %v3105
        %3523 = vmatpush1.msra.mxu0 %v3104
        %3524 = vmatprep.subr.mxu0 %v3109
        %3525 = vmatpush1.msra.mxu0 %v3108
        %3526 = vmatprep.subr.mxu0 %v3113
        %3527 = vmatpush1.msra.mxu0 %v3112
        %3528 = vmatprep.subr.mxu0 %v3117
        %3529 = vmatpush1.msra.mxu0 %v3116
        %3530 = vmatprep.subr.mxu0 %v3121
        %3531 = vmatpush1.msra.mxu0 %v3120
        %3532 = vmatprep.subr.mxu0 %v3125
        %3533 = vmatpush1.msra.mxu0 %v3124
        %3534 = vmatprep.subr.mxu0 %v3129
        %3535 = vmatpush1.msra.mxu0 %v3128
        %3536 = vmatprep.subr.mxu0 %v3133
        %3537 = vmatpush1.msra.mxu0 %v3132
        %3538 = vmatprep.subr.mxu0 %v3137
        %3539 = vmatpush1.msra.mxu0 %v3136
        %3540 = vmatprep.subr.mxu0 %v3141
        %3541 = vmatpush1.msra.mxu0 %v3140
        %3542 = vmatprep.subr.mxu0 %v3145
        %3543 = vmatpush1.msra.mxu0 %v3144
        %3544 = vmatprep.subr.mxu0 %v3149
        %3545 = vmatpush1.msra.mxu0 %v3148
        %3546 = vmatprep.subr.mxu0 %v3153
        %3547 = vmatpush1.msra.mxu0 %v3152
        %3548 = vmatprep.subr.mxu0 %v3157
        %3549 = vmatpush1.msra.mxu0 %v3156
        %3550 = vmatprep.subr.mxu0 %v3161
        %3551 = vmatpush1.msra.mxu0 %v3160
        %3552 = vmatprep.subr.mxu0 %v3165
        %3553 = vmatpush1.msra.mxu0 %v3164
        %3554 = vmatprep.subr.mxu0 %v3169
        %3555 = vmatpush1.msra.mxu0 %v3168
        %3556 = vmatprep.subr.mxu0 %v3173
        %3557 = vmatpush1.msra.mxu0 %v3172
        %3558 = vmatprep.subr.mxu0 %v3177
        %3559 = vmatpush1.msra.mxu0 %v3176
        %3560 = vmatprep.subr.mxu0 %v3181
        %3561 = vmatpush1.msra.mxu0 %v3180
        %3562 = vmatprep.subr.mxu0 %v3185
        %3563 = vmatpush1.msra.mxu0 %v3184
        %3564 = vmatprep.subr.mxu0 %v3189
        %3565 = vmatpush1.msra.mxu0 %v3188
        %3566 = vmatprep.subr.mxu0 %v3193
        %3567 = vmatpush1.msra.mxu0 %v3192
        %3568 = vmatprep.mubr.f32.mxu0 %v3335
        %3569 = vmatmul.mubr.f32.gmra.mrb[0].mxu0 %v3332
        %v3570 = vpop.f32.mrb[0].mxu0
        %v3571 = vadd.f32 0.0, %v3570
        %v3572 = vpop.f32.mrb[0].mxu0
        %v3573 = vadd.f32 0.0, %v3572
        %3574 = vmatprep.mubr.f32.mxu0 %v3334
        %3575 = vmatmul.mubr.f32.gmra.mrb[0].mxu0 %v3331
        %v3576 = vpop.f32.mrb[0].mxu0
        %v3577 = vadd.f32 0.0, %v3576
        %v3578 = vpop.f32.mrb[0].mxu0
        %v3579 = vadd.f32 0.0, %v3578
        %3580 = vdwg.mxu0
        %3581 = vmatprep.subr.mxu0 %v3197
        %3582 = vmatpush1.msra.mxu0 %v3196
        %3583 = vmatprep.subr.mxu0 %v3201
        %3584 = vmatpush1.msra.mxu0 %v3200
        %3585 = vmatprep.subr.mxu0 %v3205
        %3586 = vmatpush1.msra.mxu0 %v3204
        %3587 = vmatprep.subr.mxu0 %v3209
        %3588 = vmatpush1.msra.mxu0 %v3208
        %3589 = vmatprep.subr.mxu0 %v3213
        %3590 = vmatpush1.msra.mxu0 %v3212
        %3591 = vmatprep.subr.mxu0 %v3217
        %3592 = vmatpush1.msra.mxu0 %v3216
        %3593 = vmatprep.subr.mxu0 %v3221
        %3594 = vmatpush1.msra.mxu0 %v3220
        %3595 = vmatprep.subr.mxu0 %v3225
        %3596 = vmatpush1.msra.mxu0 %v3224
        %3597 = vmatprep.subr.mxu0 %v3229
        %3598 = vmatpush1.msra.mxu0 %v3228
        %3599 = vmatprep.subr.mxu0 %v3233
        %3600 = vmatpush1.msra.mxu0 %v3232
        %3601 = vmatprep.subr.mxu0 %v3237
        %3602 = vmatpush1.msra.mxu0 %v3236
        %3603 = vmatprep.subr.mxu0 %v3241
        %3604 = vmatpush1.msra.mxu0 %v3240
        %3605 = vmatprep.subr.mxu0 %v3245
        %3606 = vmatpush1.msra.mxu0 %v3244
        %3607 = vmatprep.subr.mxu0 %v3249
        %3608 = vmatpush1.msra.mxu0 %v3248
        %3609 = vmatprep.subr.mxu0 %v3253
        %3610 = vmatpush1.msra.mxu0 %v3252
        %3611 = vmatprep.subr.mxu0 %v3257
        %3612 = vmatpush1.msra.mxu0 %v3256
        %3613 = vmatprep.subr.mxu0 %v3261
        %3614 = vmatpush1.msra.mxu0 %v3260
        %3615 = vmatprep.subr.mxu0 %v3265
        %3616 = vmatpush1.msra.mxu0 %v3264
        %3617 = vmatprep.subr.mxu0 %v3269
        %3618 = vmatpush1.msra.mxu0 %v3268
        %3619 = vmatprep.subr.mxu0 %v3273
        %3620 = vmatpush1.msra.mxu0 %v3272
        %3621 = vmatprep.subr.mxu0 %v3277
        %3622 = vmatpush1.msra.mxu0 %v3276
        %3623 = vmatprep.subr.mxu0 %v3281
        %3624 = vmatpush1.msra.mxu0 %v3280
        %3625 = vmatprep.subr.mxu0 %v3285
        %3626 = vmatpush1.msra.mxu0 %v3284
        %3627 = vmatprep.subr.mxu0 %v3289
        %3628 = vmatpush1.msra.mxu0 %v3288
        %3629 = vmatprep.subr.mxu0 %v3293
        %3630 = vmatpush1.msra.mxu0 %v3292
        %3631 = vmatprep.subr.mxu0 %v3297
        %3632 = vmatpush1.msra.mxu0 %v3296
        %3633 = vmatprep.subr.mxu0 %v3301
        %3634 = vmatpush1.msra.mxu0 %v3300
        %3635 = vmatprep.subr.mxu0 %v3305
        %3636 = vmatpush1.msra.mxu0 %v3304
        %3637 = vmatprep.subr.mxu0 %v3309
        %3638 = vmatpush1.msra.mxu0 %v3308
        %3639 = vmatprep.subr.mxu0 %v3313
        %3640 = vmatpush1.msra.mxu0 %v3312
        %3641 = vmatprep.subr.mxu0 %v3317
        %3642 = vmatpush1.msra.mxu0 %v3316
        %3643 = vmatprep.subr.mxu0 %v3321
        %3644 = vmatpush1.msra.mxu0 %v3320
        %3645 = vmatprep.mubr.f32.mxu0 %v3341
        %3646 = vmatmul.mubr.f32.gmra.mrb[0].mxu0 %v3338
        %v3647 = vpop.f32.mrb[0].mxu0
        %v3648 = vadd.f32 %v3571, %v3647
        %v3649 = vpop.f32.mrb[0].mxu0
        %v3650 = vadd.f32 %v3573, %v3649
        %3651 = vmatprep.mubr.f32.mxu0 %v3340
        %3652 = vmatmul.mubr.f32.gmra.mrb[0].mxu0 %v3337
        %v3653 = vpop.f32.mrb[0].mxu0
        %v3654 = vadd.f32 %v3577, %v3653
        %v3655 = vpop.f32.mrb[0].mxu0
        %v3656 = vadd.f32 %v3579, %v3655
        %3657 = vdwg.mxu0
        %v3658 = vadd.f32 %v2893, %v3494
        %v3659 = vadd.f32 %v2895, %v3496
        %v3660 = vadd.f32 %v3047, %v3648
        %v3661 = vadd.f32 %v3049, %v3650
        %v3662 = vadd.f32 %v2899, %v3500
        %v3663 = vadd.f32 %v2901, %v3502
        %v3664 = vadd.f32 %v3053, %v3654
        %v3665 = vadd.f32 %v3055, %v3656
        %v3666 = vld [vmem:[%s7] ss:$2 sm:$0xf]
        %v3668 = vlaneseq
        %v3669 = vshrl.u32 %v3668, 7
        %v3670 = vsub.s32 0, %v3669
        %v3671 = vrot.slane %v3666, %v3670
        %v3672 = vlaneseq
        %v3673 = vshrl.u32 %v3672, 7
        %v3674 = vsub.s32 1, %v3673
        %v3675 = vrot.slane %v3666, %v3674
        %v3676 = vlaneseq
        %v3677 = vshrl.u32 %v3676, 7
        %v3678 = vsub.s32 2, %v3677
        %v3679 = vrot.slane %v3666, %v3678
        %v3680 = vlaneseq
        %v3681 = vshrl.u32 %v3680, 7
        %v3682 = vsub.s32 3, %v3681
        %v3683 = vrot.slane %v3666, %v3682
        %v3688 = vmul.f32 %v3658, %v3671
        %v3689 = vmul.f32 %v3659, %v3675
        %v3690 = vmul.f32 %v3660, %v3679
        %v3691 = vmul.f32 %v3661, %v3683
        %v3692 = vmul.f32 %v3662, %v3671
        %v3693 = vmul.f32 %v3663, %v3675
        %v3694 = vmul.f32 %v3664, %v3679
        %v3695 = vmul.f32 %v3665, %v3683
        %s3696 = scalar_lea.vmem %s7, 1
        %v3697 = vld [vmem:[%s3696] ss:$2 sm:$0xf]
        %v3699 = vlaneseq
        %v3700 = vshrl.u32 %v3699, 7
        %v3701 = vsub.s32 0, %v3700
        %v3702 = vrot.slane %v3697, %v3701
        %v3703 = vlaneseq
        %v3704 = vshrl.u32 %v3703, 7
        %v3705 = vsub.s32 1, %v3704
        %v3706 = vrot.slane %v3697, %v3705
        %v3707 = vlaneseq
        %v3708 = vshrl.u32 %v3707, 7
        %v3709 = vsub.s32 2, %v3708
        %v3710 = vrot.slane %v3697, %v3709
        %v3711 = vlaneseq
        %v3712 = vshrl.u32 %v3711, 7
        %v3713 = vsub.s32 3, %v3712
        %v3714 = vrot.slane %v3697, %v3713
        %v3719 = vadd.f32 %v3688, %v3702
        %v3720 = vadd.f32 %v3689, %v3706
        %v3721 = vadd.f32 %v3690, %v3710
        %v3722 = vadd.f32 %v3691, %v3714
        %v3723 = vadd.f32 %v3692, %v3702
        %v3724 = vadd.f32 %v3693, %v3706
        %v3725 = vadd.f32 %v3694, %v3710
        %v3726 = vadd.f32 %v3695, %v3714
        %vm3727 = vcmp.gt.f32.partialorder %v3719, 0.0
        %vm3728 = vcmp.gt.f32.partialorder %v3720, 0.0
        %vm3729 = vcmp.gt.f32.partialorder %v3721, 0.0
        %vm3730 = vcmp.gt.f32.partialorder %v3722, 0.0
        %vm3731 = vcmp.gt.f32.partialorder %v3723, 0.0
        %vm3732 = vcmp.gt.f32.partialorder %v3724, 0.0
        %vm3733 = vcmp.gt.f32.partialorder %v3725, 0.0
        %vm3734 = vcmp.gt.f32.partialorder %v3726, 0.0
        %v3735 = vmul.f32 %v3719, 0.1
        %v3736 = vmul.f32 %v3720, 0.1
        %v3737 = vmul.f32 %v3721, 0.1
        %v3738 = vmul.f32 %v3722, 0.1
        %v3739 = vmul.f32 %v3723, 0.1
        %v3740 = vmul.f32 %v3724, 0.1
        %v3741 = vmul.f32 %v3725, 0.1
        %v3742 = vmul.f32 %v3726, 0.1
        %v3743 = vsel %vm3727, %v3719, %v3735
        %v3744 = vsel %vm3728, %v3720, %v3736
        %v3745 = vsel %vm3729, %v3721, %v3737
        %v3746 = vsel %vm3730, %v3722, %v3738
        %v3747 = vsel %vm3731, %v3723, %v3739
        %v3748 = vsel %vm3732, %v3724, %v3740
        %v3749 = vsel %vm3733, %v3725, %v3741
        %v3750 = vsel %vm3734, %v3726, %v3742
        %v3759 = vrot.slane %v3743, 7
        %v3760 = vrot.slane %v3744, 7
        %v3761 = vrot.slane %v3745, 7
        %v3762 = vrot.slane %v3746, 7
        %v3763 = vrot.slane %v3747, 7
        %v3764 = vsel %vm603, %v3759, %v3763
        %v3765 = vrot.slane %v3748, 7
        %v3766 = vsel %vm603, %v3760, %v3765
        %v3767 = vrot.slane %v3749, 7
        %v3768 = vsel %vm603, %v3761, %v3767
        %v3769 = vrot.slane %v3750, 7
        %v3770 = vsel %vm603, %v3762, %v3769
        %3779 = vst [vmem:[#allocation4] sm:$0xfe] %v3759
        %3780 = vst [vmem:[#allocation4 + $0x8] sm:$0xfe] %v3760
        %3781 = vst [vmem:[#allocation4 + $0x10] sm:$0xfe] %v3761
        %3782 = vst.msk [vmem:[#allocation4 + $0x18] sm:$0xfe] %vm1876, %v3762
        %3783 = vst [vmem:[#allocation4 + $0x20] sm:$0x7f] %v3764
        %3784 = vst [vmem:[#allocation4 + $0x28] sm:$0x7f] %v3766
        %3785 = vst [vmem:[#allocation4 + $0x30] sm:$0x7f] %v3768
        %3786 = vst.msk [vmem:[#allocation4 + $0x38] sm:$0x7f] %vm1881, %v3770
        %v3787 = vld [vmem:[#allocation4] sm:$0xff]
        %v3788 = vld [vmem:[#allocation4 + $0x8] sm:$0xff]
        %v3789 = vld [vmem:[#allocation4 + $0x10] sm:$0xff]
        %v3790 = vld [vmem:[#allocation4 + $0x18] sm:$0xff]
        %v3791 = vld [vmem:[#allocation4 + $0x20] sm:$0xff]
        %v3792 = vld [vmem:[#allocation4 + $0x28] sm:$0xff]
        %v3793 = vld [vmem:[#allocation4 + $0x30] sm:$0xff]
        %v3794 = vld [vmem:[#allocation4 + $0x38] sm:$0xff]
        %v3795 = vld [vmem:[%s12] sm:$0x7f]
        %vm3796 = vcmask 130048
        %v3798 = vsel %vm3796, %v3795, 0
        %3800 = vmatprep.subr.mxu0 %v3788
        %3801 = vmatpush1.msra.mxu0 %v3787
        %3802 = vmatprep.subr.mxu0 %v3792
        %3803 = vmatpush1.msra.mxu0 %v3791
        %3804 = vmatprep.subr.mxu0 0.0
        %3805 = vmatpush1.msra.mxu0 0.0
        %3806 = vmatprep.subr.mxu0 0.0
        %3807 = vmatpush1.msra.mxu0 0.0
        %3808 = vmatprep.subr.mxu0 0.0
        %3809 = vmatpush1.msra.mxu0 0.0
        %3810 = vmatprep.subr.mxu0 0.0
        %3811 = vmatpush1.msra.mxu0 0.0
        %3812 = vmatprep.subr.mxu0 0.0
        %3813 = vmatpush1.msra.mxu0 0.0
        %3814 = vmatprep.subr.mxu0 0.0
        %3815 = vmatpush1.msra.mxu0 0.0
        %3816 = vmatprep.subr.mxu0 0.0
        %3817 = vmatpush1.msra.mxu0 0.0
        %3818 = vmatprep.subr.mxu0 0.0
        %3819 = vmatpush1.msra.mxu0 0.0
        %3820 = vmatprep.subr.mxu0 0.0
        %3821 = vmatpush1.msra.mxu0 0.0
        %3822 = vmatprep.subr.mxu0 0.0
        %3823 = vmatpush1.msra.mxu0 0.0
        %3824 = vmatprep.subr.mxu0 0.0
        %3825 = vmatpush1.msra.mxu0 0.0
        %3826 = vmatprep.subr.mxu0 0.0
        %3827 = vmatpush1.msra.mxu0 0.0
        %3828 = vmatprep.subr.mxu0 0.0
        %3829 = vmatpush1.msra.mxu0 0.0
        %3830 = vmatprep.subr.mxu0 0.0
        %3831 = vmatpush1.msra.mxu0 0.0
        %3832 = vmatprep.subr.mxu0 0.0
        %3833 = vmatpush1.msra.mxu0 0.0
        %3834 = vmatprep.subr.mxu0 0.0
        %3835 = vmatpush1.msra.mxu0 0.0
        %3836 = vmatprep.subr.mxu0 0.0
        %3837 = vmatpush1.msra.mxu0 0.0
        %3838 = vmatprep.subr.mxu0 0.0
        %3839 = vmatpush1.msra.mxu0 0.0
        %3840 = vmatprep.subr.mxu0 0.0
        %3841 = vmatpush1.msra.mxu0 0.0
        %3842 = vmatprep.subr.mxu0 0.0
        %3843 = vmatpush1.msra.mxu0 0.0
        %3844 = vmatprep.subr.mxu0 0.0
        %3845 = vmatpush1.msra.mxu0 0.0
        %3846 = vmatprep.subr.mxu0 0.0
        %3847 = vmatpush1.msra.mxu0 0.0
        %3848 = vmatprep.subr.mxu0 0.0
        %3849 = vmatpush1.msra.mxu0 0.0
        %3850 = vmatprep.subr.mxu0 0.0
        %3851 = vmatpush1.msra.mxu0 0.0
        %3852 = vmatprep.subr.mxu0 0.0
        %3853 = vmatpush1.msra.mxu0 0.0
        %3854 = vmatprep.subr.mxu0 0.0
        %3855 = vmatpush1.msra.mxu0 0.0
        %3856 = vmatprep.subr.mxu0 0.0
        %3857 = vmatpush1.msra.mxu0 0.0
        %3858 = vmatprep.subr.mxu0 0.0
        %3859 = vmatpush1.msra.mxu0 0.0
        %3860 = vmatprep.subr.mxu0 0.0
        %3861 = vmatpush1.msra.mxu0 0.0
        %3862 = vmatprep.subr.mxu0 0.0
        %3863 = vmatpush1.msra.mxu0 0.0
        %3864 = vmatprep.mubr.f32.mxu0 0.0
        %3865 = vmatmul.mubr.f32.gmra.mrb[0].mxu0 %v3798
        %v3866 = vpop.f32.mrb[0].mxu0
        %v3867 = vadd.f32 0.0, %v3866
        %v3868 = vpop.f32.mrb[0].mxu0
        %v3869 = vadd.f32 0.0, %v3868
        %3870 = vdwg.mxu0
        %3871 = vmatprep.subr.mxu0 %v3790
        %3872 = vmatpush1.msra.mxu0 %v3789
        %3873 = vmatprep.subr.mxu0 %v3794
        %3874 = vmatpush1.msra.mxu0 %v3793
        %3875 = vmatprep.subr.mxu0 0.0
        %3876 = vmatpush1.msra.mxu0 0.0
        %3877 = vmatprep.subr.mxu0 0.0
        %3878 = vmatpush1.msra.mxu0 0.0
        %3879 = vmatprep.subr.mxu0 0.0
        %3880 = vmatpush1.msra.mxu0 0.0
        %3881 = vmatprep.subr.mxu0 0.0
        %3882 = vmatpush1.msra.mxu0 0.0
        %3883 = vmatprep.subr.mxu0 0.0
        %3884 = vmatpush1.msra.mxu0 0.0
        %3885 = vmatprep.subr.mxu0 0.0
        %3886 = vmatpush1.msra.mxu0 0.0
        %3887 = vmatprep.subr.mxu0 0.0
        %3888 = vmatpush1.msra.mxu0 0.0
        %3889 = vmatprep.subr.mxu0 0.0
        %3890 = vmatpush1.msra.mxu0 0.0
        %3891 = vmatprep.subr.mxu0 0.0
        %3892 = vmatpush1.msra.mxu0 0.0
        %3893 = vmatprep.subr.mxu0 0.0
        %3894 = vmatpush1.msra.mxu0 0.0
        %3895 = vmatprep.subr.mxu0 0.0
        %3896 = vmatpush1.msra.mxu0 0.0
        %3897 = vmatprep.subr.mxu0 0.0
        %3898 = vmatpush1.msra.mxu0 0.0
        %3899 = vmatprep.subr.mxu0 0.0
        %3900 = vmatpush1.msra.mxu0 0.0
        %3901 = vmatprep.subr.mxu0 0.0
        %3902 = vmatpush1.msra.mxu0 0.0
        %3903 = vmatprep.subr.mxu0 0.0
        %3904 = vmatpush1.msra.mxu0 0.0
        %3905 = vmatprep.subr.mxu0 0.0
        %3906 = vmatpush1.msra.mxu0 0.0
        %3907 = vmatprep.subr.mxu0 0.0
        %3908 = vmatpush1.msra.mxu0 0.0
        %3909 = vmatprep.subr.mxu0 0.0
        %3910 = vmatpush1.msra.mxu0 0.0
        %3911 = vmatprep.subr.mxu0 0.0
        %3912 = vmatpush1.msra.mxu0 0.0
        %3913 = vmatprep.subr.mxu0 0.0
        %3914 = vmatpush1.msra.mxu0 0.0
        %3915 = vmatprep.subr.mxu0 0.0
        %3916 = vmatpush1.msra.mxu0 0.0
        %3917 = vmatprep.subr.mxu0 0.0
        %3918 = vmatpush1.msra.mxu0 0.0
        %3919 = vmatprep.subr.mxu0 0.0
        %3920 = vmatpush1.msra.mxu0 0.0
        %3921 = vmatprep.subr.mxu0 0.0
        %3922 = vmatpush1.msra.mxu0 0.0
        %3923 = vmatprep.subr.mxu0 0.0
        %3924 = vmatpush1.msra.mxu0 0.0
        %3925 = vmatprep.subr.mxu0 0.0
        %3926 = vmatpush1.msra.mxu0 0.0
        %3927 = vmatprep.subr.mxu0 0.0
        %3928 = vmatpush1.msra.mxu0 0.0
        %3929 = vmatprep.subr.mxu0 0.0
        %3930 = vmatpush1.msra.mxu0 0.0
        %3931 = vmatprep.subr.mxu0 0.0
        %3932 = vmatpush1.msra.mxu0 0.0
        %3933 = vmatprep.subr.mxu0 0.0
        %3934 = vmatpush1.msra.mxu0 0.0
        %3935 = vmatprep.mubr.f32.mxu0 0.0
        %3936 = vmatmul.mubr.f32.gmra.mrb[0].mxu0 %v3798
        %v3937 = vpop.f32.mrb[0].mxu0
        %v3938 = vadd.f32 0.0, %v3937
        %v3939 = vpop.f32.mrb[0].mxu0
        %v3940 = vadd.f32 0.0, %v3939
        %3941 = vdwg.mxu0
        %v3942 = vld [vmem:[%s3] sm:$0xff]
        %v3943 = vld [vmem:[%s3 + $0x8] sm:$0xff]
        %v3944 = vld [vmem:[%s3 + $0x10] sm:$0xff]
        %v3945 = vld [vmem:[%s3 + $0x18] sm:$0xff]
        %v3946 = vld [vmem:[%s3 + $0x20] sm:$0xff]
        %v3947 = vld [vmem:[%s3 + $0x28] sm:$0xff]
        %v3948 = vld [vmem:[%s3 + $0x30] sm:$0xff]
        %v3949 = vld [vmem:[%s3 + $0x38] sm:$0xff]
        %v3950 = vld [vmem:[%s3 + $0x40] sm:$0xff]
        %v3951 = vld [vmem:[%s3 + $0x48] sm:$0xff]
        %v3952 = vld [vmem:[%s3 + $0x50] sm:$0xff]
        %v3953 = vld [vmem:[%s3 + $0x58] sm:$0xff]
        %v3954 = vld [vmem:[%s3 + $0x60] sm:$0xff]
        %v3955 = vld [vmem:[%s3 + $0x68] sm:$0xff]
        %v3956 = vld [vmem:[%s3 + $0x70] sm:$0xff]
        %v3957 = vld [vmem:[%s3 + $0x78] sm:$0xff]
        %v3958 = vld [vmem:[%s3 + $0x80] sm:$0xff]
        %v3959 = vld [vmem:[%s3 + $0x88] sm:$0xff]
        %v3960 = vld [vmem:[%s3 + $0x90] sm:$0xff]
        %v3961 = vld [vmem:[%s3 + $0x98] sm:$0xff]
        %v3962 = vld [vmem:[%s3 + $0xa0] sm:$0xff]
        %v3963 = vld [vmem:[%s3 + $0xa8] sm:$0xff]
        %v3964 = vld [vmem:[%s3 + $0xb0] sm:$0xff]
        %v3965 = vld [vmem:[%s3 + $0xb8] sm:$0xff]
        %v3966 = vld [vmem:[%s3 + $0xc0] sm:$0xff]
        %v3967 = vld [vmem:[%s3 + $0xc8] sm:$0xff]
        %v3968 = vld [vmem:[%s3 + $0xd0] sm:$0xff]
        %v3969 = vld [vmem:[%s3 + $0xd8] sm:$0xff]
        %v3970 = vld [vmem:[%s3 + $0xe0] sm:$0xff]
        %v3971 = vld [vmem:[%s3 + $0xe8] sm:$0xff]
        %v3972 = vld [vmem:[%s3 + $0xf0] sm:$0xff]
        %v3973 = vld [vmem:[%s3 + $0xf8] sm:$0xff]
        %v3974 = vld [vmem:[%s3 + $0x100] sm:$0xff]
        %v3975 = vld [vmem:[%s3 + $0x108] sm:$0xff]
        %v3976 = vld [vmem:[%s3 + $0x110] sm:$0xff]
        %v3977 = vld [vmem:[%s3 + $0x118] sm:$0xff]
        %v3978 = vld [vmem:[%s3 + $0x120] sm:$0xff]
        %v3979 = vld [vmem:[%s3 + $0x128] sm:$0xff]
        %v3980 = vld [vmem:[%s3 + $0x130] sm:$0xff]
        %v3981 = vld [vmem:[%s3 + $0x138] sm:$0xff]
        %v3982 = vld [vmem:[%s3 + $0x140] sm:$0xff]
        %v3983 = vld [vmem:[%s3 + $0x148] sm:$0xff]
        %v3984 = vld [vmem:[%s3 + $0x150] sm:$0xff]
        %v3985 = vld [vmem:[%s3 + $0x158] sm:$0xff]
        %v3986 = vld [vmem:[%s3 + $0x160] sm:$0xff]
        %v3987 = vld [vmem:[%s3 + $0x168] sm:$0xff]
        %v3988 = vld [vmem:[%s3 + $0x170] sm:$0xff]
        %v3989 = vld [vmem:[%s3 + $0x178] sm:$0xff]
        %v3990 = vld [vmem:[%s3 + $0x180] sm:$0xff]
        %v3991 = vld [vmem:[%s3 + $0x188] sm:$0xff]
        %v3992 = vld [vmem:[%s3 + $0x190] sm:$0xff]
        %v3993 = vld [vmem:[%s3 + $0x198] sm:$0xff]
        %v3994 = vld [vmem:[%s3 + $0x1a0] sm:$0xff]
        %v3995 = vld [vmem:[%s3 + $0x1a8] sm:$0xff]
        %v3996 = vld [vmem:[%s3 + $0x1b0] sm:$0xff]
        %v3997 = vld [vmem:[%s3 + $0x1b8] sm:$0xff]
        %v3998 = vld [vmem:[%s3 + $0x1c0] sm:$0xff]
        %v3999 = vld [vmem:[%s3 + $0x1c8] sm:$0xff]
        %v4000 = vld [vmem:[%s3 + $0x1d0] sm:$0xff]
        %v4001 = vld [vmem:[%s3 + $0x1d8] sm:$0xff]
        %v4002 = vld [vmem:[%s3 + $0x1e0] sm:$0xff]
        %v4003 = vld [vmem:[%s3 + $0x1e8] sm:$0xff]
        %v4004 = vld [vmem:[%s3 + $0x1f0] sm:$0xff]
        %v4005 = vld [vmem:[%s3 + $0x1f8] sm:$0xff]
        %v4006 = vld [vmem:[%s3 + $0x200] sm:$0xff]
        %v4007 = vld [vmem:[%s3 + $0x208] sm:$0xff]
        %v4008 = vld [vmem:[%s3 + $0x210] sm:$0xff]
        %v4009 = vld [vmem:[%s3 + $0x218] sm:$0xff]
        %v4010 = vld [vmem:[%s3 + $0x220] sm:$0xff]
        %v4011 = vld [vmem:[%s3 + $0x228] sm:$0xff]
        %v4012 = vld [vmem:[%s3 + $0x230] sm:$0xff]
        %v4013 = vld [vmem:[%s3 + $0x238] sm:$0xff]
        %v4014 = vld [vmem:[%s3 + $0x240] sm:$0xff]
        %v4015 = vld [vmem:[%s3 + $0x248] sm:$0xff]
        %v4016 = vld [vmem:[%s3 + $0x250] sm:$0xff]
        %v4017 = vld [vmem:[%s3 + $0x258] sm:$0xff]
        %v4018 = vld [vmem:[%s3 + $0x260] sm:$0xff]
        %v4019 = vld [vmem:[%s3 + $0x268] sm:$0xff]
        %v4020 = vld [vmem:[%s3 + $0x270] sm:$0xff]
        %v4021 = vld [vmem:[%s3 + $0x278] sm:$0xff]
        %v4022 = vld [vmem:[%s3 + $0x280] sm:$0xff]
        %v4023 = vld [vmem:[%s3 + $0x288] sm:$0xff]
        %v4024 = vld [vmem:[%s3 + $0x290] sm:$0xff]
        %v4025 = vld [vmem:[%s3 + $0x298] sm:$0xff]
        %v4026 = vld [vmem:[%s3 + $0x2a0] sm:$0xff]
        %v4027 = vld [vmem:[%s3 + $0x2a8] sm:$0xff]
        %v4028 = vld [vmem:[%s3 + $0x2b0] sm:$0xff]
        %v4029 = vld [vmem:[%s3 + $0x2b8] sm:$0xff]
        %v4030 = vld [vmem:[%s3 + $0x2c0] sm:$0xff]
        %v4031 = vld [vmem:[%s3 + $0x2c8] sm:$0xff]
        %v4032 = vld [vmem:[%s3 + $0x2d0] sm:$0xff]
        %v4033 = vld [vmem:[%s3 + $0x2d8] sm:$0xff]
        %v4034 = vld [vmem:[%s3 + $0x2e0] sm:$0xff]
        %v4035 = vld [vmem:[%s3 + $0x2e8] sm:$0xff]
        %v4036 = vld [vmem:[%s3 + $0x2f0] sm:$0xff]
        %v4037 = vld [vmem:[%s3 + $0x2f8] sm:$0xff]
        %v4038 = vld [vmem:[%s3 + $0x300] sm:$0xff]
        %v4039 = vld [vmem:[%s3 + $0x308] sm:$0xff]
        %v4040 = vld [vmem:[%s3 + $0x310] sm:$0xff]
        %v4041 = vld [vmem:[%s3 + $0x318] sm:$0xff]
        %v4042 = vld [vmem:[%s3 + $0x320] sm:$0xff]
        %v4043 = vld [vmem:[%s3 + $0x328] sm:$0xff]
        %v4044 = vld [vmem:[%s3 + $0x330] sm:$0xff]
        %v4045 = vld [vmem:[%s3 + $0x338] sm:$0xff]
        %v4046 = vld [vmem:[%s3 + $0x340] sm:$0xff]
        %v4047 = vld [vmem:[%s3 + $0x348] sm:$0xff]
        %v4048 = vld [vmem:[%s3 + $0x350] sm:$0xff]
        %v4049 = vld [vmem:[%s3 + $0x358] sm:$0xff]
        %v4050 = vld [vmem:[%s3 + $0x360] sm:$0xff]
        %v4051 = vld [vmem:[%s3 + $0x368] sm:$0xff]
        %v4052 = vld [vmem:[%s3 + $0x370] sm:$0xff]
        %v4053 = vld [vmem:[%s3 + $0x378] sm:$0xff]
        %v4054 = vld [vmem:[%s3 + $0x380] sm:$0xff]
        %v4055 = vld [vmem:[%s3 + $0x388] sm:$0xff]
        %v4056 = vld [vmem:[%s3 + $0x390] sm:$0xff]
        %v4057 = vld [vmem:[%s3 + $0x398] sm:$0xff]
        %v4058 = vld [vmem:[%s3 + $0x3a0] sm:$0xff]
        %v4059 = vld [vmem:[%s3 + $0x3a8] sm:$0xff]
        %v4060 = vld [vmem:[%s3 + $0x3b0] sm:$0xff]
        %v4061 = vld [vmem:[%s3 + $0x3b8] sm:$0xff]
        %v4062 = vld [vmem:[%s3 + $0x3c0] sm:$0xff]
        %v4063 = vld [vmem:[%s3 + $0x3c8] sm:$0xff]
        %v4064 = vld [vmem:[%s3 + $0x3d0] sm:$0xff]
        %v4065 = vld [vmem:[%s3 + $0x3d8] sm:$0xff]
        %v4066 = vld [vmem:[%s3 + $0x3e0] sm:$0xff]
        %v4067 = vld [vmem:[%s3 + $0x3e8] sm:$0xff]
        %v4068 = vld [vmem:[%s3 + $0x3f0] sm:$0xff]
        %v4069 = vld [vmem:[%s3 + $0x3f8] sm:$0xff]
        %s4070 = scalar_lea.vmem %s12, 8
        %v4071 = vld [vmem:[%s4070] sm:$0x7f]
        %v4073 = vsel %vm3796, %v4071, 0
        %4075 = vmatprep.subr.mxu0 %v3788
        %4076 = vmatpush1.msra.mxu0 %v3787
        %4077 = vmatprep.subr.mxu0 %v3792
        %4078 = vmatpush1.msra.mxu0 %v3791
        %4079 = vmatprep.subr.mxu0 0.0
        %4080 = vmatpush1.msra.mxu0 0.0
        %4081 = vmatprep.subr.mxu0 0.0
        %4082 = vmatpush1.msra.mxu0 0.0
        %4083 = vmatprep.subr.mxu0 0.0
        %4084 = vmatpush1.msra.mxu0 0.0
        %4085 = vmatprep.subr.mxu0 0.0
        %4086 = vmatpush1.msra.mxu0 0.0
        %4087 = vmatprep.subr.mxu0 0.0
        %4088 = vmatpush1.msra.mxu0 0.0
        %4089 = vmatprep.subr.mxu0 0.0
        %4090 = vmatpush1.msra.mxu0 0.0
        %4091 = vmatprep.subr.mxu0 0.0
        %4092 = vmatpush1.msra.mxu0 0.0
        %4093 = vmatprep.subr.mxu0 0.0
        %4094 = vmatpush1.msra.mxu0 0.0
        %4095 = vmatprep.subr.mxu0 0.0
        %4096 = vmatpush1.msra.mxu0 0.0
        %4097 = vmatprep.subr.mxu0 0.0
        %4098 = vmatpush1.msra.mxu0 0.0
        %4099 = vmatprep.subr.mxu0 0.0
        %4100 = vmatpush1.msra.mxu0 0.0
        %4101 = vmatprep.subr.mxu0 0.0
        %4102 = vmatpush1.msra.mxu0 0.0
        %4103 = vmatprep.subr.mxu0 0.0
        %4104 = vmatpush1.msra.mxu0 0.0
        %4105 = vmatprep.subr.mxu0 0.0
        %4106 = vmatpush1.msra.mxu0 0.0
        %4107 = vmatprep.subr.mxu0 0.0
        %4108 = vmatpush1.msra.mxu0 0.0
        %4109 = vmatprep.subr.mxu0 0.0
        %4110 = vmatpush1.msra.mxu0 0.0
        %4111 = vmatprep.subr.mxu0 0.0
        %4112 = vmatpush1.msra.mxu0 0.0
        %4113 = vmatprep.subr.mxu0 0.0
        %4114 = vmatpush1.msra.mxu0 0.0
        %4115 = vmatprep.subr.mxu0 0.0
        %4116 = vmatpush1.msra.mxu0 0.0
        %4117 = vmatprep.subr.mxu0 0.0
        %4118 = vmatpush1.msra.mxu0 0.0
        %4119 = vmatprep.subr.mxu0 0.0
        %4120 = vmatpush1.msra.mxu0 0.0
        %4121 = vmatprep.subr.mxu0 0.0
        %4122 = vmatpush1.msra.mxu0 0.0
        %4123 = vmatprep.subr.mxu0 0.0
        %4124 = vmatpush1.msra.mxu0 0.0
        %4125 = vmatprep.subr.mxu0 0.0
        %4126 = vmatpush1.msra.mxu0 0.0
        %4127 = vmatprep.subr.mxu0 0.0
        %4128 = vmatpush1.msra.mxu0 0.0
        %4129 = vmatprep.subr.mxu0 0.0
        %4130 = vmatpush1.msra.mxu0 0.0
        %4131 = vmatprep.subr.mxu0 0.0
        %4132 = vmatpush1.msra.mxu0 0.0
        %4133 = vmatprep.subr.mxu0 0.0
        %4134 = vmatpush1.msra.mxu0 0.0
        %4135 = vmatprep.subr.mxu0 0.0
        %4136 = vmatpush1.msra.mxu0 0.0
        %4137 = vmatprep.subr.mxu0 0.0
        %4138 = vmatpush1.msra.mxu0 0.0
        %4139 = vmatprep.mubr.f32.mxu0 0.0
        %4140 = vmatmul.mubr.f32.gmra.mrb[0].mxu0 %v4073
        %v4141 = vpop.f32.mrb[0].mxu0
        %v4142 = vadd.f32 0.0, %v4141
        %v4143 = vpop.f32.mrb[0].mxu0
        %v4144 = vadd.f32 0.0, %v4143
        %4145 = vdwg.mxu0
        %4146 = vmatprep.subr.mxu0 %v3790
        %4147 = vmatpush1.msra.mxu0 %v3789
        %4148 = vmatprep.subr.mxu0 %v3794
        %4149 = vmatpush1.msra.mxu0 %v3793
        %4150 = vmatprep.subr.mxu0 0.0
        %4151 = vmatpush1.msra.mxu0 0.0
        %4152 = vmatprep.subr.mxu0 0.0
        %4153 = vmatpush1.msra.mxu0 0.0
        %4154 = vmatprep.subr.mxu0 0.0
        %4155 = vmatpush1.msra.mxu0 0.0
        %4156 = vmatprep.subr.mxu0 0.0
        %4157 = vmatpush1.msra.mxu0 0.0
        %4158 = vmatprep.subr.mxu0 0.0
        %4159 = vmatpush1.msra.mxu0 0.0
        %4160 = vmatprep.subr.mxu0 0.0
        %4161 = vmatpush1.msra.mxu0 0.0
        %4162 = vmatprep.subr.mxu0 0.0
        %4163 = vmatpush1.msra.mxu0 0.0
        %4164 = vmatprep.subr.mxu0 0.0
        %4165 = vmatpush1.msra.mxu0 0.0
        %4166 = vmatprep.subr.mxu0 0.0
        %4167 = vmatpush1.msra.mxu0 0.0
        %4168 = vmatprep.subr.mxu0 0.0
        %4169 = vmatpush1.msra.mxu0 0.0
        %4170 = vmatprep.subr.mxu0 0.0
        %4171 = vmatpush1.msra.mxu0 0.0
        %4172 = vmatprep.subr.mxu0 0.0
        %4173 = vmatpush1.msra.mxu0 0.0
        %4174 = vmatprep.subr.mxu0 0.0
        %4175 = vmatpush1.msra.mxu0 0.0
        %4176 = vmatprep.subr.mxu0 0.0
        %4177 = vmatpush1.msra.mxu0 0.0
        %4178 = vmatprep.subr.mxu0 0.0
        %4179 = vmatpush1.msra.mxu0 0.0
        %4180 = vmatprep.subr.mxu0 0.0
        %4181 = vmatpush1.msra.mxu0 0.0
        %4182 = vmatprep.subr.mxu0 0.0
        %4183 = vmatpush1.msra.mxu0 0.0
        %4184 = vmatprep.subr.mxu0 0.0
        %4185 = vmatpush1.msra.mxu0 0.0
        %4186 = vmatprep.subr.mxu0 0.0
        %4187 = vmatpush1.msra.mxu0 0.0
        %4188 = vmatprep.subr.mxu0 0.0
        %4189 = vmatpush1.msra.mxu0 0.0
        %4190 = vmatprep.subr.mxu0 0.0
        %4191 = vmatpush1.msra.mxu0 0.0
        %4192 = vmatprep.subr.mxu0 0.0
        %4193 = vmatpush1.msra.mxu0 0.0
        %4194 = vmatprep.subr.mxu0 0.0
        %4195 = vmatpush1.msra.mxu0 0.0
        %4196 = vmatprep.subr.mxu0 0.0
        %4197 = vmatpush1.msra.mxu0 0.0
        %4198 = vmatprep.subr.mxu0 0.0
        %4199 = vmatpush1.msra.mxu0 0.0
        %4200 = vmatprep.subr.mxu0 0.0
        %4201 = vmatpush1.msra.mxu0 0.0
        %4202 = vmatprep.subr.mxu0 0.0
        %4203 = vmatpush1.msra.mxu0 0.0
        %4204 = vmatprep.subr.mxu0 0.0
        %4205 = vmatpush1.msra.mxu0 0.0
        %4206 = vmatprep.subr.mxu0 0.0
        %4207 = vmatpush1.msra.mxu0 0.0
        %4208 = vmatprep.subr.mxu0 0.0
        %4209 = vmatpush1.msra.mxu0 0.0
        %4210 = vmatprep.mubr.f32.mxu0 0.0
        %4211 = vmatmul.mubr.f32.gmra.mrb[0].mxu0 %v4073
        %v4212 = vpop.f32.mrb[0].mxu0
        %v4213 = vadd.f32 0.0, %v4212
        %v4214 = vpop.f32.mrb[0].mxu0
        %v4215 = vadd.f32 0.0, %v4214
        %4216 = vdwg.mxu0
        %s4217 = scalar_lea.vmem %s3, 1024
        %v4218 = vld [vmem:[%s4217] sm:$0xff]
        %v4219 = vld [vmem:[%s4217 + $0x8] sm:$0xff]
        %v4220 = vld [vmem:[%s4217 + $0x10] sm:$0xff]
        %v4221 = vld [vmem:[%s4217 + $0x18] sm:$0xff]
        %v4222 = vld [vmem:[%s4217 + $0x20] sm:$0xff]
        %v4223 = vld [vmem:[%s4217 + $0x28] sm:$0xff]
        %v4224 = vld [vmem:[%s4217 + $0x30] sm:$0xff]
        %v4225 = vld [vmem:[%s4217 + $0x38] sm:$0xff]
        %v4226 = vld [vmem:[%s4217 + $0x40] sm:$0xff]
        %v4227 = vld [vmem:[%s4217 + $0x48] sm:$0xff]
        %v4228 = vld [vmem:[%s4217 + $0x50] sm:$0xff]
        %v4229 = vld [vmem:[%s4217 + $0x58] sm:$0xff]
        %v4230 = vld [vmem:[%s4217 + $0x60] sm:$0xff]
        %v4231 = vld [vmem:[%s4217 + $0x68] sm:$0xff]
        %v4232 = vld [vmem:[%s4217 + $0x70] sm:$0xff]
        %v4233 = vld [vmem:[%s4217 + $0x78] sm:$0xff]
        %v4234 = vld [vmem:[%s4217 + $0x80] sm:$0xff]
        %v4235 = vld [vmem:[%s4217 + $0x88] sm:$0xff]
        %v4236 = vld [vmem:[%s4217 + $0x90] sm:$0xff]
        %v4237 = vld [vmem:[%s4217 + $0x98] sm:$0xff]
        %v4238 = vld [vmem:[%s4217 + $0xa0] sm:$0xff]
        %v4239 = vld [vmem:[%s4217 + $0xa8] sm:$0xff]
        %v4240 = vld [vmem:[%s4217 + $0xb0] sm:$0xff]
        %v4241 = vld [vmem:[%s4217 + $0xb8] sm:$0xff]
        %v4242 = vld [vmem:[%s4217 + $0xc0] sm:$0xff]
        %v4243 = vld [vmem:[%s4217 + $0xc8] sm:$0xff]
        %v4244 = vld [vmem:[%s4217 + $0xd0] sm:$0xff]
        %v4245 = vld [vmem:[%s4217 + $0xd8] sm:$0xff]
        %v4246 = vld [vmem:[%s4217 + $0xe0] sm:$0xff]
        %v4247 = vld [vmem:[%s4217 + $0xe8] sm:$0xff]
        %v4248 = vld [vmem:[%s4217 + $0xf0] sm:$0xff]
        %v4249 = vld [vmem:[%s4217 + $0xf8] sm:$0xff]
        %v4250 = vld [vmem:[%s4217 + $0x100] sm:$0xff]
        %v4251 = vld [vmem:[%s4217 + $0x108] sm:$0xff]
        %v4252 = vld [vmem:[%s4217 + $0x110] sm:$0xff]
        %v4253 = vld [vmem:[%s4217 + $0x118] sm:$0xff]
        %v4254 = vld [vmem:[%s4217 + $0x120] sm:$0xff]
        %v4255 = vld [vmem:[%s4217 + $0x128] sm:$0xff]
        %v4256 = vld [vmem:[%s4217 + $0x130] sm:$0xff]
        %v4257 = vld [vmem:[%s4217 + $0x138] sm:$0xff]
        %v4258 = vld [vmem:[%s4217 + $0x140] sm:$0xff]
        %v4259 = vld [vmem:[%s4217 + $0x148] sm:$0xff]
        %v4260 = vld [vmem:[%s4217 + $0x150] sm:$0xff]
        %v4261 = vld [vmem:[%s4217 + $0x158] sm:$0xff]
        %v4262 = vld [vmem:[%s4217 + $0x160] sm:$0xff]
        %v4263 = vld [vmem:[%s4217 + $0x168] sm:$0xff]
        %v4264 = vld [vmem:[%s4217 + $0x170] sm:$0xff]
        %v4265 = vld [vmem:[%s4217 + $0x178] sm:$0xff]
        %v4266 = vld [vmem:[%s4217 + $0x180] sm:$0xff]
        %v4267 = vld [vmem:[%s4217 + $0x188] sm:$0xff]
        %v4268 = vld [vmem:[%s4217 + $0x190] sm:$0xff]
        %v4269 = vld [vmem:[%s4217 + $0x198] sm:$0xff]
        %v4270 = vld [vmem:[%s4217 + $0x1a0] sm:$0xff]
        %v4271 = vld [vmem:[%s4217 + $0x1a8] sm:$0xff]
        %v4272 = vld [vmem:[%s4217 + $0x1b0] sm:$0xff]
        %v4273 = vld [vmem:[%s4217 + $0x1b8] sm:$0xff]
        %v4274 = vld [vmem:[%s4217 + $0x1c0] sm:$0xff]
        %v4275 = vld [vmem:[%s4217 + $0x1c8] sm:$0xff]
        %v4276 = vld [vmem:[%s4217 + $0x1d0] sm:$0xff]
        %v4277 = vld [vmem:[%s4217 + $0x1d8] sm:$0xff]
        %v4278 = vld [vmem:[%s4217 + $0x1e0] sm:$0xff]
        %v4279 = vld [vmem:[%s4217 + $0x1e8] sm:$0xff]
        %v4280 = vld [vmem:[%s4217 + $0x1f0] sm:$0xff]
        %v4281 = vld [vmem:[%s4217 + $0x1f8] sm:$0xff]
        %v4282 = vld [vmem:[%s4217 + $0x200] sm:$0xff]
        %v4283 = vld [vmem:[%s4217 + $0x208] sm:$0xff]
        %v4284 = vld [vmem:[%s4217 + $0x210] sm:$0xff]
        %v4285 = vld [vmem:[%s4217 + $0x218] sm:$0xff]
        %v4286 = vld [vmem:[%s4217 + $0x220] sm:$0xff]
        %v4287 = vld [vmem:[%s4217 + $0x228] sm:$0xff]
        %v4288 = vld [vmem:[%s4217 + $0x230] sm:$0xff]
        %v4289 = vld [vmem:[%s4217 + $0x238] sm:$0xff]
        %v4290 = vld [vmem:[%s4217 + $0x240] sm:$0xff]
        %v4291 = vld [vmem:[%s4217 + $0x248] sm:$0xff]
        %v4292 = vld [vmem:[%s4217 + $0x250] sm:$0xff]
        %v4293 = vld [vmem:[%s4217 + $0x258] sm:$0xff]
        %v4294 = vld [vmem:[%s4217 + $0x260] sm:$0xff]
        %v4295 = vld [vmem:[%s4217 + $0x268] sm:$0xff]
        %v4296 = vld [vmem:[%s4217 + $0x270] sm:$0xff]
        %v4297 = vld [vmem:[%s4217 + $0x278] sm:$0xff]
        %v4298 = vld [vmem:[%s4217 + $0x280] sm:$0xff]
        %v4299 = vld [vmem:[%s4217 + $0x288] sm:$0xff]
        %v4300 = vld [vmem:[%s4217 + $0x290] sm:$0xff]
        %v4301 = vld [vmem:[%s4217 + $0x298] sm:$0xff]
        %v4302 = vld [vmem:[%s4217 + $0x2a0] sm:$0xff]
        %v4303 = vld [vmem:[%s4217 + $0x2a8] sm:$0xff]
        %v4304 = vld [vmem:[%s4217 + $0x2b0] sm:$0xff]
        %v4305 = vld [vmem:[%s4217 + $0x2b8] sm:$0xff]
        %v4306 = vld [vmem:[%s4217 + $0x2c0] sm:$0xff]
        %v4307 = vld [vmem:[%s4217 + $0x2c8] sm:$0xff]
        %v4308 = vld [vmem:[%s4217 + $0x2d0] sm:$0xff]
        %v4309 = vld [vmem:[%s4217 + $0x2d8] sm:$0xff]
        %v4310 = vld [vmem:[%s4217 + $0x2e0] sm:$0xff]
        %v4311 = vld [vmem:[%s4217 + $0x2e8] sm:$0xff]
        %v4312 = vld [vmem:[%s4217 + $0x2f0] sm:$0xff]
        %v4313 = vld [vmem:[%s4217 + $0x2f8] sm:$0xff]
        %v4314 = vld [vmem:[%s4217 + $0x300] sm:$0xff]
        %v4315 = vld [vmem:[%s4217 + $0x308] sm:$0xff]
        %v4316 = vld [vmem:[%s4217 + $0x310] sm:$0xff]
        %v4317 = vld [vmem:[%s4217 + $0x318] sm:$0xff]
        %v4318 = vld [vmem:[%s4217 + $0x320] sm:$0xff]
        %v4319 = vld [vmem:[%s4217 + $0x328] sm:$0xff]
        %v4320 = vld [vmem:[%s4217 + $0x330] sm:$0xff]
        %v4321 = vld [vmem:[%s4217 + $0x338] sm:$0xff]
        %v4322 = vld [vmem:[%s4217 + $0x340] sm:$0xff]
        %v4323 = vld [vmem:[%s4217 + $0x348] sm:$0xff]
        %v4324 = vld [vmem:[%s4217 + $0x350] sm:$0xff]
        %v4325 = vld [vmem:[%s4217 + $0x358] sm:$0xff]
        %v4326 = vld [vmem:[%s4217 + $0x360] sm:$0xff]
        %v4327 = vld [vmem:[%s4217 + $0x368] sm:$0xff]
        %v4328 = vld [vmem:[%s4217 + $0x370] sm:$0xff]
        %v4329 = vld [vmem:[%s4217 + $0x378] sm:$0xff]
        %v4330 = vld [vmem:[%s4217 + $0x380] sm:$0xff]
        %v4331 = vld [vmem:[%s4217 + $0x388] sm:$0xff]
        %v4332 = vld [vmem:[%s4217 + $0x390] sm:$0xff]
        %v4333 = vld [vmem:[%s4217 + $0x398] sm:$0xff]
        %v4334 = vld [vmem:[%s4217 + $0x3a0] sm:$0xff]
        %v4335 = vld [vmem:[%s4217 + $0x3a8] sm:$0xff]
        %v4336 = vld [vmem:[%s4217 + $0x3b0] sm:$0xff]
        %v4337 = vld [vmem:[%s4217 + $0x3b8] sm:$0xff]
        %v4338 = vld [vmem:[%s4217 + $0x3c0] sm:$0xff]
        %v4339 = vld [vmem:[%s4217 + $0x3c8] sm:$0xff]
        %v4340 = vld [vmem:[%s4217 + $0x3d0] sm:$0xff]
        %v4341 = vld [vmem:[%s4217 + $0x3d8] sm:$0xff]
        %v4342 = vld [vmem:[%s4217 + $0x3e0] sm:$0xff]
        %v4343 = vld [vmem:[%s4217 + $0x3e8] sm:$0xff]
        %v4344 = vld [vmem:[%s4217 + $0x3f0] sm:$0xff]
        %v4345 = vld [vmem:[%s4217 + $0x3f8] sm:$0xff]
        %4346 = vmatprep.subr.mxu0 %v4219
        %4347 = vmatpush1.msra.mxu0 %v4218
        %4348 = vmatprep.subr.mxu0 %v4221
        %4349 = vmatpush1.msra.mxu0 %v4220
        %4350 = vmatprep.subr.mxu0 %v4223
        %4351 = vmatpush1.msra.mxu0 %v4222
        %4352 = vmatprep.subr.mxu0 %v4225
        %4353 = vmatpush1.msra.mxu0 %v4224
        %4354 = vmatprep.subr.mxu0 %v4227
        %4355 = vmatpush1.msra.mxu0 %v4226
        %4356 = vmatprep.subr.mxu0 %v4229
        %4357 = vmatpush1.msra.mxu0 %v4228
        %4358 = vmatprep.subr.mxu0 %v4231
        %4359 = vmatpush1.msra.mxu0 %v4230
        %4360 = vmatprep.subr.mxu0 %v4233
        %4361 = vmatpush1.msra.mxu0 %v4232
        %4362 = vmatprep.subr.mxu0 %v4235
        %4363 = vmatpush1.msra.mxu0 %v4234
        %4364 = vmatprep.subr.mxu0 %v4237
        %4365 = vmatpush1.msra.mxu0 %v4236
        %4366 = vmatprep.subr.mxu0 %v4239
        %4367 = vmatpush1.msra.mxu0 %v4238
        %4368 = vmatprep.subr.mxu0 %v4241
        %4369 = vmatpush1.msra.mxu0 %v4240
        %4370 = vmatprep.subr.mxu0 %v4243
        %4371 = vmatpush1.msra.mxu0 %v4242
        %4372 = vmatprep.subr.mxu0 %v4245
        %4373 = vmatpush1.msra.mxu0 %v4244
        %4374 = vmatprep.subr.mxu0 %v4247
        %4375 = vmatpush1.msra.mxu0 %v4246
        %4376 = vmatprep.subr.mxu0 %v4249
        %4377 = vmatpush1.msra.mxu0 %v4248
        %4378 = vmatprep.subr.mxu0 %v4251
        %4379 = vmatpush1.msra.mxu0 %v4250
        %4380 = vmatprep.subr.mxu0 %v4253
        %4381 = vmatpush1.msra.mxu0 %v4252
        %4382 = vmatprep.subr.mxu0 %v4255
        %4383 = vmatpush1.msra.mxu0 %v4254
        %4384 = vmatprep.subr.mxu0 %v4257
        %4385 = vmatpush1.msra.mxu0 %v4256
        %4386 = vmatprep.subr.mxu0 %v4259
        %4387 = vmatpush1.msra.mxu0 %v4258
        %4388 = vmatprep.subr.mxu0 %v4261
        %4389 = vmatpush1.msra.mxu0 %v4260
        %4390 = vmatprep.subr.mxu0 %v4263
        %4391 = vmatpush1.msra.mxu0 %v4262
        %4392 = vmatprep.subr.mxu0 %v4265
        %4393 = vmatpush1.msra.mxu0 %v4264
        %4394 = vmatprep.subr.mxu0 %v4267
        %4395 = vmatpush1.msra.mxu0 %v4266
        %4396 = vmatprep.subr.mxu0 %v4269
        %4397 = vmatpush1.msra.mxu0 %v4268
        %4398 = vmatprep.subr.mxu0 %v4271
        %4399 = vmatpush1.msra.mxu0 %v4270
        %4400 = vmatprep.subr.mxu0 %v4273
        %4401 = vmatpush1.msra.mxu0 %v4272
        %4402 = vmatprep.subr.mxu0 %v4275
        %4403 = vmatpush1.msra.mxu0 %v4274
        %4404 = vmatprep.subr.mxu0 %v4277
        %4405 = vmatpush1.msra.mxu0 %v4276
        %4406 = vmatprep.subr.mxu0 %v4279
        %4407 = vmatpush1.msra.mxu0 %v4278
        %4408 = vmatprep.subr.mxu0 %v4281
        %4409 = vmatpush1.msra.mxu0 %v4280
        %4410 = vmatprep.mubr.f32.mxu0 %v4144
        %4411 = vmatmul.mubr.f32.gmra.mrb[0].mxu0 %v4142
        %v4412 = vpop.f32.mrb[0].mxu0
        %v4413 = vadd.f32 0.0, %v4412
        %v4414 = vpop.f32.mrb[0].mxu0
        %v4415 = vadd.f32 0.0, %v4414
        %4416 = vdwg.mxu0
        %4417 = vmatprep.subr.mxu0 %v4283
        %4418 = vmatpush1.msra.mxu0 %v4282
        %4419 = vmatprep.subr.mxu0 %v4285
        %4420 = vmatpush1.msra.mxu0 %v4284
        %4421 = vmatprep.subr.mxu0 %v4287
        %4422 = vmatpush1.msra.mxu0 %v4286
        %4423 = vmatprep.subr.mxu0 %v4289
        %4424 = vmatpush1.msra.mxu0 %v4288
        %4425 = vmatprep.subr.mxu0 %v4291
        %4426 = vmatpush1.msra.mxu0 %v4290
        %4427 = vmatprep.subr.mxu0 %v4293
        %4428 = vmatpush1.msra.mxu0 %v4292
        %4429 = vmatprep.subr.mxu0 %v4295
        %4430 = vmatpush1.msra.mxu0 %v4294
        %4431 = vmatprep.subr.mxu0 %v4297
        %4432 = vmatpush1.msra.mxu0 %v4296
        %4433 = vmatprep.subr.mxu0 %v4299
        %4434 = vmatpush1.msra.mxu0 %v4298
        %4435 = vmatprep.subr.mxu0 %v4301
        %4436 = vmatpush1.msra.mxu0 %v4300
        %4437 = vmatprep.subr.mxu0 %v4303
        %4438 = vmatpush1.msra.mxu0 %v4302
        %4439 = vmatprep.subr.mxu0 %v4305
        %4440 = vmatpush1.msra.mxu0 %v4304
        %4441 = vmatprep.subr.mxu0 %v4307
        %4442 = vmatpush1.msra.mxu0 %v4306
        %4443 = vmatprep.subr.mxu0 %v4309
        %4444 = vmatpush1.msra.mxu0 %v4308
        %4445 = vmatprep.subr.mxu0 %v4311
        %4446 = vmatpush1.msra.mxu0 %v4310
        %4447 = vmatprep.subr.mxu0 %v4313
        %4448 = vmatpush1.msra.mxu0 %v4312
        %4449 = vmatprep.subr.mxu0 %v4315
        %4450 = vmatpush1.msra.mxu0 %v4314
        %4451 = vmatprep.subr.mxu0 %v4317
        %4452 = vmatpush1.msra.mxu0 %v4316
        %4453 = vmatprep.subr.mxu0 %v4319
        %4454 = vmatpush1.msra.mxu0 %v4318
        %4455 = vmatprep.subr.mxu0 %v4321
        %4456 = vmatpush1.msra.mxu0 %v4320
        %4457 = vmatprep.subr.mxu0 %v4323
        %4458 = vmatpush1.msra.mxu0 %v4322
        %4459 = vmatprep.subr.mxu0 %v4325
        %4460 = vmatpush1.msra.mxu0 %v4324
        %4461 = vmatprep.subr.mxu0 %v4327
        %4462 = vmatpush1.msra.mxu0 %v4326
        %4463 = vmatprep.subr.mxu0 %v4329
        %4464 = vmatpush1.msra.mxu0 %v4328
        %4465 = vmatprep.subr.mxu0 %v4331
        %4466 = vmatpush1.msra.mxu0 %v4330
        %4467 = vmatprep.subr.mxu0 %v4333
        %4468 = vmatpush1.msra.mxu0 %v4332
        %4469 = vmatprep.subr.mxu0 %v4335
        %4470 = vmatpush1.msra.mxu0 %v4334
        %4471 = vmatprep.subr.mxu0 %v4337
        %4472 = vmatpush1.msra.mxu0 %v4336
        %4473 = vmatprep.subr.mxu0 %v4339
        %4474 = vmatpush1.msra.mxu0 %v4338
        %4475 = vmatprep.subr.mxu0 %v4341
        %4476 = vmatpush1.msra.mxu0 %v4340
        %4477 = vmatprep.subr.mxu0 %v4343
        %4478 = vmatpush1.msra.mxu0 %v4342
        %4479 = vmatprep.subr.mxu0 %v4345
        %4480 = vmatpush1.msra.mxu0 %v4344
        %4481 = vmatprep.mubr.f32.mxu0 %v4215
        %4482 = vmatmul.mubr.f32.gmra.mrb[0].mxu0 %v4213
        %v4483 = vpop.f32.mrb[0].mxu0
        %v4484 = vadd.f32 %v4413, %v4483
        %v4485 = vpop.f32.mrb[0].mxu0
        %v4486 = vadd.f32 %v4415, %v4485
        %4487 = vdwg.mxu0
        %4488 = vmatprep.subr.mxu0 %v3943
        %4489 = vmatpush1.msra.mxu0 %v3942
        %4490 = vmatprep.subr.mxu0 %v3945
        %4491 = vmatpush1.msra.mxu0 %v3944
        %4492 = vmatprep.subr.mxu0 %v3947
        %4493 = vmatpush1.msra.mxu0 %v3946
        %4494 = vmatprep.subr.mxu0 %v3949
        %4495 = vmatpush1.msra.mxu0 %v3948
        %4496 = vmatprep.subr.mxu0 %v3951
        %4497 = vmatpush1.msra.mxu0 %v3950
        %4498 = vmatprep.subr.mxu0 %v3953
        %4499 = vmatpush1.msra.mxu0 %v3952
        %4500 = vmatprep.subr.mxu0 %v3955
        %4501 = vmatpush1.msra.mxu0 %v3954
        %4502 = vmatprep.subr.mxu0 %v3957
        %4503 = vmatpush1.msra.mxu0 %v3956
        %4504 = vmatprep.subr.mxu0 %v3959
        %4505 = vmatpush1.msra.mxu0 %v3958
        %4506 = vmatprep.subr.mxu0 %v3961
        %4507 = vmatpush1.msra.mxu0 %v3960
        %4508 = vmatprep.subr.mxu0 %v3963
        %4509 = vmatpush1.msra.mxu0 %v3962
        %4510 = vmatprep.subr.mxu0 %v3965
        %4511 = vmatpush1.msra.mxu0 %v3964
        %4512 = vmatprep.subr.mxu0 %v3967
        %4513 = vmatpush1.msra.mxu0 %v3966
        %4514 = vmatprep.subr.mxu0 %v3969
        %4515 = vmatpush1.msra.mxu0 %v3968
        %4516 = vmatprep.subr.mxu0 %v3971
        %4517 = vmatpush1.msra.mxu0 %v3970
        %4518 = vmatprep.subr.mxu0 %v3973
        %4519 = vmatpush1.msra.mxu0 %v3972
        %4520 = vmatprep.subr.mxu0 %v3975
        %4521 = vmatpush1.msra.mxu0 %v3974
        %4522 = vmatprep.subr.mxu0 %v3977
        %4523 = vmatpush1.msra.mxu0 %v3976
        %4524 = vmatprep.subr.mxu0 %v3979
        %4525 = vmatpush1.msra.mxu0 %v3978
        %4526 = vmatprep.subr.mxu0 %v3981
        %4527 = vmatpush1.msra.mxu0 %v3980
        %4528 = vmatprep.subr.mxu0 %v3983
        %4529 = vmatpush1.msra.mxu0 %v3982
        %4530 = vmatprep.subr.mxu0 %v3985
        %4531 = vmatpush1.msra.mxu0 %v3984
        %4532 = vmatprep.subr.mxu0 %v3987
        %4533 = vmatpush1.msra.mxu0 %v3986
        %4534 = vmatprep.subr.mxu0 %v3989
        %4535 = vmatpush1.msra.mxu0 %v3988
        %4536 = vmatprep.subr.mxu0 %v3991
        %4537 = vmatpush1.msra.mxu0 %v3990
        %4538 = vmatprep.subr.mxu0 %v3993
        %4539 = vmatpush1.msra.mxu0 %v3992
        %4540 = vmatprep.subr.mxu0 %v3995
        %4541 = vmatpush1.msra.mxu0 %v3994
        %4542 = vmatprep.subr.mxu0 %v3997
        %4543 = vmatpush1.msra.mxu0 %v3996
        %4544 = vmatprep.subr.mxu0 %v3999
        %4545 = vmatpush1.msra.mxu0 %v3998
        %4546 = vmatprep.subr.mxu0 %v4001
        %4547 = vmatpush1.msra.mxu0 %v4000
        %4548 = vmatprep.subr.mxu0 %v4003
        %4549 = vmatpush1.msra.mxu0 %v4002
        %4550 = vmatprep.subr.mxu0 %v4005
        %4551 = vmatpush1.msra.mxu0 %v4004
        %4552 = vmatprep.mubr.f32.mxu0 %v3869
        %4553 = vmatmul.mubr.f32.gmra.mrb[0].mxu0 %v3867
        %v4554 = vpop.f32.mrb[0].mxu0
        %v4555 = vadd.f32 %v4484, %v4554
        %v4556 = vpop.f32.mrb[0].mxu0
        %v4557 = vadd.f32 %v4486, %v4556
        %4558 = vdwg.mxu0
        %4559 = vmatprep.subr.mxu0 %v4007
        %4560 = vmatpush1.msra.mxu0 %v4006
        %4561 = vmatprep.subr.mxu0 %v4009
        %4562 = vmatpush1.msra.mxu0 %v4008
        %4563 = vmatprep.subr.mxu0 %v4011
        %4564 = vmatpush1.msra.mxu0 %v4010
        %4565 = vmatprep.subr.mxu0 %v4013
        %4566 = vmatpush1.msra.mxu0 %v4012
        %4567 = vmatprep.subr.mxu0 %v4015
        %4568 = vmatpush1.msra.mxu0 %v4014
        %4569 = vmatprep.subr.mxu0 %v4017
        %4570 = vmatpush1.msra.mxu0 %v4016
        %4571 = vmatprep.subr.mxu0 %v4019
        %4572 = vmatpush1.msra.mxu0 %v4018
        %4573 = vmatprep.subr.mxu0 %v4021
        %4574 = vmatpush1.msra.mxu0 %v4020
        %4575 = vmatprep.subr.mxu0 %v4023
        %4576 = vmatpush1.msra.mxu0 %v4022
        %4577 = vmatprep.subr.mxu0 %v4025
        %4578 = vmatpush1.msra.mxu0 %v4024
        %4579 = vmatprep.subr.mxu0 %v4027
        %4580 = vmatpush1.msra.mxu0 %v4026
        %4581 = vmatprep.subr.mxu0 %v4029
        %4582 = vmatpush1.msra.mxu0 %v4028
        %4583 = vmatprep.subr.mxu0 %v4031
        %4584 = vmatpush1.msra.mxu0 %v4030
        %4585 = vmatprep.subr.mxu0 %v4033
        %4586 = vmatpush1.msra.mxu0 %v4032
        %4587 = vmatprep.subr.mxu0 %v4035
        %4588 = vmatpush1.msra.mxu0 %v4034
        %4589 = vmatprep.subr.mxu0 %v4037
        %4590 = vmatpush1.msra.mxu0 %v4036
        %4591 = vmatprep.subr.mxu0 %v4039
        %4592 = vmatpush1.msra.mxu0 %v4038
        %4593 = vmatprep.subr.mxu0 %v4041
        %4594 = vmatpush1.msra.mxu0 %v4040
        %4595 = vmatprep.subr.mxu0 %v4043
        %4596 = vmatpush1.msra.mxu0 %v4042
        %4597 = vmatprep.subr.mxu0 %v4045
        %4598 = vmatpush1.msra.mxu0 %v4044
        %4599 = vmatprep.subr.mxu0 %v4047
        %4600 = vmatpush1.msra.mxu0 %v4046
        %4601 = vmatprep.subr.mxu0 %v4049
        %4602 = vmatpush1.msra.mxu0 %v4048
        %4603 = vmatprep.subr.mxu0 %v4051
        %4604 = vmatpush1.msra.mxu0 %v4050
        %4605 = vmatprep.subr.mxu0 %v4053
        %4606 = vmatpush1.msra.mxu0 %v4052
        %4607 = vmatprep.subr.mxu0 %v4055
        %4608 = vmatpush1.msra.mxu0 %v4054
        %4609 = vmatprep.subr.mxu0 %v4057
        %4610 = vmatpush1.msra.mxu0 %v4056
        %4611 = vmatprep.subr.mxu0 %v4059
        %4612 = vmatpush1.msra.mxu0 %v4058
        %4613 = vmatprep.subr.mxu0 %v4061
        %4614 = vmatpush1.msra.mxu0 %v4060
        %4615 = vmatprep.subr.mxu0 %v4063
        %4616 = vmatpush1.msra.mxu0 %v4062
        %4617 = vmatprep.subr.mxu0 %v4065
        %4618 = vmatpush1.msra.mxu0 %v4064
        %4619 = vmatprep.subr.mxu0 %v4067
        %4620 = vmatpush1.msra.mxu0 %v4066
        %4621 = vmatprep.subr.mxu0 %v4069
        %4622 = vmatpush1.msra.mxu0 %v4068
        %4623 = vmatprep.mubr.f32.mxu0 %v3940
        %4624 = vmatmul.mubr.f32.gmra.mrb[0].mxu0 %v3938
        %v4625 = vpop.f32.mrb[0].mxu0
        %v4626 = vadd.f32 %v4555, %v4625
        %v4627 = vpop.f32.mrb[0].mxu0
        %v4628 = vadd.f32 %v4557, %v4627
        %4629 = vdwg.mxu0
        %s4630 = scalar_lea.vmem %s12, 16
        %v4631 = vld [vmem:[%s4630] sm:$0x7f]
        %v4633 = vsel %vm3796, %v4631, 0
        %4635 = vmatprep.subr.mxu0 %v3788
        %4636 = vmatpush1.msra.mxu0 %v3787
        %4637 = vmatprep.subr.mxu0 %v3792
        %4638 = vmatpush1.msra.mxu0 %v3791
        %4639 = vmatprep.subr.mxu0 0.0
        %4640 = vmatpush1.msra.mxu0 0.0
        %4641 = vmatprep.subr.mxu0 0.0
        %4642 = vmatpush1.msra.mxu0 0.0
        %4643 = vmatprep.subr.mxu0 0.0
        %4644 = vmatpush1.msra.mxu0 0.0
        %4645 = vmatprep.subr.mxu0 0.0
        %4646 = vmatpush1.msra.mxu0 0.0
        %4647 = vmatprep.subr.mxu0 0.0
        %4648 = vmatpush1.msra.mxu0 0.0
        %4649 = vmatprep.subr.mxu0 0.0
        %4650 = vmatpush1.msra.mxu0 0.0
        %4651 = vmatprep.subr.mxu0 0.0
        %4652 = vmatpush1.msra.mxu0 0.0
        %4653 = vmatprep.subr.mxu0 0.0
        %4654 = vmatpush1.msra.mxu0 0.0
        %4655 = vmatprep.subr.mxu0 0.0
        %4656 = vmatpush1.msra.mxu0 0.0
        %4657 = vmatprep.subr.mxu0 0.0
        %4658 = vmatpush1.msra.mxu0 0.0
        %4659 = vmatprep.subr.mxu0 0.0
        %4660 = vmatpush1.msra.mxu0 0.0
        %4661 = vmatprep.subr.mxu0 0.0
        %4662 = vmatpush1.msra.mxu0 0.0
        %4663 = vmatprep.subr.mxu0 0.0
        %4664 = vmatpush1.msra.mxu0 0.0
        %4665 = vmatprep.subr.mxu0 0.0
        %4666 = vmatpush1.msra.mxu0 0.0
        %4667 = vmatprep.subr.mxu0 0.0
        %4668 = vmatpush1.msra.mxu0 0.0
        %4669 = vmatprep.subr.mxu0 0.0
        %4670 = vmatpush1.msra.mxu0 0.0
        %4671 = vmatprep.subr.mxu0 0.0
        %4672 = vmatpush1.msra.mxu0 0.0
        %4673 = vmatprep.subr.mxu0 0.0
        %4674 = vmatpush1.msra.mxu0 0.0
        %4675 = vmatprep.subr.mxu0 0.0
        %4676 = vmatpush1.msra.mxu0 0.0
        %4677 = vmatprep.subr.mxu0 0.0
        %4678 = vmatpush1.msra.mxu0 0.0
        %4679 = vmatprep.subr.mxu0 0.0
        %4680 = vmatpush1.msra.mxu0 0.0
        %4681 = vmatprep.subr.mxu0 0.0
        %4682 = vmatpush1.msra.mxu0 0.0
        %4683 = vmatprep.subr.mxu0 0.0
        %4684 = vmatpush1.msra.mxu0 0.0
        %4685 = vmatprep.subr.mxu0 0.0
        %4686 = vmatpush1.msra.mxu0 0.0
        %4687 = vmatprep.subr.mxu0 0.0
        %4688 = vmatpush1.msra.mxu0 0.0
        %4689 = vmatprep.subr.mxu0 0.0
        %4690 = vmatpush1.msra.mxu0 0.0
        %4691 = vmatprep.subr.mxu0 0.0
        %4692 = vmatpush1.msra.mxu0 0.0
        %4693 = vmatprep.subr.mxu0 0.0
        %4694 = vmatpush1.msra.mxu0 0.0
        %4695 = vmatprep.subr.mxu0 0.0
        %4696 = vmatpush1.msra.mxu0 0.0
        %4697 = vmatprep.subr.mxu0 0.0
        %4698 = vmatpush1.msra.mxu0 0.0
        %4699 = vmatprep.mubr.f32.mxu0 0.0
        %4700 = vmatmul.mubr.f32.gmra.mrb[0].mxu0 %v4633
        %v4701 = vpop.f32.mrb[0].mxu0
        %v4702 = vadd.f32 0.0, %v4701
        %v4703 = vpop.f32.mrb[0].mxu0
        %v4704 = vadd.f32 0.0, %v4703
        %4705 = vdwg.mxu0
        %4706 = vmatprep.subr.mxu0 %v3790
        %4707 = vmatpush1.msra.mxu0 %v3789
        %4708 = vmatprep.subr.mxu0 %v3794
        %4709 = vmatpush1.msra.mxu0 %v3793
        %4710 = vmatprep.subr.mxu0 0.0
        %4711 = vmatpush1.msra.mxu0 0.0
        %4712 = vmatprep.subr.mxu0 0.0
        %4713 = vmatpush1.msra.mxu0 0.0
        %4714 = vmatprep.subr.mxu0 0.0
        %4715 = vmatpush1.msra.mxu0 0.0
        %4716 = vmatprep.subr.mxu0 0.0
        %4717 = vmatpush1.msra.mxu0 0.0
        %4718 = vmatprep.subr.mxu0 0.0
        %4719 = vmatpush1.msra.mxu0 0.0
        %4720 = vmatprep.subr.mxu0 0.0
        %4721 = vmatpush1.msra.mxu0 0.0
        %4722 = vmatprep.subr.mxu0 0.0
        %4723 = vmatpush1.msra.mxu0 0.0
        %4724 = vmatprep.subr.mxu0 0.0
        %4725 = vmatpush1.msra.mxu0 0.0
        %4726 = vmatprep.subr.mxu0 0.0
        %4727 = vmatpush1.msra.mxu0 0.0
        %4728 = vmatprep.subr.mxu0 0.0
        %4729 = vmatpush1.msra.mxu0 0.0
        %4730 = vmatprep.subr.mxu0 0.0
        %4731 = vmatpush1.msra.mxu0 0.0
        %4732 = vmatprep.subr.mxu0 0.0
        %4733 = vmatpush1.msra.mxu0 0.0
        %4734 = vmatprep.subr.mxu0 0.0
        %4735 = vmatpush1.msra.mxu0 0.0
        %4736 = vmatprep.subr.mxu0 0.0
        %4737 = vmatpush1.msra.mxu0 0.0
        %4738 = vmatprep.subr.mxu0 0.0
        %4739 = vmatpush1.msra.mxu0 0.0
        %4740 = vmatprep.subr.mxu0 0.0
        %4741 = vmatpush1.msra.mxu0 0.0
        %4742 = vmatprep.subr.mxu0 0.0
        %4743 = vmatpush1.msra.mxu0 0.0
        %4744 = vmatprep.subr.mxu0 0.0
        %4745 = vmatpush1.msra.mxu0 0.0
        %4746 = vmatprep.subr.mxu0 0.0
        %4747 = vmatpush1.msra.mxu0 0.0
        %4748 = vmatprep.subr.mxu0 0.0
        %4749 = vmatpush1.msra.mxu0 0.0
        %4750 = vmatprep.subr.mxu0 0.0
        %4751 = vmatpush1.msra.mxu0 0.0
        %4752 = vmatprep.subr.mxu0 0.0
        %4753 = vmatpush1.msra.mxu0 0.0
        %4754 = vmatprep.subr.mxu0 0.0
        %4755 = vmatpush1.msra.mxu0 0.0
        %4756 = vmatprep.subr.mxu0 0.0
        %4757 = vmatpush1.msra.mxu0 0.0
        %4758 = vmatprep.subr.mxu0 0.0
        %4759 = vmatpush1.msra.mxu0 0.0
        %4760 = vmatprep.subr.mxu0 0.0
        %4761 = vmatpush1.msra.mxu0 0.0
        %4762 = vmatprep.subr.mxu0 0.0
        %4763 = vmatpush1.msra.mxu0 0.0
        %4764 = vmatprep.subr.mxu0 0.0
        %4765 = vmatpush1.msra.mxu0 0.0
        %4766 = vmatprep.subr.mxu0 0.0
        %4767 = vmatpush1.msra.mxu0 0.0
        %4768 = vmatprep.subr.mxu0 0.0
        %4769 = vmatpush1.msra.mxu0 0.0
        %4770 = vmatprep.mubr.f32.mxu0 0.0
        %4771 = vmatmul.mubr.f32.gmra.mrb[0].mxu0 %v4633
        %v4772 = vpop.f32.mrb[0].mxu0
        %v4773 = vadd.f32 0.0, %v4772
        %v4774 = vpop.f32.mrb[0].mxu0
        %v4775 = vadd.f32 0.0, %v4774
        %4776 = vdwg.mxu0
        %s4777 = scalar_lea.vmem %s3, 2048
        %v4778 = vld [vmem:[%s4777] sm:$0xff]
        %v4779 = vld [vmem:[%s4777 + $0x8] sm:$0xff]
        %v4780 = vld [vmem:[%s4777 + $0x10] sm:$0xff]
        %v4781 = vld [vmem:[%s4777 + $0x18] sm:$0xff]
        %v4782 = vld [vmem:[%s4777 + $0x20] sm:$0xff]
        %v4783 = vld [vmem:[%s4777 + $0x28] sm:$0xff]
        %v4784 = vld [vmem:[%s4777 + $0x30] sm:$0xff]
        %v4785 = vld [vmem:[%s4777 + $0x38] sm:$0xff]
        %v4786 = vld [vmem:[%s4777 + $0x40] sm:$0xff]
        %v4787 = vld [vmem:[%s4777 + $0x48] sm:$0xff]
        %v4788 = vld [vmem:[%s4777 + $0x50] sm:$0xff]
        %v4789 = vld [vmem:[%s4777 + $0x58] sm:$0xff]
        %v4790 = vld [vmem:[%s4777 + $0x60] sm:$0xff]
        %v4791 = vld [vmem:[%s4777 + $0x68] sm:$0xff]
        %v4792 = vld [vmem:[%s4777 + $0x70] sm:$0xff]
        %v4793 = vld [vmem:[%s4777 + $0x78] sm:$0xff]
        %v4794 = vld [vmem:[%s4777 + $0x80] sm:$0xff]
        %v4795 = vld [vmem:[%s4777 + $0x88] sm:$0xff]
        %v4796 = vld [vmem:[%s4777 + $0x90] sm:$0xff]
        %v4797 = vld [vmem:[%s4777 + $0x98] sm:$0xff]
        %v4798 = vld [vmem:[%s4777 + $0xa0] sm:$0xff]
        %v4799 = vld [vmem:[%s4777 + $0xa8] sm:$0xff]
        %v4800 = vld [vmem:[%s4777 + $0xb0] sm:$0xff]
        %v4801 = vld [vmem:[%s4777 + $0xb8] sm:$0xff]
        %v4802 = vld [vmem:[%s4777 + $0xc0] sm:$0xff]
        %v4803 = vld [vmem:[%s4777 + $0xc8] sm:$0xff]
        %v4804 = vld [vmem:[%s4777 + $0xd0] sm:$0xff]
        %v4805 = vld [vmem:[%s4777 + $0xd8] sm:$0xff]
        %v4806 = vld [vmem:[%s4777 + $0xe0] sm:$0xff]
        %v4807 = vld [vmem:[%s4777 + $0xe8] sm:$0xff]
        %v4808 = vld [vmem:[%s4777 + $0xf0] sm:$0xff]
        %v4809 = vld [vmem:[%s4777 + $0xf8] sm:$0xff]
        %v4810 = vld [vmem:[%s4777 + $0x100] sm:$0xff]
        %v4811 = vld [vmem:[%s4777 + $0x108] sm:$0xff]
        %v4812 = vld [vmem:[%s4777 + $0x110] sm:$0xff]
        %v4813 = vld [vmem:[%s4777 + $0x118] sm:$0xff]
        %v4814 = vld [vmem:[%s4777 + $0x120] sm:$0xff]
        %v4815 = vld [vmem:[%s4777 + $0x128] sm:$0xff]
        %v4816 = vld [vmem:[%s4777 + $0x130] sm:$0xff]
        %v4817 = vld [vmem:[%s4777 + $0x138] sm:$0xff]
        %v4818 = vld [vmem:[%s4777 + $0x140] sm:$0xff]
        %v4819 = vld [vmem:[%s4777 + $0x148] sm:$0xff]
        %v4820 = vld [vmem:[%s4777 + $0x150] sm:$0xff]
        %v4821 = vld [vmem:[%s4777 + $0x158] sm:$0xff]
        %v4822 = vld [vmem:[%s4777 + $0x160] sm:$0xff]
        %v4823 = vld [vmem:[%s4777 + $0x168] sm:$0xff]
        %v4824 = vld [vmem:[%s4777 + $0x170] sm:$0xff]
        %v4825 = vld [vmem:[%s4777 + $0x178] sm:$0xff]
        %v4826 = vld [vmem:[%s4777 + $0x180] sm:$0xff]
        %v4827 = vld [vmem:[%s4777 + $0x188] sm:$0xff]
        %v4828 = vld [vmem:[%s4777 + $0x190] sm:$0xff]
        %v4829 = vld [vmem:[%s4777 + $0x198] sm:$0xff]
        %v4830 = vld [vmem:[%s4777 + $0x1a0] sm:$0xff]
        %v4831 = vld [vmem:[%s4777 + $0x1a8] sm:$0xff]
        %v4832 = vld [vmem:[%s4777 + $0x1b0] sm:$0xff]
        %v4833 = vld [vmem:[%s4777 + $0x1b8] sm:$0xff]
        %v4834 = vld [vmem:[%s4777 + $0x1c0] sm:$0xff]
        %v4835 = vld [vmem:[%s4777 + $0x1c8] sm:$0xff]
        %v4836 = vld [vmem:[%s4777 + $0x1d0] sm:$0xff]
        %v4837 = vld [vmem:[%s4777 + $0x1d8] sm:$0xff]
        %v4838 = vld [vmem:[%s4777 + $0x1e0] sm:$0xff]
        %v4839 = vld [vmem:[%s4777 + $0x1e8] sm:$0xff]
        %v4840 = vld [vmem:[%s4777 + $0x1f0] sm:$0xff]
        %v4841 = vld [vmem:[%s4777 + $0x1f8] sm:$0xff]
        %v4842 = vld [vmem:[%s4777 + $0x200] sm:$0xff]
        %v4843 = vld [vmem:[%s4777 + $0x208] sm:$0xff]
        %v4844 = vld [vmem:[%s4777 + $0x210] sm:$0xff]
        %v4845 = vld [vmem:[%s4777 + $0x218] sm:$0xff]
        %v4846 = vld [vmem:[%s4777 + $0x220] sm:$0xff]
        %v4847 = vld [vmem:[%s4777 + $0x228] sm:$0xff]
        %v4848 = vld [vmem:[%s4777 + $0x230] sm:$0xff]
        %v4849 = vld [vmem:[%s4777 + $0x238] sm:$0xff]
        %v4850 = vld [vmem:[%s4777 + $0x240] sm:$0xff]
        %v4851 = vld [vmem:[%s4777 + $0x248] sm:$0xff]
        %v4852 = vld [vmem:[%s4777 + $0x250] sm:$0xff]
        %v4853 = vld [vmem:[%s4777 + $0x258] sm:$0xff]
        %v4854 = vld [vmem:[%s4777 + $0x260] sm:$0xff]
        %v4855 = vld [vmem:[%s4777 + $0x268] sm:$0xff]
        %v4856 = vld [vmem:[%s4777 + $0x270] sm:$0xff]
        %v4857 = vld [vmem:[%s4777 + $0x278] sm:$0xff]
        %v4858 = vld [vmem:[%s4777 + $0x280] sm:$0xff]
        %v4859 = vld [vmem:[%s4777 + $0x288] sm:$0xff]
        %v4860 = vld [vmem:[%s4777 + $0x290] sm:$0xff]
        %v4861 = vld [vmem:[%s4777 + $0x298] sm:$0xff]
        %v4862 = vld [vmem:[%s4777 + $0x2a0] sm:$0xff]
        %v4863 = vld [vmem:[%s4777 + $0x2a8] sm:$0xff]
        %v4864 = vld [vmem:[%s4777 + $0x2b0] sm:$0xff]
        %v4865 = vld [vmem:[%s4777 + $0x2b8] sm:$0xff]
        %v4866 = vld [vmem:[%s4777 + $0x2c0] sm:$0xff]
        %v4867 = vld [vmem:[%s4777 + $0x2c8] sm:$0xff]
        %v4868 = vld [vmem:[%s4777 + $0x2d0] sm:$0xff]
        %v4869 = vld [vmem:[%s4777 + $0x2d8] sm:$0xff]
        %v4870 = vld [vmem:[%s4777 + $0x2e0] sm:$0xff]
        %v4871 = vld [vmem:[%s4777 + $0x2e8] sm:$0xff]
        %v4872 = vld [vmem:[%s4777 + $0x2f0] sm:$0xff]
        %v4873 = vld [vmem:[%s4777 + $0x2f8] sm:$0xff]
        %v4874 = vld [vmem:[%s4777 + $0x300] sm:$0xff]
        %v4875 = vld [vmem:[%s4777 + $0x308] sm:$0xff]
        %v4876 = vld [vmem:[%s4777 + $0x310] sm:$0xff]
        %v4877 = vld [vmem:[%s4777 + $0x318] sm:$0xff]
        %v4878 = vld [vmem:[%s4777 + $0x320] sm:$0xff]
        %v4879 = vld [vmem:[%s4777 + $0x328] sm:$0xff]
        %v4880 = vld [vmem:[%s4777 + $0x330] sm:$0xff]
        %v4881 = vld [vmem:[%s4777 + $0x338] sm:$0xff]
        %v4882 = vld [vmem:[%s4777 + $0x340] sm:$0xff]
        %v4883 = vld [vmem:[%s4777 + $0x348] sm:$0xff]
        %v4884 = vld [vmem:[%s4777 + $0x350] sm:$0xff]
        %v4885 = vld [vmem:[%s4777 + $0x358] sm:$0xff]
        %v4886 = vld [vmem:[%s4777 + $0x360] sm:$0xff]
        %v4887 = vld [vmem:[%s4777 + $0x368] sm:$0xff]
        %v4888 = vld [vmem:[%s4777 + $0x370] sm:$0xff]
        %v4889 = vld [vmem:[%s4777 + $0x378] sm:$0xff]
        %v4890 = vld [vmem:[%s4777 + $0x380] sm:$0xff]
        %v4891 = vld [vmem:[%s4777 + $0x388] sm:$0xff]
        %v4892 = vld [vmem:[%s4777 + $0x390] sm:$0xff]
        %v4893 = vld [vmem:[%s4777 + $0x398] sm:$0xff]
        %v4894 = vld [vmem:[%s4777 + $0x3a0] sm:$0xff]
        %v4895 = vld [vmem:[%s4777 + $0x3a8] sm:$0xff]
        %v4896 = vld [vmem:[%s4777 + $0x3b0] sm:$0xff]
        %v4897 = vld [vmem:[%s4777 + $0x3b8] sm:$0xff]
        %v4898 = vld [vmem:[%s4777 + $0x3c0] sm:$0xff]
        %v4899 = vld [vmem:[%s4777 + $0x3c8] sm:$0xff]
        %v4900 = vld [vmem:[%s4777 + $0x3d0] sm:$0xff]
        %v4901 = vld [vmem:[%s4777 + $0x3d8] sm:$0xff]
        %v4902 = vld [vmem:[%s4777 + $0x3e0] sm:$0xff]
        %v4903 = vld [vmem:[%s4777 + $0x3e8] sm:$0xff]
        %v4904 = vld [vmem:[%s4777 + $0x3f0] sm:$0xff]
        %v4905 = vld [vmem:[%s4777 + $0x3f8] sm:$0xff]
        %4906 = vmatprep.subr.mxu0 %v4779
        %4907 = vmatpush1.msra.mxu0 %v4778
        %4908 = vmatprep.subr.mxu0 %v4781
        %4909 = vmatpush1.msra.mxu0 %v4780
        %4910 = vmatprep.subr.mxu0 %v4783
        %4911 = vmatpush1.msra.mxu0 %v4782
        %4912 = vmatprep.subr.mxu0 %v4785
        %4913 = vmatpush1.msra.mxu0 %v4784
        %4914 = vmatprep.subr.mxu0 %v4787
        %4915 = vmatpush1.msra.mxu0 %v4786
        %4916 = vmatprep.subr.mxu0 %v4789
        %4917 = vmatpush1.msra.mxu0 %v4788
        %4918 = vmatprep.subr.mxu0 %v4791
        %4919 = vmatpush1.msra.mxu0 %v4790
        %4920 = vmatprep.subr.mxu0 %v4793
        %4921 = vmatpush1.msra.mxu0 %v4792
        %4922 = vmatprep.subr.mxu0 %v4795
        %4923 = vmatpush1.msra.mxu0 %v4794
        %4924 = vmatprep.subr.mxu0 %v4797
        %4925 = vmatpush1.msra.mxu0 %v4796
        %4926 = vmatprep.subr.mxu0 %v4799
        %4927 = vmatpush1.msra.mxu0 %v4798
        %4928 = vmatprep.subr.mxu0 %v4801
        %4929 = vmatpush1.msra.mxu0 %v4800
        %4930 = vmatprep.subr.mxu0 %v4803
        %4931 = vmatpush1.msra.mxu0 %v4802
        %4932 = vmatprep.subr.mxu0 %v4805
        %4933 = vmatpush1.msra.mxu0 %v4804
        %4934 = vmatprep.subr.mxu0 %v4807
        %4935 = vmatpush1.msra.mxu0 %v4806
        %4936 = vmatprep.subr.mxu0 %v4809
        %4937 = vmatpush1.msra.mxu0 %v4808
        %4938 = vmatprep.subr.mxu0 %v4811
        %4939 = vmatpush1.msra.mxu0 %v4810
        %4940 = vmatprep.subr.mxu0 %v4813
        %4941 = vmatpush1.msra.mxu0 %v4812
        %4942 = vmatprep.subr.mxu0 %v4815
        %4943 = vmatpush1.msra.mxu0 %v4814
        %4944 = vmatprep.subr.mxu0 %v4817
        %4945 = vmatpush1.msra.mxu0 %v4816
        %4946 = vmatprep.subr.mxu0 %v4819
        %4947 = vmatpush1.msra.mxu0 %v4818
        %4948 = vmatprep.subr.mxu0 %v4821
        %4949 = vmatpush1.msra.mxu0 %v4820
        %4950 = vmatprep.subr.mxu0 %v4823
        %4951 = vmatpush1.msra.mxu0 %v4822
        %4952 = vmatprep.subr.mxu0 %v4825
        %4953 = vmatpush1.msra.mxu0 %v4824
        %4954 = vmatprep.subr.mxu0 %v4827
        %4955 = vmatpush1.msra.mxu0 %v4826
        %4956 = vmatprep.subr.mxu0 %v4829
        %4957 = vmatpush1.msra.mxu0 %v4828
        %4958 = vmatprep.subr.mxu0 %v4831
        %4959 = vmatpush1.msra.mxu0 %v4830
        %4960 = vmatprep.subr.mxu0 %v4833
        %4961 = vmatpush1.msra.mxu0 %v4832
        %4962 = vmatprep.subr.mxu0 %v4835
        %4963 = vmatpush1.msra.mxu0 %v4834
        %4964 = vmatprep.subr.mxu0 %v4837
        %4965 = vmatpush1.msra.mxu0 %v4836
        %4966 = vmatprep.subr.mxu0 %v4839
        %4967 = vmatpush1.msra.mxu0 %v4838
        %4968 = vmatprep.subr.mxu0 %v4841
        %4969 = vmatpush1.msra.mxu0 %v4840
        %4970 = vmatprep.mubr.f32.mxu0 %v4704
        %4971 = vmatmul.mubr.f32.gmra.mrb[0].mxu0 %v4702
        %v4972 = vpop.f32.mrb[0].mxu0
        %v4973 = vadd.f32 0.0, %v4972
        %v4974 = vpop.f32.mrb[0].mxu0
        %v4975 = vadd.f32 0.0, %v4974
        %4976 = vdwg.mxu0
        %4977 = vmatprep.subr.mxu0 %v4843
        %4978 = vmatpush1.msra.mxu0 %v4842
        %4979 = vmatprep.subr.mxu0 %v4845
        %4980 = vmatpush1.msra.mxu0 %v4844
        %4981 = vmatprep.subr.mxu0 %v4847
        %4982 = vmatpush1.msra.mxu0 %v4846
        %4983 = vmatprep.subr.mxu0 %v4849
        %4984 = vmatpush1.msra.mxu0 %v4848
        %4985 = vmatprep.subr.mxu0 %v4851
        %4986 = vmatpush1.msra.mxu0 %v4850
        %4987 = vmatprep.subr.mxu0 %v4853
        %4988 = vmatpush1.msra.mxu0 %v4852
        %4989 = vmatprep.subr.mxu0 %v4855
        %4990 = vmatpush1.msra.mxu0 %v4854
        %4991 = vmatprep.subr.mxu0 %v4857
        %4992 = vmatpush1.msra.mxu0 %v4856
        %4993 = vmatprep.subr.mxu0 %v4859
        %4994 = vmatpush1.msra.mxu0 %v4858
        %4995 = vmatprep.subr.mxu0 %v4861
        %4996 = vmatpush1.msra.mxu0 %v4860
        %4997 = vmatprep.subr.mxu0 %v4863
        %4998 = vmatpush1.msra.mxu0 %v4862
        %4999 = vmatprep.subr.mxu0 %v4865
        %5000 = vmatpush1.msra.mxu0 %v4864
        %5001 = vmatprep.subr.mxu0 %v4867
        %5002 = vmatpush1.msra.mxu0 %v4866
        %5003 = vmatprep.subr.mxu0 %v4869
        %5004 = vmatpush1.msra.mxu0 %v4868
        %5005 = vmatprep.subr.mxu0 %v4871
        %5006 = vmatpush1.msra.mxu0 %v4870
        %5007 = vmatprep.subr.mxu0 %v4873
        %5008 = vmatpush1.msra.mxu0 %v4872
        %5009 = vmatprep.subr.mxu0 %v4875
        %5010 = vmatpush1.msra.mxu0 %v4874
        %5011 = vmatprep.subr.mxu0 %v4877
        %5012 = vmatpush1.msra.mxu0 %v4876
        %5013 = vmatprep.subr.mxu0 %v4879
        %5014 = vmatpush1.msra.mxu0 %v4878
        %5015 = vmatprep.subr.mxu0 %v4881
        %5016 = vmatpush1.msra.mxu0 %v4880
        %5017 = vmatprep.subr.mxu0 %v4883
        %5018 = vmatpush1.msra.mxu0 %v4882
        %5019 = vmatprep.subr.mxu0 %v4885
        %5020 = vmatpush1.msra.mxu0 %v4884
        %5021 = vmatprep.subr.mxu0 %v4887
        %5022 = vmatpush1.msra.mxu0 %v4886
        %5023 = vmatprep.subr.mxu0 %v4889
        %5024 = vmatpush1.msra.mxu0 %v4888
        %5025 = vmatprep.subr.mxu0 %v4891
        %5026 = vmatpush1.msra.mxu0 %v4890
        %5027 = vmatprep.subr.mxu0 %v4893
        %5028 = vmatpush1.msra.mxu0 %v4892
        %5029 = vmatprep.subr.mxu0 %v4895
        %5030 = vmatpush1.msra.mxu0 %v4894
        %5031 = vmatprep.subr.mxu0 %v4897
        %5032 = vmatpush1.msra.mxu0 %v4896
        %5033 = vmatprep.subr.mxu0 %v4899
        %5034 = vmatpush1.msra.mxu0 %v4898
        %5035 = vmatprep.subr.mxu0 %v4901
        %5036 = vmatpush1.msra.mxu0 %v4900
        %5037 = vmatprep.subr.mxu0 %v4903
        %5038 = vmatpush1.msra.mxu0 %v4902
        %5039 = vmatprep.subr.mxu0 %v4905
        %5040 = vmatpush1.msra.mxu0 %v4904
        %5041 = vmatprep.mubr.f32.mxu0 %v4775
        %5042 = vmatmul.mubr.f32.gmra.mrb[0].mxu0 %v4773
        %v5043 = vpop.f32.mrb[0].mxu0
        %v5044 = vadd.f32 %v4973, %v5043
        %v5045 = vpop.f32.mrb[0].mxu0
        %v5046 = vadd.f32 %v4975, %v5045
        %5047 = vdwg.mxu0
        %v5048 = vadd.f32 %v4626, %v5044
        %v5049 = vadd.f32 %v4628, %v5046
        %v5050 = vld [vmem:[%s8] ss:$2 sm:$0x3]
        %v5052 = vlaneseq
        %v5053 = vshrl.u32 %v5052, 7
        %v5054 = vsub.s32 0, %v5053
        %v5055 = vrot.slane %v5050, %v5054
        %v5056 = vlaneseq
        %v5057 = vshrl.u32 %v5056, 7
        %v5058 = vsub.s32 1, %v5057
        %v5059 = vrot.slane %v5050, %v5058
        %v5062 = vmul.f32 %v5048, %v5055
        %v5063 = vmul.f32 %v5049, %v5059
        %s5064 = scalar_lea.vmem %s8, 1
        %v5065 = vld [vmem:[%s5064] ss:$2 sm:$0x3]
        %v5067 = vlaneseq
        %v5068 = vshrl.u32 %v5067, 7
        %v5069 = vsub.s32 0, %v5068
        %v5070 = vrot.slane %v5065, %v5069
        %v5071 = vlaneseq
        %v5072 = vshrl.u32 %v5071, 7
        %v5073 = vsub.s32 1, %v5072
        %v5074 = vrot.slane %v5065, %v5073
        %v5077 = vadd.f32 %v5062, %v5070
        %v5078 = vadd.f32 %v5063, %v5074
        %vm5079 = vcmp.gt.f32.partialorder %v5077, 0.0
        %vm5080 = vcmp.gt.f32.partialorder %v5078, 0.0
        %v5081 = vmul.f32 %v5077, 0.1
        %v5082 = vmul.f32 %v5078, 0.1
        %v5083 = vsel %vm5079, %v5077, %v5081
        %v5084 = vsel %vm5080, %v5078, %v5082
        %v5087 = vrot.slane %v5083, 7
        %v5088 = vrot.slane %v5084, 7
        %5091 = vst [vmem:[#allocation5] sm:$0xfe] %v5087
        %5092 = vst.msk [vmem:[#allocation5 + $0x8] sm:$0xfe] %vm627, %v5088
        %v5093 = vld [vmem:[#allocation5] sm:$0x7f]
        %v5094 = vld [vmem:[#allocation5 + $0x8] sm:$0x7f]
        %v5095 = vld [vmem:[#allocation5 + $0x10] sm:$0x7f]
        %v5096 = vld [vmem:[%s4] sm:$0xff]
        %v5097 = vld [vmem:[%s4 + $0x8] sm:$0xff]
        %v5098 = vld [vmem:[%s4 + $0x10] sm:$0xff]
        %v5099 = vld [vmem:[%s4 + $0x18] sm:$0xff]
        %v5100 = vld [vmem:[%s4 + $0x20] sm:$0xff]
        %v5101 = vld [vmem:[%s4 + $0x28] sm:$0xff]
        %v5102 = vld [vmem:[%s4 + $0x30] sm:$0xff]
        %v5103 = vld [vmem:[%s4 + $0x38] sm:$0xff]
        %v5104 = vld [vmem:[%s4 + $0x40] sm:$0xff]
        %v5105 = vld [vmem:[%s4 + $0x48] sm:$0xff]
        %v5106 = vld [vmem:[%s4 + $0x50] sm:$0xff]
        %v5107 = vld [vmem:[%s4 + $0x58] sm:$0xff]
        %v5108 = vld [vmem:[%s4 + $0x60] sm:$0xff]
        %v5109 = vld [vmem:[%s4 + $0x68] sm:$0xff]
        %v5110 = vld [vmem:[%s4 + $0x70] sm:$0xff]
        %v5111 = vld [vmem:[%s4 + $0x78] sm:$0xff]
        %v5112 = vld [vmem:[%s4 + $0x80] sm:$0xff]
        %v5113 = vld [vmem:[%s4 + $0x88] sm:$0xff]
        %v5114 = vld [vmem:[%s4 + $0x90] sm:$0xff]
        %v5115 = vld [vmem:[%s4 + $0x98] sm:$0xff]
        %v5116 = vld [vmem:[%s4 + $0xa0] sm:$0xff]
        %v5117 = vld [vmem:[%s4 + $0xa8] sm:$0xff]
        %v5118 = vld [vmem:[%s4 + $0xb0] sm:$0xff]
        %v5119 = vld [vmem:[%s4 + $0xb8] sm:$0xff]
        %v5120 = vld [vmem:[%s4 + $0xc0] sm:$0xff]
        %v5121 = vld [vmem:[%s4 + $0xc8] sm:$0xff]
        %v5122 = vld [vmem:[%s4 + $0xd0] sm:$0xff]
        %v5123 = vld [vmem:[%s4 + $0xd8] sm:$0xff]
        %v5124 = vld [vmem:[%s4 + $0xe0] sm:$0xff]
        %v5125 = vld [vmem:[%s4 + $0xe8] sm:$0xff]
        %v5126 = vld [vmem:[%s4 + $0xf0] sm:$0xff]
        %v5127 = vld [vmem:[%s4 + $0xf8] sm:$0xff]
        %v5128 = vld [vmem:[%s4 + $0x100] sm:$0xff]
        %v5129 = vld [vmem:[%s4 + $0x108] sm:$0xff]
        %v5130 = vld [vmem:[%s4 + $0x110] sm:$0xff]
        %v5131 = vld [vmem:[%s4 + $0x118] sm:$0xff]
        %v5132 = vld [vmem:[%s4 + $0x120] sm:$0xff]
        %v5133 = vld [vmem:[%s4 + $0x128] sm:$0xff]
        %v5134 = vld [vmem:[%s4 + $0x130] sm:$0xff]
        %v5135 = vld [vmem:[%s4 + $0x138] sm:$0xff]
        %v5136 = vld [vmem:[%s4 + $0x140] sm:$0xff]
        %v5137 = vld [vmem:[%s4 + $0x148] sm:$0xff]
        %v5138 = vld [vmem:[%s4 + $0x150] sm:$0xff]
        %v5139 = vld [vmem:[%s4 + $0x158] sm:$0xff]
        %v5140 = vld [vmem:[%s4 + $0x160] sm:$0xff]
        %v5141 = vld [vmem:[%s4 + $0x168] sm:$0xff]
        %v5142 = vld [vmem:[%s4 + $0x170] sm:$0xff]
        %v5143 = vld [vmem:[%s4 + $0x178] sm:$0xff]
        %v5144 = vld [vmem:[%s4 + $0x180] sm:$0xff]
        %v5145 = vld [vmem:[%s4 + $0x188] sm:$0xff]
        %v5146 = vld [vmem:[%s4 + $0x190] sm:$0xff]
        %v5147 = vld [vmem:[%s4 + $0x198] sm:$0xff]
        %v5148 = vld [vmem:[%s4 + $0x1a0] sm:$0xff]
        %v5149 = vld [vmem:[%s4 + $0x1a8] sm:$0xff]
        %v5150 = vld [vmem:[%s4 + $0x1b0] sm:$0xff]
        %v5151 = vld [vmem:[%s4 + $0x1b8] sm:$0xff]
        %v5152 = vld [vmem:[%s4 + $0x1c0] sm:$0xff]
        %v5153 = vld [vmem:[%s4 + $0x1c8] sm:$0xff]
        %v5154 = vld [vmem:[%s4 + $0x1d0] sm:$0xff]
        %v5155 = vld [vmem:[%s4 + $0x1d8] sm:$0xff]
        %v5156 = vld [vmem:[%s4 + $0x1e0] sm:$0xff]
        %v5157 = vld [vmem:[%s4 + $0x1e8] sm:$0xff]
        %v5158 = vld [vmem:[%s4 + $0x1f0] sm:$0xff]
        %v5159 = vld [vmem:[%s4 + $0x1f8] sm:$0xff]
        %v5160 = vld [vmem:[%s4 + $0x200] sm:$0xff]
        %v5161 = vld [vmem:[%s4 + $0x208] sm:$0xff]
        %v5162 = vld [vmem:[%s4 + $0x210] sm:$0xff]
        %v5163 = vld [vmem:[%s4 + $0x218] sm:$0xff]
        %v5164 = vld [vmem:[%s4 + $0x220] sm:$0xff]
        %v5165 = vld [vmem:[%s4 + $0x228] sm:$0xff]
        %v5166 = vld [vmem:[%s4 + $0x230] sm:$0xff]
        %v5167 = vld [vmem:[%s4 + $0x238] sm:$0xff]
        %v5168 = vld [vmem:[#allocation5] sm:$0xfe]
        %v5169 = vld [vmem:[#allocation5 + $0x8] sm:$0xfe]
        %v5170 = vld [vmem:[#allocation5 + $0x10] sm:$0xfe]
        %s5171 = scalar_lea.vmem %s4, 576
        %v5172 = vld [vmem:[%s5171] sm:$0xff]
        %v5173 = vld [vmem:[%s5171 + $0x8] sm:$0xff]
        %v5174 = vld [vmem:[%s5171 + $0x10] sm:$0xff]
        %v5175 = vld [vmem:[%s5171 + $0x18] sm:$0xff]
        %v5176 = vld [vmem:[%s5171 + $0x20] sm:$0xff]
        %v5177 = vld [vmem:[%s5171 + $0x28] sm:$0xff]
        %v5178 = vld [vmem:[%s5171 + $0x30] sm:$0xff]
        %v5179 = vld [vmem:[%s5171 + $0x38] sm:$0xff]
        %v5180 = vld [vmem:[%s5171 + $0x40] sm:$0xff]
        %v5181 = vld [vmem:[%s5171 + $0x48] sm:$0xff]
        %v5182 = vld [vmem:[%s5171 + $0x50] sm:$0xff]
        %v5183 = vld [vmem:[%s5171 + $0x58] sm:$0xff]
        %v5184 = vld [vmem:[%s5171 + $0x60] sm:$0xff]
        %v5185 = vld [vmem:[%s5171 + $0x68] sm:$0xff]
        %v5186 = vld [vmem:[%s5171 + $0x70] sm:$0xff]
        %v5187 = vld [vmem:[%s5171 + $0x78] sm:$0xff]
        %v5188 = vld [vmem:[%s5171 + $0x80] sm:$0xff]
        %v5189 = vld [vmem:[%s5171 + $0x88] sm:$0xff]
        %v5190 = vld [vmem:[%s5171 + $0x90] sm:$0xff]
        %v5191 = vld [vmem:[%s5171 + $0x98] sm:$0xff]
        %v5192 = vld [vmem:[%s5171 + $0xa0] sm:$0xff]
        %v5193 = vld [vmem:[%s5171 + $0xa8] sm:$0xff]
        %v5194 = vld [vmem:[%s5171 + $0xb0] sm:$0xff]
        %v5195 = vld [vmem:[%s5171 + $0xb8] sm:$0xff]
        %v5196 = vld [vmem:[%s5171 + $0xc0] sm:$0xff]
        %v5197 = vld [vmem:[%s5171 + $0xc8] sm:$0xff]
        %v5198 = vld [vmem:[%s5171 + $0xd0] sm:$0xff]
        %v5199 = vld [vmem:[%s5171 + $0xd8] sm:$0xff]
        %v5200 = vld [vmem:[%s5171 + $0xe0] sm:$0xff]
        %v5201 = vld [vmem:[%s5171 + $0xe8] sm:$0xff]
        %v5202 = vld [vmem:[%s5171 + $0xf0] sm:$0xff]
        %v5203 = vld [vmem:[%s5171 + $0xf8] sm:$0xff]
        %v5204 = vld [vmem:[%s5171 + $0x100] sm:$0xff]
        %v5205 = vld [vmem:[%s5171 + $0x108] sm:$0xff]
        %v5206 = vld [vmem:[%s5171 + $0x110] sm:$0xff]
        %v5207 = vld [vmem:[%s5171 + $0x118] sm:$0xff]
        %v5208 = vld [vmem:[%s5171 + $0x120] sm:$0xff]
        %v5209 = vld [vmem:[%s5171 + $0x128] sm:$0xff]
        %v5210 = vld [vmem:[%s5171 + $0x130] sm:$0xff]
        %v5211 = vld [vmem:[%s5171 + $0x138] sm:$0xff]
        %v5212 = vld [vmem:[%s5171 + $0x140] sm:$0xff]
        %v5213 = vld [vmem:[%s5171 + $0x148] sm:$0xff]
        %v5214 = vld [vmem:[%s5171 + $0x150] sm:$0xff]
        %v5215 = vld [vmem:[%s5171 + $0x158] sm:$0xff]
        %v5216 = vld [vmem:[%s5171 + $0x160] sm:$0xff]
        %v5217 = vld [vmem:[%s5171 + $0x168] sm:$0xff]
        %v5218 = vld [vmem:[%s5171 + $0x170] sm:$0xff]
        %v5219 = vld [vmem:[%s5171 + $0x178] sm:$0xff]
        %v5220 = vld [vmem:[%s5171 + $0x180] sm:$0xff]
        %v5221 = vld [vmem:[%s5171 + $0x188] sm:$0xff]
        %v5222 = vld [vmem:[%s5171 + $0x190] sm:$0xff]
        %v5223 = vld [vmem:[%s5171 + $0x198] sm:$0xff]
        %v5224 = vld [vmem:[%s5171 + $0x1a0] sm:$0xff]
        %v5225 = vld [vmem:[%s5171 + $0x1a8] sm:$0xff]
        %v5226 = vld [vmem:[%s5171 + $0x1b0] sm:$0xff]
        %v5227 = vld [vmem:[%s5171 + $0x1b8] sm:$0xff]
        %v5228 = vld [vmem:[%s5171 + $0x1c0] sm:$0xff]
        %v5229 = vld [vmem:[%s5171 + $0x1c8] sm:$0xff]
        %v5230 = vld [vmem:[%s5171 + $0x1d0] sm:$0xff]
        %v5231 = vld [vmem:[%s5171 + $0x1d8] sm:$0xff]
        %v5232 = vld [vmem:[%s5171 + $0x1e0] sm:$0xff]
        %v5233 = vld [vmem:[%s5171 + $0x1e8] sm:$0xff]
        %v5234 = vld [vmem:[%s5171 + $0x1f0] sm:$0xff]
        %v5235 = vld [vmem:[%s5171 + $0x1f8] sm:$0xff]
        %v5236 = vld [vmem:[%s5171 + $0x200] sm:$0xff]
        %v5237 = vld [vmem:[%s5171 + $0x208] sm:$0xff]
        %v5238 = vld [vmem:[%s5171 + $0x210] sm:$0xff]
        %v5239 = vld [vmem:[%s5171 + $0x218] sm:$0xff]
        %v5240 = vld [vmem:[%s5171 + $0x220] sm:$0xff]
        %v5241 = vld [vmem:[%s5171 + $0x228] sm:$0xff]
        %v5242 = vld [vmem:[%s5171 + $0x230] sm:$0xff]
        %v5243 = vld [vmem:[%s5171 + $0x238] sm:$0xff]
        %v5247 = vrot.slane %v5168, 1
        %v5248 = vrot.slane %v5169, 1
        %v5249 = vrot.slane %v5170, 1
        %v5252 = vsel %vm575, %v5249, 0
        %5254 = vmatprep.subr.mxu0 %v5173
        %5255 = vmatpush1.msra.mxu0 %v5172
        %5256 = vmatprep.subr.mxu0 %v5175
        %5257 = vmatpush1.msra.mxu0 %v5174
        %5258 = vmatprep.subr.mxu0 %v5177
        %5259 = vmatpush1.msra.mxu0 %v5176
        %5260 = vmatprep.subr.mxu0 %v5179
        %5261 = vmatpush1.msra.mxu0 %v5178
        %5262 = vmatprep.subr.mxu0 %v5181
        %5263 = vmatpush1.msra.mxu0 %v5180
        %5264 = vmatprep.subr.mxu0 %v5183
        %5265 = vmatpush1.msra.mxu0 %v5182
        %5266 = vmatprep.subr.mxu0 %v5185
        %5267 = vmatpush1.msra.mxu0 %v5184
        %5268 = vmatprep.subr.mxu0 %v5187
        %5269 = vmatpush1.msra.mxu0 %v5186
        %5270 = vmatprep.subr.mxu0 %v5189
        %5271 = vmatpush1.msra.mxu0 %v5188
        %5272 = vmatprep.subr.mxu0 %v5191
        %5273 = vmatpush1.msra.mxu0 %v5190
        %5274 = vmatprep.subr.mxu0 %v5193
        %5275 = vmatpush1.msra.mxu0 %v5192
        %5276 = vmatprep.subr.mxu0 %v5195
        %5277 = vmatpush1.msra.mxu0 %v5194
        %5278 = vmatprep.subr.mxu0 %v5197
        %5279 = vmatpush1.msra.mxu0 %v5196
        %5280 = vmatprep.subr.mxu0 %v5199
        %5281 = vmatpush1.msra.mxu0 %v5198
        %5282 = vmatprep.subr.mxu0 %v5201
        %5283 = vmatpush1.msra.mxu0 %v5200
        %5284 = vmatprep.subr.mxu0 %v5203
        %5285 = vmatpush1.msra.mxu0 %v5202
        %5286 = vmatprep.subr.mxu0 %v5205
        %5287 = vmatpush1.msra.mxu0 %v5204
        %5288 = vmatprep.subr.mxu0 %v5207
        %5289 = vmatpush1.msra.mxu0 %v5206
        %5290 = vmatprep.subr.mxu0 %v5209
        %5291 = vmatpush1.msra.mxu0 %v5208
        %5292 = vmatprep.subr.mxu0 %v5211
        %5293 = vmatpush1.msra.mxu0 %v5210
        %5294 = vmatprep.subr.mxu0 %v5213
        %5295 = vmatpush1.msra.mxu0 %v5212
        %5296 = vmatprep.subr.mxu0 %v5215
        %5297 = vmatpush1.msra.mxu0 %v5214
        %5298 = vmatprep.subr.mxu0 %v5217
        %5299 = vmatpush1.msra.mxu0 %v5216
        %5300 = vmatprep.subr.mxu0 %v5219
        %5301 = vmatpush1.msra.mxu0 %v5218
        %5302 = vmatprep.subr.mxu0 %v5221
        %5303 = vmatpush1.msra.mxu0 %v5220
        %5304 = vmatprep.subr.mxu0 %v5223
        %5305 = vmatpush1.msra.mxu0 %v5222
        %5306 = vmatprep.subr.mxu0 %v5225
        %5307 = vmatpush1.msra.mxu0 %v5224
        %5308 = vmatprep.subr.mxu0 %v5227
        %5309 = vmatpush1.msra.mxu0 %v5226
        %5310 = vmatprep.subr.mxu0 %v5229
        %5311 = vmatpush1.msra.mxu0 %v5228
        %5312 = vmatprep.subr.mxu0 %v5231
        %5313 = vmatpush1.msra.mxu0 %v5230
        %5314 = vmatprep.subr.mxu0 %v5233
        %5315 = vmatpush1.msra.mxu0 %v5232
        %5316 = vmatprep.subr.mxu0 %v5235
        %5317 = vmatpush1.msra.mxu0 %v5234
        %5318 = vmatprep.mubr.f32.mxu0 %v5248
        %5319 = vmatmul.mubr.f32.gmra.mrb[0].mxu0 %v5247
        %v5320 = vpop.f32.mrb[0].mxu0
        %v5321 = vadd.f32 0.0, %v5320
        %v5322 = vpop.f32.mrb[0].mxu0
        %v5323 = vadd.f32 0.0, %v5322
        %5324 = vdwg.mxu0
        %5325 = vmatprep.subr.mxu0 %v5237
        %5326 = vmatpush1.msra.mxu0 %v5236
        %5327 = vmatprep.subr.mxu0 %v5239
        %5328 = vmatpush1.msra.mxu0 %v5238
        %5329 = vmatprep.subr.mxu0 %v5241
        %5330 = vmatpush1.msra.mxu0 %v5240
        %5331 = vmatprep.subr.mxu0 %v5243
        %5332 = vmatpush1.msra.mxu0 %v5242
        %5333 = vmatprep.subr.mxu0 0.0
        %5334 = vmatpush1.msra.mxu0 0.0
        %5335 = vmatprep.subr.mxu0 0.0
        %5336 = vmatpush1.msra.mxu0 0.0
        %5337 = vmatprep.subr.mxu0 0.0
        %5338 = vmatpush1.msra.mxu0 0.0
        %5339 = vmatprep.subr.mxu0 0.0
        %5340 = vmatpush1.msra.mxu0 0.0
        %5341 = vmatprep.subr.mxu0 0.0
        %5342 = vmatpush1.msra.mxu0 0.0
        %5343 = vmatprep.subr.mxu0 0.0
        %5344 = vmatpush1.msra.mxu0 0.0
        %5345 = vmatprep.subr.mxu0 0.0
        %5346 = vmatpush1.msra.mxu0 0.0
        %5347 = vmatprep.subr.mxu0 0.0
        %5348 = vmatpush1.msra.mxu0 0.0
        %5349 = vmatprep.subr.mxu0 0.0
        %5350 = vmatpush1.msra.mxu0 0.0
        %5351 = vmatprep.subr.mxu0 0.0
        %5352 = vmatpush1.msra.mxu0 0.0
        %5353 = vmatprep.subr.mxu0 0.0
        %5354 = vmatpush1.msra.mxu0 0.0
        %5355 = vmatprep.subr.mxu0 0.0
        %5356 = vmatpush1.msra.mxu0 0.0
        %5357 = vmatprep.subr.mxu0 0.0
        %5358 = vmatpush1.msra.mxu0 0.0
        %5359 = vmatprep.subr.mxu0 0.0
        %5360 = vmatpush1.msra.mxu0 0.0
        %5361 = vmatprep.subr.mxu0 0.0
        %5362 = vmatpush1.msra.mxu0 0.0
        %5363 = vmatprep.subr.mxu0 0.0
        %5364 = vmatpush1.msra.mxu0 0.0
        %5365 = vmatprep.subr.mxu0 0.0
        %5366 = vmatpush1.msra.mxu0 0.0
        %5367 = vmatprep.subr.mxu0 0.0
        %5368 = vmatpush1.msra.mxu0 0.0
        %5369 = vmatprep.subr.mxu0 0.0
        %5370 = vmatpush1.msra.mxu0 0.0
        %5371 = vmatprep.subr.mxu0 0.0
        %5372 = vmatpush1.msra.mxu0 0.0
        %5373 = vmatprep.subr.mxu0 0.0
        %5374 = vmatpush1.msra.mxu0 0.0
        %5375 = vmatprep.subr.mxu0 0.0
        %5376 = vmatpush1.msra.mxu0 0.0
        %5377 = vmatprep.subr.mxu0 0.0
        %5378 = vmatpush1.msra.mxu0 0.0
        %5379 = vmatprep.subr.mxu0 0.0
        %5380 = vmatpush1.msra.mxu0 0.0
        %5381 = vmatprep.subr.mxu0 0.0
        %5382 = vmatpush1.msra.mxu0 0.0
        %5383 = vmatprep.subr.mxu0 0.0
        %5384 = vmatpush1.msra.mxu0 0.0
        %5385 = vmatprep.subr.mxu0 0.0
        %5386 = vmatpush1.msra.mxu0 0.0
        %5387 = vmatprep.subr.mxu0 0.0
        %5388 = vmatpush1.msra.mxu0 0.0
        %5389 = vmatprep.mubr.f32.mxu0 0.0
        %5390 = vmatmul.mubr.f32.gmra.mrb[0].mxu0 %v5252
        %v5391 = vpop.f32.mrb[0].mxu0
        %v5392 = vadd.f32 %v5321, %v5391
        %v5393 = vpop.f32.mrb[0].mxu0
        %v5394 = vadd.f32 %v5323, %v5393
        %5395 = vdwg.mxu0
        %v5397 = vsel %vm575, %v5095, 0
        %5399 = vmatprep.subr.mxu0 %v5097
        %5400 = vmatpush1.msra.mxu0 %v5096
        %5401 = vmatprep.subr.mxu0 %v5099
        %5402 = vmatpush1.msra.mxu0 %v5098
        %5403 = vmatprep.subr.mxu0 %v5101
        %5404 = vmatpush1.msra.mxu0 %v5100
        %5405 = vmatprep.subr.mxu0 %v5103
        %5406 = vmatpush1.msra.mxu0 %v5102
        %5407 = vmatprep.subr.mxu0 %v5105
        %5408 = vmatpush1.msra.mxu0 %v5104
        %5409 = vmatprep.subr.mxu0 %v5107
        %5410 = vmatpush1.msra.mxu0 %v5106
        %5411 = vmatprep.subr.mxu0 %v5109
        %5412 = vmatpush1.msra.mxu0 %v5108
        %5413 = vmatprep.subr.mxu0 %v5111
        %5414 = vmatpush1.msra.mxu0 %v5110
        %5415 = vmatprep.subr.mxu0 %v5113
        %5416 = vmatpush1.msra.mxu0 %v5112
        %5417 = vmatprep.subr.mxu0 %v5115
        %5418 = vmatpush1.msra.mxu0 %v5114
        %5419 = vmatprep.subr.mxu0 %v5117
        %5420 = vmatpush1.msra.mxu0 %v5116
        %5421 = vmatprep.subr.mxu0 %v5119
        %5422 = vmatpush1.msra.mxu0 %v5118
        %5423 = vmatprep.subr.mxu0 %v5121
        %5424 = vmatpush1.msra.mxu0 %v5120
        %5425 = vmatprep.subr.mxu0 %v5123
        %5426 = vmatpush1.msra.mxu0 %v5122
        %5427 = vmatprep.subr.mxu0 %v5125
        %5428 = vmatpush1.msra.mxu0 %v5124
        %5429 = vmatprep.subr.mxu0 %v5127
        %5430 = vmatpush1.msra.mxu0 %v5126
        %5431 = vmatprep.subr.mxu0 %v5129
        %5432 = vmatpush1.msra.mxu0 %v5128
        %5433 = vmatprep.subr.mxu0 %v5131
        %5434 = vmatpush1.msra.mxu0 %v5130
        %5435 = vmatprep.subr.mxu0 %v5133
        %5436 = vmatpush1.msra.mxu0 %v5132
        %5437 = vmatprep.subr.mxu0 %v5135
        %5438 = vmatpush1.msra.mxu0 %v5134
        %5439 = vmatprep.subr.mxu0 %v5137
        %5440 = vmatpush1.msra.mxu0 %v5136
        %5441 = vmatprep.subr.mxu0 %v5139
        %5442 = vmatpush1.msra.mxu0 %v5138
        %5443 = vmatprep.subr.mxu0 %v5141
        %5444 = vmatpush1.msra.mxu0 %v5140
        %5445 = vmatprep.subr.mxu0 %v5143
        %5446 = vmatpush1.msra.mxu0 %v5142
        %5447 = vmatprep.subr.mxu0 %v5145
        %5448 = vmatpush1.msra.mxu0 %v5144
        %5449 = vmatprep.subr.mxu0 %v5147
        %5450 = vmatpush1.msra.mxu0 %v5146
        %5451 = vmatprep.subr.mxu0 %v5149
        %5452 = vmatpush1.msra.mxu0 %v5148
        %5453 = vmatprep.subr.mxu0 %v5151
        %5454 = vmatpush1.msra.mxu0 %v5150
        %5455 = vmatprep.subr.mxu0 %v5153
        %5456 = vmatpush1.msra.mxu0 %v5152
        %5457 = vmatprep.subr.mxu0 %v5155
        %5458 = vmatpush1.msra.mxu0 %v5154
        %5459 = vmatprep.subr.mxu0 %v5157
        %5460 = vmatpush1.msra.mxu0 %v5156
        %5461 = vmatprep.subr.mxu0 %v5159
        %5462 = vmatpush1.msra.mxu0 %v5158
        %5463 = vmatprep.mubr.f32.mxu0 %v5094
        %5464 = vmatmul.mubr.f32.gmra.mrb[0].mxu0 %v5093
        %v5465 = vpop.f32.mrb[0].mxu0
        %v5466 = vadd.f32 %v5392, %v5465
        %v5467 = vpop.f32.mrb[0].mxu0
        %v5468 = vadd.f32 %v5394, %v5467
        %5469 = vdwg.mxu0
        %5470 = vmatprep.subr.mxu0 %v5161
        %5471 = vmatpush1.msra.mxu0 %v5160
        %5472 = vmatprep.subr.mxu0 %v5163
        %5473 = vmatpush1.msra.mxu0 %v5162
        %5474 = vmatprep.subr.mxu0 %v5165
        %5475 = vmatpush1.msra.mxu0 %v5164
        %5476 = vmatprep.subr.mxu0 %v5167
        %5477 = vmatpush1.msra.mxu0 %v5166
        %5478 = vmatprep.subr.mxu0 0.0
        %5479 = vmatpush1.msra.mxu0 0.0
        %5480 = vmatprep.subr.mxu0 0.0
        %5481 = vmatpush1.msra.mxu0 0.0
        %5482 = vmatprep.subr.mxu0 0.0
        %5483 = vmatpush1.msra.mxu0 0.0
        %5484 = vmatprep.subr.mxu0 0.0
        %5485 = vmatpush1.msra.mxu0 0.0
        %5486 = vmatprep.subr.mxu0 0.0
        %5487 = vmatpush1.msra.mxu0 0.0
        %5488 = vmatprep.subr.mxu0 0.0
        %5489 = vmatpush1.msra.mxu0 0.0
        %5490 = vmatprep.subr.mxu0 0.0
        %5491 = vmatpush1.msra.mxu0 0.0
        %5492 = vmatprep.subr.mxu0 0.0
        %5493 = vmatpush1.msra.mxu0 0.0
        %5494 = vmatprep.subr.mxu0 0.0
        %5495 = vmatpush1.msra.mxu0 0.0
        %5496 = vmatprep.subr.mxu0 0.0
        %5497 = vmatpush1.msra.mxu0 0.0
        %5498 = vmatprep.subr.mxu0 0.0
        %5499 = vmatpush1.msra.mxu0 0.0
        %5500 = vmatprep.subr.mxu0 0.0
        %5501 = vmatpush1.msra.mxu0 0.0
        %5502 = vmatprep.subr.mxu0 0.0
        %5503 = vmatpush1.msra.mxu0 0.0
        %5504 = vmatprep.subr.mxu0 0.0
        %5505 = vmatpush1.msra.mxu0 0.0
        %5506 = vmatprep.subr.mxu0 0.0
        %5507 = vmatpush1.msra.mxu0 0.0
        %5508 = vmatprep.subr.mxu0 0.0
        %5509 = vmatpush1.msra.mxu0 0.0
        %5510 = vmatprep.subr.mxu0 0.0
        %5511 = vmatpush1.msra.mxu0 0.0
        %5512 = vmatprep.subr.mxu0 0.0
        %5513 = vmatpush1.msra.mxu0 0.0
        %5514 = vmatprep.subr.mxu0 0.0
        %5515 = vmatpush1.msra.mxu0 0.0
        %5516 = vmatprep.subr.mxu0 0.0
        %5517 = vmatpush1.msra.mxu0 0.0
        %5518 = vmatprep.subr.mxu0 0.0
        %5519 = vmatpush1.msra.mxu0 0.0
        %5520 = vmatprep.subr.mxu0 0.0
        %5521 = vmatpush1.msra.mxu0 0.0
        %5522 = vmatprep.subr.mxu0 0.0
        %5523 = vmatpush1.msra.mxu0 0.0
        %5524 = vmatprep.subr.mxu0 0.0
        %5525 = vmatpush1.msra.mxu0 0.0
        %5526 = vmatprep.subr.mxu0 0.0
        %5527 = vmatpush1.msra.mxu0 0.0
        %5528 = vmatprep.subr.mxu0 0.0
        %5529 = vmatpush1.msra.mxu0 0.0
        %5530 = vmatprep.subr.mxu0 0.0
        %5531 = vmatpush1.msra.mxu0 0.0
        %5532 = vmatprep.subr.mxu0 0.0
        %5533 = vmatpush1.msra.mxu0 0.0
        %5534 = vmatprep.mubr.f32.mxu0 0.0
        %5535 = vmatmul.mubr.f32.gmra.mrb[0].mxu0 %v5397
        %v5536 = vpop.f32.mrb[0].mxu0
        %v5537 = vadd.f32 %v5466, %v5536
        %v5538 = vpop.f32.mrb[0].mxu0
        %v5539 = vadd.f32 %v5468, %v5538
        %5540 = vdwg.mxu0
        %v5541 = vld [vmem:[#allocation5] sm:$0xfc]
        %v5542 = vld [vmem:[#allocation5 + $0x8] sm:$0xfc]
        %v5543 = vld [vmem:[#allocation5 + $0x10] sm:$0xfc]
        %v5544 = vld [vmem:[#allocation5 + $0x18] sm:$0x1]
        %v5545 = vld [vmem:[#allocation5 + $0x20] sm:$0x1]
        %v5546 = vld [vmem:[#allocation5 + $0x28] sm:$0x1]
        %s5547 = scalar_lea.vmem %s4, 1152
        %v5548 = vld [vmem:[%s5547] sm:$0xff]
        %v5549 = vld [vmem:[%s5547 + $0x8] sm:$0xff]
        %v5550 = vld [vmem:[%s5547 + $0x10] sm:$0xff]
        %v5551 = vld [vmem:[%s5547 + $0x18] sm:$0xff]
        %v5552 = vld [vmem:[%s5547 + $0x20] sm:$0xff]
        %v5553 = vld [vmem:[%s5547 + $0x28] sm:$0xff]
        %v5554 = vld [vmem:[%s5547 + $0x30] sm:$0xff]
        %v5555 = vld [vmem:[%s5547 + $0x38] sm:$0xff]
        %v5556 = vld [vmem:[%s5547 + $0x40] sm:$0xff]
        %v5557 = vld [vmem:[%s5547 + $0x48] sm:$0xff]
        %v5558 = vld [vmem:[%s5547 + $0x50] sm:$0xff]
        %v5559 = vld [vmem:[%s5547 + $0x58] sm:$0xff]
        %v5560 = vld [vmem:[%s5547 + $0x60] sm:$0xff]
        %v5561 = vld [vmem:[%s5547 + $0x68] sm:$0xff]
        %v5562 = vld [vmem:[%s5547 + $0x70] sm:$0xff]
        %v5563 = vld [vmem:[%s5547 + $0x78] sm:$0xff]
        %v5564 = vld [vmem:[%s5547 + $0x80] sm:$0xff]
        %v5565 = vld [vmem:[%s5547 + $0x88] sm:$0xff]
        %v5566 = vld [vmem:[%s5547 + $0x90] sm:$0xff]
        %v5567 = vld [vmem:[%s5547 + $0x98] sm:$0xff]
        %v5568 = vld [vmem:[%s5547 + $0xa0] sm:$0xff]
        %v5569 = vld [vmem:[%s5547 + $0xa8] sm:$0xff]
        %v5570 = vld [vmem:[%s5547 + $0xb0] sm:$0xff]
        %v5571 = vld [vmem:[%s5547 + $0xb8] sm:$0xff]
        %v5572 = vld [vmem:[%s5547 + $0xc0] sm:$0xff]
        %v5573 = vld [vmem:[%s5547 + $0xc8] sm:$0xff]
        %v5574 = vld [vmem:[%s5547 + $0xd0] sm:$0xff]
        %v5575 = vld [vmem:[%s5547 + $0xd8] sm:$0xff]
        %v5576 = vld [vmem:[%s5547 + $0xe0] sm:$0xff]
        %v5577 = vld [vmem:[%s5547 + $0xe8] sm:$0xff]
        %v5578 = vld [vmem:[%s5547 + $0xf0] sm:$0xff]
        %v5579 = vld [vmem:[%s5547 + $0xf8] sm:$0xff]
        %v5580 = vld [vmem:[%s5547 + $0x100] sm:$0xff]
        %v5581 = vld [vmem:[%s5547 + $0x108] sm:$0xff]
        %v5582 = vld [vmem:[%s5547 + $0x110] sm:$0xff]
        %v5583 = vld [vmem:[%s5547 + $0x118] sm:$0xff]
        %v5584 = vld [vmem:[%s5547 + $0x120] sm:$0xff]
        %v5585 = vld [vmem:[%s5547 + $0x128] sm:$0xff]
        %v5586 = vld [vmem:[%s5547 + $0x130] sm:$0xff]
        %v5587 = vld [vmem:[%s5547 + $0x138] sm:$0xff]
        %v5588 = vld [vmem:[%s5547 + $0x140] sm:$0xff]
        %v5589 = vld [vmem:[%s5547 + $0x148] sm:$0xff]
        %v5590 = vld [vmem:[%s5547 + $0x150] sm:$0xff]
        %v5591 = vld [vmem:[%s5547 + $0x158] sm:$0xff]
        %v5592 = vld [vmem:[%s5547 + $0x160] sm:$0xff]
        %v5593 = vld [vmem:[%s5547 + $0x168] sm:$0xff]
        %v5594 = vld [vmem:[%s5547 + $0x170] sm:$0xff]
        %v5595 = vld [vmem:[%s5547 + $0x178] sm:$0xff]
        %v5596 = vld [vmem:[%s5547 + $0x180] sm:$0xff]
        %v5597 = vld [vmem:[%s5547 + $0x188] sm:$0xff]
        %v5598 = vld [vmem:[%s5547 + $0x190] sm:$0xff]
        %v5599 = vld [vmem:[%s5547 + $0x198] sm:$0xff]
        %v5600 = vld [vmem:[%s5547 + $0x1a0] sm:$0xff]
        %v5601 = vld [vmem:[%s5547 + $0x1a8] sm:$0xff]
        %v5602 = vld [vmem:[%s5547 + $0x1b0] sm:$0xff]
        %v5603 = vld [vmem:[%s5547 + $0x1b8] sm:$0xff]
        %v5604 = vld [vmem:[%s5547 + $0x1c0] sm:$0xff]
        %v5605 = vld [vmem:[%s5547 + $0x1c8] sm:$0xff]
        %v5606 = vld [vmem:[%s5547 + $0x1d0] sm:$0xff]
        %v5607 = vld [vmem:[%s5547 + $0x1d8] sm:$0xff]
        %v5608 = vld [vmem:[%s5547 + $0x1e0] sm:$0xff]
        %v5609 = vld [vmem:[%s5547 + $0x1e8] sm:$0xff]
        %v5610 = vld [vmem:[%s5547 + $0x1f0] sm:$0xff]
        %v5611 = vld [vmem:[%s5547 + $0x1f8] sm:$0xff]
        %v5612 = vld [vmem:[%s5547 + $0x200] sm:$0xff]
        %v5613 = vld [vmem:[%s5547 + $0x208] sm:$0xff]
        %v5614 = vld [vmem:[%s5547 + $0x210] sm:$0xff]
        %v5615 = vld [vmem:[%s5547 + $0x218] sm:$0xff]
        %v5616 = vld [vmem:[%s5547 + $0x220] sm:$0xff]
        %v5617 = vld [vmem:[%s5547 + $0x228] sm:$0xff]
        %v5618 = vld [vmem:[%s5547 + $0x230] sm:$0xff]
        %v5619 = vld [vmem:[%s5547 + $0x238] sm:$0xff]
        %v5626 = vrot.slane %v5541, 2
        %v5627 = vrot.slane %v5544, 2
        %v5628 = vsel %vm654, %v5626, %v5627
        %v5629 = vrot.slane %v5542, 2
        %v5630 = vrot.slane %v5545, 2
        %v5631 = vsel %vm654, %v5629, %v5630
        %v5632 = vrot.slane %v5543, 2
        %v5633 = vrot.slane %v5546, 2
        %v5634 = vsel %vm654, %v5632, %v5633
        %v5637 = vsel %vm575, %v5634, 0
        %5639 = vmatprep.subr.mxu0 %v5549
        %5640 = vmatpush1.msra.mxu0 %v5548
        %5641 = vmatprep.subr.mxu0 %v5551
        %5642 = vmatpush1.msra.mxu0 %v5550
        %5643 = vmatprep.subr.mxu0 %v5553
        %5644 = vmatpush1.msra.mxu0 %v5552
        %5645 = vmatprep.subr.mxu0 %v5555
        %5646 = vmatpush1.msra.mxu0 %v5554
        %5647 = vmatprep.subr.mxu0 %v5557
        %5648 = vmatpush1.msra.mxu0 %v5556
        %5649 = vmatprep.subr.mxu0 %v5559
        %5650 = vmatpush1.msra.mxu0 %v5558
        %5651 = vmatprep.subr.mxu0 %v5561
        %5652 = vmatpush1.msra.mxu0 %v5560
        %5653 = vmatprep.subr.mxu0 %v5563
        %5654 = vmatpush1.msra.mxu0 %v5562
        %5655 = vmatprep.subr.mxu0 %v5565
        %5656 = vmatpush1.msra.mxu0 %v5564
        %5657 = vmatprep.subr.mxu0 %v5567
        %5658 = vmatpush1.msra.mxu0 %v5566
        %5659 = vmatprep.subr.mxu0 %v5569
        %5660 = vmatpush1.msra.mxu0 %v5568
        %5661 = vmatprep.subr.mxu0 %v5571
        %5662 = vmatpush1.msra.mxu0 %v5570
        %5663 = vmatprep.subr.mxu0 %v5573
        %5664 = vmatpush1.msra.mxu0 %v5572
        %5665 = vmatprep.subr.mxu0 %v5575
        %5666 = vmatpush1.msra.mxu0 %v5574
        %5667 = vmatprep.subr.mxu0 %v5577
        %5668 = vmatpush1.msra.mxu0 %v5576
        %5669 = vmatprep.subr.mxu0 %v5579
        %5670 = vmatpush1.msra.mxu0 %v5578
        %5671 = vmatprep.subr.mxu0 %v5581
        %5672 = vmatpush1.msra.mxu0 %v5580
        %5673 = vmatprep.subr.mxu0 %v5583
        %5674 = vmatpush1.msra.mxu0 %v5582
        %5675 = vmatprep.subr.mxu0 %v5585
        %5676 = vmatpush1.msra.mxu0 %v5584
        %5677 = vmatprep.subr.mxu0 %v5587
        %5678 = vmatpush1.msra.mxu0 %v5586
        %5679 = vmatprep.subr.mxu0 %v5589
        %5680 = vmatpush1.msra.mxu0 %v5588
        %5681 = vmatprep.subr.mxu0 %v5591
        %5682 = vmatpush1.msra.mxu0 %v5590
        %5683 = vmatprep.subr.mxu0 %v5593
        %5684 = vmatpush1.msra.mxu0 %v5592
        %5685 = vmatprep.subr.mxu0 %v5595
        %5686 = vmatpush1.msra.mxu0 %v5594
        %5687 = vmatprep.subr.mxu0 %v5597
        %5688 = vmatpush1.msra.mxu0 %v5596
        %5689 = vmatprep.subr.mxu0 %v5599
        %5690 = vmatpush1.msra.mxu0 %v5598
        %5691 = vmatprep.subr.mxu0 %v5601
        %5692 = vmatpush1.msra.mxu0 %v5600
        %5693 = vmatprep.subr.mxu0 %v5603
        %5694 = vmatpush1.msra.mxu0 %v5602
        %5695 = vmatprep.subr.mxu0 %v5605
        %5696 = vmatpush1.msra.mxu0 %v5604
        %5697 = vmatprep.subr.mxu0 %v5607
        %5698 = vmatpush1.msra.mxu0 %v5606
        %5699 = vmatprep.subr.mxu0 %v5609
        %5700 = vmatpush1.msra.mxu0 %v5608
        %5701 = vmatprep.subr.mxu0 %v5611
        %5702 = vmatpush1.msra.mxu0 %v5610
        %5703 = vmatprep.mubr.f32.mxu0 %v5631
        %5704 = vmatmul.mubr.f32.gmra.mrb[0].mxu0 %v5628
        %v5705 = vpop.f32.mrb[0].mxu0
        %v5706 = vadd.f32 0.0, %v5705
        %v5707 = vpop.f32.mrb[0].mxu0
        %v5708 = vadd.f32 0.0, %v5707
        %5709 = vdwg.mxu0
        %5710 = vmatprep.subr.mxu0 %v5613
        %5711 = vmatpush1.msra.mxu0 %v5612
        %5712 = vmatprep.subr.mxu0 %v5615
        %5713 = vmatpush1.msra.mxu0 %v5614
        %5714 = vmatprep.subr.mxu0 %v5617
        %5715 = vmatpush1.msra.mxu0 %v5616
        %5716 = vmatprep.subr.mxu0 %v5619
        %5717 = vmatpush1.msra.mxu0 %v5618
        %5718 = vmatprep.subr.mxu0 0.0
        %5719 = vmatpush1.msra.mxu0 0.0
        %5720 = vmatprep.subr.mxu0 0.0
        %5721 = vmatpush1.msra.mxu0 0.0
        %5722 = vmatprep.subr.mxu0 0.0
        %5723 = vmatpush1.msra.mxu0 0.0
        %5724 = vmatprep.subr.mxu0 0.0
        %5725 = vmatpush1.msra.mxu0 0.0
        %5726 = vmatprep.subr.mxu0 0.0
        %5727 = vmatpush1.msra.mxu0 0.0
        %5728 = vmatprep.subr.mxu0 0.0
        %5729 = vmatpush1.msra.mxu0 0.0
        %5730 = vmatprep.subr.mxu0 0.0
        %5731 = vmatpush1.msra.mxu0 0.0
        %5732 = vmatprep.subr.mxu0 0.0
        %5733 = vmatpush1.msra.mxu0 0.0
        %5734 = vmatprep.subr.mxu0 0.0
        %5735 = vmatpush1.msra.mxu0 0.0
        %5736 = vmatprep.subr.mxu0 0.0
        %5737 = vmatpush1.msra.mxu0 0.0
        %5738 = vmatprep.subr.mxu0 0.0
        %5739 = vmatpush1.msra.mxu0 0.0
        %5740 = vmatprep.subr.mxu0 0.0
        %5741 = vmatpush1.msra.mxu0 0.0
        %5742 = vmatprep.subr.mxu0 0.0
        %5743 = vmatpush1.msra.mxu0 0.0
        %5744 = vmatprep.subr.mxu0 0.0
        %5745 = vmatpush1.msra.mxu0 0.0
        %5746 = vmatprep.subr.mxu0 0.0
        %5747 = vmatpush1.msra.mxu0 0.0
        %5748 = vmatprep.subr.mxu0 0.0
        %5749 = vmatpush1.msra.mxu0 0.0
        %5750 = vmatprep.subr.mxu0 0.0
        %5751 = vmatpush1.msra.mxu0 0.0
        %5752 = vmatprep.subr.mxu0 0.0
        %5753 = vmatpush1.msra.mxu0 0.0
        %5754 = vmatprep.subr.mxu0 0.0
        %5755 = vmatpush1.msra.mxu0 0.0
        %5756 = vmatprep.subr.mxu0 0.0
        %5757 = vmatpush1.msra.mxu0 0.0
        %5758 = vmatprep.subr.mxu0 0.0
        %5759 = vmatpush1.msra.mxu0 0.0
        %5760 = vmatprep.subr.mxu0 0.0
        %5761 = vmatpush1.msra.mxu0 0.0
        %5762 = vmatprep.subr.mxu0 0.0
        %5763 = vmatpush1.msra.mxu0 0.0
        %5764 = vmatprep.subr.mxu0 0.0
        %5765 = vmatpush1.msra.mxu0 0.0
        %5766 = vmatprep.subr.mxu0 0.0
        %5767 = vmatpush1.msra.mxu0 0.0
        %5768 = vmatprep.subr.mxu0 0.0
        %5769 = vmatpush1.msra.mxu0 0.0
        %5770 = vmatprep.subr.mxu0 0.0
        %5771 = vmatpush1.msra.mxu0 0.0
        %5772 = vmatprep.subr.mxu0 0.0
        %5773 = vmatpush1.msra.mxu0 0.0
        %5774 = vmatprep.mubr.f32.mxu0 0.0
        %5775 = vmatmul.mubr.f32.gmra.mrb[0].mxu0 %v5637
        %v5776 = vpop.f32.mrb[0].mxu0
        %v5777 = vadd.f32 %v5706, %v5776
        %v5778 = vpop.f32.mrb[0].mxu0
        %v5779 = vadd.f32 %v5708, %v5778
        %5780 = vdwg.mxu0
        %v5781 = vadd.f32 %v5537, %v5777
        %v5782 = vadd.f32 %v5539, %v5779
        %v5783 = vld [vmem:[%s9] ss:$2 sm:$0x3]
        %v5785 = vlaneseq
        %v5786 = vshrl.u32 %v5785, 7
        %v5787 = vsub.s32 0, %v5786
        %v5788 = vrot.slane %v5783, %v5787
        %v5789 = vlaneseq
        %v5790 = vshrl.u32 %v5789, 7
        %v5791 = vsub.s32 1, %v5790
        %v5792 = vrot.slane %v5783, %v5791
        %v5795 = vmul.f32 %v5781, %v5788
        %v5796 = vmul.f32 %v5782, %v5792
        %s5797 = scalar_lea.vmem %s9, 1
        %v5798 = vld [vmem:[%s5797] ss:$2 sm:$0x3]
        %v5800 = vlaneseq
        %v5801 = vshrl.u32 %v5800, 7
        %v5802 = vsub.s32 0, %v5801
        %v5803 = vrot.slane %v5798, %v5802
        %v5804 = vlaneseq
        %v5805 = vshrl.u32 %v5804, 7
        %v5806 = vsub.s32 1, %v5805
        %v5807 = vrot.slane %v5798, %v5806
        %v5810 = vadd.f32 %v5795, %v5803
        %v5811 = vadd.f32 %v5796, %v5807
        %vm5812 = vcmp.gt.f32.partialorder %v5810, 0.0
        %vm5813 = vcmp.gt.f32.partialorder %v5811, 0.0
        %v5814 = vmul.f32 %v5810, 0.1
        %v5815 = vmul.f32 %v5811, 0.1
        %v5816 = vsel %vm5812, %v5810, %v5814
        %v5817 = vsel %vm5813, %v5811, %v5815
        %v5820 = vrot.slane %v5816, 7
        %v5821 = vrot.slane %v5817, 7
        %5824 = vst [vmem:[#allocation6] sm:$0xfe] %v5820
        %5825 = vst.msk [vmem:[#allocation6 + $0x8] sm:$0xfe] %vm627, %v5821
        %v5826 = vld [vmem:[#allocation6] sm:$0x7f]
        %v5827 = vld [vmem:[#allocation6 + $0x8] sm:$0x7f]
        %v5828 = vld [vmem:[#allocation6 + $0x10] sm:$0x7f]
        %v5829 = vld [vmem:[%s5] sm:$0xff]
        %v5830 = vld [vmem:[%s5 + $0x8] sm:$0xff]
        %v5831 = vld [vmem:[%s5 + $0x10] sm:$0xff]
        %v5832 = vld [vmem:[%s5 + $0x18] sm:$0xff]
        %v5833 = vld [vmem:[%s5 + $0x20] sm:$0xff]
        %v5834 = vld [vmem:[%s5 + $0x28] sm:$0xff]
        %v5835 = vld [vmem:[%s5 + $0x30] sm:$0xff]
        %v5836 = vld [vmem:[%s5 + $0x38] sm:$0xff]
        %v5837 = vld [vmem:[%s5 + $0x40] sm:$0xff]
        %v5838 = vld [vmem:[%s5 + $0x48] sm:$0xff]
        %v5839 = vld [vmem:[%s5 + $0x50] sm:$0xff]
        %v5840 = vld [vmem:[%s5 + $0x58] sm:$0xff]
        %v5841 = vld [vmem:[%s5 + $0x60] sm:$0xff]
        %v5842 = vld [vmem:[%s5 + $0x68] sm:$0xff]
        %v5843 = vld [vmem:[%s5 + $0x70] sm:$0xff]
        %v5844 = vld [vmem:[%s5 + $0x78] sm:$0xff]
        %v5845 = vld [vmem:[%s5 + $0x80] sm:$0xff]
        %v5846 = vld [vmem:[%s5 + $0x88] sm:$0xff]
        %v5847 = vld [vmem:[%s5 + $0x90] sm:$0xff]
        %v5848 = vld [vmem:[%s5 + $0x98] sm:$0xff]
        %v5849 = vld [vmem:[%s5 + $0xa0] sm:$0xff]
        %v5850 = vld [vmem:[%s5 + $0xa8] sm:$0xff]
        %v5851 = vld [vmem:[%s5 + $0xb0] sm:$0xff]
        %v5852 = vld [vmem:[%s5 + $0xb8] sm:$0xff]
        %v5853 = vld [vmem:[%s5 + $0xc0] sm:$0xff]
        %v5854 = vld [vmem:[%s5 + $0xc8] sm:$0xff]
        %v5855 = vld [vmem:[%s5 + $0xd0] sm:$0xff]
        %v5856 = vld [vmem:[%s5 + $0xd8] sm:$0xff]
        %v5857 = vld [vmem:[%s5 + $0xe0] sm:$0xff]
        %v5858 = vld [vmem:[%s5 + $0xe8] sm:$0xff]
        %v5859 = vld [vmem:[%s5 + $0xf0] sm:$0xff]
        %v5860 = vld [vmem:[%s5 + $0xf8] sm:$0xff]
        %v5861 = vld [vmem:[%s5 + $0x100] sm:$0xff]
        %v5862 = vld [vmem:[%s5 + $0x108] sm:$0xff]
        %v5863 = vld [vmem:[%s5 + $0x110] sm:$0xff]
        %v5864 = vld [vmem:[%s5 + $0x118] sm:$0xff]
        %v5865 = vld [vmem:[%s5 + $0x120] sm:$0xff]
        %v5866 = vld [vmem:[%s5 + $0x128] sm:$0xff]
        %v5867 = vld [vmem:[%s5 + $0x130] sm:$0xff]
        %v5868 = vld [vmem:[%s5 + $0x138] sm:$0xff]
        %v5869 = vld [vmem:[%s5 + $0x140] sm:$0xff]
        %v5870 = vld [vmem:[%s5 + $0x148] sm:$0xff]
        %v5871 = vld [vmem:[%s5 + $0x150] sm:$0xff]
        %v5872 = vld [vmem:[%s5 + $0x158] sm:$0xff]
        %v5873 = vld [vmem:[%s5 + $0x160] sm:$0xff]
        %v5874 = vld [vmem:[%s5 + $0x168] sm:$0xff]
        %v5875 = vld [vmem:[%s5 + $0x170] sm:$0xff]
        %v5876 = vld [vmem:[%s5 + $0x178] sm:$0xff]
        %v5877 = vld [vmem:[%s5 + $0x180] sm:$0xff]
        %v5878 = vld [vmem:[%s5 + $0x188] sm:$0xff]
        %v5879 = vld [vmem:[%s5 + $0x190] sm:$0xff]
        %v5880 = vld [vmem:[%s5 + $0x198] sm:$0xff]
        %v5881 = vld [vmem:[%s5 + $0x1a0] sm:$0xff]
        %v5882 = vld [vmem:[%s5 + $0x1a8] sm:$0xff]
        %v5883 = vld [vmem:[%s5 + $0x1b0] sm:$0xff]
        %v5884 = vld [vmem:[%s5 + $0x1b8] sm:$0xff]
        %v5885 = vld [vmem:[%s5 + $0x1c0] sm:$0xff]
        %v5886 = vld [vmem:[%s5 + $0x1c8] sm:$0xff]
        %v5887 = vld [vmem:[%s5 + $0x1d0] sm:$0xff]
        %v5888 = vld [vmem:[%s5 + $0x1d8] sm:$0xff]
        %v5889 = vld [vmem:[%s5 + $0x1e0] sm:$0xff]
        %v5890 = vld [vmem:[%s5 + $0x1e8] sm:$0xff]
        %v5891 = vld [vmem:[%s5 + $0x1f0] sm:$0xff]
        %v5892 = vld [vmem:[%s5 + $0x1f8] sm:$0xff]
        %v5893 = vld [vmem:[%s5 + $0x200] sm:$0xff]
        %v5894 = vld [vmem:[%s5 + $0x208] sm:$0xff]
        %v5895 = vld [vmem:[%s5 + $0x210] sm:$0xff]
        %v5896 = vld [vmem:[%s5 + $0x218] sm:$0xff]
        %v5897 = vld [vmem:[%s5 + $0x220] sm:$0xff]
        %v5898 = vld [vmem:[%s5 + $0x228] sm:$0xff]
        %v5899 = vld [vmem:[%s5 + $0x230] sm:$0xff]
        %v5900 = vld [vmem:[%s5 + $0x238] sm:$0xff]
        %v5901 = vld [vmem:[#allocation6] sm:$0xfe]
        %v5902 = vld [vmem:[#allocation6 + $0x8] sm:$0xfe]
        %v5903 = vld [vmem:[#allocation6 + $0x10] sm:$0xfe]
        %s5904 = scalar_lea.vmem %s5, 576
        %v5905 = vld [vmem:[%s5904] sm:$0xff]
        %v5906 = vld [vmem:[%s5904 + $0x8] sm:$0xff]
        %v5907 = vld [vmem:[%s5904 + $0x10] sm:$0xff]
        %v5908 = vld [vmem:[%s5904 + $0x18] sm:$0xff]
        %v5909 = vld [vmem:[%s5904 + $0x20] sm:$0xff]
        %v5910 = vld [vmem:[%s5904 + $0x28] sm:$0xff]
        %v5911 = vld [vmem:[%s5904 + $0x30] sm:$0xff]
        %v5912 = vld [vmem:[%s5904 + $0x38] sm:$0xff]
        %v5913 = vld [vmem:[%s5904 + $0x40] sm:$0xff]
        %v5914 = vld [vmem:[%s5904 + $0x48] sm:$0xff]
        %v5915 = vld [vmem:[%s5904 + $0x50] sm:$0xff]
        %v5916 = vld [vmem:[%s5904 + $0x58] sm:$0xff]
        %v5917 = vld [vmem:[%s5904 + $0x60] sm:$0xff]
        %v5918 = vld [vmem:[%s5904 + $0x68] sm:$0xff]
        %v5919 = vld [vmem:[%s5904 + $0x70] sm:$0xff]
        %v5920 = vld [vmem:[%s5904 + $0x78] sm:$0xff]
        %v5921 = vld [vmem:[%s5904 + $0x80] sm:$0xff]
        %v5922 = vld [vmem:[%s5904 + $0x88] sm:$0xff]
        %v5923 = vld [vmem:[%s5904 + $0x90] sm:$0xff]
        %v5924 = vld [vmem:[%s5904 + $0x98] sm:$0xff]
        %v5925 = vld [vmem:[%s5904 + $0xa0] sm:$0xff]
        %v5926 = vld [vmem:[%s5904 + $0xa8] sm:$0xff]
        %v5927 = vld [vmem:[%s5904 + $0xb0] sm:$0xff]
        %v5928 = vld [vmem:[%s5904 + $0xb8] sm:$0xff]
        %v5929 = vld [vmem:[%s5904 + $0xc0] sm:$0xff]
        %v5930 = vld [vmem:[%s5904 + $0xc8] sm:$0xff]
        %v5931 = vld [vmem:[%s5904 + $0xd0] sm:$0xff]
        %v5932 = vld [vmem:[%s5904 + $0xd8] sm:$0xff]
        %v5933 = vld [vmem:[%s5904 + $0xe0] sm:$0xff]
        %v5934 = vld [vmem:[%s5904 + $0xe8] sm:$0xff]
        %v5935 = vld [vmem:[%s5904 + $0xf0] sm:$0xff]
        %v5936 = vld [vmem:[%s5904 + $0xf8] sm:$0xff]
        %v5937 = vld [vmem:[%s5904 + $0x100] sm:$0xff]
        %v5938 = vld [vmem:[%s5904 + $0x108] sm:$0xff]
        %v5939 = vld [vmem:[%s5904 + $0x110] sm:$0xff]
        %v5940 = vld [vmem:[%s5904 + $0x118] sm:$0xff]
        %v5941 = vld [vmem:[%s5904 + $0x120] sm:$0xff]
        %v5942 = vld [vmem:[%s5904 + $0x128] sm:$0xff]
        %v5943 = vld [vmem:[%s5904 + $0x130] sm:$0xff]
        %v5944 = vld [vmem:[%s5904 + $0x138] sm:$0xff]
        %v5945 = vld [vmem:[%s5904 + $0x140] sm:$0xff]
        %v5946 = vld [vmem:[%s5904 + $0x148] sm:$0xff]
        %v5947 = vld [vmem:[%s5904 + $0x150] sm:$0xff]
        %v5948 = vld [vmem:[%s5904 + $0x158] sm:$0xff]
        %v5949 = vld [vmem:[%s5904 + $0x160] sm:$0xff]
        %v5950 = vld [vmem:[%s5904 + $0x168] sm:$0xff]
        %v5951 = vld [vmem:[%s5904 + $0x170] sm:$0xff]
        %v5952 = vld [vmem:[%s5904 + $0x178] sm:$0xff]
        %v5953 = vld [vmem:[%s5904 + $0x180] sm:$0xff]
        %v5954 = vld [vmem:[%s5904 + $0x188] sm:$0xff]
        %v5955 = vld [vmem:[%s5904 + $0x190] sm:$0xff]
        %v5956 = vld [vmem:[%s5904 + $0x198] sm:$0xff]
        %v5957 = vld [vmem:[%s5904 + $0x1a0] sm:$0xff]
        %v5958 = vld [vmem:[%s5904 + $0x1a8] sm:$0xff]
        %v5959 = vld [vmem:[%s5904 + $0x1b0] sm:$0xff]
        %v5960 = vld [vmem:[%s5904 + $0x1b8] sm:$0xff]
        %v5961 = vld [vmem:[%s5904 + $0x1c0] sm:$0xff]
        %v5962 = vld [vmem:[%s5904 + $0x1c8] sm:$0xff]
        %v5963 = vld [vmem:[%s5904 + $0x1d0] sm:$0xff]
        %v5964 = vld [vmem:[%s5904 + $0x1d8] sm:$0xff]
        %v5965 = vld [vmem:[%s5904 + $0x1e0] sm:$0xff]
        %v5966 = vld [vmem:[%s5904 + $0x1e8] sm:$0xff]
        %v5967 = vld [vmem:[%s5904 + $0x1f0] sm:$0xff]
        %v5968 = vld [vmem:[%s5904 + $0x1f8] sm:$0xff]
        %v5969 = vld [vmem:[%s5904 + $0x200] sm:$0xff]
        %v5970 = vld [vmem:[%s5904 + $0x208] sm:$0xff]
        %v5971 = vld [vmem:[%s5904 + $0x210] sm:$0xff]
        %v5972 = vld [vmem:[%s5904 + $0x218] sm:$0xff]
        %v5973 = vld [vmem:[%s5904 + $0x220] sm:$0xff]
        %v5974 = vld [vmem:[%s5904 + $0x228] sm:$0xff]
        %v5975 = vld [vmem:[%s5904 + $0x230] sm:$0xff]
        %v5976 = vld [vmem:[%s5904 + $0x238] sm:$0xff]
        %v5980 = vrot.slane %v5901, 1
        %v5981 = vrot.slane %v5902, 1
        %v5982 = vrot.slane %v5903, 1
        %v5985 = vsel %vm575, %v5982, 0
        %5987 = vmatprep.subr.mxu0 %v5906
        %5988 = vmatpush1.msra.mxu0 %v5905
        %5989 = vmatprep.subr.mxu0 %v5908
        %5990 = vmatpush1.msra.mxu0 %v5907
        %5991 = vmatprep.subr.mxu0 %v5910
        %5992 = vmatpush1.msra.mxu0 %v5909
        %5993 = vmatprep.subr.mxu0 %v5912
        %5994 = vmatpush1.msra.mxu0 %v5911
        %5995 = vmatprep.subr.mxu0 %v5914
        %5996 = vmatpush1.msra.mxu0 %v5913
        %5997 = vmatprep.subr.mxu0 %v5916
        %5998 = vmatpush1.msra.mxu0 %v5915
        %5999 = vmatprep.subr.mxu0 %v5918
        %6000 = vmatpush1.msra.mxu0 %v5917
        %6001 = vmatprep.subr.mxu0 %v5920
        %6002 = vmatpush1.msra.mxu0 %v5919
        %6003 = vmatprep.subr.mxu0 %v5922
        %6004 = vmatpush1.msra.mxu0 %v5921
        %6005 = vmatprep.subr.mxu0 %v5924
        %6006 = vmatpush1.msra.mxu0 %v5923
        %6007 = vmatprep.subr.mxu0 %v5926
        %6008 = vmatpush1.msra.mxu0 %v5925
        %6009 = vmatprep.subr.mxu0 %v5928
        %6010 = vmatpush1.msra.mxu0 %v5927
        %6011 = vmatprep.subr.mxu0 %v5930
        %6012 = vmatpush1.msra.mxu0 %v5929
        %6013 = vmatprep.subr.mxu0 %v5932
        %6014 = vmatpush1.msra.mxu0 %v5931
        %6015 = vmatprep.subr.mxu0 %v5934
        %6016 = vmatpush1.msra.mxu0 %v5933
        %6017 = vmatprep.subr.mxu0 %v5936
        %6018 = vmatpush1.msra.mxu0 %v5935
        %6019 = vmatprep.subr.mxu0 %v5938
        %6020 = vmatpush1.msra.mxu0 %v5937
        %6021 = vmatprep.subr.mxu0 %v5940
        %6022 = vmatpush1.msra.mxu0 %v5939
        %6023 = vmatprep.subr.mxu0 %v5942
        %6024 = vmatpush1.msra.mxu0 %v5941
        %6025 = vmatprep.subr.mxu0 %v5944
        %6026 = vmatpush1.msra.mxu0 %v5943
        %6027 = vmatprep.subr.mxu0 %v5946
        %6028 = vmatpush1.msra.mxu0 %v5945
        %6029 = vmatprep.subr.mxu0 %v5948
        %6030 = vmatpush1.msra.mxu0 %v5947
        %6031 = vmatprep.subr.mxu0 %v5950
        %6032 = vmatpush1.msra.mxu0 %v5949
        %6033 = vmatprep.subr.mxu0 %v5952
        %6034 = vmatpush1.msra.mxu0 %v5951
        %6035 = vmatprep.subr.mxu0 %v5954
        %6036 = vmatpush1.msra.mxu0 %v5953
        %6037 = vmatprep.subr.mxu0 %v5956
        %6038 = vmatpush1.msra.mxu0 %v5955
        %6039 = vmatprep.subr.mxu0 %v5958
        %6040 = vmatpush1.msra.mxu0 %v5957
        %6041 = vmatprep.subr.mxu0 %v5960
        %6042 = vmatpush1.msra.mxu0 %v5959
        %6043 = vmatprep.subr.mxu0 %v5962
        %6044 = vmatpush1.msra.mxu0 %v5961
        %6045 = vmatprep.subr.mxu0 %v5964
        %6046 = vmatpush1.msra.mxu0 %v5963
        %6047 = vmatprep.subr.mxu0 %v5966
        %6048 = vmatpush1.msra.mxu0 %v5965
        %6049 = vmatprep.subr.mxu0 %v5968
        %6050 = vmatpush1.msra.mxu0 %v5967
        %6051 = vmatprep.mubr.f32.mxu0 %v5981
        %6052 = vmatmul.mubr.f32.gmra.mrb[0].mxu0 %v5980
        %v6053 = vpop.f32.mrb[0].mxu0
        %v6054 = vadd.f32 0.0, %v6053
        %v6055 = vpop.f32.mrb[0].mxu0
        %v6056 = vadd.f32 0.0, %v6055
        %6057 = vdwg.mxu0
        %6058 = vmatprep.subr.mxu0 %v5970
        %6059 = vmatpush1.msra.mxu0 %v5969
        %6060 = vmatprep.subr.mxu0 %v5972
        %6061 = vmatpush1.msra.mxu0 %v5971
        %6062 = vmatprep.subr.mxu0 %v5974
        %6063 = vmatpush1.msra.mxu0 %v5973
        %6064 = vmatprep.subr.mxu0 %v5976
        %6065 = vmatpush1.msra.mxu0 %v5975
        %6066 = vmatprep.subr.mxu0 0.0
        %6067 = vmatpush1.msra.mxu0 0.0
        %6068 = vmatprep.subr.mxu0 0.0
        %6069 = vmatpush1.msra.mxu0 0.0
        %6070 = vmatprep.subr.mxu0 0.0
        %6071 = vmatpush1.msra.mxu0 0.0
        %6072 = vmatprep.subr.mxu0 0.0
        %6073 = vmatpush1.msra.mxu0 0.0
        %6074 = vmatprep.subr.mxu0 0.0
        %6075 = vmatpush1.msra.mxu0 0.0
        %6076 = vmatprep.subr.mxu0 0.0
        %6077 = vmatpush1.msra.mxu0 0.0
        %6078 = vmatprep.subr.mxu0 0.0
        %6079 = vmatpush1.msra.mxu0 0.0
        %6080 = vmatprep.subr.mxu0 0.0
        %6081 = vmatpush1.msra.mxu0 0.0
        %6082 = vmatprep.subr.mxu0 0.0
        %6083 = vmatpush1.msra.mxu0 0.0
        %6084 = vmatprep.subr.mxu0 0.0
        %6085 = vmatpush1.msra.mxu0 0.0
        %6086 = vmatprep.subr.mxu0 0.0
        %6087 = vmatpush1.msra.mxu0 0.0
        %6088 = vmatprep.subr.mxu0 0.0
        %6089 = vmatpush1.msra.mxu0 0.0
        %6090 = vmatprep.subr.mxu0 0.0
        %6091 = vmatpush1.msra.mxu0 0.0
        %6092 = vmatprep.subr.mxu0 0.0
        %6093 = vmatpush1.msra.mxu0 0.0
        %6094 = vmatprep.subr.mxu0 0.0
        %6095 = vmatpush1.msra.mxu0 0.0
        %6096 = vmatprep.subr.mxu0 0.0
        %6097 = vmatpush1.msra.mxu0 0.0
        %6098 = vmatprep.subr.mxu0 0.0
        %6099 = vmatpush1.msra.mxu0 0.0
        %6100 = vmatprep.subr.mxu0 0.0
        %6101 = vmatpush1.msra.mxu0 0.0
        %6102 = vmatprep.subr.mxu0 0.0
        %6103 = vmatpush1.msra.mxu0 0.0
        %6104 = vmatprep.subr.mxu0 0.0
        %6105 = vmatpush1.msra.mxu0 0.0
        %6106 = vmatprep.subr.mxu0 0.0
        %6107 = vmatpush1.msra.mxu0 0.0
        %6108 = vmatprep.subr.mxu0 0.0
        %6109 = vmatpush1.msra.mxu0 0.0
        %6110 = vmatprep.subr.mxu0 0.0
        %6111 = vmatpush1.msra.mxu0 0.0
        %6112 = vmatprep.subr.mxu0 0.0
        %6113 = vmatpush1.msra.mxu0 0.0
        %6114 = vmatprep.subr.mxu0 0.0
        %6115 = vmatpush1.msra.mxu0 0.0
        %6116 = vmatprep.subr.mxu0 0.0
        %6117 = vmatpush1.msra.mxu0 0.0
        %6118 = vmatprep.subr.mxu0 0.0
        %6119 = vmatpush1.msra.mxu0 0.0
        %6120 = vmatprep.subr.mxu0 0.0
        %6121 = vmatpush1.msra.mxu0 0.0
        %6122 = vmatprep.mubr.f32.mxu0 0.0
        %6123 = vmatmul.mubr.f32.gmra.mrb[0].mxu0 %v5985
        %v6124 = vpop.f32.mrb[0].mxu0
        %v6125 = vadd.f32 %v6054, %v6124
        %v6126 = vpop.f32.mrb[0].mxu0
        %v6127 = vadd.f32 %v6056, %v6126
        %6128 = vdwg.mxu0
        %v6130 = vsel %vm575, %v5828, 0
        %6132 = vmatprep.subr.mxu0 %v5830
        %6133 = vmatpush1.msra.mxu0 %v5829
        %6134 = vmatprep.subr.mxu0 %v5832
        %6135 = vmatpush1.msra.mxu0 %v5831
        %6136 = vmatprep.subr.mxu0 %v5834
        %6137 = vmatpush1.msra.mxu0 %v5833
        %6138 = vmatprep.subr.mxu0 %v5836
        %6139 = vmatpush1.msra.mxu0 %v5835
        %6140 = vmatprep.subr.mxu0 %v5838
        %6141 = vmatpush1.msra.mxu0 %v5837
        %6142 = vmatprep.subr.mxu0 %v5840
        %6143 = vmatpush1.msra.mxu0 %v5839
        %6144 = vmatprep.subr.mxu0 %v5842
        %6145 = vmatpush1.msra.mxu0 %v5841
        %6146 = vmatprep.subr.mxu0 %v5844
        %6147 = vmatpush1.msra.mxu0 %v5843
        %6148 = vmatprep.subr.mxu0 %v5846
        %6149 = vmatpush1.msra.mxu0 %v5845
        %6150 = vmatprep.subr.mxu0 %v5848
        %6151 = vmatpush1.msra.mxu0 %v5847
        %6152 = vmatprep.subr.mxu0 %v5850
        %6153 = vmatpush1.msra.mxu0 %v5849
        %6154 = vmatprep.subr.mxu0 %v5852
        %6155 = vmatpush1.msra.mxu0 %v5851
        %6156 = vmatprep.subr.mxu0 %v5854
        %6157 = vmatpush1.msra.mxu0 %v5853
        %6158 = vmatprep.subr.mxu0 %v5856
        %6159 = vmatpush1.msra.mxu0 %v5855
        %6160 = vmatprep.subr.mxu0 %v5858
        %6161 = vmatpush1.msra.mxu0 %v5857
        %6162 = vmatprep.subr.mxu0 %v5860
        %6163 = vmatpush1.msra.mxu0 %v5859
        %6164 = vmatprep.subr.mxu0 %v5862
        %6165 = vmatpush1.msra.mxu0 %v5861
        %6166 = vmatprep.subr.mxu0 %v5864
        %6167 = vmatpush1.msra.mxu0 %v5863
        %6168 = vmatprep.subr.mxu0 %v5866
        %6169 = vmatpush1.msra.mxu0 %v5865
        %6170 = vmatprep.subr.mxu0 %v5868
        %6171 = vmatpush1.msra.mxu0 %v5867
        %6172 = vmatprep.subr.mxu0 %v5870
        %6173 = vmatpush1.msra.mxu0 %v5869
        %6174 = vmatprep.subr.mxu0 %v5872
        %6175 = vmatpush1.msra.mxu0 %v5871
        %6176 = vmatprep.subr.mxu0 %v5874
        %6177 = vmatpush1.msra.mxu0 %v5873
        %6178 = vmatprep.subr.mxu0 %v5876
        %6179 = vmatpush1.msra.mxu0 %v5875
        %6180 = vmatprep.subr.mxu0 %v5878
        %6181 = vmatpush1.msra.mxu0 %v5877
        %6182 = vmatprep.subr.mxu0 %v5880
        %6183 = vmatpush1.msra.mxu0 %v5879
        %6184 = vmatprep.subr.mxu0 %v5882
        %6185 = vmatpush1.msra.mxu0 %v5881
        %6186 = vmatprep.subr.mxu0 %v5884
        %6187 = vmatpush1.msra.mxu0 %v5883
        %6188 = vmatprep.subr.mxu0 %v5886
        %6189 = vmatpush1.msra.mxu0 %v5885
        %6190 = vmatprep.subr.mxu0 %v5888
        %6191 = vmatpush1.msra.mxu0 %v5887
        %6192 = vmatprep.subr.mxu0 %v5890
        %6193 = vmatpush1.msra.mxu0 %v5889
        %6194 = vmatprep.subr.mxu0 %v5892
        %6195 = vmatpush1.msra.mxu0 %v5891
        %6196 = vmatprep.mubr.f32.mxu0 %v5827
        %6197 = vmatmul.mubr.f32.gmra.mrb[0].mxu0 %v5826
        %v6198 = vpop.f32.mrb[0].mxu0
        %v6199 = vadd.f32 %v6125, %v6198
        %v6200 = vpop.f32.mrb[0].mxu0
        %v6201 = vadd.f32 %v6127, %v6200
        %6202 = vdwg.mxu0
        %6203 = vmatprep.subr.mxu0 %v5894
        %6204 = vmatpush1.msra.mxu0 %v5893
        %6205 = vmatprep.subr.mxu0 %v5896
        %6206 = vmatpush1.msra.mxu0 %v5895
        %6207 = vmatprep.subr.mxu0 %v5898
        %6208 = vmatpush1.msra.mxu0 %v5897
        %6209 = vmatprep.subr.mxu0 %v5900
        %6210 = vmatpush1.msra.mxu0 %v5899
        %6211 = vmatprep.subr.mxu0 0.0
        %6212 = vmatpush1.msra.mxu0 0.0
        %6213 = vmatprep.subr.mxu0 0.0
        %6214 = vmatpush1.msra.mxu0 0.0
        %6215 = vmatprep.subr.mxu0 0.0
        %6216 = vmatpush1.msra.mxu0 0.0
        %6217 = vmatprep.subr.mxu0 0.0
        %6218 = vmatpush1.msra.mxu0 0.0
        %6219 = vmatprep.subr.mxu0 0.0
        %6220 = vmatpush1.msra.mxu0 0.0
        %6221 = vmatprep.subr.mxu0 0.0
        %6222 = vmatpush1.msra.mxu0 0.0
        %6223 = vmatprep.subr.mxu0 0.0
        %6224 = vmatpush1.msra.mxu0 0.0
        %6225 = vmatprep.subr.mxu0 0.0
        %6226 = vmatpush1.msra.mxu0 0.0
        %6227 = vmatprep.subr.mxu0 0.0
        %6228 = vmatpush1.msra.mxu0 0.0
        %6229 = vmatprep.subr.mxu0 0.0
        %6230 = vmatpush1.msra.mxu0 0.0
        %6231 = vmatprep.subr.mxu0 0.0
        %6232 = vmatpush1.msra.mxu0 0.0
        %6233 = vmatprep.subr.mxu0 0.0
        %6234 = vmatpush1.msra.mxu0 0.0
        %6235 = vmatprep.subr.mxu0 0.0
        %6236 = vmatpush1.msra.mxu0 0.0
        %6237 = vmatprep.subr.mxu0 0.0
        %6238 = vmatpush1.msra.mxu0 0.0
        %6239 = vmatprep.subr.mxu0 0.0
        %6240 = vmatpush1.msra.mxu0 0.0
        %6241 = vmatprep.subr.mxu0 0.0
        %6242 = vmatpush1.msra.mxu0 0.0
        %6243 = vmatprep.subr.mxu0 0.0
        %6244 = vmatpush1.msra.mxu0 0.0
        %6245 = vmatprep.subr.mxu0 0.0
        %6246 = vmatpush1.msra.mxu0 0.0
        %6247 = vmatprep.subr.mxu0 0.0
        %6248 = vmatpush1.msra.mxu0 0.0
        %6249 = vmatprep.subr.mxu0 0.0
        %6250 = vmatpush1.msra.mxu0 0.0
        %6251 = vmatprep.subr.mxu0 0.0
        %6252 = vmatpush1.msra.mxu0 0.0
        %6253 = vmatprep.subr.mxu0 0.0
        %6254 = vmatpush1.msra.mxu0 0.0
        %6255 = vmatprep.subr.mxu0 0.0
        %6256 = vmatpush1.msra.mxu0 0.0
        %6257 = vmatprep.subr.mxu0 0.0
        %6258 = vmatpush1.msra.mxu0 0.0
        %6259 = vmatprep.subr.mxu0 0.0
        %6260 = vmatpush1.msra.mxu0 0.0
        %6261 = vmatprep.subr.mxu0 0.0
        %6262 = vmatpush1.msra.mxu0 0.0
        %6263 = vmatprep.subr.mxu0 0.0
        %6264 = vmatpush1.msra.mxu0 0.0
        %6265 = vmatprep.subr.mxu0 0.0
        %6266 = vmatpush1.msra.mxu0 0.0
        %6267 = vmatprep.mubr.f32.mxu0 0.0
        %6268 = vmatmul.mubr.f32.gmra.mrb[0].mxu0 %v6130
        %v6269 = vpop.f32.mrb[0].mxu0
        %v6270 = vadd.f32 %v6199, %v6269
        %v6271 = vpop.f32.mrb[0].mxu0
        %v6272 = vadd.f32 %v6201, %v6271
        %6273 = vdwg.mxu0
        %v6274 = vld [vmem:[#allocation6] sm:$0xfc]
        %v6275 = vld [vmem:[#allocation6 + $0x8] sm:$0xfc]
        %v6276 = vld [vmem:[#allocation6 + $0x10] sm:$0xfc]
        %v6277 = vld [vmem:[#allocation6 + $0x18] sm:$0x1]
        %v6278 = vld [vmem:[#allocation6 + $0x20] sm:$0x1]
        %v6279 = vld [vmem:[#allocation6 + $0x28] sm:$0x1]
        %s6280 = scalar_lea.vmem %s5, 1152
        %v6281 = vld [vmem:[%s6280] sm:$0xff]
        %v6282 = vld [vmem:[%s6280 + $0x8] sm:$0xff]
        %v6283 = vld [vmem:[%s6280 + $0x10] sm:$0xff]
        %v6284 = vld [vmem:[%s6280 + $0x18] sm:$0xff]
        %v6285 = vld [vmem:[%s6280 + $0x20] sm:$0xff]
        %v6286 = vld [vmem:[%s6280 + $0x28] sm:$0xff]
        %v6287 = vld [vmem:[%s6280 + $0x30] sm:$0xff]
        %v6288 = vld [vmem:[%s6280 + $0x38] sm:$0xff]
        %v6289 = vld [vmem:[%s6280 + $0x40] sm:$0xff]
        %v6290 = vld [vmem:[%s6280 + $0x48] sm:$0xff]
        %v6291 = vld [vmem:[%s6280 + $0x50] sm:$0xff]
        %v6292 = vld [vmem:[%s6280 + $0x58] sm:$0xff]
        %v6293 = vld [vmem:[%s6280 + $0x60] sm:$0xff]
        %v6294 = vld [vmem:[%s6280 + $0x68] sm:$0xff]
        %v6295 = vld [vmem:[%s6280 + $0x70] sm:$0xff]
        %v6296 = vld [vmem:[%s6280 + $0x78] sm:$0xff]
        %v6297 = vld [vmem:[%s6280 + $0x80] sm:$0xff]
        %v6298 = vld [vmem:[%s6280 + $0x88] sm:$0xff]
        %v6299 = vld [vmem:[%s6280 + $0x90] sm:$0xff]
        %v6300 = vld [vmem:[%s6280 + $0x98] sm:$0xff]
        %v6301 = vld [vmem:[%s6280 + $0xa0] sm:$0xff]
        %v6302 = vld [vmem:[%s6280 + $0xa8] sm:$0xff]
        %v6303 = vld [vmem:[%s6280 + $0xb0] sm:$0xff]
        %v6304 = vld [vmem:[%s6280 + $0xb8] sm:$0xff]
        %v6305 = vld [vmem:[%s6280 + $0xc0] sm:$0xff]
        %v6306 = vld [vmem:[%s6280 + $0xc8] sm:$0xff]
        %v6307 = vld [vmem:[%s6280 + $0xd0] sm:$0xff]
        %v6308 = vld [vmem:[%s6280 + $0xd8] sm:$0xff]
        %v6309 = vld [vmem:[%s6280 + $0xe0] sm:$0xff]
        %v6310 = vld [vmem:[%s6280 + $0xe8] sm:$0xff]
        %v6311 = vld [vmem:[%s6280 + $0xf0] sm:$0xff]
        %v6312 = vld [vmem:[%s6280 + $0xf8] sm:$0xff]
        %v6313 = vld [vmem:[%s6280 + $0x100] sm:$0xff]
        %v6314 = vld [vmem:[%s6280 + $0x108] sm:$0xff]
        %v6315 = vld [vmem:[%s6280 + $0x110] sm:$0xff]
        %v6316 = vld [vmem:[%s6280 + $0x118] sm:$0xff]
        %v6317 = vld [vmem:[%s6280 + $0x120] sm:$0xff]
        %v6318 = vld [vmem:[%s6280 + $0x128] sm:$0xff]
        %v6319 = vld [vmem:[%s6280 + $0x130] sm:$0xff]
        %v6320 = vld [vmem:[%s6280 + $0x138] sm:$0xff]
        %v6321 = vld [vmem:[%s6280 + $0x140] sm:$0xff]
        %v6322 = vld [vmem:[%s6280 + $0x148] sm:$0xff]
        %v6323 = vld [vmem:[%s6280 + $0x150] sm:$0xff]
        %v6324 = vld [vmem:[%s6280 + $0x158] sm:$0xff]
        %v6325 = vld [vmem:[%s6280 + $0x160] sm:$0xff]
        %v6326 = vld [vmem:[%s6280 + $0x168] sm:$0xff]
        %v6327 = vld [vmem:[%s6280 + $0x170] sm:$0xff]
        %v6328 = vld [vmem:[%s6280 + $0x178] sm:$0xff]
        %v6329 = vld [vmem:[%s6280 + $0x180] sm:$0xff]
        %v6330 = vld [vmem:[%s6280 + $0x188] sm:$0xff]
        %v6331 = vld [vmem:[%s6280 + $0x190] sm:$0xff]
        %v6332 = vld [vmem:[%s6280 + $0x198] sm:$0xff]
        %v6333 = vld [vmem:[%s6280 + $0x1a0] sm:$0xff]
        %v6334 = vld [vmem:[%s6280 + $0x1a8] sm:$0xff]
        %v6335 = vld [vmem:[%s6280 + $0x1b0] sm:$0xff]
        %v6336 = vld [vmem:[%s6280 + $0x1b8] sm:$0xff]
        %v6337 = vld [vmem:[%s6280 + $0x1c0] sm:$0xff]
        %v6338 = vld [vmem:[%s6280 + $0x1c8] sm:$0xff]
        %v6339 = vld [vmem:[%s6280 + $0x1d0] sm:$0xff]
        %v6340 = vld [vmem:[%s6280 + $0x1d8] sm:$0xff]
        %v6341 = vld [vmem:[%s6280 + $0x1e0] sm:$0xff]
        %v6342 = vld [vmem:[%s6280 + $0x1e8] sm:$0xff]
        %v6343 = vld [vmem:[%s6280 + $0x1f0] sm:$0xff]
        %v6344 = vld [vmem:[%s6280 + $0x1f8] sm:$0xff]
        %v6345 = vld [vmem:[%s6280 + $0x200] sm:$0xff]
        %v6346 = vld [vmem:[%s6280 + $0x208] sm:$0xff]
        %v6347 = vld [vmem:[%s6280 + $0x210] sm:$0xff]
        %v6348 = vld [vmem:[%s6280 + $0x218] sm:$0xff]
        %v6349 = vld [vmem:[%s6280 + $0x220] sm:$0xff]
        %v6350 = vld [vmem:[%s6280 + $0x228] sm:$0xff]
        %v6351 = vld [vmem:[%s6280 + $0x230] sm:$0xff]
        %v6352 = vld [vmem:[%s6280 + $0x238] sm:$0xff]
        %v6359 = vrot.slane %v6274, 2
        %v6360 = vrot.slane %v6277, 2
        %v6361 = vsel %vm654, %v6359, %v6360
        %v6362 = vrot.slane %v6275, 2
        %v6363 = vrot.slane %v6278, 2
        %v6364 = vsel %vm654, %v6362, %v6363
        %v6365 = vrot.slane %v6276, 2
        %v6366 = vrot.slane %v6279, 2
        %v6367 = vsel %vm654, %v6365, %v6366
        %v6370 = vsel %vm575, %v6367, 0
        %6372 = vmatprep.subr.mxu0 %v6282
        %6373 = vmatpush1.msra.mxu0 %v6281
        %6374 = vmatprep.subr.mxu0 %v6284
        %6375 = vmatpush1.msra.mxu0 %v6283
        %6376 = vmatprep.subr.mxu0 %v6286
        %6377 = vmatpush1.msra.mxu0 %v6285
        %6378 = vmatprep.subr.mxu0 %v6288
        %6379 = vmatpush1.msra.mxu0 %v6287
        %6380 = vmatprep.subr.mxu0 %v6290
        %6381 = vmatpush1.msra.mxu0 %v6289
        %6382 = vmatprep.subr.mxu0 %v6292
        %6383 = vmatpush1.msra.mxu0 %v6291
        %6384 = vmatprep.subr.mxu0 %v6294
        %6385 = vmatpush1.msra.mxu0 %v6293
        %6386 = vmatprep.subr.mxu0 %v6296
        %6387 = vmatpush1.msra.mxu0 %v6295
        %6388 = vmatprep.subr.mxu0 %v6298
        %6389 = vmatpush1.msra.mxu0 %v6297
        %6390 = vmatprep.subr.mxu0 %v6300
        %6391 = vmatpush1.msra.mxu0 %v6299
        %6392 = vmatprep.subr.mxu0 %v6302
        %6393 = vmatpush1.msra.mxu0 %v6301
        %6394 = vmatprep.subr.mxu0 %v6304
        %6395 = vmatpush1.msra.mxu0 %v6303
        %6396 = vmatprep.subr.mxu0 %v6306
        %6397 = vmatpush1.msra.mxu0 %v6305
        %6398 = vmatprep.subr.mxu0 %v6308
        %6399 = vmatpush1.msra.mxu0 %v6307
        %6400 = vmatprep.subr.mxu0 %v6310
        %6401 = vmatpush1.msra.mxu0 %v6309
        %6402 = vmatprep.subr.mxu0 %v6312
        %6403 = vmatpush1.msra.mxu0 %v6311
        %6404 = vmatprep.subr.mxu0 %v6314
        %6405 = vmatpush1.msra.mxu0 %v6313
        %6406 = vmatprep.subr.mxu0 %v6316
        %6407 = vmatpush1.msra.mxu0 %v6315
        %6408 = vmatprep.subr.mxu0 %v6318
        %6409 = vmatpush1.msra.mxu0 %v6317
        %6410 = vmatprep.subr.mxu0 %v6320
        %6411 = vmatpush1.msra.mxu0 %v6319
        %6412 = vmatprep.subr.mxu0 %v6322
        %6413 = vmatpush1.msra.mxu0 %v6321
        %6414 = vmatprep.subr.mxu0 %v6324
        %6415 = vmatpush1.msra.mxu0 %v6323
        %6416 = vmatprep.subr.mxu0 %v6326
        %6417 = vmatpush1.msra.mxu0 %v6325
        %6418 = vmatprep.subr.mxu0 %v6328
        %6419 = vmatpush1.msra.mxu0 %v6327
        %6420 = vmatprep.subr.mxu0 %v6330
        %6421 = vmatpush1.msra.mxu0 %v6329
        %6422 = vmatprep.subr.mxu0 %v6332
        %6423 = vmatpush1.msra.mxu0 %v6331
        %6424 = vmatprep.subr.mxu0 %v6334
        %6425 = vmatpush1.msra.mxu0 %v6333
        %6426 = vmatprep.subr.mxu0 %v6336
        %6427 = vmatpush1.msra.mxu0 %v6335
        %6428 = vmatprep.subr.mxu0 %v6338
        %6429 = vmatpush1.msra.mxu0 %v6337
        %6430 = vmatprep.subr.mxu0 %v6340
        %6431 = vmatpush1.msra.mxu0 %v6339
        %6432 = vmatprep.subr.mxu0 %v6342
        %6433 = vmatpush1.msra.mxu0 %v6341
        %6434 = vmatprep.subr.mxu0 %v6344
        %6435 = vmatpush1.msra.mxu0 %v6343
        %6436 = vmatprep.mubr.f32.mxu0 %v6364
        %6437 = vmatmul.mubr.f32.gmra.mrb[0].mxu0 %v6361
        %v6438 = vpop.f32.mrb[0].mxu0
        %v6439 = vadd.f32 0.0, %v6438
        %v6440 = vpop.f32.mrb[0].mxu0
        %v6441 = vadd.f32 0.0, %v6440
        %6442 = vdwg.mxu0
        %6443 = vmatprep.subr.mxu0 %v6346
        %6444 = vmatpush1.msra.mxu0 %v6345
        %6445 = vmatprep.subr.mxu0 %v6348
        %6446 = vmatpush1.msra.mxu0 %v6347
        %6447 = vmatprep.subr.mxu0 %v6350
        %6448 = vmatpush1.msra.mxu0 %v6349
        %6449 = vmatprep.subr.mxu0 %v6352
        %6450 = vmatpush1.msra.mxu0 %v6351
        %6451 = vmatprep.subr.mxu0 0.0
        %6452 = vmatpush1.msra.mxu0 0.0
        %6453 = vmatprep.subr.mxu0 0.0
        %6454 = vmatpush1.msra.mxu0 0.0
        %6455 = vmatprep.subr.mxu0 0.0
        %6456 = vmatpush1.msra.mxu0 0.0
        %6457 = vmatprep.subr.mxu0 0.0
        %6458 = vmatpush1.msra.mxu0 0.0
        %6459 = vmatprep.subr.mxu0 0.0
        %6460 = vmatpush1.msra.mxu0 0.0
        %6461 = vmatprep.subr.mxu0 0.0
        %6462 = vmatpush1.msra.mxu0 0.0
        %6463 = vmatprep.subr.mxu0 0.0
        %6464 = vmatpush1.msra.mxu0 0.0
        %6465 = vmatprep.subr.mxu0 0.0
        %6466 = vmatpush1.msra.mxu0 0.0
        %6467 = vmatprep.subr.mxu0 0.0
        %6468 = vmatpush1.msra.mxu0 0.0
        %6469 = vmatprep.subr.mxu0 0.0
        %6470 = vmatpush1.msra.mxu0 0.0
        %6471 = vmatprep.subr.mxu0 0.0
        %6472 = vmatpush1.msra.mxu0 0.0
        %6473 = vmatprep.subr.mxu0 0.0
        %6474 = vmatpush1.msra.mxu0 0.0
        %6475 = vmatprep.subr.mxu0 0.0
        %6476 = vmatpush1.msra.mxu0 0.0
        %6477 = vmatprep.subr.mxu0 0.0
        %6478 = vmatpush1.msra.mxu0 0.0
        %6479 = vmatprep.subr.mxu0 0.0
        %6480 = vmatpush1.msra.mxu0 0.0
        %6481 = vmatprep.subr.mxu0 0.0
        %6482 = vmatpush1.msra.mxu0 0.0
        %6483 = vmatprep.subr.mxu0 0.0
        %6484 = vmatpush1.msra.mxu0 0.0
        %6485 = vmatprep.subr.mxu0 0.0
        %6486 = vmatpush1.msra.mxu0 0.0
        %6487 = vmatprep.subr.mxu0 0.0
        %6488 = vmatpush1.msra.mxu0 0.0
        %6489 = vmatprep.subr.mxu0 0.0
        %6490 = vmatpush1.msra.mxu0 0.0
        %6491 = vmatprep.subr.mxu0 0.0
        %6492 = vmatpush1.msra.mxu0 0.0
        %6493 = vmatprep.subr.mxu0 0.0
        %6494 = vmatpush1.msra.mxu0 0.0
        %6495 = vmatprep.subr.mxu0 0.0
        %6496 = vmatpush1.msra.mxu0 0.0
        %6497 = vmatprep.subr.mxu0 0.0
        %6498 = vmatpush1.msra.mxu0 0.0
        %6499 = vmatprep.subr.mxu0 0.0
        %6500 = vmatpush1.msra.mxu0 0.0
        %6501 = vmatprep.subr.mxu0 0.0
        %6502 = vmatpush1.msra.mxu0 0.0
        %6503 = vmatprep.subr.mxu0 0.0
        %6504 = vmatpush1.msra.mxu0 0.0
        %6505 = vmatprep.subr.mxu0 0.0
        %6506 = vmatpush1.msra.mxu0 0.0
        %6507 = vmatprep.mubr.f32.mxu0 0.0
        %6508 = vmatmul.mubr.f32.gmra.mrb[0].mxu0 %v6370
        %v6509 = vpop.f32.mrb[0].mxu0
        %v6510 = vadd.f32 %v6439, %v6509
        %v6511 = vpop.f32.mrb[0].mxu0
        %v6512 = vadd.f32 %v6441, %v6511
        %6513 = vdwg.mxu0
        %v6514 = vadd.f32 %v6270, %v6510
        %v6515 = vadd.f32 %v6272, %v6512
        %v6516 = vld [vmem:[%s10] ss:$2 sm:$0x3]
        %v6518 = vlaneseq
        %v6519 = vshrl.u32 %v6518, 7
        %v6520 = vsub.s32 0, %v6519
        %v6521 = vrot.slane %v6516, %v6520
        %v6522 = vlaneseq
        %v6523 = vshrl.u32 %v6522, 7
        %v6524 = vsub.s32 1, %v6523
        %v6525 = vrot.slane %v6516, %v6524
        %v6528 = vmul.f32 %v6514, %v6521
        %v6529 = vmul.f32 %v6515, %v6525
        %s6530 = scalar_lea.vmem %s10, 1
        %v6531 = vld [vmem:[%s6530] ss:$2 sm:$0x3]
        %v6533 = vlaneseq
        %v6534 = vshrl.u32 %v6533, 7
        %v6535 = vsub.s32 0, %v6534
        %v6536 = vrot.slane %v6531, %v6535
        %v6537 = vlaneseq
        %v6538 = vshrl.u32 %v6537, 7
        %v6539 = vsub.s32 1, %v6538
        %v6540 = vrot.slane %v6531, %v6539
        %v6543 = vadd.f32 %v6528, %v6536
        %v6544 = vadd.f32 %v6529, %v6540
        %vm6545 = vcmp.gt.f32.partialorder %v6543, 0.0
        %vm6546 = vcmp.gt.f32.partialorder %v6544, 0.0
        %v6547 = vmul.f32 %v6543, 0.1
        %v6548 = vmul.f32 %v6544, 0.1
        %v6549 = vsel %vm6545, %v6543, %v6547
        %v6550 = vsel %vm6546, %v6544, %v6548
        %v6551 = vld [vmem:[%s13] sm:$0xff]
        %v6552 = vld [vmem:[%s13 + $0x8] sm:$0xff]
        %v6553 = vld [vmem:[%s13 + $0x10] sm:$0xff]
        %v6554 = vld [vmem:[%s13 + $0x18] sm:$0xff]
        %v6555 = vld [vmem:[%s13 + $0x20] sm:$0xff]
        %v6556 = vld [vmem:[%s13 + $0x28] sm:$0xff]
        %v6557 = vld [vmem:[%s13 + $0x30] sm:$0xff]
        %v6558 = vld [vmem:[%s13 + $0x38] sm:$0xff]
        %v6559 = vld [vmem:[%s13 + $0x40] sm:$0xff]
        %v6560 = vld [vmem:[%s13 + $0x48] sm:$0xff]
        %v6561 = vld [vmem:[%s13 + $0x50] sm:$0xff]
        %v6562 = vld [vmem:[%s13 + $0x58] sm:$0xff]
        %v6563 = vld [vmem:[%s13 + $0x60] sm:$0xff]
        %v6564 = vld [vmem:[%s13 + $0x68] sm:$0xff]
        %v6565 = vld [vmem:[%s13 + $0x70] sm:$0xff]
        %v6566 = vld [vmem:[%s13 + $0x78] sm:$0xff]
        %v6567 = vld [vmem:[%s13 + $0x80] sm:$0xff]
        %v6568 = vld [vmem:[%s13 + $0x88] sm:$0xff]
        %v6569 = vld [vmem:[%s13 + $0x90] sm:$0xff]
        %v6570 = vld [vmem:[%s13 + $0x98] sm:$0xff]
        %v6571 = vld [vmem:[%s13 + $0xa0] sm:$0xff]
        %v6572 = vld [vmem:[%s13 + $0xa8] sm:$0xff]
        %v6573 = vld [vmem:[%s13 + $0xb0] sm:$0xff]
        %v6574 = vld [vmem:[%s13 + $0xb8] sm:$0xff]
        %v6575 = vld [vmem:[%s13 + $0xc0] sm:$0xff]
        %v6576 = vld [vmem:[%s13 + $0xc8] sm:$0xff]
        %v6577 = vld [vmem:[%s13 + $0xd0] sm:$0xff]
        %v6578 = vld [vmem:[%s13 + $0xd8] sm:$0xff]
        %s6579 = scalar_lea.vmem %s13, 224
        %v6580 = vld [vmem:[%s6579] sm:$0xff]
        %v6581 = vld [vmem:[%s6579 + $0x8] sm:$0xff]
        %v6582 = vld [vmem:[%s6579 + $0x10] sm:$0xff]
        %v6583 = vld [vmem:[%s6579 + $0x18] sm:$0xff]
        %v6584 = vld [vmem:[%s6579 + $0x20] sm:$0xff]
        %v6585 = vld [vmem:[%s6579 + $0x28] sm:$0xff]
        %v6586 = vld [vmem:[%s6579 + $0x30] sm:$0xff]
        %v6587 = vld [vmem:[%s6579 + $0x38] sm:$0xff]
        %v6588 = vld [vmem:[%s6579 + $0x40] sm:$0xff]
        %v6589 = vld [vmem:[%s6579 + $0x48] sm:$0xff]
        %v6590 = vld [vmem:[%s6579 + $0x50] sm:$0xff]
        %v6591 = vld [vmem:[%s6579 + $0x58] sm:$0xff]
        %v6592 = vld [vmem:[%s6579 + $0x60] sm:$0xff]
        %v6593 = vld [vmem:[%s6579 + $0x68] sm:$0xff]
        %v6594 = vld [vmem:[%s6579 + $0x70] sm:$0xff]
        %v6595 = vld [vmem:[%s6579 + $0x78] sm:$0xff]
        %v6596 = vld [vmem:[%s6579 + $0x80] sm:$0xff]
        %v6597 = vld [vmem:[%s6579 + $0x88] sm:$0xff]
        %v6598 = vld [vmem:[%s6579 + $0x90] sm:$0xff]
        %v6599 = vld [vmem:[%s6579 + $0x98] sm:$0xff]
        %v6600 = vld [vmem:[%s6579 + $0xa0] sm:$0xff]
        %v6601 = vld [vmem:[%s6579 + $0xa8] sm:$0xff]
        %v6602 = vld [vmem:[%s6579 + $0xb0] sm:$0xff]
        %v6603 = vld [vmem:[%s6579 + $0xb8] sm:$0xff]
        %v6604 = vld [vmem:[%s6579 + $0xc0] sm:$0xff]
        %v6605 = vld [vmem:[%s6579 + $0xc8] sm:$0xff]
        %v6606 = vld [vmem:[%s6579 + $0xd0] sm:$0xff]
        %v6607 = vld [vmem:[%s6579 + $0xd8] sm:$0xff]
        %v6610 = vrot.slane %v6549, 1
        %v6611 = vrot.slane %v6550, 1
        %v6613 = vsel %vm630, %v6611, 0
        %6615 = vmatprep.subr.mxu0 0.0
        %6616 = vmatpush1.msra.mxu0 %v6580
        %6617 = vmatprep.subr.mxu0 0.0
        %6618 = vmatpush1.msra.mxu0 %v6581
        %6619 = vmatprep.subr.mxu0 0.0
        %6620 = vmatpush1.msra.mxu0 %v6582
        %6621 = vmatprep.subr.mxu0 0.0
        %6622 = vmatpush1.msra.mxu0 %v6583
        %6623 = vmatprep.subr.mxu0 0.0
        %6624 = vmatpush1.msra.mxu0 %v6584
        %6625 = vmatprep.subr.mxu0 0.0
        %6626 = vmatpush1.msra.mxu0 %v6585
        %6627 = vmatprep.subr.mxu0 0.0
        %6628 = vmatpush1.msra.mxu0 %v6586
        %6629 = vmatprep.subr.mxu0 0.0
        %6630 = vmatpush1.msra.mxu0 %v6587
        %6631 = vmatprep.subr.mxu0 0.0
        %6632 = vmatpush1.msra.mxu0 %v6588
        %6633 = vmatprep.subr.mxu0 0.0
        %6634 = vmatpush1.msra.mxu0 %v6589
        %6635 = vmatprep.subr.mxu0 0.0
        %6636 = vmatpush1.msra.mxu0 %v6590
        %6637 = vmatprep.subr.mxu0 0.0
        %6638 = vmatpush1.msra.mxu0 %v6591
        %6639 = vmatprep.subr.mxu0 0.0
        %6640 = vmatpush1.msra.mxu0 %v6592
        %6641 = vmatprep.subr.mxu0 0.0
        %6642 = vmatpush1.msra.mxu0 %v6593
        %6643 = vmatprep.subr.mxu0 0.0
        %6644 = vmatpush1.msra.mxu0 %v6594
        %6645 = vmatprep.subr.mxu0 0.0
        %6646 = vmatpush1.msra.mxu0 %v6595
        %6647 = vmatprep.subr.mxu0 0.0
        %6648 = vmatpush1.msra.mxu0 %v6596
        %6649 = vmatprep.subr.mxu0 0.0
        %6650 = vmatpush1.msra.mxu0 %v6597
        %6651 = vmatprep.subr.mxu0 0.0
        %6652 = vmatpush1.msra.mxu0 %v6598
        %6653 = vmatprep.subr.mxu0 0.0
        %6654 = vmatpush1.msra.mxu0 %v6599
        %6655 = vmatprep.subr.mxu0 0.0
        %6656 = vmatpush1.msra.mxu0 %v6600
        %6657 = vmatprep.subr.mxu0 0.0
        %6658 = vmatpush1.msra.mxu0 %v6601
        %6659 = vmatprep.subr.mxu0 0.0
        %6660 = vmatpush1.msra.mxu0 %v6602
        %6661 = vmatprep.subr.mxu0 0.0
        %6662 = vmatpush1.msra.mxu0 %v6603
        %6663 = vmatprep.subr.mxu0 0.0
        %6664 = vmatpush1.msra.mxu0 %v6604
        %6665 = vmatprep.subr.mxu0 0.0
        %6666 = vmatpush1.msra.mxu0 %v6605
        %6667 = vmatprep.subr.mxu0 0.0
        %6668 = vmatpush1.msra.mxu0 %v6606
        %6669 = vmatprep.subr.mxu0 0.0
        %6670 = vmatpush1.msra.mxu0 %v6607
        %6671 = vmatprep.subr.mxu0 0.0
        %6672 = vmatpush1.msra.mxu0 0.0
        %6673 = vmatprep.subr.mxu0 0.0
        %6674 = vmatpush1.msra.mxu0 0.0
        %6675 = vmatprep.subr.mxu0 0.0
        %6676 = vmatpush1.msra.mxu0 0.0
        %6677 = vmatprep.subr.mxu0 0.0
        %6678 = vmatpush1.msra.mxu0 0.0
        %6679 = vmatprep.mubr.f32.mxu0 %v6613
        %6680 = vmatmul.mubr.f32.gmra.mrb[0].mxu0 %v6610
        %v6681 = vpop.f32.mrb[0].mxu0
        %v6682 = vadd.f32 0.0, %v6681
        %v6683 = vpop.f32.mrb[0].mxu0
        %6684 = vdwg.mxu0
        %v6685 = vsel %vm630, %v6550, 0
        %6687 = vmatprep.subr.mxu0 0.0
        %6688 = vmatpush1.msra.mxu0 %v6551
        %6689 = vmatprep.subr.mxu0 0.0
        %6690 = vmatpush1.msra.mxu0 %v6552
        %6691 = vmatprep.subr.mxu0 0.0
        %6692 = vmatpush1.msra.mxu0 %v6553
        %6693 = vmatprep.subr.mxu0 0.0
        %6694 = vmatpush1.msra.mxu0 %v6554
        %6695 = vmatprep.subr.mxu0 0.0
        %6696 = vmatpush1.msra.mxu0 %v6555
        %6697 = vmatprep.subr.mxu0 0.0
        %6698 = vmatpush1.msra.mxu0 %v6556
        %6699 = vmatprep.subr.mxu0 0.0
        %6700 = vmatpush1.msra.mxu0 %v6557
        %6701 = vmatprep.subr.mxu0 0.0
        %6702 = vmatpush1.msra.mxu0 %v6558
        %6703 = vmatprep.subr.mxu0 0.0
        %6704 = vmatpush1.msra.mxu0 %v6559
        %6705 = vmatprep.subr.mxu0 0.0
        %6706 = vmatpush1.msra.mxu0 %v6560
        %6707 = vmatprep.subr.mxu0 0.0
        %6708 = vmatpush1.msra.mxu0 %v6561
        %6709 = vmatprep.subr.mxu0 0.0
        %6710 = vmatpush1.msra.mxu0 %v6562
        %6711 = vmatprep.subr.mxu0 0.0
        %6712 = vmatpush1.msra.mxu0 %v6563
        %6713 = vmatprep.subr.mxu0 0.0
        %6714 = vmatpush1.msra.mxu0 %v6564
        %6715 = vmatprep.subr.mxu0 0.0
        %6716 = vmatpush1.msra.mxu0 %v6565
        %6717 = vmatprep.subr.mxu0 0.0
        %6718 = vmatpush1.msra.mxu0 %v6566
        %6719 = vmatprep.subr.mxu0 0.0
        %6720 = vmatpush1.msra.mxu0 %v6567
        %6721 = vmatprep.subr.mxu0 0.0
        %6722 = vmatpush1.msra.mxu0 %v6568
        %6723 = vmatprep.subr.mxu0 0.0
        %6724 = vmatpush1.msra.mxu0 %v6569
        %6725 = vmatprep.subr.mxu0 0.0
        %6726 = vmatpush1.msra.mxu0 %v6570
        %6727 = vmatprep.subr.mxu0 0.0
        %6728 = vmatpush1.msra.mxu0 %v6571
        %6729 = vmatprep.subr.mxu0 0.0
        %6730 = vmatpush1.msra.mxu0 %v6572
        %6731 = vmatprep.subr.mxu0 0.0
        %6732 = vmatpush1.msra.mxu0 %v6573
        %6733 = vmatprep.subr.mxu0 0.0
        %6734 = vmatpush1.msra.mxu0 %v6574
        %6735 = vmatprep.subr.mxu0 0.0
        %6736 = vmatpush1.msra.mxu0 %v6575
        %6737 = vmatprep.subr.mxu0 0.0
        %6738 = vmatpush1.msra.mxu0 %v6576
        %6739 = vmatprep.subr.mxu0 0.0
        %6740 = vmatpush1.msra.mxu0 %v6577
        %6741 = vmatprep.subr.mxu0 0.0
        %6742 = vmatpush1.msra.mxu0 %v6578
        %6743 = vmatprep.subr.mxu0 0.0
        %6744 = vmatpush1.msra.mxu0 0.0
        %6745 = vmatprep.subr.mxu0 0.0
        %6746 = vmatpush1.msra.mxu0 0.0
        %6747 = vmatprep.subr.mxu0 0.0
        %6748 = vmatpush1.msra.mxu0 0.0
        %6749 = vmatprep.subr.mxu0 0.0
        %6750 = vmatpush1.msra.mxu0 0.0
        %6751 = vmatprep.mubr.f32.mxu0 %v6685
        %6752 = vmatmul.mubr.f32.gmra.mrb[0].mxu0 %v6549
        %v6753 = vpop.f32.mrb[0].mxu0
        %v6754 = vadd.f32 %v6682, %v6753
        %v6755 = vpop.f32.mrb[0].mxu0
        %6756 = vdwg.mxu0
        %s6757 = scalar_lea.vmem %s13, 448
        %v6758 = vld [vmem:[%s6757] sm:$0xff]
        %v6759 = vld [vmem:[%s6757 + $0x8] sm:$0xff]
        %v6760 = vld [vmem:[%s6757 + $0x10] sm:$0xff]
        %v6761 = vld [vmem:[%s6757 + $0x18] sm:$0xff]
        %v6762 = vld [vmem:[%s6757 + $0x20] sm:$0xff]
        %v6763 = vld [vmem:[%s6757 + $0x28] sm:$0xff]
        %v6764 = vld [vmem:[%s6757 + $0x30] sm:$0xff]
        %v6765 = vld [vmem:[%s6757 + $0x38] sm:$0xff]
        %v6766 = vld [vmem:[%s6757 + $0x40] sm:$0xff]
        %v6767 = vld [vmem:[%s6757 + $0x48] sm:$0xff]
        %v6768 = vld [vmem:[%s6757 + $0x50] sm:$0xff]
        %v6769 = vld [vmem:[%s6757 + $0x58] sm:$0xff]
        %v6770 = vld [vmem:[%s6757 + $0x60] sm:$0xff]
        %v6771 = vld [vmem:[%s6757 + $0x68] sm:$0xff]
        %v6772 = vld [vmem:[%s6757 + $0x70] sm:$0xff]
        %v6773 = vld [vmem:[%s6757 + $0x78] sm:$0xff]
        %v6774 = vld [vmem:[%s6757 + $0x80] sm:$0xff]
        %v6775 = vld [vmem:[%s6757 + $0x88] sm:$0xff]
        %v6776 = vld [vmem:[%s6757 + $0x90] sm:$0xff]
        %v6777 = vld [vmem:[%s6757 + $0x98] sm:$0xff]
        %v6778 = vld [vmem:[%s6757 + $0xa0] sm:$0xff]
        %v6779 = vld [vmem:[%s6757 + $0xa8] sm:$0xff]
        %v6780 = vld [vmem:[%s6757 + $0xb0] sm:$0xff]
        %v6781 = vld [vmem:[%s6757 + $0xb8] sm:$0xff]
        %v6782 = vld [vmem:[%s6757 + $0xc0] sm:$0xff]
        %v6783 = vld [vmem:[%s6757 + $0xc8] sm:$0xff]
        %v6784 = vld [vmem:[%s6757 + $0xd0] sm:$0xff]
        %v6785 = vld [vmem:[%s6757 + $0xd8] sm:$0xff]
        %v6786 = vrot.slane %v6549, 2
        %v6787 = vrot.slane %v6550, 2
        %v6789 = vsel %vm630, %v6787, 0
        %6791 = vmatprep.subr.mxu0 0.0
        %6792 = vmatpush1.msra.mxu0 %v6758
        %6793 = vmatprep.subr.mxu0 0.0
        %6794 = vmatpush1.msra.mxu0 %v6759
        %6795 = vmatprep.subr.mxu0 0.0
        %6796 = vmatpush1.msra.mxu0 %v6760
        %6797 = vmatprep.subr.mxu0 0.0
        %6798 = vmatpush1.msra.mxu0 %v6761
        %6799 = vmatprep.subr.mxu0 0.0
        %6800 = vmatpush1.msra.mxu0 %v6762
        %6801 = vmatprep.subr.mxu0 0.0
        %6802 = vmatpush1.msra.mxu0 %v6763
        %6803 = vmatprep.subr.mxu0 0.0
        %6804 = vmatpush1.msra.mxu0 %v6764
        %6805 = vmatprep.subr.mxu0 0.0
        %6806 = vmatpush1.msra.mxu0 %v6765
        %6807 = vmatprep.subr.mxu0 0.0
        %6808 = vmatpush1.msra.mxu0 %v6766
        %6809 = vmatprep.subr.mxu0 0.0
        %6810 = vmatpush1.msra.mxu0 %v6767
        %6811 = vmatprep.subr.mxu0 0.0
        %6812 = vmatpush1.msra.mxu0 %v6768
        %6813 = vmatprep.subr.mxu0 0.0
        %6814 = vmatpush1.msra.mxu0 %v6769
        %6815 = vmatprep.subr.mxu0 0.0
        %6816 = vmatpush1.msra.mxu0 %v6770
        %6817 = vmatprep.subr.mxu0 0.0
        %6818 = vmatpush1.msra.mxu0 %v6771
        %6819 = vmatprep.subr.mxu0 0.0
        %6820 = vmatpush1.msra.mxu0 %v6772
        %6821 = vmatprep.subr.mxu0 0.0
        %6822 = vmatpush1.msra.mxu0 %v6773
        %6823 = vmatprep.subr.mxu0 0.0
        %6824 = vmatpush1.msra.mxu0 %v6774
        %6825 = vmatprep.subr.mxu0 0.0
        %6826 = vmatpush1.msra.mxu0 %v6775
        %6827 = vmatprep.subr.mxu0 0.0
        %6828 = vmatpush1.msra.mxu0 %v6776
        %6829 = vmatprep.subr.mxu0 0.0
        %6830 = vmatpush1.msra.mxu0 %v6777
        %6831 = vmatprep.subr.mxu0 0.0
        %6832 = vmatpush1.msra.mxu0 %v6778
        %6833 = vmatprep.subr.mxu0 0.0
        %6834 = vmatpush1.msra.mxu0 %v6779
        %6835 = vmatprep.subr.mxu0 0.0
        %6836 = vmatpush1.msra.mxu0 %v6780
        %6837 = vmatprep.subr.mxu0 0.0
        %6838 = vmatpush1.msra.mxu0 %v6781
        %6839 = vmatprep.subr.mxu0 0.0
        %6840 = vmatpush1.msra.mxu0 %v6782
        %6841 = vmatprep.subr.mxu0 0.0
        %6842 = vmatpush1.msra.mxu0 %v6783
        %6843 = vmatprep.subr.mxu0 0.0
        %6844 = vmatpush1.msra.mxu0 %v6784
        %6845 = vmatprep.subr.mxu0 0.0
        %6846 = vmatpush1.msra.mxu0 %v6785
        %6847 = vmatprep.subr.mxu0 0.0
        %6848 = vmatpush1.msra.mxu0 0.0
        %6849 = vmatprep.subr.mxu0 0.0
        %6850 = vmatpush1.msra.mxu0 0.0
        %6851 = vmatprep.subr.mxu0 0.0
        %6852 = vmatpush1.msra.mxu0 0.0
        %6853 = vmatprep.subr.mxu0 0.0
        %6854 = vmatpush1.msra.mxu0 0.0
        %6855 = vmatprep.mubr.f32.mxu0 %v6789
        %6856 = vmatmul.mubr.f32.gmra.mrb[0].mxu0 %v6786
        %v6857 = vpop.f32.mrb[0].mxu0
        %v6858 = vadd.f32 0.0, %v6857
        %v6859 = vpop.f32.mrb[0].mxu0
        %6860 = vdwg.mxu0
        %v6861 = vadd.f32 %v6754, %v6858
        %s6862 = scalar_lea.vmem %s13, 672
        %v6863 = vld [vmem:[%s6862] sm:$0xff]
        %v6864 = vld [vmem:[%s6862 + $0x8] sm:$0xff]
        %v6865 = vld [vmem:[%s6862 + $0x10] sm:$0xff]
        %v6866 = vld [vmem:[%s6862 + $0x18] sm:$0xff]
        %v6867 = vld [vmem:[%s6862 + $0x20] sm:$0xff]
        %v6868 = vld [vmem:[%s6862 + $0x28] sm:$0xff]
        %v6869 = vld [vmem:[%s6862 + $0x30] sm:$0xff]
        %v6870 = vld [vmem:[%s6862 + $0x38] sm:$0xff]
        %v6871 = vld [vmem:[%s6862 + $0x40] sm:$0xff]
        %v6872 = vld [vmem:[%s6862 + $0x48] sm:$0xff]
        %v6873 = vld [vmem:[%s6862 + $0x50] sm:$0xff]
        %v6874 = vld [vmem:[%s6862 + $0x58] sm:$0xff]
        %v6875 = vld [vmem:[%s6862 + $0x60] sm:$0xff]
        %v6876 = vld [vmem:[%s6862 + $0x68] sm:$0xff]
        %v6877 = vld [vmem:[%s6862 + $0x70] sm:$0xff]
        %v6878 = vld [vmem:[%s6862 + $0x78] sm:$0xff]
        %v6879 = vld [vmem:[%s6862 + $0x80] sm:$0xff]
        %v6880 = vld [vmem:[%s6862 + $0x88] sm:$0xff]
        %v6881 = vld [vmem:[%s6862 + $0x90] sm:$0xff]
        %v6882 = vld [vmem:[%s6862 + $0x98] sm:$0xff]
        %v6883 = vld [vmem:[%s6862 + $0xa0] sm:$0xff]
        %v6884 = vld [vmem:[%s6862 + $0xa8] sm:$0xff]
        %v6885 = vld [vmem:[%s6862 + $0xb0] sm:$0xff]
        %v6886 = vld [vmem:[%s6862 + $0xb8] sm:$0xff]
        %v6887 = vld [vmem:[%s6862 + $0xc0] sm:$0xff]
        %v6888 = vld [vmem:[%s6862 + $0xc8] sm:$0xff]
        %v6889 = vld [vmem:[%s6862 + $0xd0] sm:$0xff]
        %v6890 = vld [vmem:[%s6862 + $0xd8] sm:$0xff]
        %v6891 = vrot.slane %v6549, 3
        %v6892 = vrot.slane %v6550, 3
        %v6894 = vsel %vm630, %v6892, 0
        %6896 = vmatprep.subr.mxu0 0.0
        %6897 = vmatpush1.msra.mxu0 %v6863
        %6898 = vmatprep.subr.mxu0 0.0
        %6899 = vmatpush1.msra.mxu0 %v6864
        %6900 = vmatprep.subr.mxu0 0.0
        %6901 = vmatpush1.msra.mxu0 %v6865
        %6902 = vmatprep.subr.mxu0 0.0
        %6903 = vmatpush1.msra.mxu0 %v6866
        %6904 = vmatprep.subr.mxu0 0.0
        %6905 = vmatpush1.msra.mxu0 %v6867
        %6906 = vmatprep.subr.mxu0 0.0
        %6907 = vmatpush1.msra.mxu0 %v6868
        %6908 = vmatprep.subr.mxu0 0.0
        %6909 = vmatpush1.msra.mxu0 %v6869
        %6910 = vmatprep.subr.mxu0 0.0
        %6911 = vmatpush1.msra.mxu0 %v6870
        %6912 = vmatprep.subr.mxu0 0.0
        %6913 = vmatpush1.msra.mxu0 %v6871
        %6914 = vmatprep.subr.mxu0 0.0
        %6915 = vmatpush1.msra.mxu0 %v6872
        %6916 = vmatprep.subr.mxu0 0.0
        %6917 = vmatpush1.msra.mxu0 %v6873
        %6918 = vmatprep.subr.mxu0 0.0
        %6919 = vmatpush1.msra.mxu0 %v6874
        %6920 = vmatprep.subr.mxu0 0.0
        %6921 = vmatpush1.msra.mxu0 %v6875
        %6922 = vmatprep.subr.mxu0 0.0
        %6923 = vmatpush1.msra.mxu0 %v6876
        %6924 = vmatprep.subr.mxu0 0.0
        %6925 = vmatpush1.msra.mxu0 %v6877
        %6926 = vmatprep.subr.mxu0 0.0
        %6927 = vmatpush1.msra.mxu0 %v6878
        %6928 = vmatprep.subr.mxu0 0.0
        %6929 = vmatpush1.msra.mxu0 %v6879
        %6930 = vmatprep.subr.mxu0 0.0
        %6931 = vmatpush1.msra.mxu0 %v6880
        %6932 = vmatprep.subr.mxu0 0.0
        %6933 = vmatpush1.msra.mxu0 %v6881
        %6934 = vmatprep.subr.mxu0 0.0
        %6935 = vmatpush1.msra.mxu0 %v6882
        %6936 = vmatprep.subr.mxu0 0.0
        %6937 = vmatpush1.msra.mxu0 %v6883
        %6938 = vmatprep.subr.mxu0 0.0
        %6939 = vmatpush1.msra.mxu0 %v6884
        %6940 = vmatprep.subr.mxu0 0.0
        %6941 = vmatpush1.msra.mxu0 %v6885
        %6942 = vmatprep.subr.mxu0 0.0
        %6943 = vmatpush1.msra.mxu0 %v6886
        %6944 = vmatprep.subr.mxu0 0.0
        %6945 = vmatpush1.msra.mxu0 %v6887
        %6946 = vmatprep.subr.mxu0 0.0
        %6947 = vmatpush1.msra.mxu0 %v6888
        %6948 = vmatprep.subr.mxu0 0.0
        %6949 = vmatpush1.msra.mxu0 %v6889
        %6950 = vmatprep.subr.mxu0 0.0
        %6951 = vmatpush1.msra.mxu0 %v6890
        %6952 = vmatprep.subr.mxu0 0.0
        %6953 = vmatpush1.msra.mxu0 0.0
        %6954 = vmatprep.subr.mxu0 0.0
        %6955 = vmatpush1.msra.mxu0 0.0
        %6956 = vmatprep.subr.mxu0 0.0
        %6957 = vmatpush1.msra.mxu0 0.0
        %6958 = vmatprep.subr.mxu0 0.0
        %6959 = vmatpush1.msra.mxu0 0.0
        %6960 = vmatprep.mubr.f32.mxu0 %v6894
        %6961 = vmatmul.mubr.f32.gmra.mrb[0].mxu0 %v6891
        %v6962 = vpop.f32.mrb[0].mxu0
        %v6963 = vadd.f32 0.0, %v6962
        %v6964 = vpop.f32.mrb[0].mxu0
        %6965 = vdwg.mxu0
        %v6966 = vadd.f32 %v6861, %v6963
        %s6967 = scalar_lea.vmem %s13, 896
        %v6968 = vld [vmem:[%s6967] sm:$0xff]
        %v6969 = vld [vmem:[%s6967 + $0x8] sm:$0xff]
        %v6970 = vld [vmem:[%s6967 + $0x10] sm:$0xff]
        %v6971 = vld [vmem:[%s6967 + $0x18] sm:$0xff]
        %v6972 = vld [vmem:[%s6967 + $0x20] sm:$0xff]
        %v6973 = vld [vmem:[%s6967 + $0x28] sm:$0xff]
        %v6974 = vld [vmem:[%s6967 + $0x30] sm:$0xff]
        %v6975 = vld [vmem:[%s6967 + $0x38] sm:$0xff]
        %v6976 = vld [vmem:[%s6967 + $0x40] sm:$0xff]
        %v6977 = vld [vmem:[%s6967 + $0x48] sm:$0xff]
        %v6978 = vld [vmem:[%s6967 + $0x50] sm:$0xff]
        %v6979 = vld [vmem:[%s6967 + $0x58] sm:$0xff]
        %v6980 = vld [vmem:[%s6967 + $0x60] sm:$0xff]
        %v6981 = vld [vmem:[%s6967 + $0x68] sm:$0xff]
        %v6982 = vld [vmem:[%s6967 + $0x70] sm:$0xff]
        %v6983 = vld [vmem:[%s6967 + $0x78] sm:$0xff]
        %v6984 = vld [vmem:[%s6967 + $0x80] sm:$0xff]
        %v6985 = vld [vmem:[%s6967 + $0x88] sm:$0xff]
        %v6986 = vld [vmem:[%s6967 + $0x90] sm:$0xff]
        %v6987 = vld [vmem:[%s6967 + $0x98] sm:$0xff]
        %v6988 = vld [vmem:[%s6967 + $0xa0] sm:$0xff]
        %v6989 = vld [vmem:[%s6967 + $0xa8] sm:$0xff]
        %v6990 = vld [vmem:[%s6967 + $0xb0] sm:$0xff]
        %v6991 = vld [vmem:[%s6967 + $0xb8] sm:$0xff]
        %v6992 = vld [vmem:[%s6967 + $0xc0] sm:$0xff]
        %v6993 = vld [vmem:[%s6967 + $0xc8] sm:$0xff]
        %v6994 = vld [vmem:[%s6967 + $0xd0] sm:$0xff]
        %v6995 = vld [vmem:[%s6967 + $0xd8] sm:$0xff]
        %v6996 = vrot.slane %v6549, 4
        %v6997 = vrot.slane %v6550, 4
        %v6999 = vsel %vm630, %v6997, 0
        %7001 = vmatprep.subr.mxu0 0.0
        %7002 = vmatpush1.msra.mxu0 %v6968
        %7003 = vmatprep.subr.mxu0 0.0
        %7004 = vmatpush1.msra.mxu0 %v6969
        %7005 = vmatprep.subr.mxu0 0.0
        %7006 = vmatpush1.msra.mxu0 %v6970
        %7007 = vmatprep.subr.mxu0 0.0
        %7008 = vmatpush1.msra.mxu0 %v6971
        %7009 = vmatprep.subr.mxu0 0.0
        %7010 = vmatpush1.msra.mxu0 %v6972
        %7011 = vmatprep.subr.mxu0 0.0
        %7012 = vmatpush1.msra.mxu0 %v6973
        %7013 = vmatprep.subr.mxu0 0.0
        %7014 = vmatpush1.msra.mxu0 %v6974
        %7015 = vmatprep.subr.mxu0 0.0
        %7016 = vmatpush1.msra.mxu0 %v6975
        %7017 = vmatprep.subr.mxu0 0.0
        %7018 = vmatpush1.msra.mxu0 %v6976
        %7019 = vmatprep.subr.mxu0 0.0
        %7020 = vmatpush1.msra.mxu0 %v6977
        %7021 = vmatprep.subr.mxu0 0.0
        %7022 = vmatpush1.msra.mxu0 %v6978
        %7023 = vmatprep.subr.mxu0 0.0
        %7024 = vmatpush1.msra.mxu0 %v6979
        %7025 = vmatprep.subr.mxu0 0.0
        %7026 = vmatpush1.msra.mxu0 %v6980
        %7027 = vmatprep.subr.mxu0 0.0
        %7028 = vmatpush1.msra.mxu0 %v6981
        %7029 = vmatprep.subr.mxu0 0.0
        %7030 = vmatpush1.msra.mxu0 %v6982
        %7031 = vmatprep.subr.mxu0 0.0
        %7032 = vmatpush1.msra.mxu0 %v6983
        %7033 = vmatprep.subr.mxu0 0.0
        %7034 = vmatpush1.msra.mxu0 %v6984
        %7035 = vmatprep.subr.mxu0 0.0
        %7036 = vmatpush1.msra.mxu0 %v6985
        %7037 = vmatprep.subr.mxu0 0.0
        %7038 = vmatpush1.msra.mxu0 %v6986
        %7039 = vmatprep.subr.mxu0 0.0
        %7040 = vmatpush1.msra.mxu0 %v6987
        %7041 = vmatprep.subr.mxu0 0.0
        %7042 = vmatpush1.msra.mxu0 %v6988
        %7043 = vmatprep.subr.mxu0 0.0
        %7044 = vmatpush1.msra.mxu0 %v6989
        %7045 = vmatprep.subr.mxu0 0.0
        %7046 = vmatpush1.msra.mxu0 %v6990
        %7047 = vmatprep.subr.mxu0 0.0
        %7048 = vmatpush1.msra.mxu0 %v6991
        %7049 = vmatprep.subr.mxu0 0.0
        %7050 = vmatpush1.msra.mxu0 %v6992
        %7051 = vmatprep.subr.mxu0 0.0
        %7052 = vmatpush1.msra.mxu0 %v6993
        %7053 = vmatprep.subr.mxu0 0.0
        %7054 = vmatpush1.msra.mxu0 %v6994
        %7055 = vmatprep.subr.mxu0 0.0
        %7056 = vmatpush1.msra.mxu0 %v6995
        %7057 = vmatprep.subr.mxu0 0.0
        %7058 = vmatpush1.msra.mxu0 0.0
        %7059 = vmatprep.subr.mxu0 0.0
        %7060 = vmatpush1.msra.mxu0 0.0
        %7061 = vmatprep.subr.mxu0 0.0
        %7062 = vmatpush1.msra.mxu0 0.0
        %7063 = vmatprep.subr.mxu0 0.0
        %7064 = vmatpush1.msra.mxu0 0.0
        %7065 = vmatprep.mubr.f32.mxu0 %v6999
        %7066 = vmatmul.mubr.f32.gmra.mrb[0].mxu0 %v6996
        %v7067 = vpop.f32.mrb[0].mxu0
        %v7068 = vadd.f32 0.0, %v7067
        %v7069 = vpop.f32.mrb[0].mxu0
        %7070 = vdwg.mxu0
        %v7071 = vadd.f32 %v6966, %v7068
        %s7072 = scalar_lea.vmem %s13, 1120
        %v7073 = vld [vmem:[%s7072] sm:$0xff]
        %v7074 = vld [vmem:[%s7072 + $0x8] sm:$0xff]
        %v7075 = vld [vmem:[%s7072 + $0x10] sm:$0xff]
        %v7076 = vld [vmem:[%s7072 + $0x18] sm:$0xff]
        %v7077 = vld [vmem:[%s7072 + $0x20] sm:$0xff]
        %v7078 = vld [vmem:[%s7072 + $0x28] sm:$0xff]
        %v7079 = vld [vmem:[%s7072 + $0x30] sm:$0xff]
        %v7080 = vld [vmem:[%s7072 + $0x38] sm:$0xff]
        %v7081 = vld [vmem:[%s7072 + $0x40] sm:$0xff]
        %v7082 = vld [vmem:[%s7072 + $0x48] sm:$0xff]
        %v7083 = vld [vmem:[%s7072 + $0x50] sm:$0xff]
        %v7084 = vld [vmem:[%s7072 + $0x58] sm:$0xff]
        %v7085 = vld [vmem:[%s7072 + $0x60] sm:$0xff]
        %v7086 = vld [vmem:[%s7072 + $0x68] sm:$0xff]
        %v7087 = vld [vmem:[%s7072 + $0x70] sm:$0xff]
        %v7088 = vld [vmem:[%s7072 + $0x78] sm:$0xff]
        %v7089 = vld [vmem:[%s7072 + $0x80] sm:$0xff]
        %v7090 = vld [vmem:[%s7072 + $0x88] sm:$0xff]
        %v7091 = vld [vmem:[%s7072 + $0x90] sm:$0xff]
        %v7092 = vld [vmem:[%s7072 + $0x98] sm:$0xff]
        %v7093 = vld [vmem:[%s7072 + $0xa0] sm:$0xff]
        %v7094 = vld [vmem:[%s7072 + $0xa8] sm:$0xff]
        %v7095 = vld [vmem:[%s7072 + $0xb0] sm:$0xff]
        %v7096 = vld [vmem:[%s7072 + $0xb8] sm:$0xff]
        %v7097 = vld [vmem:[%s7072 + $0xc0] sm:$0xff]
        %v7098 = vld [vmem:[%s7072 + $0xc8] sm:$0xff]
        %v7099 = vld [vmem:[%s7072 + $0xd0] sm:$0xff]
        %v7100 = vld [vmem:[%s7072 + $0xd8] sm:$0xff]
        %v7101 = vrot.slane %v6549, 5
        %v7102 = vrot.slane %v6550, 5
        %v7104 = vsel %vm630, %v7102, 0
        %7106 = vmatprep.subr.mxu0 0.0
        %7107 = vmatpush1.msra.mxu0 %v7073
        %7108 = vmatprep.subr.mxu0 0.0
        %7109 = vmatpush1.msra.mxu0 %v7074
        %7110 = vmatprep.subr.mxu0 0.0
        %7111 = vmatpush1.msra.mxu0 %v7075
        %7112 = vmatprep.subr.mxu0 0.0
        %7113 = vmatpush1.msra.mxu0 %v7076
        %7114 = vmatprep.subr.mxu0 0.0
        %7115 = vmatpush1.msra.mxu0 %v7077
        %7116 = vmatprep.subr.mxu0 0.0
        %7117 = vmatpush1.msra.mxu0 %v7078
        %7118 = vmatprep.subr.mxu0 0.0
        %7119 = vmatpush1.msra.mxu0 %v7079
        %7120 = vmatprep.subr.mxu0 0.0
        %7121 = vmatpush1.msra.mxu0 %v7080
        %7122 = vmatprep.subr.mxu0 0.0
        %7123 = vmatpush1.msra.mxu0 %v7081
        %7124 = vmatprep.subr.mxu0 0.0
        %7125 = vmatpush1.msra.mxu0 %v7082
        %7126 = vmatprep.subr.mxu0 0.0
        %7127 = vmatpush1.msra.mxu0 %v7083
        %7128 = vmatprep.subr.mxu0 0.0
        %7129 = vmatpush1.msra.mxu0 %v7084
        %7130 = vmatprep.subr.mxu0 0.0
        %7131 = vmatpush1.msra.mxu0 %v7085
        %7132 = vmatprep.subr.mxu0 0.0
        %7133 = vmatpush1.msra.mxu0 %v7086
        %7134 = vmatprep.subr.mxu0 0.0
        %7135 = vmatpush1.msra.mxu0 %v7087
        %7136 = vmatprep.subr.mxu0 0.0
        %7137 = vmatpush1.msra.mxu0 %v7088
        %7138 = vmatprep.subr.mxu0 0.0
        %7139 = vmatpush1.msra.mxu0 %v7089
        %7140 = vmatprep.subr.mxu0 0.0
        %7141 = vmatpush1.msra.mxu0 %v7090
        %7142 = vmatprep.subr.mxu0 0.0
        %7143 = vmatpush1.msra.mxu0 %v7091
        %7144 = vmatprep.subr.mxu0 0.0
        %7145 = vmatpush1.msra.mxu0 %v7092
        %7146 = vmatprep.subr.mxu0 0.0
        %7147 = vmatpush1.msra.mxu0 %v7093
        %7148 = vmatprep.subr.mxu0 0.0
        %7149 = vmatpush1.msra.mxu0 %v7094
        %7150 = vmatprep.subr.mxu0 0.0
        %7151 = vmatpush1.msra.mxu0 %v7095
        %7152 = vmatprep.subr.mxu0 0.0
        %7153 = vmatpush1.msra.mxu0 %v7096
        %7154 = vmatprep.subr.mxu0 0.0
        %7155 = vmatpush1.msra.mxu0 %v7097
        %7156 = vmatprep.subr.mxu0 0.0
        %7157 = vmatpush1.msra.mxu0 %v7098
        %7158 = vmatprep.subr.mxu0 0.0
        %7159 = vmatpush1.msra.mxu0 %v7099
        %7160 = vmatprep.subr.mxu0 0.0
        %7161 = vmatpush1.msra.mxu0 %v7100
        %7162 = vmatprep.subr.mxu0 0.0
        %7163 = vmatpush1.msra.mxu0 0.0
        %7164 = vmatprep.subr.mxu0 0.0
        %7165 = vmatpush1.msra.mxu0 0.0
        %7166 = vmatprep.subr.mxu0 0.0
        %7167 = vmatpush1.msra.mxu0 0.0
        %7168 = vmatprep.subr.mxu0 0.0
        %7169 = vmatpush1.msra.mxu0 0.0
        %7170 = vmatprep.mubr.f32.mxu0 %v7104
        %7171 = vmatmul.mubr.f32.gmra.mrb[0].mxu0 %v7101
        %v7172 = vpop.f32.mrb[0].mxu0
        %v7173 = vadd.f32 0.0, %v7172
        %v7174 = vpop.f32.mrb[0].mxu0
        %7175 = vdwg.mxu0
        %v7176 = vadd.f32 %v7071, %v7173
        %s7177 = scalar_lea.vmem %s13, 1344
        %v7178 = vld [vmem:[%s7177] sm:$0xff]
        %v7179 = vld [vmem:[%s7177 + $0x8] sm:$0xff]
        %v7180 = vld [vmem:[%s7177 + $0x10] sm:$0xff]
        %v7181 = vld [vmem:[%s7177 + $0x18] sm:$0xff]
        %v7182 = vld [vmem:[%s7177 + $0x20] sm:$0xff]
        %v7183 = vld [vmem:[%s7177 + $0x28] sm:$0xff]
        %v7184 = vld [vmem:[%s7177 + $0x30] sm:$0xff]
        %v7185 = vld [vmem:[%s7177 + $0x38] sm:$0xff]
        %v7186 = vld [vmem:[%s7177 + $0x40] sm:$0xff]
        %v7187 = vld [vmem:[%s7177 + $0x48] sm:$0xff]
        %v7188 = vld [vmem:[%s7177 + $0x50] sm:$0xff]
        %v7189 = vld [vmem:[%s7177 + $0x58] sm:$0xff]
        %v7190 = vld [vmem:[%s7177 + $0x60] sm:$0xff]
        %v7191 = vld [vmem:[%s7177 + $0x68] sm:$0xff]
        %v7192 = vld [vmem:[%s7177 + $0x70] sm:$0xff]
        %v7193 = vld [vmem:[%s7177 + $0x78] sm:$0xff]
        %v7194 = vld [vmem:[%s7177 + $0x80] sm:$0xff]
        %v7195 = vld [vmem:[%s7177 + $0x88] sm:$0xff]
        %v7196 = vld [vmem:[%s7177 + $0x90] sm:$0xff]
        %v7197 = vld [vmem:[%s7177 + $0x98] sm:$0xff]
        %v7198 = vld [vmem:[%s7177 + $0xa0] sm:$0xff]
        %v7199 = vld [vmem:[%s7177 + $0xa8] sm:$0xff]
        %v7200 = vld [vmem:[%s7177 + $0xb0] sm:$0xff]
        %v7201 = vld [vmem:[%s7177 + $0xb8] sm:$0xff]
        %v7202 = vld [vmem:[%s7177 + $0xc0] sm:$0xff]
        %v7203 = vld [vmem:[%s7177 + $0xc8] sm:$0xff]
        %v7204 = vld [vmem:[%s7177 + $0xd0] sm:$0xff]
        %v7205 = vld [vmem:[%s7177 + $0xd8] sm:$0xff]
        %v7206 = vrot.slane %v6549, 6
        %v7207 = vrot.slane %v6550, 6
        %v7209 = vsel %vm630, %v7207, 0
        %7211 = vmatprep.subr.mxu0 0.0
        %7212 = vmatpush1.msra.mxu0 %v7178
        %7213 = vmatprep.subr.mxu0 0.0
        %7214 = vmatpush1.msra.mxu0 %v7179
        %7215 = vmatprep.subr.mxu0 0.0
        %7216 = vmatpush1.msra.mxu0 %v7180
        %7217 = vmatprep.subr.mxu0 0.0
        %7218 = vmatpush1.msra.mxu0 %v7181
        %7219 = vmatprep.subr.mxu0 0.0
        %7220 = vmatpush1.msra.mxu0 %v7182
        %7221 = vmatprep.subr.mxu0 0.0
        %7222 = vmatpush1.msra.mxu0 %v7183
        %7223 = vmatprep.subr.mxu0 0.0
        %7224 = vmatpush1.msra.mxu0 %v7184
        %7225 = vmatprep.subr.mxu0 0.0
        %7226 = vmatpush1.msra.mxu0 %v7185
        %7227 = vmatprep.subr.mxu0 0.0
        %7228 = vmatpush1.msra.mxu0 %v7186
        %7229 = vmatprep.subr.mxu0 0.0
        %7230 = vmatpush1.msra.mxu0 %v7187
        %7231 = vmatprep.subr.mxu0 0.0
        %7232 = vmatpush1.msra.mxu0 %v7188
        %7233 = vmatprep.subr.mxu0 0.0
        %7234 = vmatpush1.msra.mxu0 %v7189
        %7235 = vmatprep.subr.mxu0 0.0
        %7236 = vmatpush1.msra.mxu0 %v7190
        %7237 = vmatprep.subr.mxu0 0.0
        %7238 = vmatpush1.msra.mxu0 %v7191
        %7239 = vmatprep.subr.mxu0 0.0
        %7240 = vmatpush1.msra.mxu0 %v7192
        %7241 = vmatprep.subr.mxu0 0.0
        %7242 = vmatpush1.msra.mxu0 %v7193
        %7243 = vmatprep.subr.mxu0 0.0
        %7244 = vmatpush1.msra.mxu0 %v7194
        %7245 = vmatprep.subr.mxu0 0.0
        %7246 = vmatpush1.msra.mxu0 %v7195
        %7247 = vmatprep.subr.mxu0 0.0
        %7248 = vmatpush1.msra.mxu0 %v7196
        %7249 = vmatprep.subr.mxu0 0.0
        %7250 = vmatpush1.msra.mxu0 %v7197
        %7251 = vmatprep.subr.mxu0 0.0
        %7252 = vmatpush1.msra.mxu0 %v7198
        %7253 = vmatprep.subr.mxu0 0.0
        %7254 = vmatpush1.msra.mxu0 %v7199
        %7255 = vmatprep.subr.mxu0 0.0
        %7256 = vmatpush1.msra.mxu0 %v7200
        %7257 = vmatprep.subr.mxu0 0.0
        %7258 = vmatpush1.msra.mxu0 %v7201
        %7259 = vmatprep.subr.mxu0 0.0
        %7260 = vmatpush1.msra.mxu0 %v7202
        %7261 = vmatprep.subr.mxu0 0.0
        %7262 = vmatpush1.msra.mxu0 %v7203
        %7263 = vmatprep.subr.mxu0 0.0
        %7264 = vmatpush1.msra.mxu0 %v7204
        %7265 = vmatprep.subr.mxu0 0.0
        %7266 = vmatpush1.msra.mxu0 %v7205
        %7267 = vmatprep.subr.mxu0 0.0
        %7268 = vmatpush1.msra.mxu0 0.0
        %7269 = vmatprep.subr.mxu0 0.0
        %7270 = vmatpush1.msra.mxu0 0.0
        %7271 = vmatprep.subr.mxu0 0.0
        %7272 = vmatpush1.msra.mxu0 0.0
        %7273 = vmatprep.subr.mxu0 0.0
        %7274 = vmatpush1.msra.mxu0 0.0
        %7275 = vmatprep.mubr.f32.mxu0 %v7209
        %7276 = vmatmul.mubr.f32.gmra.mrb[0].mxu0 %v7206
        %v7277 = vpop.f32.mrb[0].mxu0
        %v7278 = vadd.f32 0.0, %v7277
        %v7279 = vpop.f32.mrb[0].mxu0
        %7280 = vdwg.mxu0
        %v7281 = vadd.f32 %v7176, %v7278
        %v7282 = vld [vmem:[%s14] sm:$0x1]
        %v7283 = vadd.f32 %v7281, %v7282
        %vm7284 = vcmp.gt.f32.partialorder %v7283, 0.0
        %v7285 = vmul.f32 %v7283, 0.1
        %v7286 = vsel %vm7284, %v7283, %v7285
        %v7287 = vld [vmem:[%s15] sm:$0xff]
        %v7288 = vld [vmem:[%s15 + $0x8] sm:$0xff]
        %v7289 = vld [vmem:[%s15 + $0x10] sm:$0xff]
        %v7290 = vld [vmem:[%s15 + $0x18] sm:$0xff]
        %v7291 = vld [vmem:[%s15 + $0x20] sm:$0xff]
        %v7292 = vld [vmem:[%s15 + $0x28] sm:$0xff]
        %v7293 = vld [vmem:[%s15 + $0x30] sm:$0xff]
        %v7294 = vld [vmem:[%s15 + $0x38] sm:$0xff]
        %v7295 = vld [vmem:[%s15 + $0x40] sm:$0xff]
        %v7296 = vld [vmem:[%s15 + $0x48] sm:$0xff]
        %v7297 = vld [vmem:[%s15 + $0x50] sm:$0xff]
        %v7298 = vld [vmem:[%s15 + $0x58] sm:$0xff]
        %v7299 = vld [vmem:[%s15 + $0x60] sm:$0xff]
        %v7300 = vld [vmem:[%s15 + $0x68] sm:$0xff]
        %v7301 = vld [vmem:[%s15 + $0x70] sm:$0xff]
        %v7302 = vld [vmem:[%s15 + $0x78] sm:$0xff]
        %v7303 = vld [vmem:[%s15 + $0x80] sm:$0xff]
        %v7304 = vld [vmem:[%s15 + $0x88] sm:$0xff]
        %v7305 = vld [vmem:[%s15 + $0x90] sm:$0xff]
        %v7306 = vld [vmem:[%s15 + $0x98] sm:$0xff]
        %v7307 = vld [vmem:[%s15 + $0xa0] sm:$0xff]
        %v7308 = vld [vmem:[%s15 + $0xa8] sm:$0xff]
        %v7309 = vld [vmem:[%s15 + $0xb0] sm:$0xff]
        %v7310 = vld [vmem:[%s15 + $0xb8] sm:$0xff]
        %v7311 = vld [vmem:[%s15 + $0xc0] sm:$0xff]
        %v7312 = vld [vmem:[%s15 + $0xc8] sm:$0xff]
        %v7313 = vld [vmem:[%s15 + $0xd0] sm:$0xff]
        %v7314 = vld [vmem:[%s15 + $0xd8] sm:$0xff]
        %v7315 = vld [vmem:[%s15 + $0xe0] sm:$0xff]
        %v7316 = vld [vmem:[%s15 + $0xe8] sm:$0xff]
        %v7317 = vld [vmem:[%s15 + $0xf0] sm:$0xff]
        %v7318 = vld [vmem:[%s15 + $0xf8] sm:$0xff]
        %v7319 = vld [vmem:[%s15 + $0x100] sm:$0xff]
        %v7320 = vld [vmem:[%s15 + $0x108] sm:$0xff]
        %v7321 = vld [vmem:[%s15 + $0x110] sm:$0xff]
        %v7322 = vld [vmem:[%s15 + $0x118] sm:$0xff]
        %v7323 = vld [vmem:[%s15 + $0x120] sm:$0xff]
        %v7324 = vld [vmem:[%s15 + $0x128] sm:$0xff]
        %v7325 = vld [vmem:[%s15 + $0x130] sm:$0xff]
        %v7326 = vld [vmem:[%s15 + $0x138] sm:$0xff]
        %v7327 = vld [vmem:[%s15 + $0x140] sm:$0xff]
        %v7328 = vld [vmem:[%s15 + $0x148] sm:$0xff]
        %v7329 = vld [vmem:[%s15 + $0x150] sm:$0xff]
        %v7330 = vld [vmem:[%s15 + $0x158] sm:$0xff]
        %v7331 = vld [vmem:[%s15 + $0x160] sm:$0xff]
        %v7332 = vld [vmem:[%s15 + $0x168] sm:$0xff]
        %v7333 = vld [vmem:[%s15 + $0x170] sm:$0xff]
        %v7334 = vld [vmem:[%s15 + $0x178] sm:$0xff]
        %v7335 = vld [vmem:[%s15 + $0x180] sm:$0xff]
        %v7336 = vld [vmem:[%s15 + $0x188] sm:$0xff]
        %v7337 = vld [vmem:[%s15 + $0x190] sm:$0xff]
        %v7338 = vld [vmem:[%s15 + $0x198] sm:$0xff]
        %v7339 = vld [vmem:[%s15 + $0x1a0] sm:$0xff]
        %v7340 = vld [vmem:[%s15 + $0x1a8] sm:$0xff]
        %v7341 = vld [vmem:[%s15 + $0x1b0] sm:$0xff]
        %v7342 = vld [vmem:[%s15 + $0x1b8] sm:$0xff]
        %v7343 = vld [vmem:[%s15 + $0x1c0] sm:$0xff]
        %v7344 = vld [vmem:[%s15 + $0x1c8] sm:$0xff]
        %v7345 = vld [vmem:[%s15 + $0x1d0] sm:$0xff]
        %v7346 = vld [vmem:[%s15 + $0x1d8] sm:$0xff]
        %v7347 = vld [vmem:[%s15 + $0x1e0] sm:$0xff]
        %v7348 = vld [vmem:[%s15 + $0x1e8] sm:$0xff]
        %v7349 = vld [vmem:[%s15 + $0x1f0] sm:$0xff]
        %v7350 = vld [vmem:[%s15 + $0x1f8] sm:$0xff]
        %v7351 = vld [vmem:[%s15 + $0x200] sm:$0xff]
        %v7352 = vld [vmem:[%s15 + $0x208] sm:$0xff]
        %v7353 = vld [vmem:[%s15 + $0x210] sm:$0xff]
        %v7354 = vld [vmem:[%s15 + $0x218] sm:$0xff]
        %v7355 = vld [vmem:[%s15 + $0x220] sm:$0xff]
        %v7356 = vld [vmem:[%s15 + $0x228] sm:$0xff]
        %v7357 = vld [vmem:[%s15 + $0x230] sm:$0xff]
        %v7358 = vld [vmem:[%s15 + $0x238] sm:$0xff]
        %v7359 = vld [vmem:[%s15 + $0x240] sm:$0xff]
        %v7360 = vld [vmem:[%s15 + $0x248] sm:$0xff]
        %v7361 = vld [vmem:[%s15 + $0x250] sm:$0xff]
        %v7362 = vld [vmem:[%s15 + $0x258] sm:$0xff]
        %v7363 = vld [vmem:[%s15 + $0x260] sm:$0xff]
        %v7364 = vld [vmem:[%s15 + $0x268] sm:$0xff]
        %v7365 = vld [vmem:[%s15 + $0x270] sm:$0xff]
        %v7366 = vld [vmem:[%s15 + $0x278] sm:$0xff]
        %v7367 = vld [vmem:[%s15 + $0x280] sm:$0xff]
        %v7368 = vld [vmem:[%s15 + $0x288] sm:$0xff]
        %v7369 = vld [vmem:[%s15 + $0x290] sm:$0xff]
        %v7370 = vld [vmem:[%s15 + $0x298] sm:$0xff]
        %v7371 = vld [vmem:[%s15 + $0x2a0] sm:$0xff]
        %v7372 = vld [vmem:[%s15 + $0x2a8] sm:$0xff]
        %v7373 = vld [vmem:[%s15 + $0x2b0] sm:$0xff]
        %v7374 = vld [vmem:[%s15 + $0x2b8] sm:$0xff]
        %v7375 = vld [vmem:[%s15 + $0x2c0] sm:$0xff]
        %v7376 = vld [vmem:[%s15 + $0x2c8] sm:$0xff]
        %v7377 = vld [vmem:[%s15 + $0x2d0] sm:$0xff]
        %v7378 = vld [vmem:[%s15 + $0x2d8] sm:$0xff]
        %v7379 = vld [vmem:[%s15 + $0x2e0] sm:$0xff]
        %v7380 = vld [vmem:[%s15 + $0x2e8] sm:$0xff]
        %v7381 = vld [vmem:[%s15 + $0x2f0] sm:$0xff]
        %v7382 = vld [vmem:[%s15 + $0x2f8] sm:$0xff]
        %v7383 = vld [vmem:[%s15 + $0x300] sm:$0xff]
        %v7384 = vld [vmem:[%s15 + $0x308] sm:$0xff]
        %v7385 = vld [vmem:[%s15 + $0x310] sm:$0xff]
        %v7386 = vld [vmem:[%s15 + $0x318] sm:$0xff]
        %v7387 = vld [vmem:[%s15 + $0x320] sm:$0xff]
        %v7388 = vld [vmem:[%s15 + $0x328] sm:$0xff]
        %v7389 = vld [vmem:[%s15 + $0x330] sm:$0xff]
        %v7390 = vld [vmem:[%s15 + $0x338] sm:$0xff]
        %v7391 = vld [vmem:[%s15 + $0x340] sm:$0xff]
        %v7392 = vld [vmem:[%s15 + $0x348] sm:$0xff]
        %v7393 = vld [vmem:[%s15 + $0x350] sm:$0xff]
        %v7394 = vld [vmem:[%s15 + $0x358] sm:$0xff]
        %v7395 = vld [vmem:[%s15 + $0x360] sm:$0xff]
        %v7396 = vld [vmem:[%s15 + $0x368] sm:$0xff]
        %v7397 = vld [vmem:[%s15 + $0x370] sm:$0xff]
        %v7398 = vld [vmem:[%s15 + $0x378] sm:$0xff]
        %v7399 = vld [vmem:[%s15 + $0x380] sm:$0xff]
        %v7400 = vld [vmem:[%s15 + $0x388] sm:$0xff]
        %v7401 = vld [vmem:[%s15 + $0x390] sm:$0xff]
        %v7402 = vld [vmem:[%s15 + $0x398] sm:$0xff]
        %v7403 = vld [vmem:[%s15 + $0x3a0] sm:$0xff]
        %v7404 = vld [vmem:[%s15 + $0x3a8] sm:$0xff]
        %v7405 = vld [vmem:[%s15 + $0x3b0] sm:$0xff]
        %v7406 = vld [vmem:[%s15 + $0x3b8] sm:$0xff]
        %v7407 = vld [vmem:[%s15 + $0x3c0] sm:$0xff]
        %v7408 = vld [vmem:[%s15 + $0x3c8] sm:$0xff]
        %v7409 = vld [vmem:[%s15 + $0x3d0] sm:$0xff]
        %v7410 = vld [vmem:[%s15 + $0x3d8] sm:$0xff]
        %v7411 = vld [vmem:[%s15 + $0x3e0] sm:$0xff]
        %v7412 = vld [vmem:[%s15 + $0x3e8] sm:$0xff]
        %v7413 = vld [vmem:[%s15 + $0x3f0] sm:$0xff]
        %v7414 = vld [vmem:[%s15 + $0x3f8] sm:$0xff]
        %v7415 = vld [vmem:[%s15 + $0x400] sm:$0xff]
        %v7416 = vld [vmem:[%s15 + $0x408] sm:$0xff]
        %v7417 = vld [vmem:[%s15 + $0x410] sm:$0xff]
        %v7418 = vld [vmem:[%s15 + $0x418] sm:$0xff]
        %v7419 = vld [vmem:[%s15 + $0x420] sm:$0xff]
        %v7420 = vld [vmem:[%s15 + $0x428] sm:$0xff]
        %v7421 = vld [vmem:[%s15 + $0x430] sm:$0xff]
        %v7422 = vld [vmem:[%s15 + $0x438] sm:$0xff]
        %v7423 = vld [vmem:[%s15 + $0x440] sm:$0xff]
        %v7424 = vld [vmem:[%s15 + $0x448] sm:$0xff]
        %v7425 = vld [vmem:[%s15 + $0x450] sm:$0xff]
        %v7426 = vld [vmem:[%s15 + $0x458] sm:$0xff]
        %v7427 = vld [vmem:[%s15 + $0x460] sm:$0xff]
        %v7428 = vld [vmem:[%s15 + $0x468] sm:$0xff]
        %v7429 = vld [vmem:[%s15 + $0x470] sm:$0xff]
        %v7430 = vld [vmem:[%s15 + $0x478] sm:$0xff]
        %v7431 = vld [vmem:[%s15 + $0x480] sm:$0xff]
        %v7432 = vld [vmem:[%s15 + $0x488] sm:$0xff]
        %v7433 = vld [vmem:[%s15 + $0x490] sm:$0xff]
        %v7434 = vld [vmem:[%s15 + $0x498] sm:$0xff]
        %v7435 = vld [vmem:[%s15 + $0x4a0] sm:$0xff]
        %v7436 = vld [vmem:[%s15 + $0x4a8] sm:$0xff]
        %v7437 = vld [vmem:[%s15 + $0x4b0] sm:$0xff]
        %v7438 = vld [vmem:[%s15 + $0x4b8] sm:$0xff]
        %v7439 = vld [vmem:[%s15 + $0x4c0] sm:$0xff]
        %v7440 = vld [vmem:[%s15 + $0x4c8] sm:$0xff]
        %v7441 = vld [vmem:[%s15 + $0x4d0] sm:$0xff]
        %v7442 = vld [vmem:[%s15 + $0x4d8] sm:$0xff]
        %v7443 = vld [vmem:[%s15 + $0x4e0] sm:$0xff]
        %v7444 = vld [vmem:[%s15 + $0x4e8] sm:$0xff]
        %v7445 = vld [vmem:[%s15 + $0x4f0] sm:$0xff]
        %v7446 = vld [vmem:[%s15 + $0x4f8] sm:$0xff]
        %v7447 = vld [vmem:[%s15 + $0x500] sm:$0xff]
        %v7448 = vld [vmem:[%s15 + $0x508] sm:$0xff]
        %v7449 = vld [vmem:[%s15 + $0x510] sm:$0xff]
        %v7450 = vld [vmem:[%s15 + $0x518] sm:$0xff]
        %v7451 = vld [vmem:[%s15 + $0x520] sm:$0xff]
        %v7452 = vld [vmem:[%s15 + $0x528] sm:$0xff]
        %v7453 = vld [vmem:[%s15 + $0x530] sm:$0xff]
        %v7454 = vld [vmem:[%s15 + $0x538] sm:$0xff]
        %v7455 = vld [vmem:[%s15 + $0x540] sm:$0xff]
        %v7456 = vld [vmem:[%s15 + $0x548] sm:$0xff]
        %v7457 = vld [vmem:[%s15 + $0x550] sm:$0xff]
        %v7458 = vld [vmem:[%s15 + $0x558] sm:$0xff]
        %v7459 = vld [vmem:[%s15 + $0x560] sm:$0xff]
        %v7460 = vld [vmem:[%s15 + $0x568] sm:$0xff]
        %v7461 = vld [vmem:[%s15 + $0x570] sm:$0xff]
        %v7462 = vld [vmem:[%s15 + $0x578] sm:$0xff]
        %v7463 = vld [vmem:[%s15 + $0x580] sm:$0xff]
        %v7464 = vld [vmem:[%s15 + $0x588] sm:$0xff]
        %v7465 = vld [vmem:[%s15 + $0x590] sm:$0xff]
        %v7466 = vld [vmem:[%s15 + $0x598] sm:$0xff]
        %v7467 = vld [vmem:[%s15 + $0x5a0] sm:$0xff]
        %v7468 = vld [vmem:[%s15 + $0x5a8] sm:$0xff]
        %v7469 = vld [vmem:[%s15 + $0x5b0] sm:$0xff]
        %v7470 = vld [vmem:[%s15 + $0x5b8] sm:$0xff]
        %v7471 = vld [vmem:[%s15 + $0x5c0] sm:$0xff]
        %v7472 = vld [vmem:[%s15 + $0x5c8] sm:$0xff]
        %v7473 = vld [vmem:[%s15 + $0x5d0] sm:$0xff]
        %v7474 = vld [vmem:[%s15 + $0x5d8] sm:$0xff]
        %v7475 = vld [vmem:[%s15 + $0x5e0] sm:$0xff]
        %v7476 = vld [vmem:[%s15 + $0x5e8] sm:$0xff]
        %v7477 = vld [vmem:[%s15 + $0x5f0] sm:$0xff]
        %v7478 = vld [vmem:[%s15 + $0x5f8] sm:$0xff]
        %v7479 = vld [vmem:[%s16] sm:$0xff]
        %v7480 = vld [vmem:[%s16 + $0x8] sm:$0xf]
        %v7483 = vlaneseq
        %v7484 = vshrl.u32 %v7483, 7
        %v7485 = vsub.s32 0, %v7484
        %v7486 = vrot.slane %v7479, %v7485
        %v7487 = vlaneseq
        %v7488 = vshrl.u32 %v7487, 7
        %v7489 = vsub.s32 1, %v7488
        %v7490 = vrot.slane %v7479, %v7489
        %v7491 = vlaneseq
        %v7492 = vshrl.u32 %v7491, 7
        %v7493 = vsub.s32 2, %v7492
        %v7494 = vrot.slane %v7479, %v7493
        %v7495 = vlaneseq
        %v7496 = vshrl.u32 %v7495, 7
        %v7497 = vsub.s32 3, %v7496
        %v7498 = vrot.slane %v7479, %v7497
        %v7499 = vlaneseq
        %v7500 = vshrl.u32 %v7499, 7
        %v7501 = vsub.s32 4, %v7500
        %v7502 = vrot.slane %v7479, %v7501
        %v7503 = vlaneseq
        %v7504 = vshrl.u32 %v7503, 7
        %v7505 = vsub.s32 5, %v7504
        %v7506 = vrot.slane %v7479, %v7505
        %v7507 = vlaneseq
        %v7508 = vshrl.u32 %v7507, 7
        %v7509 = vsub.s32 6, %v7508
        %v7510 = vrot.slane %v7479, %v7509
        %v7511 = vlaneseq
        %v7512 = vshrl.u32 %v7511, 7
        %v7513 = vsub.s32 7, %v7512
        %v7514 = vrot.slane %v7479, %v7513
        %v7515 = vlaneseq
        %v7516 = vshrl.u32 %v7515, 7
        %v7517 = vsub.s32 0, %v7516
        %v7518 = vrot.slane %v7480, %v7517
        %v7519 = vlaneseq
        %v7520 = vshrl.u32 %v7519, 7
        %v7521 = vsub.s32 1, %v7520
        %v7522 = vrot.slane %v7480, %v7521
        %v7523 = vlaneseq
        %v7524 = vshrl.u32 %v7523, 7
        %v7525 = vsub.s32 2, %v7524
        %v7526 = vrot.slane %v7480, %v7525
        %v7527 = vlaneseq
        %v7528 = vshrl.u32 %v7527, 7
        %v7529 = vsub.s32 3, %v7528
        %v7530 = vrot.slane %v7480, %v7529
        %7543 = vmatprep.subr.mxu0 %v7288
        %7544 = vmatpush1.msra.mxu0 %v7287
        %7545 = vmatprep.subr.mxu0 %v7300
        %7546 = vmatpush1.msra.mxu0 %v7299
        %7547 = vmatprep.subr.mxu0 %v7312
        %7548 = vmatpush1.msra.mxu0 %v7311
        %7549 = vmatprep.subr.mxu0 %v7324
        %7550 = vmatpush1.msra.mxu0 %v7323
        %7551 = vmatprep.subr.mxu0 %v7336
        %7552 = vmatpush1.msra.mxu0 %v7335
        %7553 = vmatprep.subr.mxu0 %v7348
        %7554 = vmatpush1.msra.mxu0 %v7347
        %7555 = vmatprep.subr.mxu0 %v7360
        %7556 = vmatpush1.msra.mxu0 %v7359
        %7557 = vmatprep.subr.mxu0 %v7372
        %7558 = vmatpush1.msra.mxu0 %v7371
        %7559 = vmatprep.subr.mxu0 %v7384
        %7560 = vmatpush1.msra.mxu0 %v7383
        %7561 = vmatprep.subr.mxu0 %v7396
        %7562 = vmatpush1.msra.mxu0 %v7395
        %7563 = vmatprep.subr.mxu0 %v7408
        %7564 = vmatpush1.msra.mxu0 %v7407
        %7565 = vmatprep.subr.mxu0 %v7420
        %7566 = vmatpush1.msra.mxu0 %v7419
        %7567 = vmatprep.subr.mxu0 %v7432
        %7568 = vmatpush1.msra.mxu0 %v7431
        %7569 = vmatprep.subr.mxu0 %v7444
        %7570 = vmatpush1.msra.mxu0 %v7443
        %7571 = vmatprep.subr.mxu0 %v7456
        %7572 = vmatpush1.msra.mxu0 %v7455
        %7573 = vmatprep.subr.mxu0 %v7468
        %7574 = vmatpush1.msra.mxu0 %v7467
        %7575 = vmatprep.subr.mxu0 0.0
        %7576 = vmatpush1.msra.mxu0 0.0
        %7577 = vmatprep.subr.mxu0 0.0
        %7578 = vmatpush1.msra.mxu0 0.0
        %7579 = vmatprep.subr.mxu0 0.0
        %7580 = vmatpush1.msra.mxu0 0.0
        %7581 = vmatprep.subr.mxu0 0.0
        %7582 = vmatpush1.msra.mxu0 0.0
        %7583 = vmatprep.subr.mxu0 0.0
        %7584 = vmatpush1.msra.mxu0 0.0
        %7585 = vmatprep.subr.mxu0 0.0
        %7586 = vmatpush1.msra.mxu0 0.0
        %7587 = vmatprep.subr.mxu0 0.0
        %7588 = vmatpush1.msra.mxu0 0.0
        %7589 = vmatprep.subr.mxu0 0.0
        %7590 = vmatpush1.msra.mxu0 0.0
        %7591 = vmatprep.subr.mxu0 0.0
        %7592 = vmatpush1.msra.mxu0 0.0
        %7593 = vmatprep.subr.mxu0 0.0
        %7594 = vmatpush1.msra.mxu0 0.0
        %7595 = vmatprep.subr.mxu0 0.0
        %7596 = vmatpush1.msra.mxu0 0.0
        %7597 = vmatprep.subr.mxu0 0.0
        %7598 = vmatpush1.msra.mxu0 0.0
        %7599 = vmatprep.subr.mxu0 0.0
        %7600 = vmatpush1.msra.mxu0 0.0
        %7601 = vmatprep.subr.mxu0 0.0
        %7602 = vmatpush1.msra.mxu0 0.0
        %7603 = vmatprep.subr.mxu0 0.0
        %7604 = vmatpush1.msra.mxu0 0.0
        %7605 = vmatprep.subr.mxu0 0.0
        %7606 = vmatpush1.msra.mxu0 0.0
        %7607 = vmatprep.mubr.f32.mxu0 0.0
        %7608 = vmatmul.mubr.f32.gmra.mrb[0].mxu0 %v7286
        %v7609 = vpop.f32.mrb[0].mxu0
        %v7610 = vadd.f32 %v7486, %v7609
        %v7611 = vpop.f32.mrb[0].mxu0
        %v7612 = vadd.f32 %v7490, %v7611
        %7613 = vdwg.mxu0
        %7614 = vmatprep.subr.mxu0 %v7290
        %7615 = vmatpush1.msra.mxu0 %v7289
        %7616 = vmatprep.subr.mxu0 %v7302
        %7617 = vmatpush1.msra.mxu0 %v7301
        %7618 = vmatprep.subr.mxu0 %v7314
        %7619 = vmatpush1.msra.mxu0 %v7313
        %7620 = vmatprep.subr.mxu0 %v7326
        %7621 = vmatpush1.msra.mxu0 %v7325
        %7622 = vmatprep.subr.mxu0 %v7338
        %7623 = vmatpush1.msra.mxu0 %v7337
        %7624 = vmatprep.subr.mxu0 %v7350
        %7625 = vmatpush1.msra.mxu0 %v7349
        %7626 = vmatprep.subr.mxu0 %v7362
        %7627 = vmatpush1.msra.mxu0 %v7361
        %7628 = vmatprep.subr.mxu0 %v7374
        %7629 = vmatpush1.msra.mxu0 %v7373
        %7630 = vmatprep.subr.mxu0 %v7386
        %7631 = vmatpush1.msra.mxu0 %v7385
        %7632 = vmatprep.subr.mxu0 %v7398
        %7633 = vmatpush1.msra.mxu0 %v7397
        %7634 = vmatprep.subr.mxu0 %v7410
        %7635 = vmatpush1.msra.mxu0 %v7409
        %7636 = vmatprep.subr.mxu0 %v7422
        %7637 = vmatpush1.msra.mxu0 %v7421
        %7638 = vmatprep.subr.mxu0 %v7434
        %7639 = vmatpush1.msra.mxu0 %v7433
        %7640 = vmatprep.subr.mxu0 %v7446
        %7641 = vmatpush1.msra.mxu0 %v7445
        %7642 = vmatprep.subr.mxu0 %v7458
        %7643 = vmatpush1.msra.mxu0 %v7457
        %7644 = vmatprep.subr.mxu0 %v7470
        %7645 = vmatpush1.msra.mxu0 %v7469
        %7646 = vmatprep.subr.mxu0 0.0
        %7647 = vmatpush1.msra.mxu0 0.0
        %7648 = vmatprep.subr.mxu0 0.0
        %7649 = vmatpush1.msra.mxu0 0.0
        %7650 = vmatprep.subr.mxu0 0.0
        %7651 = vmatpush1.msra.mxu0 0.0
        %7652 = vmatprep.subr.mxu0 0.0
        %7653 = vmatpush1.msra.mxu0 0.0
        %7654 = vmatprep.subr.mxu0 0.0
        %7655 = vmatpush1.msra.mxu0 0.0
        %7656 = vmatprep.subr.mxu0 0.0
        %7657 = vmatpush1.msra.mxu0 0.0
        %7658 = vmatprep.subr.mxu0 0.0
        %7659 = vmatpush1.msra.mxu0 0.0
        %7660 = vmatprep.subr.mxu0 0.0
        %7661 = vmatpush1.msra.mxu0 0.0
        %7662 = vmatprep.subr.mxu0 0.0
        %7663 = vmatpush1.msra.mxu0 0.0
        %7664 = vmatprep.subr.mxu0 0.0
        %7665 = vmatpush1.msra.mxu0 0.0
        %7666 = vmatprep.subr.mxu0 0.0
        %7667 = vmatpush1.msra.mxu0 0.0
        %7668 = vmatprep.subr.mxu0 0.0
        %7669 = vmatpush1.msra.mxu0 0.0
        %7670 = vmatprep.subr.mxu0 0.0
        %7671 = vmatpush1.msra.mxu0 0.0
        %7672 = vmatprep.subr.mxu0 0.0
        %7673 = vmatpush1.msra.mxu0 0.0
        %7674 = vmatprep.subr.mxu0 0.0
        %7675 = vmatpush1.msra.mxu0 0.0
        %7676 = vmatprep.subr.mxu0 0.0
        %7677 = vmatpush1.msra.mxu0 0.0
        %7678 = vmatprep.mubr.f32.mxu0 0.0
        %7679 = vmatmul.mubr.f32.gmra.mrb[0].mxu0 %v7286
        %v7680 = vpop.f32.mrb[0].mxu0
        %v7681 = vadd.f32 %v7494, %v7680
        %v7682 = vpop.f32.mrb[0].mxu0
        %v7683 = vadd.f32 %v7498, %v7682
        %7684 = vdwg.mxu0
        %7685 = vmatprep.subr.mxu0 %v7292
        %7686 = vmatpush1.msra.mxu0 %v7291
        %7687 = vmatprep.subr.mxu0 %v7304
        %7688 = vmatpush1.msra.mxu0 %v7303
        %7689 = vmatprep.subr.mxu0 %v7316
        %7690 = vmatpush1.msra.mxu0 %v7315
        %7691 = vmatprep.subr.mxu0 %v7328
        %7692 = vmatpush1.msra.mxu0 %v7327
        %7693 = vmatprep.subr.mxu0 %v7340
        %7694 = vmatpush1.msra.mxu0 %v7339
        %7695 = vmatprep.subr.mxu0 %v7352
        %7696 = vmatpush1.msra.mxu0 %v7351
        %7697 = vmatprep.subr.mxu0 %v7364
        %7698 = vmatpush1.msra.mxu0 %v7363
        %7699 = vmatprep.subr.mxu0 %v7376
        %7700 = vmatpush1.msra.mxu0 %v7375
        %7701 = vmatprep.subr.mxu0 %v7388
        %7702 = vmatpush1.msra.mxu0 %v7387
        %7703 = vmatprep.subr.mxu0 %v7400
        %7704 = vmatpush1.msra.mxu0 %v7399
        %7705 = vmatprep.subr.mxu0 %v7412
        %7706 = vmatpush1.msra.mxu0 %v7411
        %7707 = vmatprep.subr.mxu0 %v7424
        %7708 = vmatpush1.msra.mxu0 %v7423
        %7709 = vmatprep.subr.mxu0 %v7436
        %7710 = vmatpush1.msra.mxu0 %v7435
        %7711 = vmatprep.subr.mxu0 %v7448
        %7712 = vmatpush1.msra.mxu0 %v7447
        %7713 = vmatprep.subr.mxu0 %v7460
        %7714 = vmatpush1.msra.mxu0 %v7459
        %7715 = vmatprep.subr.mxu0 %v7472
        %7716 = vmatpush1.msra.mxu0 %v7471
        %7717 = vmatprep.subr.mxu0 0.0
        %7718 = vmatpush1.msra.mxu0 0.0
        %7719 = vmatprep.subr.mxu0 0.0
        %7720 = vmatpush1.msra.mxu0 0.0
        %7721 = vmatprep.subr.mxu0 0.0
        %7722 = vmatpush1.msra.mxu0 0.0
        %7723 = vmatprep.subr.mxu0 0.0
        %7724 = vmatpush1.msra.mxu0 0.0
        %7725 = vmatprep.subr.mxu0 0.0
        %7726 = vmatpush1.msra.mxu0 0.0
        %7727 = vmatprep.subr.mxu0 0.0
        %7728 = vmatpush1.msra.mxu0 0.0
        %7729 = vmatprep.subr.mxu0 0.0
        %7730 = vmatpush1.msra.mxu0 0.0
        %7731 = vmatprep.subr.mxu0 0.0
        %7732 = vmatpush1.msra.mxu0 0.0
        %7733 = vmatprep.subr.mxu0 0.0
        %7734 = vmatpush1.msra.mxu0 0.0
        %7735 = vmatprep.subr.mxu0 0.0
        %7736 = vmatpush1.msra.mxu0 0.0
        %7737 = vmatprep.subr.mxu0 0.0
        %7738 = vmatpush1.msra.mxu0 0.0
        %7739 = vmatprep.subr.mxu0 0.0
        %7740 = vmatpush1.msra.mxu0 0.0
        %7741 = vmatprep.subr.mxu0 0.0
        %7742 = vmatpush1.msra.mxu0 0.0
        %7743 = vmatprep.subr.mxu0 0.0
        %7744 = vmatpush1.msra.mxu0 0.0
        %7745 = vmatprep.subr.mxu0 0.0
        %7746 = vmatpush1.msra.mxu0 0.0
        %7747 = vmatprep.subr.mxu0 0.0
        %7748 = vmatpush1.msra.mxu0 0.0
        %7749 = vmatprep.mubr.f32.mxu0 0.0
        %7750 = vmatmul.mubr.f32.gmra.mrb[0].mxu0 %v7286
        %v7751 = vpop.f32.mrb[0].mxu0
        %v7752 = vadd.f32 %v7502, %v7751
        %v7753 = vpop.f32.mrb[0].mxu0
        %v7754 = vadd.f32 %v7506, %v7753
        %7755 = vdwg.mxu0
        %7756 = vmatprep.subr.mxu0 %v7294
        %7757 = vmatpush1.msra.mxu0 %v7293
        %7758 = vmatprep.subr.mxu0 %v7306
        %7759 = vmatpush1.msra.mxu0 %v7305
        %7760 = vmatprep.subr.mxu0 %v7318
        %7761 = vmatpush1.msra.mxu0 %v7317
        %7762 = vmatprep.subr.mxu0 %v7330
        %7763 = vmatpush1.msra.mxu0 %v7329
        %7764 = vmatprep.subr.mxu0 %v7342
        %7765 = vmatpush1.msra.mxu0 %v7341
        %7766 = vmatprep.subr.mxu0 %v7354
        %7767 = vmatpush1.msra.mxu0 %v7353
        %7768 = vmatprep.subr.mxu0 %v7366
        %7769 = vmatpush1.msra.mxu0 %v7365
        %7770 = vmatprep.subr.mxu0 %v7378
        %7771 = vmatpush1.msra.mxu0 %v7377
        %7772 = vmatprep.subr.mxu0 %v7390
        %7773 = vmatpush1.msra.mxu0 %v7389
        %7774 = vmatprep.subr.mxu0 %v7402
        %7775 = vmatpush1.msra.mxu0 %v7401
        %7776 = vmatprep.subr.mxu0 %v7414
        %7777 = vmatpush1.msra.mxu0 %v7413
        %7778 = vmatprep.subr.mxu0 %v7426
        %7779 = vmatpush1.msra.mxu0 %v7425
        %7780 = vmatprep.subr.mxu0 %v7438
        %7781 = vmatpush1.msra.mxu0 %v7437
        %7782 = vmatprep.subr.mxu0 %v7450
        %7783 = vmatpush1.msra.mxu0 %v7449
        %7784 = vmatprep.subr.mxu0 %v7462
        %7785 = vmatpush1.msra.mxu0 %v7461
        %7786 = vmatprep.subr.mxu0 %v7474
        %7787 = vmatpush1.msra.mxu0 %v7473
        %7788 = vmatprep.subr.mxu0 0.0
        %7789 = vmatpush1.msra.mxu0 0.0
        %7790 = vmatprep.subr.mxu0 0.0
        %7791 = vmatpush1.msra.mxu0 0.0
        %7792 = vmatprep.subr.mxu0 0.0
        %7793 = vmatpush1.msra.mxu0 0.0
        %7794 = vmatprep.subr.mxu0 0.0
        %7795 = vmatpush1.msra.mxu0 0.0
        %7796 = vmatprep.subr.mxu0 0.0
        %7797 = vmatpush1.msra.mxu0 0.0
        %7798 = vmatprep.subr.mxu0 0.0
        %7799 = vmatpush1.msra.mxu0 0.0
        %7800 = vmatprep.subr.mxu0 0.0
        %7801 = vmatpush1.msra.mxu0 0.0
        %7802 = vmatprep.subr.mxu0 0.0
        %7803 = vmatpush1.msra.mxu0 0.0
        %7804 = vmatprep.subr.mxu0 0.0
        %7805 = vmatpush1.msra.mxu0 0.0
        %7806 = vmatprep.subr.mxu0 0.0
        %7807 = vmatpush1.msra.mxu0 0.0
        %7808 = vmatprep.subr.mxu0 0.0
        %7809 = vmatpush1.msra.mxu0 0.0
        %7810 = vmatprep.subr.mxu0 0.0
        %7811 = vmatpush1.msra.mxu0 0.0
        %7812 = vmatprep.subr.mxu0 0.0
        %7813 = vmatpush1.msra.mxu0 0.0
        %7814 = vmatprep.subr.mxu0 0.0
        %7815 = vmatpush1.msra.mxu0 0.0
        %7816 = vmatprep.subr.mxu0 0.0
        %7817 = vmatpush1.msra.mxu0 0.0
        %7818 = vmatprep.subr.mxu0 0.0
        %7819 = vmatpush1.msra.mxu0 0.0
        %7820 = vmatprep.mubr.f32.mxu0 0.0
        %7821 = vmatmul.mubr.f32.gmra.mrb[0].mxu0 %v7286
        %v7822 = vpop.f32.mrb[0].mxu0
        %v7823 = vadd.f32 %v7510, %v7822
        %v7824 = vpop.f32.mrb[0].mxu0
        %v7825 = vadd.f32 %v7514, %v7824
        %7826 = vdwg.mxu0
        %7827 = vmatprep.subr.mxu0 %v7296
        %7828 = vmatpush1.msra.mxu0 %v7295
        %7829 = vmatprep.subr.mxu0 %v7308
        %7830 = vmatpush1.msra.mxu0 %v7307
        %7831 = vmatprep.subr.mxu0 %v7320
        %7832 = vmatpush1.msra.mxu0 %v7319
        %7833 = vmatprep.subr.mxu0 %v7332
        %7834 = vmatpush1.msra.mxu0 %v7331
        %7835 = vmatprep.subr.mxu0 %v7344
        %7836 = vmatpush1.msra.mxu0 %v7343
        %7837 = vmatprep.subr.mxu0 %v7356
        %7838 = vmatpush1.msra.mxu0 %v7355
        %7839 = vmatprep.subr.mxu0 %v7368
        %7840 = vmatpush1.msra.mxu0 %v7367
        %7841 = vmatprep.subr.mxu0 %v7380
        %7842 = vmatpush1.msra.mxu0 %v7379
        %7843 = vmatprep.subr.mxu0 %v7392
        %7844 = vmatpush1.msra.mxu0 %v7391
        %7845 = vmatprep.subr.mxu0 %v7404
        %7846 = vmatpush1.msra.mxu0 %v7403
        %7847 = vmatprep.subr.mxu0 %v7416
        %7848 = vmatpush1.msra.mxu0 %v7415
        %7849 = vmatprep.subr.mxu0 %v7428
        %7850 = vmatpush1.msra.mxu0 %v7427
        %7851 = vmatprep.subr.mxu0 %v7440
        %7852 = vmatpush1.msra.mxu0 %v7439
        %7853 = vmatprep.subr.mxu0 %v7452
        %7854 = vmatpush1.msra.mxu0 %v7451
        %7855 = vmatprep.subr.mxu0 %v7464
        %7856 = vmatpush1.msra.mxu0 %v7463
        %7857 = vmatprep.subr.mxu0 %v7476
        %7858 = vmatpush1.msra.mxu0 %v7475
        %7859 = vmatprep.subr.mxu0 0.0
        %7860 = vmatpush1.msra.mxu0 0.0
        %7861 = vmatprep.subr.mxu0 0.0
        %7862 = vmatpush1.msra.mxu0 0.0
        %7863 = vmatprep.subr.mxu0 0.0
        %7864 = vmatpush1.msra.mxu0 0.0
        %7865 = vmatprep.subr.mxu0 0.0
        %7866 = vmatpush1.msra.mxu0 0.0
        %7867 = vmatprep.subr.mxu0 0.0
        %7868 = vmatpush1.msra.mxu0 0.0
        %7869 = vmatprep.subr.mxu0 0.0
        %7870 = vmatpush1.msra.mxu0 0.0
        %7871 = vmatprep.subr.mxu0 0.0
        %7872 = vmatpush1.msra.mxu0 0.0
        %7873 = vmatprep.subr.mxu0 0.0
        %7874 = vmatpush1.msra.mxu0 0.0
        %7875 = vmatprep.subr.mxu0 0.0
        %7876 = vmatpush1.msra.mxu0 0.0
        %7877 = vmatprep.subr.mxu0 0.0
        %7878 = vmatpush1.msra.mxu0 0.0
        %7879 = vmatprep.subr.mxu0 0.0
        %7880 = vmatpush1.msra.mxu0 0.0
        %7881 = vmatprep.subr.mxu0 0.0
        %7882 = vmatpush1.msra.mxu0 0.0
        %7883 = vmatprep.subr.mxu0 0.0
        %7884 = vmatpush1.msra.mxu0 0.0
        %7885 = vmatprep.subr.mxu0 0.0
        %7886 = vmatpush1.msra.mxu0 0.0
        %7887 = vmatprep.subr.mxu0 0.0
        %7888 = vmatpush1.msra.mxu0 0.0
        %7889 = vmatprep.subr.mxu0 0.0
        %7890 = vmatpush1.msra.mxu0 0.0
        %7891 = vmatprep.mubr.f32.mxu0 0.0
        %7892 = vmatmul.mubr.f32.gmra.mrb[0].mxu0 %v7286
        %v7893 = vpop.f32.mrb[0].mxu0
        %v7894 = vadd.f32 %v7518, %v7893
        %v7895 = vpop.f32.mrb[0].mxu0
        %v7896 = vadd.f32 %v7522, %v7895
        %7897 = vdwg.mxu0
        %7898 = vmatprep.subr.mxu0 %v7298
        %7899 = vmatpush1.msra.mxu0 %v7297
        %7900 = vmatprep.subr.mxu0 %v7310
        %7901 = vmatpush1.msra.mxu0 %v7309
        %7902 = vmatprep.subr.mxu0 %v7322
        %7903 = vmatpush1.msra.mxu0 %v7321
        %7904 = vmatprep.subr.mxu0 %v7334
        %7905 = vmatpush1.msra.mxu0 %v7333
        %7906 = vmatprep.subr.mxu0 %v7346
        %7907 = vmatpush1.msra.mxu0 %v7345
        %7908 = vmatprep.subr.mxu0 %v7358
        %7909 = vmatpush1.msra.mxu0 %v7357
        %7910 = vmatprep.subr.mxu0 %v7370
        %7911 = vmatpush1.msra.mxu0 %v7369
        %7912 = vmatprep.subr.mxu0 %v7382
        %7913 = vmatpush1.msra.mxu0 %v7381
        %7914 = vmatprep.subr.mxu0 %v7394
        %7915 = vmatpush1.msra.mxu0 %v7393
        %7916 = vmatprep.subr.mxu0 %v7406
        %7917 = vmatpush1.msra.mxu0 %v7405
        %7918 = vmatprep.subr.mxu0 %v7418
        %7919 = vmatpush1.msra.mxu0 %v7417
        %7920 = vmatprep.subr.mxu0 %v7430
        %7921 = vmatpush1.msra.mxu0 %v7429
        %7922 = vmatprep.subr.mxu0 %v7442
        %7923 = vmatpush1.msra.mxu0 %v7441
        %7924 = vmatprep.subr.mxu0 %v7454
        %7925 = vmatpush1.msra.mxu0 %v7453
        %7926 = vmatprep.subr.mxu0 %v7466
        %7927 = vmatpush1.msra.mxu0 %v7465
        %7928 = vmatprep.subr.mxu0 %v7478
        %7929 = vmatpush1.msra.mxu0 %v7477
        %7930 = vmatprep.subr.mxu0 0.0
        %7931 = vmatpush1.msra.mxu0 0.0
        %7932 = vmatprep.subr.mxu0 0.0
        %7933 = vmatpush1.msra.mxu0 0.0
        %7934 = vmatprep.subr.mxu0 0.0
        %7935 = vmatpush1.msra.mxu0 0.0
        %7936 = vmatprep.subr.mxu0 0.0
        %7937 = vmatpush1.msra.mxu0 0.0
        %7938 = vmatprep.subr.mxu0 0.0
        %7939 = vmatpush1.msra.mxu0 0.0
        %7940 = vmatprep.subr.mxu0 0.0
        %7941 = vmatpush1.msra.mxu0 0.0
        %7942 = vmatprep.subr.mxu0 0.0
        %7943 = vmatpush1.msra.mxu0 0.0
        %7944 = vmatprep.subr.mxu0 0.0
        %7945 = vmatpush1.msra.mxu0 0.0
        %7946 = vmatprep.subr.mxu0 0.0
        %7947 = vmatpush1.msra.mxu0 0.0
        %7948 = vmatprep.subr.mxu0 0.0
        %7949 = vmatpush1.msra.mxu0 0.0
        %7950 = vmatprep.subr.mxu0 0.0
        %7951 = vmatpush1.msra.mxu0 0.0
        %7952 = vmatprep.subr.mxu0 0.0
        %7953 = vmatpush1.msra.mxu0 0.0
        %7954 = vmatprep.subr.mxu0 0.0
        %7955 = vmatpush1.msra.mxu0 0.0
        %7956 = vmatprep.subr.mxu0 0.0
        %7957 = vmatpush1.msra.mxu0 0.0
        %7958 = vmatprep.subr.mxu0 0.0
        %7959 = vmatpush1.msra.mxu0 0.0
        %7960 = vmatprep.subr.mxu0 0.0
        %7961 = vmatpush1.msra.mxu0 0.0
        %7962 = vmatprep.mubr.f32.mxu0 0.0
        %7963 = vmatmul.mubr.f32.gmra.mrb[0].mxu0 %v7286
        %v7964 = vpop.f32.mrb[0].mxu0
        %v7965 = vadd.f32 %v7526, %v7964
        %v7966 = vpop.f32.mrb[0].mxu0
        %v7967 = vadd.f32 %v7530, %v7966
        %7968 = vdwg.mxu0
        %v7969 = vsub.f32 0.0, %v7610
        %v7970 = vsub.f32 0.0, %v7612
        %v7971 = vsub.f32 0.0, %v7681
        %v7972 = vsub.f32 0.0, %v7683
        %v7973 = vsub.f32 0.0, %v7752
        %v7974 = vsub.f32 0.0, %v7754
        %v7975 = vsub.f32 0.0, %v7823
        %v7976 = vsub.f32 0.0, %v7825
        %v7977 = vsub.f32 0.0, %v7894
        %v7978 = vsub.f32 0.0, %v7896
        %v7979 = vsub.f32 0.0, %v7965
        %v7980 = vsub.f32 0.0, %v7967
        %v7981 = vmul.f32 %v7969, 1.442695
        %v7982 = vpow.pop %v7981
        %v7983 = vmul.f32 %v7970, 1.442695
        %v7984 = vpow.pop %v7983
        %v7985 = vmul.f32 %v7971, 1.442695
        %v7986 = vpow.pop %v7985
        %v7987 = vmul.f32 %v7972, 1.442695
        %v7988 = vpow.pop %v7987
        %v7989 = vmul.f32 %v7973, 1.442695
        %v7990 = vpow.pop %v7989
        %v7991 = vmul.f32 %v7974, 1.442695
        %v7992 = vpow.pop %v7991
        %v7993 = vmul.f32 %v7975, 1.442695
        %v7994 = vpow.pop %v7993
        %v7995 = vmul.f32 %v7976, 1.442695
        %v7996 = vpow.pop %v7995
        %v7997 = vmul.f32 %v7977, 1.442695
        %v7998 = vpow.pop %v7997
        %v7999 = vmul.f32 %v7978, 1.442695
        %v8000 = vpow.pop %v7999
        %v8001 = vmul.f32 %v7979, 1.442695
        %v8002 = vpow.pop %v8001
        %v8003 = vmul.f32 %v7980, 1.442695
        %v8004 = vpow.pop %v8003
        %v8005 = vadd.f32 %v7982, 1.0
        %v8006 = vadd.f32 %v7984, 1.0
        %v8007 = vadd.f32 %v7986, 1.0
        %v8008 = vadd.f32 %v7988, 1.0
        %v8009 = vadd.f32 %v7990, 1.0
        %v8010 = vadd.f32 %v7992, 1.0
        %v8011 = vadd.f32 %v7994, 1.0
        %v8012 = vadd.f32 %v7996, 1.0
        %v8013 = vadd.f32 %v7998, 1.0
        %v8014 = vadd.f32 %v8000, 1.0
        %v8015 = vadd.f32 %v8002, 1.0
        %v8016 = vadd.f32 %v8004, 1.0
        %v8017 = vrcp.pop %v8005
        %v8018 = vmul.f32 1.0, %v8017
        %v8019 = vrcp.pop %v8006
        %v8020 = vmul.f32 1.0, %v8019
        %v8021 = vrcp.pop %v8007
        %v8022 = vmul.f32 1.0, %v8021
        %v8023 = vrcp.pop %v8008
        %v8024 = vmul.f32 1.0, %v8023
        %v8025 = vrcp.pop %v8009
        %v8026 = vmul.f32 1.0, %v8025
        %v8027 = vrcp.pop %v8010
        %v8028 = vmul.f32 1.0, %v8027
        %v8029 = vrcp.pop %v8011
        %v8030 = vmul.f32 1.0, %v8029
        %v8031 = vrcp.pop %v8012
        %v8032 = vmul.f32 1.0, %v8031
        %v8033 = vrcp.pop %v8013
        %v8034 = vmul.f32 1.0, %v8033
        %v8035 = vrcp.pop %v8014
        %v8036 = vmul.f32 1.0, %v8035
        %v8037 = vrcp.pop %v8015
        %v8038 = vmul.f32 1.0, %v8037
        %v8039 = vrcp.pop %v8016
        %v8040 = vmul.f32 1.0, %v8039
        %v8053 = vcombine.low %v8018, %v8020
        %v8054 = vcombine.low %v8022, %v8024
        %v8055 = vcombine.low %v8026, %v8028
        %v8056 = vcombine.low %v8030, %v8032
        %v8058 = vunpack.c.l.s4 1966171168
        %v8059 = vunpack.c.0.s8 %v8058
        %v8060 = vlaneseq
        %v8061 = vshrl.u32 %v8060, 7
        %v8062 = vsub.s32 %v8059, %v8061
        %v8063 = vrot.slane %v8053, %v8062
        %v8065 = vunpack.c.l.s4 1966171168
        %v8066 = vunpack.c.0.s8 %v8065
        %v8067 = vlaneseq
        %v8068 = vshrl.u32 %v8067, 7
        %v8069 = vsub.s32 %v8066, %v8068
        %v8070 = vrot.slane %v8054, %v8069
        %v8072 = vunpack.c.l.s4 1966171168
        %v8073 = vunpack.c.0.s8 %v8072
        %v8074 = vlaneseq
        %v8075 = vshrl.u32 %v8074, 7
        %v8076 = vsub.s32 %v8073, %v8075
        %v8077 = vrot.slane %v8055, %v8076
        %v8079 = vunpack.c.l.s4 1966171168
        %v8080 = vunpack.c.0.s8 %v8079
        %v8081 = vlaneseq
        %v8082 = vshrl.u32 %v8081, 7
        %v8083 = vsub.s32 %v8080, %v8082
        %v8084 = vrot.slane %v8056, %v8083
        %v8085 = vcombine.low %v8063, %v8070
        %v8086 = vcombine.low %v8077, %v8084
        %v8088 = vunpack.c.l.s4 1966171168
        %v8089 = vunpack.c.0.s8 %v8088
        %v8090 = vlaneseq
        %v8091 = vshrl.u32 %v8090, 7
        %v8092 = vsub.s32 %v8089, %v8091
        %v8093 = vrot.slane %v8085, %v8092
        %v8095 = vunpack.c.l.s4 1966171168
        %v8096 = vunpack.c.0.s8 %v8095
        %v8097 = vlaneseq
        %v8098 = vshrl.u32 %v8097, 7
        %v8099 = vsub.s32 %v8096, %v8098
        %v8100 = vrot.slane %v8086, %v8099
        %v8101 = vcombine.low %v8093, %v8100
        %v8102 = vcombine.low %v8034, %v8036
        %v8103 = vcombine.low %v8038, %v8040
        %v8105 = vunpack.c.l.s4 1966171168
        %v8106 = vunpack.c.0.s8 %v8105
        %v8107 = vlaneseq
        %v8108 = vshrl.u32 %v8107, 7
        %v8109 = vsub.s32 %v8106, %v8108
        %v8110 = vrot.slane %v8102, %v8109
        %v8112 = vunpack.c.l.s4 1966171168
        %v8113 = vunpack.c.0.s8 %v8112
        %v8114 = vlaneseq
        %v8115 = vshrl.u32 %v8114, 7
        %v8116 = vsub.s32 %v8113, %v8115
        %v8117 = vrot.slane %v8103, %v8116
        %v8118 = vcombine.low %v8110, %v8117
        %v8120 = vunpack.c.l.s4 1966171168
        %v8121 = vunpack.c.0.s8 %v8120
        %v8122 = vlaneseq
        %v8123 = vshrl.u32 %v8122, 7
        %v8124 = vsub.s32 %v8121, %v8123
        %v8125 = vrot.slane %v8118, %v8124
        %8128 = vst [vmem:[%s541] sm:$0xff] %v8101
        %v8129 = vlaneseq
        %vm8130 = vcmp.ge.s32.totalorder %v8129, 0
        %vm8131 = vcmp.lt.s32.totalorder %v8129, 512
        %vm8132 = vmand %vm8130, %vm8131
        %8133 = vst.msk [vmem:[%s541 + $0x8] sm:$0xf] %vm8132, %v8125
        %s8134 = sand.u32 %s401, 1
        %s8135 = scalar_lea.sflag [#allocation8], %s8134
        %s8136 = sand.u32 %s401, 1
        %s8137 = smul.addr %s8136, 12
        %s8138 = scalar_lea.vmem [#allocation7], %s8137
        // Predicated region
        $region89: #{tpu_custom_call.1} parent=87 // pred_check
          %p8139 = pneg %p411
        $region90: #{tpu_custom_call.1} parent=87 // pred_check_branch
          %8141 = sbr.rel (%p8139) target = $region92
        $region91: #{tpu_custom_call.1} parent=87 // pred_region
          %s8143 = ssub.s32 192, 192
          %8144 = vsyncadd %s8135, %s8143
          %s8145 = smul.addr %s31, 12
          %s8146 = smul.addr %s8145, 16
          %s8147 = scalar_lea.hbm %s17, %s8146
          %s8149 = sshll.u32 %s8138, 4
          %s8150 = int_to_ptr.vmem [resolvable:$true] %s8149
          %8152 = dma.vmem_to_hbm [thread:$0]  %s8150, 192, %s8147, %s8135
        $region92: #{tpu_custom_call.1} parent=87 // pred_fallthru
          _
      $region88: #{tpu_custom_call.1} parent=5 // pred_fallthru
        _
      %p8153 = scmp.le.s32.totalorder 2, %s26
      // Predicated region
      $region93: #{tpu_custom_call.1} parent=5 // pred_check
        %p8154 = pneg %p8153
      $region94: #{tpu_custom_call.1} parent=5 // pred_check_branch
        %8156 = sbr.rel (%p8154) target = $region96
      $region95: #{tpu_custom_call.1} parent=5 // pred_region
        %s8157 = ssub.s32 %s26, 2
        // Predicated region
        $region97: #{tpu_custom_call.1} parent=95 // pred_check
          %p8158 = pneg %p417
        $region98: #{tpu_custom_call.1} parent=95 // pred_check_branch
          %8160 = sbr.rel (%p8158) target = $region100
        $region99: #{tpu_custom_call.1} parent=95 // pred_region
          %s8161 = sand.u32 %s402, 1
          %s8162 = scalar_lea.sflag [#allocation8], %s8161
          %s8163 = sand.u32 %s402, 1
          %s8164 = smul.addr %s8163, 12
          %s8165 = scalar_lea.vmem [#allocation7], %s8164
          %8166 = dma.done %s8162, 192
        $region100: #{tpu_custom_call.1} parent=95 // pred_fallthru
          _
      $region96: #{tpu_custom_call.1} parent=5 // pred_fallthru
        _
    $region6: #{tpu_custom_call.1} parent=1 // loop_footer
      %s30 = sadd.s32 1, %s26
    $region7: #{tpu_custom_call.1} parent=1 // loop_footer_branch
      %25 = sbr.rel target = $region3
    $region8: #{tpu_custom_call.1} parent=1 // loop_exit
      _
    %8167 = vsyncpa [#allocation8], 1
    %s8168 = scalar_lea.sflag [#allocation8], 1
    %8169 = vsyncpa %s8168, 1

</llo_original>
